<compile_context>
chip_gen: v5e
topology: v5e:2x2
jax: 0.10.0
libtpu: 0.0.40
codegen_flags: <defaults>
</compile_context>

<pallas_src>
import functools

import numpy as np
import jax
import jax.numpy as jnp
from jax import lax
from jax.experimental import pallas as pl
from jax.experimental.pallas import tpu as pltpu

EPS = 1e-5  # PyTorch InstanceNorm3d default eps


# ------------------------------ host-side helpers -----------------------------

def _pick_samples_per_step(n, max_b=8):
    """Largest divisor of n (<= max_b) that still leaves a grid of >= 2 steps
    (keeps both v7x TensorCores busy); falls back to the largest divisor."""
    divs = [b for b in range(1, min(max_b, n) + 1) if n % b == 0]
    multi = [b for b in divs if n // b >= 2]
    return max(multi) if multi else max(divs)


def _make_tap_masks(C, D, H, W):
    """(27*C, P) 0/1 float32 mask; rows tap*C..tap*C+C for tap = kd*9+kh*3+kw.

    Encodes zero-padding validity of each 3x3x3 tap at every flattened spatial
    position.  Built once on the host and passed as a resident VMEM constant so
    no mask arithmetic / broadcasts are emitted per tap inside the kernel."""
    P = D * H * W
    idx = np.arange(P)
    d = idx // (H * W)
    h = (idx // W) % H
    w = idx % W

    def valid(coord, extent, k):
        if k == 0:
            return coord >= 1
        if k == 2:
            return coord <= extent - 2
        return np.ones(P, dtype=bool)

    blocks = []
    for kd in range(3):
        for kh in range(3):
            for kw in range(3):
                m = valid(d, D, kd) & valid(h, H, kh) & valid(w, W, kw)
                blocks.append(np.repeat(m[None, :].astype(np.float32), C, axis=0))
    return np.concatenate(blocks, axis=0)


# -------------------------------- Pallas kernel --------------------------------

def resnet_block_kernel(x_ref, w1_ref, w2_ref, mask_ref, ones_ref,
                        o_ref, s_ref, xpad_ref, *, D, H, W, PAD):
    """Fused ResnetBlock for a block of B samples.

    x_ref   : (B, C, P)       P = D*H*W (lane-dense per sample)
    w*_ref  : (C, KP)         im2col weights, column = tap*C + cin, zero-padded K
    mask_ref: (27*C, P)       0/1 tap-validity mask (resident constant)
    ones_ref: (P, 128)        ones, RHS for MXU-based IN reductions (resident)
    o_ref   : (B, C, P)       out = x + IN(conv2(ReLU(IN(conv1(x)))))
    s_ref   : (KP, P)         VMEM im2col scratch (reused for both convs)
    xpad_ref: (C, P + 2*PAD)  zero-haloed slab for the shifted tap reads
    """
    B, C, P = o_ref.shape
    HW = H * W
    K27 = 27 * C
    KP = s_ref.shape[0]
    inv_p = 1.0 / float(P)

    # Zero the halo (and the K padding rows) once per grid step; the centre /
    # valid rows are rewritten before every use, so these stay zero.
    xpad_ref[:, 0:PAD] = jnp.zeros((C, PAD), jnp.float32)
    xpad_ref[:, PAD + P:] = jnp.zeros((C, PAD), jnp.float32)
    if KP > K27:
        s_ref[K27:, :] = jnp.zeros((KP - K27, P), jnp.float32)

    w1 = w1_ref[...]
    w2 = w2_ref[...]
    ones_kn = ones_ref[...]

    def fill_taps(src):
        """im2col: 27 shifted + border-masked copies of src (C,P) into s_ref."""
        xpad_ref[:, PAD:PAD + P] = src
        tap = 0
        for kd in range(3):
            for kh in range(3):
                for kw in range(3):
                    off = (kd - 1) * HW + (kh - 1) * W + (kw - 1)
                    r0 = tap * C
                    shifted = xpad_ref[:, PAD + off:PAD + off + P]
                    if kh == 1 and kw == 1:
                        # Only the d-axis can overrun for these taps and that
                        # lands in the zero halo -> no mask multiply needed.
                        s_ref[r0:r0 + C, :] = shifted
                    else:
                        s_ref[r0:r0 + C, :] = shifted * mask_ref[r0:r0 + C, :]
                    tap += 1

    def inorm(y):
        """InstanceNorm3d(affine=False) over the lane (spatial) axis of (C,P).

        Statistics go through the (idle) MXU so the XLU stays free for the
        im2col shifts.  One-pass variance is fine here: the conv outputs are
        ~zero-mean (bias dropped, see wrapper)."""
        s1 = jnp.dot(y, ones_kn, preferred_element_type=jnp.float32)[:, 0:1]
        s2 = jnp.dot(y * y, ones_kn, preferred_element_type=jnp.float32)[:, 0:1]
        mean = s1 * inv_p
        var = s2 * inv_p - mean * mean          # biased variance (PyTorch IN)
        return (y - mean) * lax.rsqrt(var + EPS)

    for b in range(B):                          # static unroll: B samples per step
        x = x_ref[b]
        # ---- stage 1: conv1 -> IN -> ReLU (never leaves VMEM) ----
        fill_taps(x)
        y = jnp.dot(w1, s_ref[...], preferred_element_type=jnp.float32)
        h = jnp.maximum(inorm(y), 0.0)
        # ---- stage 2: conv2 -> IN -> residual add ----
        fill_taps(h)
        z = jnp.dot(w2, s_ref[...], preferred_element_type=jnp.float32)
        o_ref[b] = (x + inorm(z)).astype(o_ref.dtype)


# ----------------------------------- wrapper -----------------------------------

def resnet_block_forward(x_ncdhw, w1, b1, w2, b2):
    """ResnetBlock forward.  x: (N,C,D,H,W); w*: (C,C,3,3,3); b*: (C,).

    The conv biases are accepted for API parity but never computed:
    InstanceNorm3d(affine=False) immediately follows each conv, so a per-channel
    constant bias cancels exactly in the mean subtraction."""
    del b1, b2
    N, C, D, H, W = x_ncdhw.shape
    P = D * H * W
    # Shifted-slab im2col needs the volume to exceed the largest tap offset.
    assert P > H * W + W + 1, "volume too small for the shifted-slab im2col"

    B = _pick_samples_per_step(N)
    G = N // B
    PAD = -(-(H * W + W + 1) // 128) * 128          # halo, lane-aligned
    KP = -(-(27 * C) // 128) * 128                  # contraction dim, lane-aligned

    # Free reshape: keep native NCDHW order, just flatten the spatial dims.
    x2 = x_ncdhw.reshape(N, C, P).astype(jnp.float32)

    # (O, I, kd, kh, kw) -> (O, kd, kh, kw, I) -> (O, 27*I), then zero-pad K.
    w1m = jnp.transpose(w1, (0, 2, 3, 4, 1)).reshape(C, 27 * C).astype(jnp.float32)
    w2m = jnp.transpose(w2, (0, 2, 3, 4, 1)).reshape(C, 27 * C).astype(jnp.float32)
    w1m = jnp.pad(w1m, ((0, 0), (0, KP - 27 * C)))
    w2m = jnp.pad(w2m, ((0, 0), (0, KP - 27 * C)))

    mask = jnp.asarray(_make_tap_masks(C, D, H, W))      # (27C, P) resident
    ones_kn = jnp.ones((P, 128), jnp.float32)            # MXU reduction RHS

    kernel = functools.partial(resnet_block_kernel, D=D, H=H, W=W, PAD=PAD)

    # VMEM: im2col (KP,P)=512K + mask 432K + ones 256K + haloed slab 24K + I/O
    # blocks -> ~2.5 MiB total; well under the 16/32 MiB scoped defaults
    # (and v7x's 64 MiB physical VMEM).
    out = pl.pallas_call(
        kernel,
        out_shape=jax.ShapeDtypeStruct((N, C, P), jnp.float32),
        grid=(G,),
        in_specs=[
            pl.BlockSpec((B, C, P), lambda g: (g, 0, 0)),     # x (B samples/step)
            pl.BlockSpec((C, KP), lambda g: (0, 0)),          # w1 (resident)
            pl.BlockSpec((C, KP), lambda g: (0, 0)),          # w2 (resident)
            pl.BlockSpec((27 * C, P), lambda g: (0, 0)),      # tap masks (resident)
            pl.BlockSpec((P, 128), lambda g: (0, 0)),         # ones (resident)
        ],
        out_specs=pl.BlockSpec((B, C, P), lambda g: (g, 0, 0)),
        scratch_shapes=[
            pltpu.VMEM((KP, P), jnp.float32),                 # im2col scratch
            pltpu.VMEM((C, P + 2 * PAD), jnp.float32),        # zero-haloed slab
        ],
        compiler_params=pltpu.CompilerParams(
            dimension_semantics=("parallel",)),
    )(x2, w1m, w2m, mask, ones_kn)

    return out.reshape(N, C, D, H, W)


# ------------------------------ pure-JAX reference ------------------------------

def resnet_block_reference(x, w1, b1, w2, b2):
    dn = ("NCDHW", "OIDHW", "NCDHW")

    def conv(z, w, b):
        o = lax.conv_general_dilated(z, w, (1, 1, 1),
                                     [(1, 1), (1, 1), (1, 1)],
                                     dimension_numbers=dn,
                                     precision=lax.Precision.HIGHEST)
        return o + b.reshape(1, -1, 1, 1, 1)

    def inorm(z):
        m = jnp.mean(z, axis=(2, 3, 4), keepdims=True)
        v = jnp.mean((z - m) ** 2, axis=(2, 3, 4), keepdims=True)
        return (z - m) * lax.rsqrt(v + EPS)

    h = jnp.maximum(inorm(conv(x, w1, b1)), 0.0)
    return x + inorm(conv(h, w2, b2))


# ------------------------------------- main -------------------------------------

if __name__ == "__main__":
    # dim=8 ResnetBlock, 4 samples -> grid=(2,), 2 samples per grid step.
    N, C, D, H, W = 4, 8, 8, 8, 8

    key = jax.random.PRNGKey(0)
    kx, kw1, kb1, kw2, kb2 = jax.random.split(key, 5)
    x = jax.random.normal(kx, (N, C, D, H, W), jnp.float32)
    w1 = jax.random.normal(kw1, (C, C, 3, 3, 3), jnp.float32) * 0.1
    b1 = jax.random.normal(kb1, (C,), jnp.float32) * 0.1
    w2 = jax.random.normal(kw2, (C, C, 3, 3, 3), jnp.float32) * 0.1
    b2 = jax.random.normal(kb2, (C,), jnp.float32) * 0.1

    fwd = jax.jit(resnet_block_forward)
    out = jax.block_until_ready(fwd(x, w1, b1, w2, b2))
    ref = jax.block_until_ready(resnet_block_reference(x, w1, b1, w2, b2))

    assert out.shape == (N, C, D, H, W), out.shape
    err = float(jnp.max(jnp.abs(out - ref)))
    # Tolerance absorbs the MXU's bf16-pass emulation of f32 matmuls on TPU
    # (error is ~1e-5 on full-precision / interpret paths).
    assert err < 2e-2, f"max abs error {err}"
    print("KERNEL_OK")
</pallas_src>

<mosaic_0001>
module attributes {stable_mosaic.version = 11 : i64} {
  func.func @resnet_block_kernel(%arg0: i32, %arg1: memref<2x8x512xf32, #tpu.memory_space<vmem>>, %arg2: memref<8x256xf32, #tpu.memory_space<vmem>>, %arg3: memref<8x256xf32, #tpu.memory_space<vmem>>, %arg4: memref<216x512xf32, #tpu.memory_space<vmem>>, %arg5: memref<512x128xf32, #tpu.memory_space<vmem>>, %arg6: memref<2x8x512xf32, #tpu.memory_space<vmem>>, %arg7: memref<256x512xf32, #tpu.memory_space<vmem>>, %arg8: memref<8x768xf32, #tpu.memory_space<vmem>>) attributes {dimension_semantics = [#tpu.dimension_semantics<parallel>], iteration_bounds = array<i64: 2>, scalar_prefetch = 0 : i64, scratch_operands = 2 : i64, tpu.core_type = #tpu.core_type<tc>, window_params = [{transform_indices = @transform_0, window_bounds = array<i64: 2, 8, 512>}, {pipeline_mode = #tpu.pipeline_mode<synchronous>, transform_indices = @transform_1, window_bounds = array<i64: 8, 256>}, {pipeline_mode = #tpu.pipeline_mode<synchronous>, transform_indices = @transform_2, window_bounds = array<i64: 8, 256>}, {pipeline_mode = #tpu.pipeline_mode<synchronous>, transform_indices = @transform_3, window_bounds = array<i64: 216, 512>}, {pipeline_mode = #tpu.pipeline_mode<synchronous>, transform_indices = @transform_4, window_bounds = array<i64: 512, 128>}, {transform_indices = @transform_5, window_bounds = array<i64: 2, 8, 512>}]} {
    %cst = arith.constant 0.000000e+00 : f32
    %0 = vector.broadcast %cst : f32 to vector<8x128xf32>
    %c0 = arith.constant 0 : index
    %c0_0 = arith.constant 0 : index
    %1 = vector.load %arg8[%c0, %c0_0] : memref<8x768xf32, #tpu.memory_space<vmem>>, vector<8x128xf32>
    tpu.vector_store %arg8[%c0, %c0_0], %0 {strides = array<i32>} : memref<8x768xf32, #tpu.memory_space<vmem>>, vector<8x128xf32>,
    %cst_1 = arith.constant 0.000000e+00 : f32
    %2 = vector.broadcast %cst_1 : f32 to vector<8x128xf32>
    %c0_2 = arith.constant 0 : index
    %c640 = arith.constant 640 : index
    %3 = vector.load %arg8[%c0_2, %c640] : memref<8x768xf32, #tpu.memory_space<vmem>>, vector<8x128xf32>
    tpu.vector_store %arg8[%c0_2, %c640], %2 {strides = array<i32>} : memref<8x768xf32, #tpu.memory_space<vmem>>, vector<8x128xf32>,
    %cst_3 = arith.constant 0.000000e+00 : f32
    %4 = vector.broadcast %cst_3 : f32 to vector<40x512xf32>
    %c216 = arith.constant 216 : index
    %c0_4 = arith.constant 0 : index
    %5 = vector.load %arg7[%c216, %c0_4] : memref<256x512xf32, #tpu.memory_space<vmem>>, vector<40x512xf32>
    tpu.vector_store %arg7[%c216, %c0_4], %4 {strides = array<i32>} : memref<256x512xf32, #tpu.memory_space<vmem>>, vector<40x512xf32>,
    %c0_5 = arith.constant 0 : index
    %c0_6 = arith.constant 0 : index
    %6 = vector.load %arg2[%c0_5, %c0_6] : memref<8x256xf32, #tpu.memory_space<vmem>>, vector<8x256xf32>
    %c0_7 = arith.constant 0 : index
    %c0_8 = arith.constant 0 : index
    %7 = vector.load %arg3[%c0_7, %c0_8] : memref<8x256xf32, #tpu.memory_space<vmem>>, vector<8x256xf32>
    %c0_9 = arith.constant 0 : index
    %c0_10 = arith.constant 0 : index
    %8 = vector.load %arg5[%c0_9, %c0_10] : memref<512x128xf32, #tpu.memory_space<vmem>>, vector<512x128xf32>
    %c0_11 = arith.constant 0 : index
    %c0_12 = arith.constant 0 : index
    %c0_13 = arith.constant 0 : index
    %9 = vector.load %arg1[%c0_11, %c0_12, %c0_13] : memref<2x8x512xf32, #tpu.memory_space<vmem>>, vector<1x8x512xf32>
    %10 = vector.shape_cast %9 : vector<1x8x512xf32> to vector<8x512xf32>
    %c0_14 = arith.constant 0 : index
    %c128 = arith.constant 128 : index
    %11 = vector.load %arg8[%c0_14, %c128] : memref<8x768xf32, #tpu.memory_space<vmem>>, vector<8x512xf32>
    tpu.vector_store %arg8[%c0_14, %c128], %10 {strides = array<i32>} : memref<8x768xf32, #tpu.memory_space<vmem>>, vector<8x512xf32>,
    %c0_15 = arith.constant 0 : index
    %c55 = arith.constant 55 : index
    %12 = vector.load %arg8[%c0_15, %c55] : memref<8x768xf32, #tpu.memory_space<vmem>>, vector<8x512xf32>
    %c0_16 = arith.constant 0 : index
    %c0_17 = arith.constant 0 : index
    %13 = vector.load %arg4[%c0_16, %c0_17] : memref<216x512xf32, #tpu.memory_space<vmem>>, vector<8x512xf32>
    %14 = arith.mulf %12, %13 : vector<8x512xf32>
    %c0_18 = arith.constant 0 : index
    %c0_19 = arith.constant 0 : index
    %15 = vector.load %arg7[%c0_18, %c0_19] : memref<256x512xf32, #tpu.memory_space<vmem>>, vector<8x512xf32>
    tpu.vector_store %arg7[%c0_18, %c0_19], %14 {strides = array<i32>} : memref<256x512xf32, #tpu.memory_space<vmem>>, vector<8x512xf32>,
    %c0_20 = arith.constant 0 : index
    %c56 = arith.constant 56 : index
    %16 = vector.load %arg8[%c0_20, %c56] : memref<8x768xf32, #tpu.memory_space<vmem>>, vector<8x512xf32>
    %c8 = arith.constant 8 : index
    %c0_21 = arith.constant 0 : index
    %17 = vector.load %arg4[%c8, %c0_21] : memref<216x512xf32, #tpu.memory_space<vmem>>, vector<8x512xf32>
    %18 = arith.mulf %16, %17 : vector<8x512xf32>
    %c8_22 = arith.constant 8 : index
    %c0_23 = arith.constant 0 : index
    %19 = vector.load %arg7[%c8_22, %c0_23] : memref<256x512xf32, #tpu.memory_space<vmem>>, vector<8x512xf32>
    tpu.vector_store %arg7[%c8_22, %c0_23], %18 {strides = array<i32>} : memref<256x512xf32, #tpu.memory_space<vmem>>, vector<8x512xf32>,
    %c0_24 = arith.constant 0 : index
    %c57 = arith.constant 57 : index
    %20 = vector.load %arg8[%c0_24, %c57] : memref<8x768xf32, #tpu.memory_space<vmem>>, vector<8x512xf32>
    %c16 = arith.constant 16 : index
    %c0_25 = arith.constant 0 : index
    %21 = vector.load %arg4[%c16, %c0_25] : memref<216x512xf32, #tpu.memory_space<vmem>>, vector<8x512xf32>
    %22 = arith.mulf %20, %21 : vector<8x512xf32>
    %c16_26 = arith.constant 16 : index
    %c0_27 = arith.constant 0 : index
    %23 = vector.load %arg7[%c16_26, %c0_27] : memref<256x512xf32, #tpu.memory_space<vmem>>, vector<8x512xf32>
    tpu.vector_store %arg7[%c16_26, %c0_27], %22 {strides = array<i32>} : memref<256x512xf32, #tpu.memory_space<vmem>>, vector<8x512xf32>,
    %c0_28 = arith.constant 0 : index
    %c63 = arith.constant 63 : index
    %24 = vector.load %arg8[%c0_28, %c63] : memref<8x768xf32, #tpu.memory_space<vmem>>, vector<8x512xf32>
    %c24 = arith.constant 24 : index
    %c0_29 = arith.constant 0 : index
    %25 = vector.load %arg4[%c24, %c0_29] : memref<216x512xf32, #tpu.memory_space<vmem>>, vector<8x512xf32>
    %26 = arith.mulf %24, %25 : vector<8x512xf32>
    %c24_30 = arith.constant 24 : index
    %c0_31 = arith.constant 0 : index
    %27 = vector.load %arg7[%c24_30, %c0_31] : memref<256x512xf32, #tpu.memory_space<vmem>>, vector<8x512xf32>
    tpu.vector_store %arg7[%c24_30, %c0_31], %26 {strides = array<i32>} : memref<256x512xf32, #tpu.memory_space<vmem>>, vector<8x512xf32>,
    %c0_32 = arith.constant 0 : index
    %c64 = arith.constant 64 : index
    %28 = vector.load %arg8[%c0_32, %c64] : memref<8x768xf32, #tpu.memory_space<vmem>>, vector<8x512xf32>
    %c32 = arith.constant 32 : index
    %c0_33 = arith.constant 0 : index
    %29 = vector.load %arg7[%c32, %c0_33] : memref<256x512xf32, #tpu.memory_space<vmem>>, vector<8x512xf32>
    tpu.vector_store %arg7[%c32, %c0_33], %28 {strides = array<i32>} : memref<256x512xf32, #tpu.memory_space<vmem>>, vector<8x512xf32>,
    %c0_34 = arith.constant 0 : index
    %c65 = arith.constant 65 : index
    %30 = vector.load %arg8[%c0_34, %c65] : memref<8x768xf32, #tpu.memory_space<vmem>>, vector<8x512xf32>
    %c40 = arith.constant 40 : index
    %c0_35 = arith.constant 0 : index
    %31 = vector.load %arg4[%c40, %c0_35] : memref<216x512xf32, #tpu.memory_space<vmem>>, vector<8x512xf32>
    %32 = arith.mulf %30, %31 : vector<8x512xf32>
    %c40_36 = arith.constant 40 : index
    %c0_37 = arith.constant 0 : index
    %33 = vector.load %arg7[%c40_36, %c0_37] : memref<256x512xf32, #tpu.memory_space<vmem>>, vector<8x512xf32>
    tpu.vector_store %arg7[%c40_36, %c0_37], %32 {strides = array<i32>} : memref<256x512xf32, #tpu.memory_space<vmem>>, vector<8x512xf32>,
    %c0_38 = arith.constant 0 : index
    %c71 = arith.constant 71 : index
    %34 = vector.load %arg8[%c0_38, %c71] : memref<8x768xf32, #tpu.memory_space<vmem>>, vector<8x512xf32>
    %c48 = arith.constant 48 : index
    %c0_39 = arith.constant 0 : index
    %35 = vector.load %arg4[%c48, %c0_39] : memref<216x512xf32, #tpu.memory_space<vmem>>, vector<8x512xf32>
    %36 = arith.mulf %34, %35 : vector<8x512xf32>
    %c48_40 = arith.constant 48 : index
    %c0_41 = arith.constant 0 : index
    %37 = vector.load %arg7[%c48_40, %c0_41] : memref<256x512xf32, #tpu.memory_space<vmem>>, vector<8x512xf32>
    tpu.vector_store %arg7[%c48_40, %c0_41], %36 {strides = array<i32>} : memref<256x512xf32, #tpu.memory_space<vmem>>, vector<8x512xf32>,
    %c0_42 = arith.constant 0 : index
    %c72 = arith.constant 72 : index
    %38 = vector.load %arg8[%c0_42, %c72] : memref<8x768xf32, #tpu.memory_space<vmem>>, vector<8x512xf32>
    %c56_43 = arith.constant 56 : index
    %c0_44 = arith.constant 0 : index
    %39 = vector.load %arg4[%c56_43, %c0_44] : memref<216x512xf32, #tpu.memory_space<vmem>>, vector<8x512xf32>
    %40 = arith.mulf %38, %39 : vector<8x512xf32>
    %c56_45 = arith.constant 56 : index
    %c0_46 = arith.constant 0 : index
    %41 = vector.load %arg7[%c56_45, %c0_46] : memref<256x512xf32, #tpu.memory_space<vmem>>, vector<8x512xf32>
    tpu.vector_store %arg7[%c56_45, %c0_46], %40 {strides = array<i32>} : memref<256x512xf32, #tpu.memory_space<vmem>>, vector<8x512xf32>,
    %c0_47 = arith.constant 0 : index
    %c73 = arith.constant 73 : index
    %42 = vector.load %arg8[%c0_47, %c73] : memref<8x768xf32, #tpu.memory_space<vmem>>, vector<8x512xf32>
    %c64_48 = arith.constant 64 : index
    %c0_49 = arith.constant 0 : index
    %43 = vector.load %arg4[%c64_48, %c0_49] : memref<216x512xf32, #tpu.memory_space<vmem>>, vector<8x512xf32>
    %44 = arith.mulf %42, %43 : vector<8x512xf32>
    %c64_50 = arith.constant 64 : index
    %c0_51 = arith.constant 0 : index
    %45 = vector.load %arg7[%c64_50, %c0_51] : memref<256x512xf32, #tpu.memory_space<vmem>>, vector<8x512xf32>
    tpu.vector_store %arg7[%c64_50, %c0_51], %44 {strides = array<i32>} : memref<256x512xf32, #tpu.memory_space<vmem>>, vector<8x512xf32>,
    %c0_52 = arith.constant 0 : index
    %c119 = arith.constant 119 : index
    %46 = vector.load %arg8[%c0_52, %c119] : memref<8x768xf32, #tpu.memory_space<vmem>>, vector<8x512xf32>
    %c72_53 = arith.constant 72 : index
    %c0_54 = arith.constant 0 : index
    %47 = vector.load %arg4[%c72_53, %c0_54] : memref<216x512xf32, #tpu.memory_space<vmem>>, vector<8x512xf32>
    %48 = arith.mulf %46, %47 : vector<8x512xf32>
    %c72_55 = arith.constant 72 : index
    %c0_56 = arith.constant 0 : index
    %49 = vector.load %arg7[%c72_55, %c0_56] : memref<256x512xf32, #tpu.memory_space<vmem>>, vector<8x512xf32>
    tpu.vector_store %arg7[%c72_55, %c0_56], %48 {strides = array<i32>} : memref<256x512xf32, #tpu.memory_space<vmem>>, vector<8x512xf32>,
    %c0_57 = arith.constant 0 : index
    %c120 = arith.constant 120 : index
    %50 = vector.load %arg8[%c0_57, %c120] : memref<8x768xf32, #tpu.memory_space<vmem>>, vector<8x512xf32>
    %c80 = arith.constant 80 : index
    %c0_58 = arith.constant 0 : index
    %51 = vector.load %arg4[%c80, %c0_58] : memref<216x512xf32, #tpu.memory_space<vmem>>, vector<8x512xf32>
    %52 = arith.mulf %50, %51 : vector<8x512xf32>
    %c80_59 = arith.constant 80 : index
    %c0_60 = arith.constant 0 : index
    %53 = vector.load %arg7[%c80_59, %c0_60] : memref<256x512xf32, #tpu.memory_space<vmem>>, vector<8x512xf32>
    tpu.vector_store %arg7[%c80_59, %c0_60], %52 {strides = array<i32>} : memref<256x512xf32, #tpu.memory_space<vmem>>, vector<8x512xf32>,
    %c0_61 = arith.constant 0 : index
    %c121 = arith.constant 121 : index
    %54 = vector.load %arg8[%c0_61, %c121] : memref<8x768xf32, #tpu.memory_space<vmem>>, vector<8x512xf32>
    %c88 = arith.constant 88 : index
    %c0_62 = arith.constant 0 : index
    %55 = vector.load %arg4[%c88, %c0_62] : memref<216x512xf32, #tpu.memory_space<vmem>>, vector<8x512xf32>
    %56 = arith.mulf %54, %55 : vector<8x512xf32>
    %c88_63 = arith.constant 88 : index
    %c0_64 = arith.constant 0 : index
    %57 = vector.load %arg7[%c88_63, %c0_64] : memref<256x512xf32, #tpu.memory_space<vmem>>, vector<8x512xf32>
    tpu.vector_store %arg7[%c88_63, %c0_64], %56 {strides = array<i32>} : memref<256x512xf32, #tpu.memory_space<vmem>>, vector<8x512xf32>,
    %c0_65 = arith.constant 0 : index
    %c127 = arith.constant 127 : index
    %58 = vector.load %arg8[%c0_65, %c127] : memref<8x768xf32, #tpu.memory_space<vmem>>, vector<8x512xf32>
    %c96 = arith.constant 96 : index
    %c0_66 = arith.constant 0 : index
    %59 = vector.load %arg4[%c96, %c0_66] : memref<216x512xf32, #tpu.memory_space<vmem>>, vector<8x512xf32>
    %60 = arith.mulf %58, %59 : vector<8x512xf32>
    %c96_67 = arith.constant 96 : index
    %c0_68 = arith.constant 0 : index
    %61 = vector.load %arg7[%c96_67, %c0_68] : memref<256x512xf32, #tpu.memory_space<vmem>>, vector<8x512xf32>
    tpu.vector_store %arg7[%c96_67, %c0_68], %60 {strides = array<i32>} : memref<256x512xf32, #tpu.memory_space<vmem>>, vector<8x512xf32>,
    %c0_69 = arith.constant 0 : index
    %c128_70 = arith.constant 128 : index
    %62 = vector.load %arg8[%c0_69, %c128_70] : memref<8x768xf32, #tpu.memory_space<vmem>>, vector<8x512xf32>
    %c104 = arith.constant 104 : index
    %c0_71 = arith.constant 0 : index
    %63 = vector.load %arg7[%c104, %c0_71] : memref<256x512xf32, #tpu.memory_space<vmem>>, vector<8x512xf32>
    tpu.vector_store %arg7[%c104, %c0_71], %62 {strides = array<i32>} : memref<256x512xf32, #tpu.memory_space<vmem>>, vector<8x512xf32>,
    %c0_72 = arith.constant 0 : index
    %c129 = arith.constant 129 : index
    %64 = vector.load %arg8[%c0_72, %c129] : memref<8x768xf32, #tpu.memory_space<vmem>>, vector<8x512xf32>
    %c112 = arith.constant 112 : index
    %c0_73 = arith.constant 0 : index
    %65 = vector.load %arg4[%c112, %c0_73] : memref<216x512xf32, #tpu.memory_space<vmem>>, vector<8x512xf32>
    %66 = arith.mulf %64, %65 : vector<8x512xf32>
    %c112_74 = arith.constant 112 : index
    %c0_75 = arith.constant 0 : index
    %67 = vector.load %arg7[%c112_74, %c0_75] : memref<256x512xf32, #tpu.memory_space<vmem>>, vector<8x512xf32>
    tpu.vector_store %arg7[%c112_74, %c0_75], %66 {strides = array<i32>} : memref<256x512xf32, #tpu.memory_space<vmem>>, vector<8x512xf32>,
    %c0_76 = arith.constant 0 : index
    %c135 = arith.constant 135 : index
    %68 = vector.load %arg8[%c0_76, %c135] : memref<8x768xf32, #tpu.memory_space<vmem>>, vector<8x512xf32>
    %c120_77 = arith.constant 120 : index
    %c0_78 = arith.constant 0 : index
    %69 = vector.load %arg4[%c120_77, %c0_78] : memref<216x512xf32, #tpu.memory_space<vmem>>, vector<8x512xf32>
    %70 = arith.mulf %68, %69 : vector<8x512xf32>
    %c120_79 = arith.constant 120 : index
    %c0_80 = arith.constant 0 : index
    %71 = vector.load %arg7[%c120_79, %c0_80] : memref<256x512xf32, #tpu.memory_space<vmem>>, vector<8x512xf32>
    tpu.vector_store %arg7[%c120_79, %c0_80], %70 {strides = array<i32>} : memref<256x512xf32, #tpu.memory_space<vmem>>, vector<8x512xf32>,
    %c0_81 = arith.constant 0 : index
    %c136 = arith.constant 136 : index
    %72 = vector.load %arg8[%c0_81, %c136] : memref<8x768xf32, #tpu.memory_space<vmem>>, vector<8x512xf32>
    %c128_82 = arith.constant 128 : index
    %c0_83 = arith.constant 0 : index
    %73 = vector.load %arg4[%c128_82, %c0_83] : memref<216x512xf32, #tpu.memory_space<vmem>>, vector<8x512xf32>
    %74 = arith.mulf %72, %73 : vector<8x512xf32>
    %c128_84 = arith.constant 128 : index
    %c0_85 = arith.constant 0 : index
    %75 = vector.load %arg7[%c128_84, %c0_85] : memref<256x512xf32, #tpu.memory_space<vmem>>, vector<8x512xf32>
    tpu.vector_store %arg7[%c128_84, %c0_85], %74 {strides = array<i32>} : memref<256x512xf32, #tpu.memory_space<vmem>>, vector<8x512xf32>,
    %c0_86 = arith.constant 0 : index
    %c137 = arith.constant 137 : index
    %76 = vector.load %arg8[%c0_86, %c137] : memref<8x768xf32, #tpu.memory_space<vmem>>, vector<8x512xf32>
    %c136_87 = arith.constant 136 : index
    %c0_88 = arith.constant 0 : index
    %77 = vector.load %arg4[%c136_87, %c0_88] : memref<216x512xf32, #tpu.memory_space<vmem>>, vector<8x512xf32>
    %78 = arith.mulf %76, %77 : vector<8x512xf32>
    %c136_89 = arith.constant 136 : index
    %c0_90 = arith.constant 0 : index
    %79 = vector.load %arg7[%c136_89, %c0_90] : memref<256x512xf32, #tpu.memory_space<vmem>>, vector<8x512xf32>
    tpu.vector_store %arg7[%c136_89, %c0_90], %78 {strides = array<i32>} : memref<256x512xf32, #tpu.memory_space<vmem>>, vector<8x512xf32>,
    %c0_91 = arith.constant 0 : index
    %c183 = arith.constant 183 : index
    %80 = vector.load %arg8[%c0_91, %c183] : memref<8x768xf32, #tpu.memory_space<vmem>>, vector<8x512xf32>
    %c144 = arith.constant 144 : index
    %c0_92 = arith.constant 0 : index
    %81 = vector.load %arg4[%c144, %c0_92] : memref<216x512xf32, #tpu.memory_space<vmem>>, vector<8x512xf32>
    %82 = arith.mulf %80, %81 : vector<8x512xf32>
    %c144_93 = arith.constant 144 : index
    %c0_94 = arith.constant 0 : index
    %83 = vector.load %arg7[%c144_93, %c0_94] : memref<256x512xf32, #tpu.memory_space<vmem>>, vector<8x512xf32>
    tpu.vector_store %arg7[%c144_93, %c0_94], %82 {strides = array<i32>} : memref<256x512xf32, #tpu.memory_space<vmem>>, vector<8x512xf32>,
    %c0_95 = arith.constant 0 : index
    %c184 = arith.constant 184 : index
    %84 = vector.load %arg8[%c0_95, %c184] : memref<8x768xf32, #tpu.memory_space<vmem>>, vector<8x512xf32>
    %c152 = arith.constant 152 : index
    %c0_96 = arith.constant 0 : index
    %85 = vector.load %arg4[%c152, %c0_96] : memref<216x512xf32, #tpu.memory_space<vmem>>, vector<8x512xf32>
    %86 = arith.mulf %84, %85 : vector<8x512xf32>
    %c152_97 = arith.constant 152 : index
    %c0_98 = arith.constant 0 : index
    %87 = vector.load %arg7[%c152_97, %c0_98] : memref<256x512xf32, #tpu.memory_space<vmem>>, vector<8x512xf32>
    tpu.vector_store %arg7[%c152_97, %c0_98], %86 {strides = array<i32>} : memref<256x512xf32, #tpu.memory_space<vmem>>, vector<8x512xf32>,
    %c0_99 = arith.constant 0 : index
    %c185 = arith.constant 185 : index
    %88 = vector.load %arg8[%c0_99, %c185] : memref<8x768xf32, #tpu.memory_space<vmem>>, vector<8x512xf32>
    %c160 = arith.constant 160 : index
    %c0_100 = arith.constant 0 : index
    %89 = vector.load %arg4[%c160, %c0_100] : memref<216x512xf32, #tpu.memory_space<vmem>>, vector<8x512xf32>
    %90 = arith.mulf %88, %89 : vector<8x512xf32>
    %c160_101 = arith.constant 160 : index
    %c0_102 = arith.constant 0 : index
    %91 = vector.load %arg7[%c160_101, %c0_102] : memref<256x512xf32, #tpu.memory_space<vmem>>, vector<8x512xf32>
    tpu.vector_store %arg7[%c160_101, %c0_102], %90 {strides = array<i32>} : memref<256x512xf32, #tpu.memory_space<vmem>>, vector<8x512xf32>,
    %c0_103 = arith.constant 0 : index
    %c191 = arith.constant 191 : index
    %92 = vector.load %arg8[%c0_103, %c191] : memref<8x768xf32, #tpu.memory_space<vmem>>, vector<8x512xf32>
    %c168 = arith.constant 168 : index
    %c0_104 = arith.constant 0 : index
    %93 = vector.load %arg4[%c168, %c0_104] : memref<216x512xf32, #tpu.memory_space<vmem>>, vector<8x512xf32>
    %94 = arith.mulf %92, %93 : vector<8x512xf32>
    %c168_105 = arith.constant 168 : index
    %c0_106 = arith.constant 0 : index
    %95 = vector.load %arg7[%c168_105, %c0_106] : memref<256x512xf32, #tpu.memory_space<vmem>>, vector<8x512xf32>
    tpu.vector_store %arg7[%c168_105, %c0_106], %94 {strides = array<i32>} : memref<256x512xf32, #tpu.memory_space<vmem>>, vector<8x512xf32>,
    %c0_107 = arith.constant 0 : index
    %c192 = arith.constant 192 : index
    %96 = vector.load %arg8[%c0_107, %c192] : memref<8x768xf32, #tpu.memory_space<vmem>>, vector<8x512xf32>
    %c176 = arith.constant 176 : index
    %c0_108 = arith.constant 0 : index
    %97 = vector.load %arg7[%c176, %c0_108] : memref<256x512xf32, #tpu.memory_space<vmem>>, vector<8x512xf32>
    tpu.vector_store %arg7[%c176, %c0_108], %96 {strides = array<i32>} : memref<256x512xf32, #tpu.memory_space<vmem>>, vector<8x512xf32>,
    %c0_109 = arith.constant 0 : index
    %c193 = arith.constant 193 : index
    %98 = vector.load %arg8[%c0_109, %c193] : memref<8x768xf32, #tpu.memory_space<vmem>>, vector<8x512xf32>
    %c184_110 = arith.constant 184 : index
    %c0_111 = arith.constant 0 : index
    %99 = vector.load %arg4[%c184_110, %c0_111] : memref<216x512xf32, #tpu.memory_space<vmem>>, vector<8x512xf32>
    %100 = arith.mulf %98, %99 : vector<8x512xf32>
    %c184_112 = arith.constant 184 : index
    %c0_113 = arith.constant 0 : index
    %101 = vector.load %arg7[%c184_112, %c0_113] : memref<256x512xf32, #tpu.memory_space<vmem>>, vector<8x512xf32>
    tpu.vector_store %arg7[%c184_112, %c0_113], %100 {strides = array<i32>} : memref<256x512xf32, #tpu.memory_space<vmem>>, vector<8x512xf32>,
    %c0_114 = arith.constant 0 : index
    %c199 = arith.constant 199 : index
    %102 = vector.load %arg8[%c0_114, %c199] : memref<8x768xf32, #tpu.memory_space<vmem>>, vector<8x512xf32>
    %c192_115 = arith.constant 192 : index
    %c0_116 = arith.constant 0 : index
    %103 = vector.load %arg4[%c192_115, %c0_116] : memref<216x512xf32, #tpu.memory_space<vmem>>, vector<8x512xf32>
    %104 = arith.mulf %102, %103 : vector<8x512xf32>
    %c192_117 = arith.constant 192 : index
    %c0_118 = arith.constant 0 : index
    %105 = vector.load %arg7[%c192_117, %c0_118] : memref<256x512xf32, #tpu.memory_space<vmem>>, vector<8x512xf32>
    tpu.vector_store %arg7[%c192_117, %c0_118], %104 {strides = array<i32>} : memref<256x512xf32, #tpu.memory_space<vmem>>, vector<8x512xf32>,
    %c0_119 = arith.constant 0 : index
    %c200 = arith.constant 200 : index
    %106 = vector.load %arg8[%c0_119, %c200] : memref<8x768xf32, #tpu.memory_space<vmem>>, vector<8x512xf32>
    %c200_120 = arith.constant 200 : index
    %c0_121 = arith.constant 0 : index
    %107 = vector.load %arg4[%c200_120, %c0_121] : memref<216x512xf32, #tpu.memory_space<vmem>>, vector<8x512xf32>
    %108 = arith.mulf %106, %107 : vector<8x512xf32>
    %c200_122 = arith.constant 200 : index
    %c0_123 = arith.constant 0 : index
    %109 = vector.load %arg7[%c200_122, %c0_123] : memref<256x512xf32, #tpu.memory_space<vmem>>, vector<8x512xf32>
    tpu.vector_store %arg7[%c200_122, %c0_123], %108 {strides = array<i32>} : memref<256x512xf32, #tpu.memory_space<vmem>>, vector<8x512xf32>,
    %c0_124 = arith.constant 0 : index
    %c201 = arith.constant 201 : index
    %110 = vector.load %arg8[%c0_124, %c201] : memref<8x768xf32, #tpu.memory_space<vmem>>, vector<8x512xf32>
    %c208 = arith.constant 208 : index
    %c0_125 = arith.constant 0 : index
    %111 = vector.load %arg4[%c208, %c0_125] : memref<216x512xf32, #tpu.memory_space<vmem>>, vector<8x512xf32>
    %112 = arith.mulf %110, %111 : vector<8x512xf32>
    %c208_126 = arith.constant 208 : index
    %c0_127 = arith.constant 0 : index
    %113 = vector.load %arg7[%c208_126, %c0_127] : memref<256x512xf32, #tpu.memory_space<vmem>>, vector<8x512xf32>
    tpu.vector_store %arg7[%c208_126, %c0_127], %112 {strides = array<i32>} : memref<256x512xf32, #tpu.memory_space<vmem>>, vector<8x512xf32>,
    %c0_128 = arith.constant 0 : index
    %c0_129 = arith.constant 0 : index
    %114 = vector.load %arg7[%c0_128, %c0_129] : memref<256x512xf32, #tpu.memory_space<vmem>>, vector<256x512xf32>
    %cst_130 = arith.constant dense<0.000000e+00> : vector<8x512xf32>
    %115 = tpu.matmul %6, %114, %cst_130 {dimension_numbers = #tpu.dot_dimension_numbers<[1], [0], [0], [1], [0, 0, 1, 1], [], []>} : vector<8x256xf32>, vector<256x512xf32>, vector<8x512xf32> -> vector<8x512xf32>
    %cst_131 = arith.constant dense<0.000000e+00> : vector<8x128xf32>
    %116 = tpu.matmul %115, %8, %cst_131 {dimension_numbers = #tpu.dot_dimension_numbers<[1], [0], [0], [1], [0, 0, 1, 1], [], []>} : vector<8x512xf32>, vector<512x128xf32>, vector<8x128xf32> -> vector<8x128xf32>
    %117 = vector.extract_strided_slice %116 {offsets = [0, 0], sizes = [8, 1], strides = [1, 1]} : vector<8x128xf32> to vector<8x1xf32>
    %118 = arith.mulf %115, %115 : vector<8x512xf32>
    %cst_132 = arith.constant dense<0.000000e+00> : vector<8x128xf32>
    %119 = tpu.matmul %118, %8, %cst_132 {dimension_numbers = #tpu.dot_dimension_numbers<[1], [0], [0], [1], [0, 0, 1, 1], [], []>} : vector<8x512xf32>, vector<512x128xf32>, vector<8x128xf32> -> vector<8x128xf32>
    %120 = vector.extract_strided_slice %119 {offsets = [0, 0], sizes = [8, 1], strides = [1, 1]} : vector<8x128xf32> to vector<8x1xf32>
    %cst_133 = arith.constant 0.001953125 : f32
    %121 = vector.broadcast %cst_133 : f32 to vector<8x1xf32>
    %122 = arith.mulf %117, %121 : vector<8x1xf32>
    %cst_134 = arith.constant 0.001953125 : f32
    %123 = vector.broadcast %cst_134 : f32 to vector<8x1xf32>
    %124 = arith.mulf %120, %123 : vector<8x1xf32>
    %125 = arith.mulf %122, %122 : vector<8x1xf32>
    %126 = arith.subf %124, %125 : vector<8x1xf32>
    %127 = vector.broadcast %122 : vector<8x1xf32> to vector<8x512xf32>
    %128 = arith.subf %115, %127 : vector<8x512xf32>
    %cst_135 = arith.constant 9.99999974E-6 : f32
    %129 = vector.broadcast %cst_135 : f32 to vector<8x1xf32>
    %130 = arith.addf %126, %129 : vector<8x1xf32>
    %131 = math.rsqrt %130 : vector<8x1xf32>
    %132 = vector.broadcast %131 : vector<8x1xf32> to vector<8x512xf32>
    %133 = arith.mulf %128, %132 : vector<8x512xf32>
    %cst_136 = arith.constant 0.000000e+00 : f32
    %134 = vector.broadcast %cst_136 : f32 to vector<8x512xf32>
    %135 = arith.maximumf %133, %134 : vector<8x512xf32>
    %c0_137 = arith.constant 0 : index
    %c128_138 = arith.constant 128 : index
    %136 = vector.load %arg8[%c0_137, %c128_138] : memref<8x768xf32, #tpu.memory_space<vmem>>, vector<8x512xf32>
    tpu.vector_store %arg8[%c0_137, %c128_138], %135 {strides = array<i32>} : memref<8x768xf32, #tpu.memory_space<vmem>>, vector<8x512xf32>,
    %c0_139 = arith.constant 0 : index
    %c55_140 = arith.constant 55 : index
    %137 = vector.load %arg8[%c0_139, %c55_140] : memref<8x768xf32, #tpu.memory_space<vmem>>, vector<8x512xf32>
    %c0_141 = arith.constant 0 : index
    %c0_142 = arith.constant 0 : index
    %138 = vector.load %arg4[%c0_141, %c0_142] : memref<216x512xf32, #tpu.memory_space<vmem>>, vector<8x512xf32>
    %139 = arith.mulf %137, %138 : vector<8x512xf32>
    %c0_143 = arith.constant 0 : index
    %c0_144 = arith.constant 0 : index
    %140 = vector.load %arg7[%c0_143, %c0_144] : memref<256x512xf32, #tpu.memory_space<vmem>>, vector<8x512xf32>
    tpu.vector_store %arg7[%c0_143, %c0_144], %139 {strides = array<i32>} : memref<256x512xf32, #tpu.memory_space<vmem>>, vector<8x512xf32>,
    %c0_145 = arith.constant 0 : index
    %c56_146 = arith.constant 56 : index
    %141 = vector.load %arg8[%c0_145, %c56_146] : memref<8x768xf32, #tpu.memory_space<vmem>>, vector<8x512xf32>
    %c8_147 = arith.constant 8 : index
    %c0_148 = arith.constant 0 : index
    %142 = vector.load %arg4[%c8_147, %c0_148] : memref<216x512xf32, #tpu.memory_space<vmem>>, vector<8x512xf32>
    %143 = arith.mulf %141, %142 : vector<8x512xf32>
    %c8_149 = arith.constant 8 : index
    %c0_150 = arith.constant 0 : index
    %144 = vector.load %arg7[%c8_149, %c0_150] : memref<256x512xf32, #tpu.memory_space<vmem>>, vector<8x512xf32>
    tpu.vector_store %arg7[%c8_149, %c0_150], %143 {strides = array<i32>} : memref<256x512xf32, #tpu.memory_space<vmem>>, vector<8x512xf32>,
    %c0_151 = arith.constant 0 : index
    %c57_152 = arith.constant 57 : index
    %145 = vector.load %arg8[%c0_151, %c57_152] : memref<8x768xf32, #tpu.memory_space<vmem>>, vector<8x512xf32>
    %c16_153 = arith.constant 16 : index
    %c0_154 = arith.constant 0 : index
    %146 = vector.load %arg4[%c16_153, %c0_154] : memref<216x512xf32, #tpu.memory_space<vmem>>, vector<8x512xf32>
    %147 = arith.mulf %145, %146 : vector<8x512xf32>
    %c16_155 = arith.constant 16 : index
    %c0_156 = arith.constant 0 : index
    %148 = vector.load %arg7[%c16_155, %c0_156] : memref<256x512xf32, #tpu.memory_space<vmem>>, vector<8x512xf32>
    tpu.vector_store %arg7[%c16_155, %c0_156], %147 {strides = array<i32>} : memref<256x512xf32, #tpu.memory_space<vmem>>, vector<8x512xf32>,
    %c0_157 = arith.constant 0 : index
    %c63_158 = arith.constant 63 : index
    %149 = vector.load %arg8[%c0_157, %c63_158] : memref<8x768xf32, #tpu.memory_space<vmem>>, vector<8x512xf32>
    %c24_159 = arith.constant 24 : index
    %c0_160 = arith.constant 0 : index
    %150 = vector.load %arg4[%c24_159, %c0_160] : memref<216x512xf32, #tpu.memory_space<vmem>>, vector<8x512xf32>
    %151 = arith.mulf %149, %150 : vector<8x512xf32>
    %c24_161 = arith.constant 24 : index
    %c0_162 = arith.constant 0 : index
    %152 = vector.load %arg7[%c24_161, %c0_162] : memref<256x512xf32, #tpu.memory_space<vmem>>, vector<8x512xf32>
    tpu.vector_store %arg7[%c24_161, %c0_162], %151 {strides = array<i32>} : memref<256x512xf32, #tpu.memory_space<vmem>>, vector<8x512xf32>,
    %c0_163 = arith.constant 0 : index
    %c64_164 = arith.constant 64 : index
    %153 = vector.load %arg8[%c0_163, %c64_164] : memref<8x768xf32, #tpu.memory_space<vmem>>, vector<8x512xf32>
    %c32_165 = arith.constant 32 : index
    %c0_166 = arith.constant 0 : index
    %154 = vector.load %arg7[%c32_165, %c0_166] : memref<256x512xf32, #tpu.memory_space<vmem>>, vector<8x512xf32>
    tpu.vector_store %arg7[%c32_165, %c0_166], %153 {strides = array<i32>} : memref<256x512xf32, #tpu.memory_space<vmem>>, vector<8x512xf32>,
    %c0_167 = arith.constant 0 : index
    %c65_168 = arith.constant 65 : index
    %155 = vector.load %arg8[%c0_167, %c65_168] : memref<8x768xf32, #tpu.memory_space<vmem>>, vector<8x512xf32>
    %c40_169 = arith.constant 40 : index
    %c0_170 = arith.constant 0 : index
    %156 = vector.load %arg4[%c40_169, %c0_170] : memref<216x512xf32, #tpu.memory_space<vmem>>, vector<8x512xf32>
    %157 = arith.mulf %155, %156 : vector<8x512xf32>
    %c40_171 = arith.constant 40 : index
    %c0_172 = arith.constant 0 : index
    %158 = vector.load %arg7[%c40_171, %c0_172] : memref<256x512xf32, #tpu.memory_space<vmem>>, vector<8x512xf32>
    tpu.vector_store %arg7[%c40_171, %c0_172], %157 {strides = array<i32>} : memref<256x512xf32, #tpu.memory_space<vmem>>, vector<8x512xf32>,
    %c0_173 = arith.constant 0 : index
    %c71_174 = arith.constant 71 : index
    %159 = vector.load %arg8[%c0_173, %c71_174] : memref<8x768xf32, #tpu.memory_space<vmem>>, vector<8x512xf32>
    %c48_175 = arith.constant 48 : index
    %c0_176 = arith.constant 0 : index
    %160 = vector.load %arg4[%c48_175, %c0_176] : memref<216x512xf32, #tpu.memory_space<vmem>>, vector<8x512xf32>
    %161 = arith.mulf %159, %160 : vector<8x512xf32>
    %c48_177 = arith.constant 48 : index
    %c0_178 = arith.constant 0 : index
    %162 = vector.load %arg7[%c48_177, %c0_178] : memref<256x512xf32, #tpu.memory_space<vmem>>, vector<8x512xf32>
    tpu.vector_store %arg7[%c48_177, %c0_178], %161 {strides = array<i32>} : memref<256x512xf32, #tpu.memory_space<vmem>>, vector<8x512xf32>,
    %c0_179 = arith.constant 0 : index
    %c72_180 = arith.constant 72 : index
    %163 = vector.load %arg8[%c0_179, %c72_180] : memref<8x768xf32, #tpu.memory_space<vmem>>, vector<8x512xf32>
    %c56_181 = arith.constant 56 : index
    %c0_182 = arith.constant 0 : index
    %164 = vector.load %arg4[%c56_181, %c0_182] : memref<216x512xf32, #tpu.memory_space<vmem>>, vector<8x512xf32>
    %165 = arith.mulf %163, %164 : vector<8x512xf32>
    %c56_183 = arith.constant 56 : index
    %c0_184 = arith.constant 0 : index
    %166 = vector.load %arg7[%c56_183, %c0_184] : memref<256x512xf32, #tpu.memory_space<vmem>>, vector<8x512xf32>
    tpu.vector_store %arg7[%c56_183, %c0_184], %165 {strides = array<i32>} : memref<256x512xf32, #tpu.memory_space<vmem>>, vector<8x512xf32>,
    %c0_185 = arith.constant 0 : index
    %c73_186 = arith.constant 73 : index
    %167 = vector.load %arg8[%c0_185, %c73_186] : memref<8x768xf32, #tpu.memory_space<vmem>>, vector<8x512xf32>
    %c64_187 = arith.constant 64 : index
    %c0_188 = arith.constant 0 : index
    %168 = vector.load %arg4[%c64_187, %c0_188] : memref<216x512xf32, #tpu.memory_space<vmem>>, vector<8x512xf32>
    %169 = arith.mulf %167, %168 : vector<8x512xf32>
    %c64_189 = arith.constant 64 : index
    %c0_190 = arith.constant 0 : index
    %170 = vector.load %arg7[%c64_189, %c0_190] : memref<256x512xf32, #tpu.memory_space<vmem>>, vector<8x512xf32>
    tpu.vector_store %arg7[%c64_189, %c0_190], %169 {strides = array<i32>} : memref<256x512xf32, #tpu.memory_space<vmem>>, vector<8x512xf32>,
    %c0_191 = arith.constant 0 : index
    %c119_192 = arith.constant 119 : index
    %171 = vector.load %arg8[%c0_191, %c119_192] : memref<8x768xf32, #tpu.memory_space<vmem>>, vector<8x512xf32>
    %c72_193 = arith.constant 72 : index
    %c0_194 = arith.constant 0 : index
    %172 = vector.load %arg4[%c72_193, %c0_194] : memref<216x512xf32, #tpu.memory_space<vmem>>, vector<8x512xf32>
    %173 = arith.mulf %171, %172 : vector<8x512xf32>
    %c72_195 = arith.constant 72 : index
    %c0_196 = arith.constant 0 : index
    %174 = vector.load %arg7[%c72_195, %c0_196] : memref<256x512xf32, #tpu.memory_space<vmem>>, vector<8x512xf32>
    tpu.vector_store %arg7[%c72_195, %c0_196], %173 {strides = array<i32>} : memref<256x512xf32, #tpu.memory_space<vmem>>, vector<8x512xf32>,
    %c0_197 = arith.constant 0 : index
    %c120_198 = arith.constant 120 : index
    %175 = vector.load %arg8[%c0_197, %c120_198] : memref<8x768xf32, #tpu.memory_space<vmem>>, vector<8x512xf32>
    %c80_199 = arith.constant 80 : index
    %c0_200 = arith.constant 0 : index
    %176 = vector.load %arg4[%c80_199, %c0_200] : memref<216x512xf32, #tpu.memory_space<vmem>>, vector<8x512xf32>
    %177 = arith.mulf %175, %176 : vector<8x512xf32>
    %c80_201 = arith.constant 80 : index
    %c0_202 = arith.constant 0 : index
    %178 = vector.load %arg7[%c80_201, %c0_202] : memref<256x512xf32, #tpu.memory_space<vmem>>, vector<8x512xf32>
    tpu.vector_store %arg7[%c80_201, %c0_202], %177 {strides = array<i32>} : memref<256x512xf32, #tpu.memory_space<vmem>>, vector<8x512xf32>,
    %c0_203 = arith.constant 0 : index
    %c121_204 = arith.constant 121 : index
    %179 = vector.load %arg8[%c0_203, %c121_204] : memref<8x768xf32, #tpu.memory_space<vmem>>, vector<8x512xf32>
    %c88_205 = arith.constant 88 : index
    %c0_206 = arith.constant 0 : index
    %180 = vector.load %arg4[%c88_205, %c0_206] : memref<216x512xf32, #tpu.memory_space<vmem>>, vector<8x512xf32>
    %181 = arith.mulf %179, %180 : vector<8x512xf32>
    %c88_207 = arith.constant 88 : index
    %c0_208 = arith.constant 0 : index
    %182 = vector.load %arg7[%c88_207, %c0_208] : memref<256x512xf32, #tpu.memory_space<vmem>>, vector<8x512xf32>
    tpu.vector_store %arg7[%c88_207, %c0_208], %181 {strides = array<i32>} : memref<256x512xf32, #tpu.memory_space<vmem>>, vector<8x512xf32>,
    %c0_209 = arith.constant 0 : index
    %c127_210 = arith.constant 127 : index
    %183 = vector.load %arg8[%c0_209, %c127_210] : memref<8x768xf32, #tpu.memory_space<vmem>>, vector<8x512xf32>
    %c96_211 = arith.constant 96 : index
    %c0_212 = arith.constant 0 : index
    %184 = vector.load %arg4[%c96_211, %c0_212] : memref<216x512xf32, #tpu.memory_space<vmem>>, vector<8x512xf32>
    %185 = arith.mulf %183, %184 : vector<8x512xf32>
    %c96_213 = arith.constant 96 : index
    %c0_214 = arith.constant 0 : index
    %186 = vector.load %arg7[%c96_213, %c0_214] : memref<256x512xf32, #tpu.memory_space<vmem>>, vector<8x512xf32>
    tpu.vector_store %arg7[%c96_213, %c0_214], %185 {strides = array<i32>} : memref<256x512xf32, #tpu.memory_space<vmem>>, vector<8x512xf32>,
    %c0_215 = arith.constant 0 : index
    %c128_216 = arith.constant 128 : index
    %187 = vector.load %arg8[%c0_215, %c128_216] : memref<8x768xf32, #tpu.memory_space<vmem>>, vector<8x512xf32>
    %c104_217 = arith.constant 104 : index
    %c0_218 = arith.constant 0 : index
    %188 = vector.load %arg7[%c104_217, %c0_218] : memref<256x512xf32, #tpu.memory_space<vmem>>, vector<8x512xf32>
    tpu.vector_store %arg7[%c104_217, %c0_218], %187 {strides = array<i32>} : memref<256x512xf32, #tpu.memory_space<vmem>>, vector<8x512xf32>,
    %c0_219 = arith.constant 0 : index
    %c129_220 = arith.constant 129 : index
    %189 = vector.load %arg8[%c0_219, %c129_220] : memref<8x768xf32, #tpu.memory_space<vmem>>, vector<8x512xf32>
    %c112_221 = arith.constant 112 : index
    %c0_222 = arith.constant 0 : index
    %190 = vector.load %arg4[%c112_221, %c0_222] : memref<216x512xf32, #tpu.memory_space<vmem>>, vector<8x512xf32>
    %191 = arith.mulf %189, %190 : vector<8x512xf32>
    %c112_223 = arith.constant 112 : index
    %c0_224 = arith.constant 0 : index
    %192 = vector.load %arg7[%c112_223, %c0_224] : memref<256x512xf32, #tpu.memory_space<vmem>>, vector<8x512xf32>
    tpu.vector_store %arg7[%c112_223, %c0_224], %191 {strides = array<i32>} : memref<256x512xf32, #tpu.memory_space<vmem>>, vector<8x512xf32>,
    %c0_225 = arith.constant 0 : index
    %c135_226 = arith.constant 135 : index
    %193 = vector.load %arg8[%c0_225, %c135_226] : memref<8x768xf32, #tpu.memory_space<vmem>>, vector<8x512xf32>
    %c120_227 = arith.constant 120 : index
    %c0_228 = arith.constant 0 : index
    %194 = vector.load %arg4[%c120_227, %c0_228] : memref<216x512xf32, #tpu.memory_space<vmem>>, vector<8x512xf32>
    %195 = arith.mulf %193, %194 : vector<8x512xf32>
    %c120_229 = arith.constant 120 : index
    %c0_230 = arith.constant 0 : index
    %196 = vector.load %arg7[%c120_229, %c0_230] : memref<256x512xf32, #tpu.memory_space<vmem>>, vector<8x512xf32>
    tpu.vector_store %arg7[%c120_229, %c0_230], %195 {strides = array<i32>} : memref<256x512xf32, #tpu.memory_space<vmem>>, vector<8x512xf32>,
    %c0_231 = arith.constant 0 : index
    %c136_232 = arith.constant 136 : index
    %197 = vector.load %arg8[%c0_231, %c136_232] : memref<8x768xf32, #tpu.memory_space<vmem>>, vector<8x512xf32>
    %c128_233 = arith.constant 128 : index
    %c0_234 = arith.constant 0 : index
    %198 = vector.load %arg4[%c128_233, %c0_234] : memref<216x512xf32, #tpu.memory_space<vmem>>, vector<8x512xf32>
    %199 = arith.mulf %197, %198 : vector<8x512xf32>
    %c128_235 = arith.constant 128 : index
    %c0_236 = arith.constant 0 : index
    %200 = vector.load %arg7[%c128_235, %c0_236] : memref<256x512xf32, #tpu.memory_space<vmem>>, vector<8x512xf32>
    tpu.vector_store %arg7[%c128_235, %c0_236], %199 {strides = array<i32>} : memref<256x512xf32, #tpu.memory_space<vmem>>, vector<8x512xf32>,
    %c0_237 = arith.constant 0 : index
    %c137_238 = arith.constant 137 : index
    %201 = vector.load %arg8[%c0_237, %c137_238] : memref<8x768xf32, #tpu.memory_space<vmem>>, vector<8x512xf32>
    %c136_239 = arith.constant 136 : index
    %c0_240 = arith.constant 0 : index
    %202 = vector.load %arg4[%c136_239, %c0_240] : memref<216x512xf32, #tpu.memory_space<vmem>>, vector<8x512xf32>
    %203 = arith.mulf %201, %202 : vector<8x512xf32>
    %c136_241 = arith.constant 136 : index
    %c0_242 = arith.constant 0 : index
    %204 = vector.load %arg7[%c136_241, %c0_242] : memref<256x512xf32, #tpu.memory_space<vmem>>, vector<8x512xf32>
    tpu.vector_store %arg7[%c136_241, %c0_242], %203 {strides = array<i32>} : memref<256x512xf32, #tpu.memory_space<vmem>>, vector<8x512xf32>,
    %c0_243 = arith.constant 0 : index
    %c183_244 = arith.constant 183 : index
    %205 = vector.load %arg8[%c0_243, %c183_244] : memref<8x768xf32, #tpu.memory_space<vmem>>, vector<8x512xf32>
    %c144_245 = arith.constant 144 : index
    %c0_246 = arith.constant 0 : index
    %206 = vector.load %arg4[%c144_245, %c0_246] : memref<216x512xf32, #tpu.memory_space<vmem>>, vector<8x512xf32>
    %207 = arith.mulf %205, %206 : vector<8x512xf32>
    %c144_247 = arith.constant 144 : index
    %c0_248 = arith.constant 0 : index
    %208 = vector.load %arg7[%c144_247, %c0_248] : memref<256x512xf32, #tpu.memory_space<vmem>>, vector<8x512xf32>
    tpu.vector_store %arg7[%c144_247, %c0_248], %207 {strides = array<i32>} : memref<256x512xf32, #tpu.memory_space<vmem>>, vector<8x512xf32>,
    %c0_249 = arith.constant 0 : index
    %c184_250 = arith.constant 184 : index
    %209 = vector.load %arg8[%c0_249, %c184_250] : memref<8x768xf32, #tpu.memory_space<vmem>>, vector<8x512xf32>
    %c152_251 = arith.constant 152 : index
    %c0_252 = arith.constant 0 : index
    %210 = vector.load %arg4[%c152_251, %c0_252] : memref<216x512xf32, #tpu.memory_space<vmem>>, vector<8x512xf32>
    %211 = arith.mulf %209, %210 : vector<8x512xf32>
    %c152_253 = arith.constant 152 : index
    %c0_254 = arith.constant 0 : index
    %212 = vector.load %arg7[%c152_253, %c0_254] : memref<256x512xf32, #tpu.memory_space<vmem>>, vector<8x512xf32>
    tpu.vector_store %arg7[%c152_253, %c0_254], %211 {strides = array<i32>} : memref<256x512xf32, #tpu.memory_space<vmem>>, vector<8x512xf32>,
    %c0_255 = arith.constant 0 : index
    %c185_256 = arith.constant 185 : index
    %213 = vector.load %arg8[%c0_255, %c185_256] : memref<8x768xf32, #tpu.memory_space<vmem>>, vector<8x512xf32>
    %c160_257 = arith.constant 160 : index
    %c0_258 = arith.constant 0 : index
    %214 = vector.load %arg4[%c160_257, %c0_258] : memref<216x512xf32, #tpu.memory_space<vmem>>, vector<8x512xf32>
    %215 = arith.mulf %213, %214 : vector<8x512xf32>
    %c160_259 = arith.constant 160 : index
    %c0_260 = arith.constant 0 : index
    %216 = vector.load %arg7[%c160_259, %c0_260] : memref<256x512xf32, #tpu.memory_space<vmem>>, vector<8x512xf32>
    tpu.vector_store %arg7[%c160_259, %c0_260], %215 {strides = array<i32>} : memref<256x512xf32, #tpu.memory_space<vmem>>, vector<8x512xf32>,
    %c0_261 = arith.constant 0 : index
    %c191_262 = arith.constant 191 : index
    %217 = vector.load %arg8[%c0_261, %c191_262] : memref<8x768xf32, #tpu.memory_space<vmem>>, vector<8x512xf32>
    %c168_263 = arith.constant 168 : index
    %c0_264 = arith.constant 0 : index
    %218 = vector.load %arg4[%c168_263, %c0_264] : memref<216x512xf32, #tpu.memory_space<vmem>>, vector<8x512xf32>
    %219 = arith.mulf %217, %218 : vector<8x512xf32>
    %c168_265 = arith.constant 168 : index
    %c0_266 = arith.constant 0 : index
    %220 = vector.load %arg7[%c168_265, %c0_266] : memref<256x512xf32, #tpu.memory_space<vmem>>, vector<8x512xf32>
    tpu.vector_store %arg7[%c168_265, %c0_266], %219 {strides = array<i32>} : memref<256x512xf32, #tpu.memory_space<vmem>>, vector<8x512xf32>,
    %c0_267 = arith.constant 0 : index
    %c192_268 = arith.constant 192 : index
    %221 = vector.load %arg8[%c0_267, %c192_268] : memref<8x768xf32, #tpu.memory_space<vmem>>, vector<8x512xf32>
    %c176_269 = arith.constant 176 : index
    %c0_270 = arith.constant 0 : index
    %222 = vector.load %arg7[%c176_269, %c0_270] : memref<256x512xf32, #tpu.memory_space<vmem>>, vector<8x512xf32>
    tpu.vector_store %arg7[%c176_269, %c0_270], %221 {strides = array<i32>} : memref<256x512xf32, #tpu.memory_space<vmem>>, vector<8x512xf32>,
    %c0_271 = arith.constant 0 : index
    %c193_272 = arith.constant 193 : index
    %223 = vector.load %arg8[%c0_271, %c193_272] : memref<8x768xf32, #tpu.memory_space<vmem>>, vector<8x512xf32>
    %c184_273 = arith.constant 184 : index
    %c0_274 = arith.constant 0 : index
    %224 = vector.load %arg4[%c184_273, %c0_274] : memref<216x512xf32, #tpu.memory_space<vmem>>, vector<8x512xf32>
    %225 = arith.mulf %223, %224 : vector<8x512xf32>
    %c184_275 = arith.constant 184 : index
    %c0_276 = arith.constant 0 : index
    %226 = vector.load %arg7[%c184_275, %c0_276] : memref<256x512xf32, #tpu.memory_space<vmem>>, vector<8x512xf32>
    tpu.vector_store %arg7[%c184_275, %c0_276], %225 {strides = array<i32>} : memref<256x512xf32, #tpu.memory_space<vmem>>, vector<8x512xf32>,
    %c0_277 = arith.constant 0 : index
    %c199_278 = arith.constant 199 : index
    %227 = vector.load %arg8[%c0_277, %c199_278] : memref<8x768xf32, #tpu.memory_space<vmem>>, vector<8x512xf32>
    %c192_279 = arith.constant 192 : index
    %c0_280 = arith.constant 0 : index
    %228 = vector.load %arg4[%c192_279, %c0_280] : memref<216x512xf32, #tpu.memory_space<vmem>>, vector<8x512xf32>
    %229 = arith.mulf %227, %228 : vector<8x512xf32>
    %c192_281 = arith.constant 192 : index
    %c0_282 = arith.constant 0 : index
    %230 = vector.load %arg7[%c192_281, %c0_282] : memref<256x512xf32, #tpu.memory_space<vmem>>, vector<8x512xf32>
    tpu.vector_store %arg7[%c192_281, %c0_282], %229 {strides = array<i32>} : memref<256x512xf32, #tpu.memory_space<vmem>>, vector<8x512xf32>,
    %c0_283 = arith.constant 0 : index
    %c200_284 = arith.constant 200 : index
    %231 = vector.load %arg8[%c0_283, %c200_284] : memref<8x768xf32, #tpu.memory_space<vmem>>, vector<8x512xf32>
    %c200_285 = arith.constant 200 : index
    %c0_286 = arith.constant 0 : index
    %232 = vector.load %arg4[%c200_285, %c0_286] : memref<216x512xf32, #tpu.memory_space<vmem>>, vector<8x512xf32>
    %233 = arith.mulf %231, %232 : vector<8x512xf32>
    %c200_287 = arith.constant 200 : index
    %c0_288 = arith.constant 0 : index
    %234 = vector.load %arg7[%c200_287, %c0_288] : memref<256x512xf32, #tpu.memory_space<vmem>>, vector<8x512xf32>
    tpu.vector_store %arg7[%c200_287, %c0_288], %233 {strides = array<i32>} : memref<256x512xf32, #tpu.memory_space<vmem>>, vector<8x512xf32>,
    %c0_289 = arith.constant 0 : index
    %c201_290 = arith.constant 201 : index
    %235 = vector.load %arg8[%c0_289, %c201_290] : memref<8x768xf32, #tpu.memory_space<vmem>>, vector<8x512xf32>
    %c208_291 = arith.constant 208 : index
    %c0_292 = arith.constant 0 : index
    %236 = vector.load %arg4[%c208_291, %c0_292] : memref<216x512xf32, #tpu.memory_space<vmem>>, vector<8x512xf32>
    %237 = arith.mulf %235, %236 : vector<8x512xf32>
    %c208_293 = arith.constant 208 : index
    %c0_294 = arith.constant 0 : index
    %238 = vector.load %arg7[%c208_293, %c0_294] : memref<256x512xf32, #tpu.memory_space<vmem>>, vector<8x512xf32>
    tpu.vector_store %arg7[%c208_293, %c0_294], %237 {strides = array<i32>} : memref<256x512xf32, #tpu.memory_space<vmem>>, vector<8x512xf32>,
    %c0_295 = arith.constant 0 : index
    %c0_296 = arith.constant 0 : index
    %239 = vector.load %arg7[%c0_295, %c0_296] : memref<256x512xf32, #tpu.memory_space<vmem>>, vector<256x512xf32>
    %cst_297 = arith.constant dense<0.000000e+00> : vector<8x512xf32>
    %240 = tpu.matmul %7, %239, %cst_297 {dimension_numbers = #tpu.dot_dimension_numbers<[1], [0], [0], [1], [0, 0, 1, 1], [], []>} : vector<8x256xf32>, vector<256x512xf32>, vector<8x512xf32> -> vector<8x512xf32>
    %cst_298 = arith.constant dense<0.000000e+00> : vector<8x128xf32>
    %241 = tpu.matmul %240, %8, %cst_298 {dimension_numbers = #tpu.dot_dimension_numbers<[1], [0], [0], [1], [0, 0, 1, 1], [], []>} : vector<8x512xf32>, vector<512x128xf32>, vector<8x128xf32> -> vector<8x128xf32>
    %242 = vector.extract_strided_slice %241 {offsets = [0, 0], sizes = [8, 1], strides = [1, 1]} : vector<8x128xf32> to vector<8x1xf32>
    %243 = arith.mulf %240, %240 : vector<8x512xf32>
    %cst_299 = arith.constant dense<0.000000e+00> : vector<8x128xf32>
    %244 = tpu.matmul %243, %8, %cst_299 {dimension_numbers = #tpu.dot_dimension_numbers<[1], [0], [0], [1], [0, 0, 1, 1], [], []>} : vector<8x512xf32>, vector<512x128xf32>, vector<8x128xf32> -> vector<8x128xf32>
    %245 = vector.extract_strided_slice %244 {offsets = [0, 0], sizes = [8, 1], strides = [1, 1]} : vector<8x128xf32> to vector<8x1xf32>
    %cst_300 = arith.constant 0.001953125 : f32
    %246 = vector.broadcast %cst_300 : f32 to vector<8x1xf32>
    %247 = arith.mulf %242, %246 : vector<8x1xf32>
    %cst_301 = arith.constant 0.001953125 : f32
    %248 = vector.broadcast %cst_301 : f32 to vector<8x1xf32>
    %249 = arith.mulf %245, %248 : vector<8x1xf32>
    %250 = arith.mulf %247, %247 : vector<8x1xf32>
    %251 = arith.subf %249, %250 : vector<8x1xf32>
    %252 = vector.broadcast %247 : vector<8x1xf32> to vector<8x512xf32>
    %253 = arith.subf %240, %252 : vector<8x512xf32>
    %cst_302 = arith.constant 9.99999974E-6 : f32
    %254 = vector.broadcast %cst_302 : f32 to vector<8x1xf32>
    %255 = arith.addf %251, %254 : vector<8x1xf32>
    %256 = math.rsqrt %255 : vector<8x1xf32>
    %257 = vector.broadcast %256 : vector<8x1xf32> to vector<8x512xf32>
    %258 = arith.mulf %253, %257 : vector<8x512xf32>
    %259 = arith.addf %10, %258 : vector<8x512xf32>
    %c0_303 = arith.constant 0 : index
    %c0_304 = arith.constant 0 : index
    %c0_305 = arith.constant 0 : index
    %260 = vector.load %arg6[%c0_303, %c0_304, %c0_305] : memref<2x8x512xf32, #tpu.memory_space<vmem>>, vector<1x8x512xf32>
    %261 = vector.shape_cast %260 : vector<1x8x512xf32> to vector<8x512xf32>
    %262 = vector.shape_cast %259 : vector<8x512xf32> to vector<1x8x512xf32>
    tpu.vector_store %arg6[%c0_303, %c0_304, %c0_305], %262 {strides = array<i32>} : memref<2x8x512xf32, #tpu.memory_space<vmem>>, vector<1x8x512xf32>,
    %c1 = arith.constant 1 : index
    %c0_306 = arith.constant 0 : index
    %c0_307 = arith.constant 0 : index
    %263 = vector.load %arg1[%c1, %c0_306, %c0_307] : memref<2x8x512xf32, #tpu.memory_space<vmem>>, vector<1x8x512xf32>
    %264 = vector.shape_cast %263 : vector<1x8x512xf32> to vector<8x512xf32>
    %c0_308 = arith.constant 0 : index
    %c128_309 = arith.constant 128 : index
    %265 = vector.load %arg8[%c0_308, %c128_309] : memref<8x768xf32, #tpu.memory_space<vmem>>, vector<8x512xf32>
    tpu.vector_store %arg8[%c0_308, %c128_309], %264 {strides = array<i32>} : memref<8x768xf32, #tpu.memory_space<vmem>>, vector<8x512xf32>,
    %c0_310 = arith.constant 0 : index
    %c55_311 = arith.constant 55 : index
    %266 = vector.load %arg8[%c0_310, %c55_311] : memref<8x768xf32, #tpu.memory_space<vmem>>, vector<8x512xf32>
    %c0_312 = arith.constant 0 : index
    %c0_313 = arith.constant 0 : index
    %267 = vector.load %arg4[%c0_312, %c0_313] : memref<216x512xf32, #tpu.memory_space<vmem>>, vector<8x512xf32>
    %268 = arith.mulf %266, %267 : vector<8x512xf32>
    %c0_314 = arith.constant 0 : index
    %c0_315 = arith.constant 0 : index
    %269 = vector.load %arg7[%c0_314, %c0_315] : memref<256x512xf32, #tpu.memory_space<vmem>>, vector<8x512xf32>
    tpu.vector_store %arg7[%c0_314, %c0_315], %268 {strides = array<i32>} : memref<256x512xf32, #tpu.memory_space<vmem>>, vector<8x512xf32>,
    %c0_316 = arith.constant 0 : index
    %c56_317 = arith.constant 56 : index
    %270 = vector.load %arg8[%c0_316, %c56_317] : memref<8x768xf32, #tpu.memory_space<vmem>>, vector<8x512xf32>
    %c8_318 = arith.constant 8 : index
    %c0_319 = arith.constant 0 : index
    %271 = vector.load %arg4[%c8_318, %c0_319] : memref<216x512xf32, #tpu.memory_space<vmem>>, vector<8x512xf32>
    %272 = arith.mulf %270, %271 : vector<8x512xf32>
    %c8_320 = arith.constant 8 : index
    %c0_321 = arith.constant 0 : index
    %273 = vector.load %arg7[%c8_320, %c0_321] : memref<256x512xf32, #tpu.memory_space<vmem>>, vector<8x512xf32>
    tpu.vector_store %arg7[%c8_320, %c0_321], %272 {strides = array<i32>} : memref<256x512xf32, #tpu.memory_space<vmem>>, vector<8x512xf32>,
    %c0_322 = arith.constant 0 : index
    %c57_323 = arith.constant 57 : index
    %274 = vector.load %arg8[%c0_322, %c57_323] : memref<8x768xf32, #tpu.memory_space<vmem>>, vector<8x512xf32>
    %c16_324 = arith.constant 16 : index
    %c0_325 = arith.constant 0 : index
    %275 = vector.load %arg4[%c16_324, %c0_325] : memref<216x512xf32, #tpu.memory_space<vmem>>, vector<8x512xf32>
    %276 = arith.mulf %274, %275 : vector<8x512xf32>
    %c16_326 = arith.constant 16 : index
    %c0_327 = arith.constant 0 : index
    %277 = vector.load %arg7[%c16_326, %c0_327] : memref<256x512xf32, #tpu.memory_space<vmem>>, vector<8x512xf32>
    tpu.vector_store %arg7[%c16_326, %c0_327], %276 {strides = array<i32>} : memref<256x512xf32, #tpu.memory_space<vmem>>, vector<8x512xf32>,
    %c0_328 = arith.constant 0 : index
    %c63_329 = arith.constant 63 : index
    %278 = vector.load %arg8[%c0_328, %c63_329] : memref<8x768xf32, #tpu.memory_space<vmem>>, vector<8x512xf32>
    %c24_330 = arith.constant 24 : index
    %c0_331 = arith.constant 0 : index
    %279 = vector.load %arg4[%c24_330, %c0_331] : memref<216x512xf32, #tpu.memory_space<vmem>>, vector<8x512xf32>
    %280 = arith.mulf %278, %279 : vector<8x512xf32>
    %c24_332 = arith.constant 24 : index
    %c0_333 = arith.constant 0 : index
    %281 = vector.load %arg7[%c24_332, %c0_333] : memref<256x512xf32, #tpu.memory_space<vmem>>, vector<8x512xf32>
    tpu.vector_store %arg7[%c24_332, %c0_333], %280 {strides = array<i32>} : memref<256x512xf32, #tpu.memory_space<vmem>>, vector<8x512xf32>,
    %c0_334 = arith.constant 0 : index
    %c64_335 = arith.constant 64 : index
    %282 = vector.load %arg8[%c0_334, %c64_335] : memref<8x768xf32, #tpu.memory_space<vmem>>, vector<8x512xf32>
    %c32_336 = arith.constant 32 : index
    %c0_337 = arith.constant 0 : index
    %283 = vector.load %arg7[%c32_336, %c0_337] : memref<256x512xf32, #tpu.memory_space<vmem>>, vector<8x512xf32>
    tpu.vector_store %arg7[%c32_336, %c0_337], %282 {strides = array<i32>} : memref<256x512xf32, #tpu.memory_space<vmem>>, vector<8x512xf32>,
    %c0_338 = arith.constant 0 : index
    %c65_339 = arith.constant 65 : index
    %284 = vector.load %arg8[%c0_338, %c65_339] : memref<8x768xf32, #tpu.memory_space<vmem>>, vector<8x512xf32>
    %c40_340 = arith.constant 40 : index
    %c0_341 = arith.constant 0 : index
    %285 = vector.load %arg4[%c40_340, %c0_341] : memref<216x512xf32, #tpu.memory_space<vmem>>, vector<8x512xf32>
    %286 = arith.mulf %284, %285 : vector<8x512xf32>
    %c40_342 = arith.constant 40 : index
    %c0_343 = arith.constant 0 : index
    %287 = vector.load %arg7[%c40_342, %c0_343] : memref<256x512xf32, #tpu.memory_space<vmem>>, vector<8x512xf32>
    tpu.vector_store %arg7[%c40_342, %c0_343], %286 {strides = array<i32>} : memref<256x512xf32, #tpu.memory_space<vmem>>, vector<8x512xf32>,
    %c0_344 = arith.constant 0 : index
    %c71_345 = arith.constant 71 : index
    %288 = vector.load %arg8[%c0_344, %c71_345] : memref<8x768xf32, #tpu.memory_space<vmem>>, vector<8x512xf32>
    %c48_346 = arith.constant 48 : index
    %c0_347 = arith.constant 0 : index
    %289 = vector.load %arg4[%c48_346, %c0_347] : memref<216x512xf32, #tpu.memory_space<vmem>>, vector<8x512xf32>
    %290 = arith.mulf %288, %289 : vector<8x512xf32>
    %c48_348 = arith.constant 48 : index
    %c0_349 = arith.constant 0 : index
    %291 = vector.load %arg7[%c48_348, %c0_349] : memref<256x512xf32, #tpu.memory_space<vmem>>, vector<8x512xf32>
    tpu.vector_store %arg7[%c48_348, %c0_349], %290 {strides = array<i32>} : memref<256x512xf32, #tpu.memory_space<vmem>>, vector<8x512xf32>,
    %c0_350 = arith.constant 0 : index
    %c72_351 = arith.constant 72 : index
    %292 = vector.load %arg8[%c0_350, %c72_351] : memref<8x768xf32, #tpu.memory_space<vmem>>, vector<8x512xf32>
    %c56_352 = arith.constant 56 : index
    %c0_353 = arith.constant 0 : index
    %293 = vector.load %arg4[%c56_352, %c0_353] : memref<216x512xf32, #tpu.memory_space<vmem>>, vector<8x512xf32>
    %294 = arith.mulf %292, %293 : vector<8x512xf32>
    %c56_354 = arith.constant 56 : index
    %c0_355 = arith.constant 0 : index
    %295 = vector.load %arg7[%c56_354, %c0_355] : memref<256x512xf32, #tpu.memory_space<vmem>>, vector<8x512xf32>
    tpu.vector_store %arg7[%c56_354, %c0_355], %294 {strides = array<i32>} : memref<256x512xf32, #tpu.memory_space<vmem>>, vector<8x512xf32>,
    %c0_356 = arith.constant 0 : index
    %c73_357 = arith.constant 73 : index
    %296 = vector.load %arg8[%c0_356, %c73_357] : memref<8x768xf32, #tpu.memory_space<vmem>>, vector<8x512xf32>
    %c64_358 = arith.constant 64 : index
    %c0_359 = arith.constant 0 : index
    %297 = vector.load %arg4[%c64_358, %c0_359] : memref<216x512xf32, #tpu.memory_space<vmem>>, vector<8x512xf32>
    %298 = arith.mulf %296, %297 : vector<8x512xf32>
    %c64_360 = arith.constant 64 : index
    %c0_361 = arith.constant 0 : index
    %299 = vector.load %arg7[%c64_360, %c0_361] : memref<256x512xf32, #tpu.memory_space<vmem>>, vector<8x512xf32>
    tpu.vector_store %arg7[%c64_360, %c0_361], %298 {strides = array<i32>} : memref<256x512xf32, #tpu.memory_space<vmem>>, vector<8x512xf32>,
    %c0_362 = arith.constant 0 : index
    %c119_363 = arith.constant 119 : index
    %300 = vector.load %arg8[%c0_362, %c119_363] : memref<8x768xf32, #tpu.memory_space<vmem>>, vector<8x512xf32>
    %c72_364 = arith.constant 72 : index
    %c0_365 = arith.constant 0 : index
    %301 = vector.load %arg4[%c72_364, %c0_365] : memref<216x512xf32, #tpu.memory_space<vmem>>, vector<8x512xf32>
    %302 = arith.mulf %300, %301 : vector<8x512xf32>
    %c72_366 = arith.constant 72 : index
    %c0_367 = arith.constant 0 : index
    %303 = vector.load %arg7[%c72_366, %c0_367] : memref<256x512xf32, #tpu.memory_space<vmem>>, vector<8x512xf32>
    tpu.vector_store %arg7[%c72_366, %c0_367], %302 {strides = array<i32>} : memref<256x512xf32, #tpu.memory_space<vmem>>, vector<8x512xf32>,
    %c0_368 = arith.constant 0 : index
    %c120_369 = arith.constant 120 : index
    %304 = vector.load %arg8[%c0_368, %c120_369] : memref<8x768xf32, #tpu.memory_space<vmem>>, vector<8x512xf32>
    %c80_370 = arith.constant 80 : index
    %c0_371 = arith.constant 0 : index
    %305 = vector.load %arg4[%c80_370, %c0_371] : memref<216x512xf32, #tpu.memory_space<vmem>>, vector<8x512xf32>
    %306 = arith.mulf %304, %305 : vector<8x512xf32>
    %c80_372 = arith.constant 80 : index
    %c0_373 = arith.constant 0 : index
    %307 = vector.load %arg7[%c80_372, %c0_373] : memref<256x512xf32, #tpu.memory_space<vmem>>, vector<8x512xf32>
    tpu.vector_store %arg7[%c80_372, %c0_373], %306 {strides = array<i32>} : memref<256x512xf32, #tpu.memory_space<vmem>>, vector<8x512xf32>,
    %c0_374 = arith.constant 0 : index
    %c121_375 = arith.constant 121 : index
    %308 = vector.load %arg8[%c0_374, %c121_375] : memref<8x768xf32, #tpu.memory_space<vmem>>, vector<8x512xf32>
    %c88_376 = arith.constant 88 : index
    %c0_377 = arith.constant 0 : index
    %309 = vector.load %arg4[%c88_376, %c0_377] : memref<216x512xf32, #tpu.memory_space<vmem>>, vector<8x512xf32>
    %310 = arith.mulf %308, %309 : vector<8x512xf32>
    %c88_378 = arith.constant 88 : index
    %c0_379 = arith.constant 0 : index
    %311 = vector.load %arg7[%c88_378, %c0_379] : memref<256x512xf32, #tpu.memory_space<vmem>>, vector<8x512xf32>
    tpu.vector_store %arg7[%c88_378, %c0_379], %310 {strides = array<i32>} : memref<256x512xf32, #tpu.memory_space<vmem>>, vector<8x512xf32>,
    %c0_380 = arith.constant 0 : index
    %c127_381 = arith.constant 127 : index
    %312 = vector.load %arg8[%c0_380, %c127_381] : memref<8x768xf32, #tpu.memory_space<vmem>>, vector<8x512xf32>
    %c96_382 = arith.constant 96 : index
    %c0_383 = arith.constant 0 : index
    %313 = vector.load %arg4[%c96_382, %c0_383] : memref<216x512xf32, #tpu.memory_space<vmem>>, vector<8x512xf32>
    %314 = arith.mulf %312, %313 : vector<8x512xf32>
    %c96_384 = arith.constant 96 : index
    %c0_385 = arith.constant 0 : index
    %315 = vector.load %arg7[%c96_384, %c0_385] : memref<256x512xf32, #tpu.memory_space<vmem>>, vector<8x512xf32>
    tpu.vector_store %arg7[%c96_384, %c0_385], %314 {strides = array<i32>} : memref<256x512xf32, #tpu.memory_space<vmem>>, vector<8x512xf32>,
    %c0_386 = arith.constant 0 : index
    %c128_387 = arith.constant 128 : index
    %316 = vector.load %arg8[%c0_386, %c128_387] : memref<8x768xf32, #tpu.memory_space<vmem>>, vector<8x512xf32>
    %c104_388 = arith.constant 104 : index
    %c0_389 = arith.constant 0 : index
    %317 = vector.load %arg7[%c104_388, %c0_389] : memref<256x512xf32, #tpu.memory_space<vmem>>, vector<8x512xf32>
    tpu.vector_store %arg7[%c104_388, %c0_389], %316 {strides = array<i32>} : memref<256x512xf32, #tpu.memory_space<vmem>>, vector<8x512xf32>,
    %c0_390 = arith.constant 0 : index
    %c129_391 = arith.constant 129 : index
    %318 = vector.load %arg8[%c0_390, %c129_391] : memref<8x768xf32, #tpu.memory_space<vmem>>, vector<8x512xf32>
    %c112_392 = arith.constant 112 : index
    %c0_393 = arith.constant 0 : index
    %319 = vector.load %arg4[%c112_392, %c0_393] : memref<216x512xf32, #tpu.memory_space<vmem>>, vector<8x512xf32>
    %320 = arith.mulf %318, %319 : vector<8x512xf32>
    %c112_394 = arith.constant 112 : index
    %c0_395 = arith.constant 0 : index
    %321 = vector.load %arg7[%c112_394, %c0_395] : memref<256x512xf32, #tpu.memory_space<vmem>>, vector<8x512xf32>
    tpu.vector_store %arg7[%c112_394, %c0_395], %320 {strides = array<i32>} : memref<256x512xf32, #tpu.memory_space<vmem>>, vector<8x512xf32>,
    %c0_396 = arith.constant 0 : index
    %c135_397 = arith.constant 135 : index
    %322 = vector.load %arg8[%c0_396, %c135_397] : memref<8x768xf32, #tpu.memory_space<vmem>>, vector<8x512xf32>
    %c120_398 = arith.constant 120 : index
    %c0_399 = arith.constant 0 : index
    %323 = vector.load %arg4[%c120_398, %c0_399] : memref<216x512xf32, #tpu.memory_space<vmem>>, vector<8x512xf32>
    %324 = arith.mulf %322, %323 : vector<8x512xf32>
    %c120_400 = arith.constant 120 : index
    %c0_401 = arith.constant 0 : index
    %325 = vector.load %arg7[%c120_400, %c0_401] : memref<256x512xf32, #tpu.memory_space<vmem>>, vector<8x512xf32>
    tpu.vector_store %arg7[%c120_400, %c0_401], %324 {strides = array<i32>} : memref<256x512xf32, #tpu.memory_space<vmem>>, vector<8x512xf32>,
    %c0_402 = arith.constant 0 : index
    %c136_403 = arith.constant 136 : index
    %326 = vector.load %arg8[%c0_402, %c136_403] : memref<8x768xf32, #tpu.memory_space<vmem>>, vector<8x512xf32>
    %c128_404 = arith.constant 128 : index
    %c0_405 = arith.constant 0 : index
    %327 = vector.load %arg4[%c128_404, %c0_405] : memref<216x512xf32, #tpu.memory_space<vmem>>, vector<8x512xf32>
    %328 = arith.mulf %326, %327 : vector<8x512xf32>
    %c128_406 = arith.constant 128 : index
    %c0_407 = arith.constant 0 : index
    %329 = vector.load %arg7[%c128_406, %c0_407] : memref<256x512xf32, #tpu.memory_space<vmem>>, vector<8x512xf32>
    tpu.vector_store %arg7[%c128_406, %c0_407], %328 {strides = array<i32>} : memref<256x512xf32, #tpu.memory_space<vmem>>, vector<8x512xf32>,
    %c0_408 = arith.constant 0 : index
    %c137_409 = arith.constant 137 : index
    %330 = vector.load %arg8[%c0_408, %c137_409] : memref<8x768xf32, #tpu.memory_space<vmem>>, vector<8x512xf32>
    %c136_410 = arith.constant 136 : index
    %c0_411 = arith.constant 0 : index
    %331 = vector.load %arg4[%c136_410, %c0_411] : memref<216x512xf32, #tpu.memory_space<vmem>>, vector<8x512xf32>
    %332 = arith.mulf %330, %331 : vector<8x512xf32>
    %c136_412 = arith.constant 136 : index
    %c0_413 = arith.constant 0 : index
    %333 = vector.load %arg7[%c136_412, %c0_413] : memref<256x512xf32, #tpu.memory_space<vmem>>, vector<8x512xf32>
    tpu.vector_store %arg7[%c136_412, %c0_413], %332 {strides = array<i32>} : memref<256x512xf32, #tpu.memory_space<vmem>>, vector<8x512xf32>,
    %c0_414 = arith.constant 0 : index
    %c183_415 = arith.constant 183 : index
    %334 = vector.load %arg8[%c0_414, %c183_415] : memref<8x768xf32, #tpu.memory_space<vmem>>, vector<8x512xf32>
    %c144_416 = arith.constant 144 : index
    %c0_417 = arith.constant 0 : index
    %335 = vector.load %arg4[%c144_416, %c0_417] : memref<216x512xf32, #tpu.memory_space<vmem>>, vector<8x512xf32>
    %336 = arith.mulf %334, %335 : vector<8x512xf32>
    %c144_418 = arith.constant 144 : index
    %c0_419 = arith.constant 0 : index
    %337 = vector.load %arg7[%c144_418, %c0_419] : memref<256x512xf32, #tpu.memory_space<vmem>>, vector<8x512xf32>
    tpu.vector_store %arg7[%c144_418, %c0_419], %336 {strides = array<i32>} : memref<256x512xf32, #tpu.memory_space<vmem>>, vector<8x512xf32>,
    %c0_420 = arith.constant 0 : index
    %c184_421 = arith.constant 184 : index
    %338 = vector.load %arg8[%c0_420, %c184_421] : memref<8x768xf32, #tpu.memory_space<vmem>>, vector<8x512xf32>
    %c152_422 = arith.constant 152 : index
    %c0_423 = arith.constant 0 : index
    %339 = vector.load %arg4[%c152_422, %c0_423] : memref<216x512xf32, #tpu.memory_space<vmem>>, vector<8x512xf32>
    %340 = arith.mulf %338, %339 : vector<8x512xf32>
    %c152_424 = arith.constant 152 : index
    %c0_425 = arith.constant 0 : index
    %341 = vector.load %arg7[%c152_424, %c0_425] : memref<256x512xf32, #tpu.memory_space<vmem>>, vector<8x512xf32>
    tpu.vector_store %arg7[%c152_424, %c0_425], %340 {strides = array<i32>} : memref<256x512xf32, #tpu.memory_space<vmem>>, vector<8x512xf32>,
    %c0_426 = arith.constant 0 : index
    %c185_427 = arith.constant 185 : index
    %342 = vector.load %arg8[%c0_426, %c185_427] : memref<8x768xf32, #tpu.memory_space<vmem>>, vector<8x512xf32>
    %c160_428 = arith.constant 160 : index
    %c0_429 = arith.constant 0 : index
    %343 = vector.load %arg4[%c160_428, %c0_429] : memref<216x512xf32, #tpu.memory_space<vmem>>, vector<8x512xf32>
    %344 = arith.mulf %342, %343 : vector<8x512xf32>
    %c160_430 = arith.constant 160 : index
    %c0_431 = arith.constant 0 : index
    %345 = vector.load %arg7[%c160_430, %c0_431] : memref<256x512xf32, #tpu.memory_space<vmem>>, vector<8x512xf32>
    tpu.vector_store %arg7[%c160_430, %c0_431], %344 {strides = array<i32>} : memref<256x512xf32, #tpu.memory_space<vmem>>, vector<8x512xf32>,
    %c0_432 = arith.constant 0 : index
    %c191_433 = arith.constant 191 : index
    %346 = vector.load %arg8[%c0_432, %c191_433] : memref<8x768xf32, #tpu.memory_space<vmem>>, vector<8x512xf32>
    %c168_434 = arith.constant 168 : index
    %c0_435 = arith.constant 0 : index
    %347 = vector.load %arg4[%c168_434, %c0_435] : memref<216x512xf32, #tpu.memory_space<vmem>>, vector<8x512xf32>
    %348 = arith.mulf %346, %347 : vector<8x512xf32>
    %c168_436 = arith.constant 168 : index
    %c0_437 = arith.constant 0 : index
    %349 = vector.load %arg7[%c168_436, %c0_437] : memref<256x512xf32, #tpu.memory_space<vmem>>, vector<8x512xf32>
    tpu.vector_store %arg7[%c168_436, %c0_437], %348 {strides = array<i32>} : memref<256x512xf32, #tpu.memory_space<vmem>>, vector<8x512xf32>,
    %c0_438 = arith.constant 0 : index
    %c192_439 = arith.constant 192 : index
    %350 = vector.load %arg8[%c0_438, %c192_439] : memref<8x768xf32, #tpu.memory_space<vmem>>, vector<8x512xf32>
    %c176_440 = arith.constant 176 : index
    %c0_441 = arith.constant 0 : index
    %351 = vector.load %arg7[%c176_440, %c0_441] : memref<256x512xf32, #tpu.memory_space<vmem>>, vector<8x512xf32>
    tpu.vector_store %arg7[%c176_440, %c0_441], %350 {strides = array<i32>} : memref<256x512xf32, #tpu.memory_space<vmem>>, vector<8x512xf32>,
    %c0_442 = arith.constant 0 : index
    %c193_443 = arith.constant 193 : index
    %352 = vector.load %arg8[%c0_442, %c193_443] : memref<8x768xf32, #tpu.memory_space<vmem>>, vector<8x512xf32>
    %c184_444 = arith.constant 184 : index
    %c0_445 = arith.constant 0 : index
    %353 = vector.load %arg4[%c184_444, %c0_445] : memref<216x512xf32, #tpu.memory_space<vmem>>, vector<8x512xf32>
    %354 = arith.mulf %352, %353 : vector<8x512xf32>
    %c184_446 = arith.constant 184 : index
    %c0_447 = arith.constant 0 : index
    %355 = vector.load %arg7[%c184_446, %c0_447] : memref<256x512xf32, #tpu.memory_space<vmem>>, vector<8x512xf32>
    tpu.vector_store %arg7[%c184_446, %c0_447], %354 {strides = array<i32>} : memref<256x512xf32, #tpu.memory_space<vmem>>, vector<8x512xf32>,
    %c0_448 = arith.constant 0 : index
    %c199_449 = arith.constant 199 : index
    %356 = vector.load %arg8[%c0_448, %c199_449] : memref<8x768xf32, #tpu.memory_space<vmem>>, vector<8x512xf32>
    %c192_450 = arith.constant 192 : index
    %c0_451 = arith.constant 0 : index
    %357 = vector.load %arg4[%c192_450, %c0_451] : memref<216x512xf32, #tpu.memory_space<vmem>>, vector<8x512xf32>
    %358 = arith.mulf %356, %357 : vector<8x512xf32>
    %c192_452 = arith.constant 192 : index
    %c0_453 = arith.constant 0 : index
    %359 = vector.load %arg7[%c192_452, %c0_453] : memref<256x512xf32, #tpu.memory_space<vmem>>, vector<8x512xf32>
    tpu.vector_store %arg7[%c192_452, %c0_453], %358 {strides = array<i32>} : memref<256x512xf32, #tpu.memory_space<vmem>>, vector<8x512xf32>,
    %c0_454 = arith.constant 0 : index
    %c200_455 = arith.constant 200 : index
    %360 = vector.load %arg8[%c0_454, %c200_455] : memref<8x768xf32, #tpu.memory_space<vmem>>, vector<8x512xf32>
    %c200_456 = arith.constant 200 : index
    %c0_457 = arith.constant 0 : index
    %361 = vector.load %arg4[%c200_456, %c0_457] : memref<216x512xf32, #tpu.memory_space<vmem>>, vector<8x512xf32>
    %362 = arith.mulf %360, %361 : vector<8x512xf32>
    %c200_458 = arith.constant 200 : index
    %c0_459 = arith.constant 0 : index
    %363 = vector.load %arg7[%c200_458, %c0_459] : memref<256x512xf32, #tpu.memory_space<vmem>>, vector<8x512xf32>
    tpu.vector_store %arg7[%c200_458, %c0_459], %362 {strides = array<i32>} : memref<256x512xf32, #tpu.memory_space<vmem>>, vector<8x512xf32>,
    %c0_460 = arith.constant 0 : index
    %c201_461 = arith.constant 201 : index
    %364 = vector.load %arg8[%c0_460, %c201_461] : memref<8x768xf32, #tpu.memory_space<vmem>>, vector<8x512xf32>
    %c208_462 = arith.constant 208 : index
    %c0_463 = arith.constant 0 : index
    %365 = vector.load %arg4[%c208_462, %c0_463] : memref<216x512xf32, #tpu.memory_space<vmem>>, vector<8x512xf32>
    %366 = arith.mulf %364, %365 : vector<8x512xf32>
    %c208_464 = arith.constant 208 : index
    %c0_465 = arith.constant 0 : index
    %367 = vector.load %arg7[%c208_464, %c0_465] : memref<256x512xf32, #tpu.memory_space<vmem>>, vector<8x512xf32>
    tpu.vector_store %arg7[%c208_464, %c0_465], %366 {strides = array<i32>} : memref<256x512xf32, #tpu.memory_space<vmem>>, vector<8x512xf32>,
    %c0_466 = arith.constant 0 : index
    %c0_467 = arith.constant 0 : index
    %368 = vector.load %arg7[%c0_466, %c0_467] : memref<256x512xf32, #tpu.memory_space<vmem>>, vector<256x512xf32>
    %cst_468 = arith.constant dense<0.000000e+00> : vector<8x512xf32>
    %369 = tpu.matmul %6, %368, %cst_468 {dimension_numbers = #tpu.dot_dimension_numbers<[1], [0], [0], [1], [0, 0, 1, 1], [], []>} : vector<8x256xf32>, vector<256x512xf32>, vector<8x512xf32> -> vector<8x512xf32>
    %cst_469 = arith.constant dense<0.000000e+00> : vector<8x128xf32>
    %370 = tpu.matmul %369, %8, %cst_469 {dimension_numbers = #tpu.dot_dimension_numbers<[1], [0], [0], [1], [0, 0, 1, 1], [], []>} : vector<8x512xf32>, vector<512x128xf32>, vector<8x128xf32> -> vector<8x128xf32>
    %371 = vector.extract_strided_slice %370 {offsets = [0, 0], sizes = [8, 1], strides = [1, 1]} : vector<8x128xf32> to vector<8x1xf32>
    %372 = arith.mulf %369, %369 : vector<8x512xf32>
    %cst_470 = arith.constant dense<0.000000e+00> : vector<8x128xf32>
    %373 = tpu.matmul %372, %8, %cst_470 {dimension_numbers = #tpu.dot_dimension_numbers<[1], [0], [0], [1], [0, 0, 1, 1], [], []>} : vector<8x512xf32>, vector<512x128xf32>, vector<8x128xf32> -> vector<8x128xf32>
    %374 = vector.extract_strided_slice %373 {offsets = [0, 0], sizes = [8, 1], strides = [1, 1]} : vector<8x128xf32> to vector<8x1xf32>
    %cst_471 = arith.constant 0.001953125 : f32
    %375 = vector.broadcast %cst_471 : f32 to vector<8x1xf32>
    %376 = arith.mulf %371, %375 : vector<8x1xf32>
    %cst_472 = arith.constant 0.001953125 : f32
    %377 = vector.broadcast %cst_472 : f32 to vector<8x1xf32>
    %378 = arith.mulf %374, %377 : vector<8x1xf32>
    %379 = arith.mulf %376, %376 : vector<8x1xf32>
    %380 = arith.subf %378, %379 : vector<8x1xf32>
    %381 = vector.broadcast %376 : vector<8x1xf32> to vector<8x512xf32>
    %382 = arith.subf %369, %381 : vector<8x512xf32>
    %cst_473 = arith.constant 9.99999974E-6 : f32
    %383 = vector.broadcast %cst_473 : f32 to vector<8x1xf32>
    %384 = arith.addf %380, %383 : vector<8x1xf32>
    %385 = math.rsqrt %384 : vector<8x1xf32>
    %386 = vector.broadcast %385 : vector<8x1xf32> to vector<8x512xf32>
    %387 = arith.mulf %382, %386 : vector<8x512xf32>
    %cst_474 = arith.constant 0.000000e+00 : f32
    %388 = vector.broadcast %cst_474 : f32 to vector<8x512xf32>
    %389 = arith.maximumf %387, %388 : vector<8x512xf32>
    %c0_475 = arith.constant 0 : index
    %c128_476 = arith.constant 128 : index
    %390 = vector.load %arg8[%c0_475, %c128_476] : memref<8x768xf32, #tpu.memory_space<vmem>>, vector<8x512xf32>
    tpu.vector_store %arg8[%c0_475, %c128_476], %389 {strides = array<i32>} : memref<8x768xf32, #tpu.memory_space<vmem>>, vector<8x512xf32>,
    %c0_477 = arith.constant 0 : index
    %c55_478 = arith.constant 55 : index
    %391 = vector.load %arg8[%c0_477, %c55_478] : memref<8x768xf32, #tpu.memory_space<vmem>>, vector<8x512xf32>
    %c0_479 = arith.constant 0 : index
    %c0_480 = arith.constant 0 : index
    %392 = vector.load %arg4[%c0_479, %c0_480] : memref<216x512xf32, #tpu.memory_space<vmem>>, vector<8x512xf32>
    %393 = arith.mulf %391, %392 : vector<8x512xf32>
    %c0_481 = arith.constant 0 : index
    %c0_482 = arith.constant 0 : index
    %394 = vector.load %arg7[%c0_481, %c0_482] : memref<256x512xf32, #tpu.memory_space<vmem>>, vector<8x512xf32>
    tpu.vector_store %arg7[%c0_481, %c0_482], %393 {strides = array<i32>} : memref<256x512xf32, #tpu.memory_space<vmem>>, vector<8x512xf32>,
    %c0_483 = arith.constant 0 : index
    %c56_484 = arith.constant 56 : index
    %395 = vector.load %arg8[%c0_483, %c56_484] : memref<8x768xf32, #tpu.memory_space<vmem>>, vector<8x512xf32>
    %c8_485 = arith.constant 8 : index
    %c0_486 = arith.constant 0 : index
    %396 = vector.load %arg4[%c8_485, %c0_486] : memref<216x512xf32, #tpu.memory_space<vmem>>, vector<8x512xf32>
    %397 = arith.mulf %395, %396 : vector<8x512xf32>
    %c8_487 = arith.constant 8 : index
    %c0_488 = arith.constant 0 : index
    %398 = vector.load %arg7[%c8_487, %c0_488] : memref<256x512xf32, #tpu.memory_space<vmem>>, vector<8x512xf32>
    tpu.vector_store %arg7[%c8_487, %c0_488], %397 {strides = array<i32>} : memref<256x512xf32, #tpu.memory_space<vmem>>, vector<8x512xf32>,
    %c0_489 = arith.constant 0 : index
    %c57_490 = arith.constant 57 : index
    %399 = vector.load %arg8[%c0_489, %c57_490] : memref<8x768xf32, #tpu.memory_space<vmem>>, vector<8x512xf32>
    %c16_491 = arith.constant 16 : index
    %c0_492 = arith.constant 0 : index
    %400 = vector.load %arg4[%c16_491, %c0_492] : memref<216x512xf32, #tpu.memory_space<vmem>>, vector<8x512xf32>
    %401 = arith.mulf %399, %400 : vector<8x512xf32>
    %c16_493 = arith.constant 16 : index
    %c0_494 = arith.constant 0 : index
    %402 = vector.load %arg7[%c16_493, %c0_494] : memref<256x512xf32, #tpu.memory_space<vmem>>, vector<8x512xf32>
    tpu.vector_store %arg7[%c16_493, %c0_494], %401 {strides = array<i32>} : memref<256x512xf32, #tpu.memory_space<vmem>>, vector<8x512xf32>,
    %c0_495 = arith.constant 0 : index
    %c63_496 = arith.constant 63 : index
    %403 = vector.load %arg8[%c0_495, %c63_496] : memref<8x768xf32, #tpu.memory_space<vmem>>, vector<8x512xf32>
    %c24_497 = arith.constant 24 : index
    %c0_498 = arith.constant 0 : index
    %404 = vector.load %arg4[%c24_497, %c0_498] : memref<216x512xf32, #tpu.memory_space<vmem>>, vector<8x512xf32>
    %405 = arith.mulf %403, %404 : vector<8x512xf32>
    %c24_499 = arith.constant 24 : index
    %c0_500 = arith.constant 0 : index
    %406 = vector.load %arg7[%c24_499, %c0_500] : memref<256x512xf32, #tpu.memory_space<vmem>>, vector<8x512xf32>
    tpu.vector_store %arg7[%c24_499, %c0_500], %405 {strides = array<i32>} : memref<256x512xf32, #tpu.memory_space<vmem>>, vector<8x512xf32>,
    %c0_501 = arith.constant 0 : index
    %c64_502 = arith.constant 64 : index
    %407 = vector.load %arg8[%c0_501, %c64_502] : memref<8x768xf32, #tpu.memory_space<vmem>>, vector<8x512xf32>
    %c32_503 = arith.constant 32 : index
    %c0_504 = arith.constant 0 : index
    %408 = vector.load %arg7[%c32_503, %c0_504] : memref<256x512xf32, #tpu.memory_space<vmem>>, vector<8x512xf32>
    tpu.vector_store %arg7[%c32_503, %c0_504], %407 {strides = array<i32>} : memref<256x512xf32, #tpu.memory_space<vmem>>, vector<8x512xf32>,
    %c0_505 = arith.constant 0 : index
    %c65_506 = arith.constant 65 : index
    %409 = vector.load %arg8[%c0_505, %c65_506] : memref<8x768xf32, #tpu.memory_space<vmem>>, vector<8x512xf32>
    %c40_507 = arith.constant 40 : index
    %c0_508 = arith.constant 0 : index
    %410 = vector.load %arg4[%c40_507, %c0_508] : memref<216x512xf32, #tpu.memory_space<vmem>>, vector<8x512xf32>
    %411 = arith.mulf %409, %410 : vector<8x512xf32>
    %c40_509 = arith.constant 40 : index
    %c0_510 = arith.constant 0 : index
    %412 = vector.load %arg7[%c40_509, %c0_510] : memref<256x512xf32, #tpu.memory_space<vmem>>, vector<8x512xf32>
    tpu.vector_store %arg7[%c40_509, %c0_510], %411 {strides = array<i32>} : memref<256x512xf32, #tpu.memory_space<vmem>>, vector<8x512xf32>,
    %c0_511 = arith.constant 0 : index
    %c71_512 = arith.constant 71 : index
    %413 = vector.load %arg8[%c0_511, %c71_512] : memref<8x768xf32, #tpu.memory_space<vmem>>, vector<8x512xf32>
    %c48_513 = arith.constant 48 : index
    %c0_514 = arith.constant 0 : index
    %414 = vector.load %arg4[%c48_513, %c0_514] : memref<216x512xf32, #tpu.memory_space<vmem>>, vector<8x512xf32>
    %415 = arith.mulf %413, %414 : vector<8x512xf32>
    %c48_515 = arith.constant 48 : index
    %c0_516 = arith.constant 0 : index
    %416 = vector.load %arg7[%c48_515, %c0_516] : memref<256x512xf32, #tpu.memory_space<vmem>>, vector<8x512xf32>
    tpu.vector_store %arg7[%c48_515, %c0_516], %415 {strides = array<i32>} : memref<256x512xf32, #tpu.memory_space<vmem>>, vector<8x512xf32>,
    %c0_517 = arith.constant 0 : index
    %c72_518 = arith.constant 72 : index
    %417 = vector.load %arg8[%c0_517, %c72_518] : memref<8x768xf32, #tpu.memory_space<vmem>>, vector<8x512xf32>
    %c56_519 = arith.constant 56 : index
    %c0_520 = arith.constant 0 : index
    %418 = vector.load %arg4[%c56_519, %c0_520] : memref<216x512xf32, #tpu.memory_space<vmem>>, vector<8x512xf32>
    %419 = arith.mulf %417, %418 : vector<8x512xf32>
    %c56_521 = arith.constant 56 : index
    %c0_522 = arith.constant 0 : index
    %420 = vector.load %arg7[%c56_521, %c0_522] : memref<256x512xf32, #tpu.memory_space<vmem>>, vector<8x512xf32>
    tpu.vector_store %arg7[%c56_521, %c0_522], %419 {strides = array<i32>} : memref<256x512xf32, #tpu.memory_space<vmem>>, vector<8x512xf32>,
    %c0_523 = arith.constant 0 : index
    %c73_524 = arith.constant 73 : index
    %421 = vector.load %arg8[%c0_523, %c73_524] : memref<8x768xf32, #tpu.memory_space<vmem>>, vector<8x512xf32>
    %c64_525 = arith.constant 64 : index
    %c0_526 = arith.constant 0 : index
    %422 = vector.load %arg4[%c64_525, %c0_526] : memref<216x512xf32, #tpu.memory_space<vmem>>, vector<8x512xf32>
    %423 = arith.mulf %421, %422 : vector<8x512xf32>
    %c64_527 = arith.constant 64 : index
    %c0_528 = arith.constant 0 : index
    %424 = vector.load %arg7[%c64_527, %c0_528] : memref<256x512xf32, #tpu.memory_space<vmem>>, vector<8x512xf32>
    tpu.vector_store %arg7[%c64_527, %c0_528], %423 {strides = array<i32>} : memref<256x512xf32, #tpu.memory_space<vmem>>, vector<8x512xf32>,
    %c0_529 = arith.constant 0 : index
    %c119_530 = arith.constant 119 : index
    %425 = vector.load %arg8[%c0_529, %c119_530] : memref<8x768xf32, #tpu.memory_space<vmem>>, vector<8x512xf32>
    %c72_531 = arith.constant 72 : index
    %c0_532 = arith.constant 0 : index
    %426 = vector.load %arg4[%c72_531, %c0_532] : memref<216x512xf32, #tpu.memory_space<vmem>>, vector<8x512xf32>
    %427 = arith.mulf %425, %426 : vector<8x512xf32>
    %c72_533 = arith.constant 72 : index
    %c0_534 = arith.constant 0 : index
    %428 = vector.load %arg7[%c72_533, %c0_534] : memref<256x512xf32, #tpu.memory_space<vmem>>, vector<8x512xf32>
    tpu.vector_store %arg7[%c72_533, %c0_534], %427 {strides = array<i32>} : memref<256x512xf32, #tpu.memory_space<vmem>>, vector<8x512xf32>,
    %c0_535 = arith.constant 0 : index
    %c120_536 = arith.constant 120 : index
    %429 = vector.load %arg8[%c0_535, %c120_536] : memref<8x768xf32, #tpu.memory_space<vmem>>, vector<8x512xf32>
    %c80_537 = arith.constant 80 : index
    %c0_538 = arith.constant 0 : index
    %430 = vector.load %arg4[%c80_537, %c0_538] : memref<216x512xf32, #tpu.memory_space<vmem>>, vector<8x512xf32>
    %431 = arith.mulf %429, %430 : vector<8x512xf32>
    %c80_539 = arith.constant 80 : index
    %c0_540 = arith.constant 0 : index
    %432 = vector.load %arg7[%c80_539, %c0_540] : memref<256x512xf32, #tpu.memory_space<vmem>>, vector<8x512xf32>
    tpu.vector_store %arg7[%c80_539, %c0_540], %431 {strides = array<i32>} : memref<256x512xf32, #tpu.memory_space<vmem>>, vector<8x512xf32>,
    %c0_541 = arith.constant 0 : index
    %c121_542 = arith.constant 121 : index
    %433 = vector.load %arg8[%c0_541, %c121_542] : memref<8x768xf32, #tpu.memory_space<vmem>>, vector<8x512xf32>
    %c88_543 = arith.constant 88 : index
    %c0_544 = arith.constant 0 : index
    %434 = vector.load %arg4[%c88_543, %c0_544] : memref<216x512xf32, #tpu.memory_space<vmem>>, vector<8x512xf32>
    %435 = arith.mulf %433, %434 : vector<8x512xf32>
    %c88_545 = arith.constant 88 : index
    %c0_546 = arith.constant 0 : index
    %436 = vector.load %arg7[%c88_545, %c0_546] : memref<256x512xf32, #tpu.memory_space<vmem>>, vector<8x512xf32>
    tpu.vector_store %arg7[%c88_545, %c0_546], %435 {strides = array<i32>} : memref<256x512xf32, #tpu.memory_space<vmem>>, vector<8x512xf32>,
    %c0_547 = arith.constant 0 : index
    %c127_548 = arith.constant 127 : index
    %437 = vector.load %arg8[%c0_547, %c127_548] : memref<8x768xf32, #tpu.memory_space<vmem>>, vector<8x512xf32>
    %c96_549 = arith.constant 96 : index
    %c0_550 = arith.constant 0 : index
    %438 = vector.load %arg4[%c96_549, %c0_550] : memref<216x512xf32, #tpu.memory_space<vmem>>, vector<8x512xf32>
    %439 = arith.mulf %437, %438 : vector<8x512xf32>
    %c96_551 = arith.constant 96 : index
    %c0_552 = arith.constant 0 : index
    %440 = vector.load %arg7[%c96_551, %c0_552] : memref<256x512xf32, #tpu.memory_space<vmem>>, vector<8x512xf32>
    tpu.vector_store %arg7[%c96_551, %c0_552], %439 {strides = array<i32>} : memref<256x512xf32, #tpu.memory_space<vmem>>, vector<8x512xf32>,
    %c0_553 = arith.constant 0 : index
    %c128_554 = arith.constant 128 : index
    %441 = vector.load %arg8[%c0_553, %c128_554] : memref<8x768xf32, #tpu.memory_space<vmem>>, vector<8x512xf32>
    %c104_555 = arith.constant 104 : index
    %c0_556 = arith.constant 0 : index
    %442 = vector.load %arg7[%c104_555, %c0_556] : memref<256x512xf32, #tpu.memory_space<vmem>>, vector<8x512xf32>
    tpu.vector_store %arg7[%c104_555, %c0_556], %441 {strides = array<i32>} : memref<256x512xf32, #tpu.memory_space<vmem>>, vector<8x512xf32>,
    %c0_557 = arith.constant 0 : index
    %c129_558 = arith.constant 129 : index
    %443 = vector.load %arg8[%c0_557, %c129_558] : memref<8x768xf32, #tpu.memory_space<vmem>>, vector<8x512xf32>
    %c112_559 = arith.constant 112 : index
    %c0_560 = arith.constant 0 : index
    %444 = vector.load %arg4[%c112_559, %c0_560] : memref<216x512xf32, #tpu.memory_space<vmem>>, vector<8x512xf32>
    %445 = arith.mulf %443, %444 : vector<8x512xf32>
    %c112_561 = arith.constant 112 : index
    %c0_562 = arith.constant 0 : index
    %446 = vector.load %arg7[%c112_561, %c0_562] : memref<256x512xf32, #tpu.memory_space<vmem>>, vector<8x512xf32>
    tpu.vector_store %arg7[%c112_561, %c0_562], %445 {strides = array<i32>} : memref<256x512xf32, #tpu.memory_space<vmem>>, vector<8x512xf32>,
    %c0_563 = arith.constant 0 : index
    %c135_564 = arith.constant 135 : index
    %447 = vector.load %arg8[%c0_563, %c135_564] : memref<8x768xf32, #tpu.memory_space<vmem>>, vector<8x512xf32>
    %c120_565 = arith.constant 120 : index
    %c0_566 = arith.constant 0 : index
    %448 = vector.load %arg4[%c120_565, %c0_566] : memref<216x512xf32, #tpu.memory_space<vmem>>, vector<8x512xf32>
    %449 = arith.mulf %447, %448 : vector<8x512xf32>
    %c120_567 = arith.constant 120 : index
    %c0_568 = arith.constant 0 : index
    %450 = vector.load %arg7[%c120_567, %c0_568] : memref<256x512xf32, #tpu.memory_space<vmem>>, vector<8x512xf32>
    tpu.vector_store %arg7[%c120_567, %c0_568], %449 {strides = array<i32>} : memref<256x512xf32, #tpu.memory_space<vmem>>, vector<8x512xf32>,
    %c0_569 = arith.constant 0 : index
    %c136_570 = arith.constant 136 : index
    %451 = vector.load %arg8[%c0_569, %c136_570] : memref<8x768xf32, #tpu.memory_space<vmem>>, vector<8x512xf32>
    %c128_571 = arith.constant 128 : index
    %c0_572 = arith.constant 0 : index
    %452 = vector.load %arg4[%c128_571, %c0_572] : memref<216x512xf32, #tpu.memory_space<vmem>>, vector<8x512xf32>
    %453 = arith.mulf %451, %452 : vector<8x512xf32>
    %c128_573 = arith.constant 128 : index
    %c0_574 = arith.constant 0 : index
    %454 = vector.load %arg7[%c128_573, %c0_574] : memref<256x512xf32, #tpu.memory_space<vmem>>, vector<8x512xf32>
    tpu.vector_store %arg7[%c128_573, %c0_574], %453 {strides = array<i32>} : memref<256x512xf32, #tpu.memory_space<vmem>>, vector<8x512xf32>,
    %c0_575 = arith.constant 0 : index
    %c137_576 = arith.constant 137 : index
    %455 = vector.load %arg8[%c0_575, %c137_576] : memref<8x768xf32, #tpu.memory_space<vmem>>, vector<8x512xf32>
    %c136_577 = arith.constant 136 : index
    %c0_578 = arith.constant 0 : index
    %456 = vector.load %arg4[%c136_577, %c0_578] : memref<216x512xf32, #tpu.memory_space<vmem>>, vector<8x512xf32>
    %457 = arith.mulf %455, %456 : vector<8x512xf32>
    %c136_579 = arith.constant 136 : index
    %c0_580 = arith.constant 0 : index
    %458 = vector.load %arg7[%c136_579, %c0_580] : memref<256x512xf32, #tpu.memory_space<vmem>>, vector<8x512xf32>
    tpu.vector_store %arg7[%c136_579, %c0_580], %457 {strides = array<i32>} : memref<256x512xf32, #tpu.memory_space<vmem>>, vector<8x512xf32>,
    %c0_581 = arith.constant 0 : index
    %c183_582 = arith.constant 183 : index
    %459 = vector.load %arg8[%c0_581, %c183_582] : memref<8x768xf32, #tpu.memory_space<vmem>>, vector<8x512xf32>
    %c144_583 = arith.constant 144 : index
    %c0_584 = arith.constant 0 : index
    %460 = vector.load %arg4[%c144_583, %c0_584] : memref<216x512xf32, #tpu.memory_space<vmem>>, vector<8x512xf32>
    %461 = arith.mulf %459, %460 : vector<8x512xf32>
    %c144_585 = arith.constant 144 : index
    %c0_586 = arith.constant 0 : index
    %462 = vector.load %arg7[%c144_585, %c0_586] : memref<256x512xf32, #tpu.memory_space<vmem>>, vector<8x512xf32>
    tpu.vector_store %arg7[%c144_585, %c0_586], %461 {strides = array<i32>} : memref<256x512xf32, #tpu.memory_space<vmem>>, vector<8x512xf32>,
    %c0_587 = arith.constant 0 : index
    %c184_588 = arith.constant 184 : index
    %463 = vector.load %arg8[%c0_587, %c184_588] : memref<8x768xf32, #tpu.memory_space<vmem>>, vector<8x512xf32>
    %c152_589 = arith.constant 152 : index
    %c0_590 = arith.constant 0 : index
    %464 = vector.load %arg4[%c152_589, %c0_590] : memref<216x512xf32, #tpu.memory_space<vmem>>, vector<8x512xf32>
    %465 = arith.mulf %463, %464 : vector<8x512xf32>
    %c152_591 = arith.constant 152 : index
    %c0_592 = arith.constant 0 : index
    %466 = vector.load %arg7[%c152_591, %c0_592] : memref<256x512xf32, #tpu.memory_space<vmem>>, vector<8x512xf32>
    tpu.vector_store %arg7[%c152_591, %c0_592], %465 {strides = array<i32>} : memref<256x512xf32, #tpu.memory_space<vmem>>, vector<8x512xf32>,
    %c0_593 = arith.constant 0 : index
    %c185_594 = arith.constant 185 : index
    %467 = vector.load %arg8[%c0_593, %c185_594] : memref<8x768xf32, #tpu.memory_space<vmem>>, vector<8x512xf32>
    %c160_595 = arith.constant 160 : index
    %c0_596 = arith.constant 0 : index
    %468 = vector.load %arg4[%c160_595, %c0_596] : memref<216x512xf32, #tpu.memory_space<vmem>>, vector<8x512xf32>
    %469 = arith.mulf %467, %468 : vector<8x512xf32>
    %c160_597 = arith.constant 160 : index
    %c0_598 = arith.constant 0 : index
    %470 = vector.load %arg7[%c160_597, %c0_598] : memref<256x512xf32, #tpu.memory_space<vmem>>, vector<8x512xf32>
    tpu.vector_store %arg7[%c160_597, %c0_598], %469 {strides = array<i32>} : memref<256x512xf32, #tpu.memory_space<vmem>>, vector<8x512xf32>,
    %c0_599 = arith.constant 0 : index
    %c191_600 = arith.constant 191 : index
    %471 = vector.load %arg8[%c0_599, %c191_600] : memref<8x768xf32, #tpu.memory_space<vmem>>, vector<8x512xf32>
    %c168_601 = arith.constant 168 : index
    %c0_602 = arith.constant 0 : index
    %472 = vector.load %arg4[%c168_601, %c0_602] : memref<216x512xf32, #tpu.memory_space<vmem>>, vector<8x512xf32>
    %473 = arith.mulf %471, %472 : vector<8x512xf32>
    %c168_603 = arith.constant 168 : index
    %c0_604 = arith.constant 0 : index
    %474 = vector.load %arg7[%c168_603, %c0_604] : memref<256x512xf32, #tpu.memory_space<vmem>>, vector<8x512xf32>
    tpu.vector_store %arg7[%c168_603, %c0_604], %473 {strides = array<i32>} : memref<256x512xf32, #tpu.memory_space<vmem>>, vector<8x512xf32>,
    %c0_605 = arith.constant 0 : index
    %c192_606 = arith.constant 192 : index
    %475 = vector.load %arg8[%c0_605, %c192_606] : memref<8x768xf32, #tpu.memory_space<vmem>>, vector<8x512xf32>
    %c176_607 = arith.constant 176 : index
    %c0_608 = arith.constant 0 : index
    %476 = vector.load %arg7[%c176_607, %c0_608] : memref<256x512xf32, #tpu.memory_space<vmem>>, vector<8x512xf32>
    tpu.vector_store %arg7[%c176_607, %c0_608], %475 {strides = array<i32>} : memref<256x512xf32, #tpu.memory_space<vmem>>, vector<8x512xf32>,
    %c0_609 = arith.constant 0 : index
    %c193_610 = arith.constant 193 : index
    %477 = vector.load %arg8[%c0_609, %c193_610] : memref<8x768xf32, #tpu.memory_space<vmem>>, vector<8x512xf32>
    %c184_611 = arith.constant 184 : index
    %c0_612 = arith.constant 0 : index
    %478 = vector.load %arg4[%c184_611, %c0_612] : memref<216x512xf32, #tpu.memory_space<vmem>>, vector<8x512xf32>
    %479 = arith.mulf %477, %478 : vector<8x512xf32>
    %c184_613 = arith.constant 184 : index
    %c0_614 = arith.constant 0 : index
    %480 = vector.load %arg7[%c184_613, %c0_614] : memref<256x512xf32, #tpu.memory_space<vmem>>, vector<8x512xf32>
    tpu.vector_store %arg7[%c184_613, %c0_614], %479 {strides = array<i32>} : memref<256x512xf32, #tpu.memory_space<vmem>>, vector<8x512xf32>,
    %c0_615 = arith.constant 0 : index
    %c199_616 = arith.constant 199 : index
    %481 = vector.load %arg8[%c0_615, %c199_616] : memref<8x768xf32, #tpu.memory_space<vmem>>, vector<8x512xf32>
    %c192_617 = arith.constant 192 : index
    %c0_618 = arith.constant 0 : index
    %482 = vector.load %arg4[%c192_617, %c0_618] : memref<216x512xf32, #tpu.memory_space<vmem>>, vector<8x512xf32>
    %483 = arith.mulf %481, %482 : vector<8x512xf32>
    %c192_619 = arith.constant 192 : index
    %c0_620 = arith.constant 0 : index
    %484 = vector.load %arg7[%c192_619, %c0_620] : memref<256x512xf32, #tpu.memory_space<vmem>>, vector<8x512xf32>
    tpu.vector_store %arg7[%c192_619, %c0_620], %483 {strides = array<i32>} : memref<256x512xf32, #tpu.memory_space<vmem>>, vector<8x512xf32>,
    %c0_621 = arith.constant 0 : index
    %c200_622 = arith.constant 200 : index
    %485 = vector.load %arg8[%c0_621, %c200_622] : memref<8x768xf32, #tpu.memory_space<vmem>>, vector<8x512xf32>
    %c200_623 = arith.constant 200 : index
    %c0_624 = arith.constant 0 : index
    %486 = vector.load %arg4[%c200_623, %c0_624] : memref<216x512xf32, #tpu.memory_space<vmem>>, vector<8x512xf32>
    %487 = arith.mulf %485, %486 : vector<8x512xf32>
    %c200_625 = arith.constant 200 : index
    %c0_626 = arith.constant 0 : index
    %488 = vector.load %arg7[%c200_625, %c0_626] : memref<256x512xf32, #tpu.memory_space<vmem>>, vector<8x512xf32>
    tpu.vector_store %arg7[%c200_625, %c0_626], %487 {strides = array<i32>} : memref<256x512xf32, #tpu.memory_space<vmem>>, vector<8x512xf32>,
    %c0_627 = arith.constant 0 : index
    %c201_628 = arith.constant 201 : index
    %489 = vector.load %arg8[%c0_627, %c201_628] : memref<8x768xf32, #tpu.memory_space<vmem>>, vector<8x512xf32>
    %c208_629 = arith.constant 208 : index
    %c0_630 = arith.constant 0 : index
    %490 = vector.load %arg4[%c208_629, %c0_630] : memref<216x512xf32, #tpu.memory_space<vmem>>, vector<8x512xf32>
    %491 = arith.mulf %489, %490 : vector<8x512xf32>
    %c208_631 = arith.constant 208 : index
    %c0_632 = arith.constant 0 : index
    %492 = vector.load %arg7[%c208_631, %c0_632] : memref<256x512xf32, #tpu.memory_space<vmem>>, vector<8x512xf32>
    tpu.vector_store %arg7[%c208_631, %c0_632], %491 {strides = array<i32>} : memref<256x512xf32, #tpu.memory_space<vmem>>, vector<8x512xf32>,
    %c0_633 = arith.constant 0 : index
    %c0_634 = arith.constant 0 : index
    %493 = vector.load %arg7[%c0_633, %c0_634] : memref<256x512xf32, #tpu.memory_space<vmem>>, vector<256x512xf32>
    %cst_635 = arith.constant dense<0.000000e+00> : vector<8x512xf32>
    %494 = tpu.matmul %7, %493, %cst_635 {dimension_numbers = #tpu.dot_dimension_numbers<[1], [0], [0], [1], [0, 0, 1, 1], [], []>} : vector<8x256xf32>, vector<256x512xf32>, vector<8x512xf32> -> vector<8x512xf32>
    %cst_636 = arith.constant dense<0.000000e+00> : vector<8x128xf32>
    %495 = tpu.matmul %494, %8, %cst_636 {dimension_numbers = #tpu.dot_dimension_numbers<[1], [0], [0], [1], [0, 0, 1, 1], [], []>} : vector<8x512xf32>, vector<512x128xf32>, vector<8x128xf32> -> vector<8x128xf32>
    %496 = vector.extract_strided_slice %495 {offsets = [0, 0], sizes = [8, 1], strides = [1, 1]} : vector<8x128xf32> to vector<8x1xf32>
    %497 = arith.mulf %494, %494 : vector<8x512xf32>
    %cst_637 = arith.constant dense<0.000000e+00> : vector<8x128xf32>
    %498 = tpu.matmul %497, %8, %cst_637 {dimension_numbers = #tpu.dot_dimension_numbers<[1], [0], [0], [1], [0, 0, 1, 1], [], []>} : vector<8x512xf32>, vector<512x128xf32>, vector<8x128xf32> -> vector<8x128xf32>
    %499 = vector.extract_strided_slice %498 {offsets = [0, 0], sizes = [8, 1], strides = [1, 1]} : vector<8x128xf32> to vector<8x1xf32>
    %cst_638 = arith.constant 0.001953125 : f32
    %500 = vector.broadcast %cst_638 : f32 to vector<8x1xf32>
    %501 = arith.mulf %496, %500 : vector<8x1xf32>
    %cst_639 = arith.constant 0.001953125 : f32
    %502 = vector.broadcast %cst_639 : f32 to vector<8x1xf32>
    %503 = arith.mulf %499, %502 : vector<8x1xf32>
    %504 = arith.mulf %501, %501 : vector<8x1xf32>
    %505 = arith.subf %503, %504 : vector<8x1xf32>
    %506 = vector.broadcast %501 : vector<8x1xf32> to vector<8x512xf32>
    %507 = arith.subf %494, %506 : vector<8x512xf32>
    %cst_640 = arith.constant 9.99999974E-6 : f32
    %508 = vector.broadcast %cst_640 : f32 to vector<8x1xf32>
    %509 = arith.addf %505, %508 : vector<8x1xf32>
    %510 = math.rsqrt %509 : vector<8x1xf32>
    %511 = vector.broadcast %510 : vector<8x1xf32> to vector<8x512xf32>
    %512 = arith.mulf %507, %511 : vector<8x512xf32>
    %513 = arith.addf %264, %512 : vector<8x512xf32>
    %c1_641 = arith.constant 1 : index
    %c0_642 = arith.constant 0 : index
    %c0_643 = arith.constant 0 : index
    %514 = vector.load %arg6[%c1_641, %c0_642, %c0_643] : memref<2x8x512xf32, #tpu.memory_space<vmem>>, vector<1x8x512xf32>
    %515 = vector.shape_cast %514 : vector<1x8x512xf32> to vector<8x512xf32>
    %516 = vector.shape_cast %513 : vector<8x512xf32> to vector<1x8x512xf32>
    tpu.vector_store %arg6[%c1_641, %c0_642, %c0_643], %516 {strides = array<i32>} : memref<2x8x512xf32, #tpu.memory_space<vmem>>, vector<1x8x512xf32>,
    return
  }
  func.func @transform_0(%arg0: i32) -> (i32, i32, i32) {
    %c0_i32 = arith.constant 0 : i32
    %c0_i32_0 = arith.constant 0 : i32
    %c0_i32_1 = arith.constant 0 : i32
    return %arg0, %c0_i32, %c0_i32_0 : i32, i32, i32
  }
  func.func @transform_1(%arg0: i32) -> (i32, i32) {
    %c0_i32 = arith.constant 0 : i32
    %c0_i32_0 = arith.constant 0 : i32
    %c0_i32_1 = arith.constant 0 : i32
    return %c0_i32, %c0_i32_0 : i32, i32
  }
  func.func @transform_2(%arg0: i32) -> (i32, i32) {
    %c0_i32 = arith.constant 0 : i32
    %c0_i32_0 = arith.constant 0 : i32
    %c0_i32_1 = arith.constant 0 : i32
    return %c0_i32, %c0_i32_0 : i32, i32
  }
  func.func @transform_3(%arg0: i32) -> (i32, i32) {
    %c0_i32 = arith.constant 0 : i32
    %c0_i32_0 = arith.constant 0 : i32
    %c0_i32_1 = arith.constant 0 : i32
    return %c0_i32, %c0_i32_0 : i32, i32
  }
  func.func @transform_4(%arg0: i32) -> (i32, i32) {
    %c0_i32 = arith.constant 0 : i32
    %c0_i32_0 = arith.constant 0 : i32
    %c0_i32_1 = arith.constant 0 : i32
    return %c0_i32, %c0_i32_0 : i32, i32
  }
  func.func @transform_5(%arg0: i32) -> (i32, i32, i32) {
    %c0_i32 = arith.constant 0 : i32
    %c0_i32_0 = arith.constant 0 : i32
    %c0_i32_1 = arith.constant 0 : i32
    return %arg0, %c0_i32, %c0_i32_0 : i32, i32, i32
  }
}

</mosaic_0001>

<llo_original>
// kernel: resnet_block_forward.1
$region0: #{resnet_block_forward.1}
  #allocation0 [shape = 'u32[]', space=smem, size = 0x4, offset = 0x4, fixed_abs, tag = 'smem constant byte address 0x4 - core index']
  #allocation1 [shape = 'u32[72,128]{1,0:T(1,128)}', space=vmem, size = 0x9000, scoped, tag = 'internal scratch']
  #allocation2 [shape = 'f32[256,512]{1,0:T(8,128)}', space=vmem, size = 0x80000, scoped, tag = 'scratch operand']
  #allocation3 [shape = 'f32[8,768]{1,0:T(8,128)}', space=vmem, size = 0x6000, scoped, tag = 'scratch operand']
  %s0 = inlined_call_operand.vmem [shape: f32[4,8,512], index: 0, kind: input, shape index: {}]
  %s1 = inlined_call_operand.vmem [shape: f32[8,256], index: 1, kind: input, shape index: {}]
  %s2 = inlined_call_operand.vmem [shape: f32[8,256], index: 2, kind: input, shape index: {}]
  %s3 = inlined_call_operand.vmem [shape: f32[216,512], index: 3, kind: input, shape index: {}]
  %s4 = inlined_call_operand.vmem [shape: f32[512,128], index: 4, kind: input, shape index: {}]
  %s5 = inlined_call_operand.vmem [shape: f32[4,8,512], index: 5, kind: output, shape index: {}]
  %s6 = sld [smem:[#allocation0]]
  $region53: #{resnet_block_forward.1} parent=0
    _
  %s8 = ssub.s32 1, %s6
  %s9 = scalar_select 0, %s8, %s6
  loop: start=0, step=1, limit=4
  $region2: #{resnet_block_forward.1} parent=0 // loop_pre_header
    _
  $region3: #{resnet_block_forward.1} parent=0 // loop_header
    %s11 = sphi 0, %s15
    %p12 = scmp.ge.s32.totalorder %s11, 4
    %s21 = sphi 0, %s23
    %s24 = sphi 0, %s21
    %s25 = sphi 0, %s24
    %s41 = sphi 0, %s25
    %s45 = sphi 0, %s45
    %s47 = sphi 0, %s45
    %s48 = sphi 0, %s47
    %s62 = sphi 0, %s48
    %s66 = sphi 0, %s66
    %s68 = sphi 0, %s66
    %s69 = sphi 0, %s68
    %s83 = sphi 0, %s69
    %s87 = sphi 0, %s87
    %s89 = sphi 0, %s87
    %s90 = sphi 0, %s89
    %s104 = sphi 0, %s90
    %s108 = sphi 0, %s108
    %s110 = sphi 0, %s108
    %s111 = sphi 0, %s110
    %s125 = sphi 0, %s111
    %s131 = sphi 0, %s133
    %s134 = sphi 0, %s131
    %s135 = sphi 0, %s134
    %s151 = sphi 0, %s135
  $region4: #{resnet_block_forward.1} parent=0 // loop_header_branch
    %14 = sbr.rel (%p12) target = $region8
  $region5: #{resnet_block_forward.1} parent=0 // loop_body
    %s16 = ssub.s32 %s11, 1
    %s17 = ssub.s32 %s11, 2
    %s18 = sadd.s32 %s11, 1
    %s19 = ssub.s32 %s11, %s18
    %p20 = scmp.eq.s32.totalorder %s19, 0
    %s22 = sadd.s32 %s21, 1
    %s23 = scalar_select %p20, %s21, %s22
    %p26 = pneg %p20
    %p27 = scmp.eq.s32.totalorder %s11, 1
    %p28 = por %p26, %p27
    %p29 = scmp.ne.s32.totalorder %s21, %s24
    %p30 = scmp.eq.s32.totalorder %s11, 0
    %p31 = por %p29, %p30
    %p32 = scmp.ne.s32.totalorder %s21, %s24
    %p33 = scmp.eq.s32.totalorder %s16, 1
    %p34 = por %p32, %p33
    %p35 = scmp.ne.s32.totalorder %s24, %s25
    %p36 = scmp.eq.s32.totalorder %s16, 0
    %p37 = por %p35, %p36
    %p38 = scmp.ne.s32.totalorder %s24, %s25
    %p39 = scmp.eq.s32.totalorder %s17, 1
    %p40 = por %p38, %p39
    %p42 = scmp.ne.s32.totalorder %s25, %s41
    %p43 = scmp.eq.s32.totalorder %s17, 0
    %p44 = por %p42, %p43
    %s46 = sadd.s32 %s45, 1
    %p49 = scmp.eq.s32.totalorder %s11, 1
    %p50 = scmp.ne.s32.totalorder %s45, %s47
    %p51 = scmp.eq.s32.totalorder %s11, 0
    %p52 = por %p50, %p51
    %p53 = scmp.ne.s32.totalorder %s45, %s47
    %p54 = scmp.eq.s32.totalorder %s16, 1
    %p55 = por %p53, %p54
    %p56 = scmp.ne.s32.totalorder %s47, %s48
    %p57 = scmp.eq.s32.totalorder %s16, 0
    %p58 = por %p56, %p57
    %p59 = scmp.ne.s32.totalorder %s47, %s48
    %p60 = scmp.eq.s32.totalorder %s17, 1
    %p61 = por %p59, %p60
    %p63 = scmp.ne.s32.totalorder %s48, %s62
    %p64 = scmp.eq.s32.totalorder %s17, 0
    %p65 = por %p63, %p64
    %s67 = sadd.s32 %s66, 1
    %p70 = scmp.eq.s32.totalorder %s11, 1
    %p71 = scmp.ne.s32.totalorder %s66, %s68
    %p72 = scmp.eq.s32.totalorder %s11, 0
    %p73 = por %p71, %p72
    %p74 = scmp.ne.s32.totalorder %s66, %s68
    %p75 = scmp.eq.s32.totalorder %s16, 1
    %p76 = por %p74, %p75
    %p77 = scmp.ne.s32.totalorder %s68, %s69
    %p78 = scmp.eq.s32.totalorder %s16, 0
    %p79 = por %p77, %p78
    %p80 = scmp.ne.s32.totalorder %s68, %s69
    %p81 = scmp.eq.s32.totalorder %s17, 1
    %p82 = por %p80, %p81
    %p84 = scmp.ne.s32.totalorder %s69, %s83
    %p85 = scmp.eq.s32.totalorder %s17, 0
    %p86 = por %p84, %p85
    %s88 = sadd.s32 %s87, 1
    %p91 = scmp.eq.s32.totalorder %s11, 1
    %p92 = scmp.ne.s32.totalorder %s87, %s89
    %p93 = scmp.eq.s32.totalorder %s11, 0
    %p94 = por %p92, %p93
    %p95 = scmp.ne.s32.totalorder %s87, %s89
    %p96 = scmp.eq.s32.totalorder %s16, 1
    %p97 = por %p95, %p96
    %p98 = scmp.ne.s32.totalorder %s89, %s90
    %p99 = scmp.eq.s32.totalorder %s16, 0
    %p100 = por %p98, %p99
    %p101 = scmp.ne.s32.totalorder %s89, %s90
    %p102 = scmp.eq.s32.totalorder %s17, 1
    %p103 = por %p101, %p102
    %p105 = scmp.ne.s32.totalorder %s90, %s104
    %p106 = scmp.eq.s32.totalorder %s17, 0
    %p107 = por %p105, %p106
    %s109 = sadd.s32 %s108, 1
    %p112 = scmp.eq.s32.totalorder %s11, 1
    %p113 = scmp.ne.s32.totalorder %s108, %s110
    %p114 = scmp.eq.s32.totalorder %s11, 0
    %p115 = por %p113, %p114
    %p116 = scmp.ne.s32.totalorder %s108, %s110
    %p117 = scmp.eq.s32.totalorder %s16, 1
    %p118 = por %p116, %p117
    %p119 = scmp.ne.s32.totalorder %s110, %s111
    %p120 = scmp.eq.s32.totalorder %s16, 0
    %p121 = por %p119, %p120
    %p122 = scmp.ne.s32.totalorder %s110, %s111
    %p123 = scmp.eq.s32.totalorder %s17, 1
    %p124 = por %p122, %p123
    %p126 = scmp.ne.s32.totalorder %s111, %s125
    %p127 = scmp.eq.s32.totalorder %s17, 0
    %p128 = por %p126, %p127
    %s129 = ssub.s32 %s11, %s18
    %p130 = scmp.eq.s32.totalorder %s129, 0
    %s132 = sadd.s32 %s131, 1
    %s133 = scalar_select %p130, %s131, %s132
    %p136 = pneg %p130
    %p137 = scmp.eq.s32.totalorder %s11, 1
    %p138 = por %p136, %p137
    %p139 = scmp.ne.s32.totalorder %s131, %s134
    %p140 = scmp.eq.s32.totalorder %s11, 0
    %p141 = por %p139, %p140
    %p142 = scmp.ne.s32.totalorder %s131, %s134
    %p143 = scmp.eq.s32.totalorder %s16, 1
    %p144 = por %p142, %p143
    %p145 = scmp.ne.s32.totalorder %s134, %s135
    %p146 = scmp.eq.s32.totalorder %s16, 0
    %p147 = por %p145, %p146
    %p148 = scmp.ne.s32.totalorder %s134, %s135
    %p149 = scmp.eq.s32.totalorder %s17, 1
    %p150 = por %p148, %p149
    %p152 = scmp.ne.s32.totalorder %s135, %s151
    %p153 = scmp.eq.s32.totalorder %s17, 0
    %p154 = por %p152, %p153
    %p155 = scmp.le.s32.totalorder 1, %s11
    %p156 = scmp.lt.s32.totalorder %s11, 3
    %p157 = pnand %p155, %p156
    %p158 = pneg %p157
    // Predicated region
    $region9: #{resnet_block_forward.1} parent=5 // pred_check
      _
    $region10: #{resnet_block_forward.1} parent=5 // pred_check_branch
      %160 = sbr.rel (%p157) target = $region12
    $region11: #{resnet_block_forward.1} parent=5 // pred_region
      %s161 = ssub.s32 %s11, 1
      // Predicated region
      $region13: #{resnet_block_forward.1} parent=11 // pred_check
        %p162 = pneg %p58
      $region14: #{resnet_block_forward.1} parent=11 // pred_check_branch
        %164 = sbr.rel (%p162) target = $region16
      $region15: #{resnet_block_forward.1} parent=11 // pred_region
        _
      $region16: #{resnet_block_forward.1} parent=11 // pred_fallthru
        _
      // Predicated region
      $region17: #{resnet_block_forward.1} parent=11 // pred_check
        %p165 = pneg %p79
      $region18: #{resnet_block_forward.1} parent=11 // pred_check_branch
        %167 = sbr.rel (%p165) target = $region20
      $region19: #{resnet_block_forward.1} parent=11 // pred_region
        _
      $region20: #{resnet_block_forward.1} parent=11 // pred_fallthru
        _
      // Predicated region
      $region21: #{resnet_block_forward.1} parent=11 // pred_check
        %p168 = pneg %p100
      $region22: #{resnet_block_forward.1} parent=11 // pred_check_branch
        %170 = sbr.rel (%p168) target = $region24
      $region23: #{resnet_block_forward.1} parent=11 // pred_region
        _
      $region24: #{resnet_block_forward.1} parent=11 // pred_fallthru
        _
      // Predicated region
      $region25: #{resnet_block_forward.1} parent=11 // pred_check
        %p171 = pneg %p121
      $region26: #{resnet_block_forward.1} parent=11 // pred_check_branch
        %173 = sbr.rel (%p171) target = $region28
      $region27: #{resnet_block_forward.1} parent=11 // pred_region
        _
      $region28: #{resnet_block_forward.1} parent=11 // pred_fallthru
        _
    $region12: #{resnet_block_forward.1} parent=5 // pred_fallthru
      _
    %p174 = scmp.lt.s32.totalorder %s11, 2
    // Predicated region
    $region29: #{resnet_block_forward.1} parent=5 // pred_check
      %p175 = pneg %p174
    $region30: #{resnet_block_forward.1} parent=5 // pred_check_branch
      %177 = sbr.rel (%p175) target = $region32
    $region31: #{resnet_block_forward.1} parent=5 // pred_region
      // Predicated region
      $region33: #{resnet_block_forward.1} parent=31 // pred_check
        %p178 = pneg %p31
      $region34: #{resnet_block_forward.1} parent=31 // pred_check_branch
        %180 = sbr.rel (%p178) target = $region36
      $region35: #{resnet_block_forward.1} parent=31 // pred_region
        %s181 = smul.u32 2, %s11
        %p182 = scmp.lt.s32.totalorder %s181, 3
        %s183 = scalar_select %p182, %s181, 3
        %s184 = smul.addr %s183, 4
        %s185 = smul.addr %s184, 8
        %s186 = scalar_lea.vmem %s0, %s185
        %s187 = smul.u32 2, %s11
      $region36: #{resnet_block_forward.1} parent=31 // pred_fallthru
        _
    $region32: #{resnet_block_forward.1} parent=5 // pred_fallthru
      _
    %p188 = scmp.le.s32.totalorder 1, %s11
    %p189 = scmp.lt.s32.totalorder %s11, 3
    %p190 = pnand %p188, %p189
    %p191 = pneg %p190
    // Predicated region
    $region37: #{resnet_block_forward.1} parent=5 // pred_check
      _
    $region38: #{resnet_block_forward.1} parent=5 // pred_check_branch
      %193 = sbr.rel (%p190) target = $region40
    $region39: #{resnet_block_forward.1} parent=5 // pred_region
      %s194 = ssub.s32 %s11, 1
      %s195 = smul.u32 2, %s16
      %p196 = scmp.lt.s32.totalorder %s195, 3
      %s197 = scalar_select %p196, %s195, 3
      %s198 = smul.addr %s197, 4
      %s199 = smul.addr %s198, 8
      %s200 = scalar_lea.vmem %s0, %s199
      %p201 = pneg %p37
      %p202 = pneg %p34
      %p203 = pneg %p58
      %p204 = pneg %p55
      %p205 = pneg %p79
      %p206 = pneg %p76
      %p207 = pneg %p100
      %p208 = pneg %p97
      %p209 = pneg %p121
      %p210 = pneg %p118
      %p211 = pneg %p147
      %p212 = pneg %p144
      %s213 = smul.u32 2, %s16
      %p214 = scmp.lt.s32.totalorder %s213, 3
      %s215 = scalar_select %p214, %s213, 3
      %s216 = smul.addr %s215, 4
      %s217 = smul.addr %s216, 8
      %s218 = scalar_lea.vmem %s5, %s217
      %s219 = smul.u32 2, %s16
      %p220 = scmp.lt.s32.totalorder %s219, 3
      %s221 = scalar_select %p220, %s219, 3
      %s222 = smul.addr %s221, 4
      %s223 = smul.addr %s222, 8
      %s224 = scalar_lea.vmem %s0, %s223
      %s225 = smul.u32 2, %s16
      %s226 = smul.u32 2, %s16
      %p227 = scmp.lt.s32.totalorder %s226, 3
      %s228 = scalar_select %p227, %s226, 3
      %s229 = smul.addr %s228, 4
      %s230 = smul.addr %s229, 8
      %s231 = scalar_lea.vmem %s5, %s230
      %s232 = smul.u32 2, %s16
      %233 = vst [vmem:[#allocation3] sm:$0xff] 0.0
      %234 = vst [vmem:[#allocation3 + $0x28] sm:$0xff] 0.0
      %235 = vst [vmem:[#allocation2 + $0x360] sm:$0xff] 0.0
      %236 = vst [vmem:[#allocation2 + $0x368] sm:$0xff] 0.0
      %237 = vst [vmem:[#allocation2 + $0x370] sm:$0xff] 0.0
      %238 = vst [vmem:[#allocation2 + $0x378] sm:$0xff] 0.0
      %239 = vst [vmem:[#allocation2 + $0x380] sm:$0xff] 0.0
      %240 = vst [vmem:[#allocation2 + $0x388] sm:$0xff] 0.0
      %241 = vst [vmem:[#allocation2 + $0x390] sm:$0xff] 0.0
      %242 = vst [vmem:[#allocation2 + $0x398] sm:$0xff] 0.0
      %243 = vst [vmem:[#allocation2 + $0x3a0] sm:$0xff] 0.0
      %244 = vst [vmem:[#allocation2 + $0x3a8] sm:$0xff] 0.0
      %245 = vst [vmem:[#allocation2 + $0x3b0] sm:$0xff] 0.0
      %246 = vst [vmem:[#allocation2 + $0x3b8] sm:$0xff] 0.0
      %247 = vst [vmem:[#allocation2 + $0x3c0] sm:$0xff] 0.0
      %248 = vst [vmem:[#allocation2 + $0x3c8] sm:$0xff] 0.0
      %249 = vst [vmem:[#allocation2 + $0x3d0] sm:$0xff] 0.0
      %250 = vst [vmem:[#allocation2 + $0x3d8] sm:$0xff] 0.0
      %251 = vst [vmem:[#allocation2 + $0x3e0] sm:$0xff] 0.0
      %252 = vst [vmem:[#allocation2 + $0x3e8] sm:$0xff] 0.0
      %253 = vst [vmem:[#allocation2 + $0x3f0] sm:$0xff] 0.0
      %254 = vst [vmem:[#allocation2 + $0x3f8] sm:$0xff] 0.0
      %v255 = vld [vmem:[%s1] sm:$0xff]
      %v256 = vld [vmem:[%s1 + $0x8] sm:$0xff]
      %v257 = vld [vmem:[%s2] sm:$0xff]
      %v258 = vld [vmem:[%s2 + $0x8] sm:$0xff]
      %v259 = vld [vmem:[%s4] sm:$0xff]
      %v260 = vld [vmem:[%s4 + $0x8] sm:$0xff]
      %v261 = vld [vmem:[%s4 + $0x10] sm:$0xff]
      %v262 = vld [vmem:[%s4 + $0x18] sm:$0xff]
      %v263 = vld [vmem:[%s4 + $0x20] sm:$0xff]
      %v264 = vld [vmem:[%s4 + $0x28] sm:$0xff]
      %v265 = vld [vmem:[%s4 + $0x30] sm:$0xff]
      %v266 = vld [vmem:[%s4 + $0x38] sm:$0xff]
      %v267 = vld [vmem:[%s4 + $0x40] sm:$0xff]
      %v268 = vld [vmem:[%s4 + $0x48] sm:$0xff]
      %v269 = vld [vmem:[%s4 + $0x50] sm:$0xff]
      %v270 = vld [vmem:[%s4 + $0x58] sm:$0xff]
      %v271 = vld [vmem:[%s4 + $0x60] sm:$0xff]
      %v272 = vld [vmem:[%s4 + $0x68] sm:$0xff]
      %v273 = vld [vmem:[%s4 + $0x70] sm:$0xff]
      %v274 = vld [vmem:[%s4 + $0x78] sm:$0xff]
      %v275 = vld [vmem:[%s4 + $0x80] sm:$0xff]
      %v276 = vld [vmem:[%s4 + $0x88] sm:$0xff]
      %v277 = vld [vmem:[%s4 + $0x90] sm:$0xff]
      %v278 = vld [vmem:[%s4 + $0x98] sm:$0xff]
      %v279 = vld [vmem:[%s4 + $0xa0] sm:$0xff]
      %v280 = vld [vmem:[%s4 + $0xa8] sm:$0xff]
      %v281 = vld [vmem:[%s4 + $0xb0] sm:$0xff]
      %v282 = vld [vmem:[%s4 + $0xb8] sm:$0xff]
      %v283 = vld [vmem:[%s4 + $0xc0] sm:$0xff]
      %v284 = vld [vmem:[%s4 + $0xc8] sm:$0xff]
      %v285 = vld [vmem:[%s4 + $0xd0] sm:$0xff]
      %v286 = vld [vmem:[%s4 + $0xd8] sm:$0xff]
      %v287 = vld [vmem:[%s4 + $0xe0] sm:$0xff]
      %v288 = vld [vmem:[%s4 + $0xe8] sm:$0xff]
      %v289 = vld [vmem:[%s4 + $0xf0] sm:$0xff]
      %v290 = vld [vmem:[%s4 + $0xf8] sm:$0xff]
      %v291 = vld [vmem:[%s4 + $0x100] sm:$0xff]
      %v292 = vld [vmem:[%s4 + $0x108] sm:$0xff]
      %v293 = vld [vmem:[%s4 + $0x110] sm:$0xff]
      %v294 = vld [vmem:[%s4 + $0x118] sm:$0xff]
      %v295 = vld [vmem:[%s4 + $0x120] sm:$0xff]
      %v296 = vld [vmem:[%s4 + $0x128] sm:$0xff]
      %v297 = vld [vmem:[%s4 + $0x130] sm:$0xff]
      %v298 = vld [vmem:[%s4 + $0x138] sm:$0xff]
      %v299 = vld [vmem:[%s4 + $0x140] sm:$0xff]
      %v300 = vld [vmem:[%s4 + $0x148] sm:$0xff]
      %v301 = vld [vmem:[%s4 + $0x150] sm:$0xff]
      %v302 = vld [vmem:[%s4 + $0x158] sm:$0xff]
      %v303 = vld [vmem:[%s4 + $0x160] sm:$0xff]
      %v304 = vld [vmem:[%s4 + $0x168] sm:$0xff]
      %v305 = vld [vmem:[%s4 + $0x170] sm:$0xff]
      %v306 = vld [vmem:[%s4 + $0x178] sm:$0xff]
      %v307 = vld [vmem:[%s4 + $0x180] sm:$0xff]
      %v308 = vld [vmem:[%s4 + $0x188] sm:$0xff]
      %v309 = vld [vmem:[%s4 + $0x190] sm:$0xff]
      %v310 = vld [vmem:[%s4 + $0x198] sm:$0xff]
      %v311 = vld [vmem:[%s4 + $0x1a0] sm:$0xff]
      %v312 = vld [vmem:[%s4 + $0x1a8] sm:$0xff]
      %v313 = vld [vmem:[%s4 + $0x1b0] sm:$0xff]
      %v314 = vld [vmem:[%s4 + $0x1b8] sm:$0xff]
      %v315 = vld [vmem:[%s4 + $0x1c0] sm:$0xff]
      %v316 = vld [vmem:[%s4 + $0x1c8] sm:$0xff]
      %v317 = vld [vmem:[%s4 + $0x1d0] sm:$0xff]
      %v318 = vld [vmem:[%s4 + $0x1d8] sm:$0xff]
      %v319 = vld [vmem:[%s4 + $0x1e0] sm:$0xff]
      %v320 = vld [vmem:[%s4 + $0x1e8] sm:$0xff]
      %v321 = vld [vmem:[%s4 + $0x1f0] sm:$0xff]
      %v322 = vld [vmem:[%s4 + $0x1f8] sm:$0xff]
      %v323 = vld [vmem:[%s224] sm:$0xff]
      %v324 = vld [vmem:[%s224 + $0x8] sm:$0xff]
      %v325 = vld [vmem:[%s224 + $0x10] sm:$0xff]
      %v326 = vld [vmem:[%s224 + $0x18] sm:$0xff]
      %327 = vst [vmem:[#allocation3 + $0x8] sm:$0xff] %v323
      %328 = vst [vmem:[#allocation3 + $0x10] sm:$0xff] %v324
      %329 = vst [vmem:[#allocation3 + $0x18] sm:$0xff] %v325
      %330 = vst [vmem:[#allocation3 + $0x20] sm:$0xff] %v326
      %v331 = vld [vmem:[#allocation3] sm:$0xff]
      %v332 = vld [vmem:[#allocation3 + $0x8] sm:$0xff]
      %v333 = vld [vmem:[#allocation3 + $0x10] sm:$0xff]
      %v334 = vld [vmem:[#allocation3 + $0x18] sm:$0xff]
      %v335 = vld [vmem:[#allocation3 + $0x20] sm:$0xff]
      %v336 = vld [vmem:[%s3] sm:$0xff]
      %v337 = vld [vmem:[%s3 + $0x8] sm:$0xff]
      %v338 = vld [vmem:[%s3 + $0x10] sm:$0xff]
      %v339 = vld [vmem:[%s3 + $0x18] sm:$0xff]
      %344 = vrot.lane.b32.xlu0 %v336, 55
      %v345 = vpop.permute.xlu0 %344
      %346 = vrot.lane.b32.xlu0 %v337, 55
      %v347 = vpop.permute.xlu0 %346
      %348 = vrot.lane.b32.xlu0 %v338, 55
      %v349 = vpop.permute.xlu0 %348
      %350 = vrot.lane.b32.xlu0 %v339, 55
      %v351 = vpop.permute.xlu0 %350
      %vm352 = vcmask 449536
      %v353 = vsel %vm352, %v345, %v347
      %v354 = vsel %vm352, %v347, %v349
      %v355 = vsel %vm352, %v349, %v351
      %v361 = vmul.f32 %v331, %v345
      %v362 = vmul.f32 %v332, %v353
      %v363 = vmul.f32 %v333, %v354
      %v364 = vmul.f32 %v334, %v355
      %v365 = vmul.f32 %v335, %v351
      %371 = vrot.lane.b32.xlu0 %v361, 73
      %v372 = vpop.permute.xlu0 %371
      %373 = vrot.lane.b32.xlu0 %v362, 73
      %v374 = vpop.permute.xlu0 %373
      %375 = vrot.lane.b32.xlu0 %v363, 73
      %v376 = vpop.permute.xlu0 %375
      %377 = vrot.lane.b32.xlu0 %v364, 73
      %v378 = vpop.permute.xlu0 %377
      %379 = vrot.lane.b32.xlu0 %v365, 73
      %v380 = vpop.permute.xlu0 %379
      %vm381 = vcmask 596992
      %v382 = vsel %vm381, %v372, %v374
      %v383 = vsel %vm381, %v374, %v376
      %v384 = vsel %vm381, %v376, %v378
      %v385 = vsel %vm381, %v378, %v380
      %390 = vst [vmem:[#allocation2] sm:$0xff] %v382
      %391 = vst [vmem:[#allocation2 + $0x8] sm:$0xff] %v383
      %392 = vst [vmem:[#allocation2 + $0x10] sm:$0xff] %v384
      %393 = vst [vmem:[#allocation2 + $0x18] sm:$0xff] %v385
      %v394 = vld [vmem:[#allocation3] sm:$0xff]
      %v395 = vld [vmem:[#allocation3 + $0x8] sm:$0xff]
      %v396 = vld [vmem:[#allocation3 + $0x10] sm:$0xff]
      %v397 = vld [vmem:[#allocation3 + $0x18] sm:$0xff]
      %v398 = vld [vmem:[#allocation3 + $0x20] sm:$0xff]
      %v399 = vld [vmem:[%s3 + $0x20] sm:$0xff]
      %v400 = vld [vmem:[%s3 + $0x28] sm:$0xff]
      %v401 = vld [vmem:[%s3 + $0x30] sm:$0xff]
      %v402 = vld [vmem:[%s3 + $0x38] sm:$0xff]
      %407 = vrot.lane.b32.xlu0 %v399, 56
      %v408 = vpop.permute.xlu0 %407
      %409 = vrot.lane.b32.xlu0 %v400, 56
      %v410 = vpop.permute.xlu0 %409
      %411 = vrot.lane.b32.xlu0 %v401, 56
      %v412 = vpop.permute.xlu0 %411
      %413 = vrot.lane.b32.xlu0 %v402, 56
      %v414 = vpop.permute.xlu0 %413
      %vm415 = vcmask 457728
      %v416 = vsel %vm415, %v408, %v410
      %v417 = vsel %vm415, %v410, %v412
      %v418 = vsel %vm415, %v412, %v414
      %v424 = vmul.f32 %v394, %v408
      %v425 = vmul.f32 %v395, %v416
      %v426 = vmul.f32 %v396, %v417
      %v427 = vmul.f32 %v397, %v418
      %v428 = vmul.f32 %v398, %v414
      %434 = vrot.lane.b32.xlu0 %v424, 72
      %v435 = vpop.permute.xlu0 %434
      %436 = vrot.lane.b32.xlu0 %v425, 72
      %v437 = vpop.permute.xlu0 %436
      %438 = vrot.lane.b32.xlu0 %v426, 72
      %v439 = vpop.permute.xlu0 %438
      %440 = vrot.lane.b32.xlu0 %v427, 72
      %v441 = vpop.permute.xlu0 %440
      %442 = vrot.lane.b32.xlu0 %v428, 72
      %v443 = vpop.permute.xlu0 %442
      %vm444 = vcmask 588800
      %v445 = vsel %vm444, %v435, %v437
      %v446 = vsel %vm444, %v437, %v439
      %v447 = vsel %vm444, %v439, %v441
      %v448 = vsel %vm444, %v441, %v443
      %453 = vst [vmem:[#allocation2 + $0x20] sm:$0xff] %v445
      %454 = vst [vmem:[#allocation2 + $0x28] sm:$0xff] %v446
      %455 = vst [vmem:[#allocation2 + $0x30] sm:$0xff] %v447
      %456 = vst [vmem:[#allocation2 + $0x38] sm:$0xff] %v448
      %v457 = vld [vmem:[#allocation3] sm:$0xff]
      %v458 = vld [vmem:[#allocation3 + $0x8] sm:$0xff]
      %v459 = vld [vmem:[#allocation3 + $0x10] sm:$0xff]
      %v460 = vld [vmem:[#allocation3 + $0x18] sm:$0xff]
      %v461 = vld [vmem:[#allocation3 + $0x20] sm:$0xff]
      %v462 = vld [vmem:[%s3 + $0x40] sm:$0xff]
      %v463 = vld [vmem:[%s3 + $0x48] sm:$0xff]
      %v464 = vld [vmem:[%s3 + $0x50] sm:$0xff]
      %v465 = vld [vmem:[%s3 + $0x58] sm:$0xff]
      %470 = vrot.lane.b32.xlu0 %v462, 57
      %v471 = vpop.permute.xlu0 %470
      %472 = vrot.lane.b32.xlu0 %v463, 57
      %v473 = vpop.permute.xlu0 %472
      %474 = vrot.lane.b32.xlu0 %v464, 57
      %v475 = vpop.permute.xlu0 %474
      %476 = vrot.lane.b32.xlu0 %v465, 57
      %v477 = vpop.permute.xlu0 %476
      %vm478 = vcmask 465920
      %v479 = vsel %vm478, %v471, %v473
      %v480 = vsel %vm478, %v473, %v475
      %v481 = vsel %vm478, %v475, %v477
      %v487 = vmul.f32 %v457, %v471
      %v488 = vmul.f32 %v458, %v479
      %v489 = vmul.f32 %v459, %v480
      %v490 = vmul.f32 %v460, %v481
      %v491 = vmul.f32 %v461, %v477
      %497 = vrot.lane.b32.xlu0 %v487, 71
      %v498 = vpop.permute.xlu0 %497
      %499 = vrot.lane.b32.xlu0 %v488, 71
      %v500 = vpop.permute.xlu0 %499
      %501 = vrot.lane.b32.xlu0 %v489, 71
      %v502 = vpop.permute.xlu0 %501
      %503 = vrot.lane.b32.xlu0 %v490, 71
      %v504 = vpop.permute.xlu0 %503
      %505 = vrot.lane.b32.xlu0 %v491, 71
      %v506 = vpop.permute.xlu0 %505
      %vm507 = vcmask 580608
      %v508 = vsel %vm507, %v498, %v500
      %v509 = vsel %vm507, %v500, %v502
      %v510 = vsel %vm507, %v502, %v504
      %v511 = vsel %vm507, %v504, %v506
      %516 = vst [vmem:[#allocation2 + $0x40] sm:$0xff] %v508
      %517 = vst [vmem:[#allocation2 + $0x48] sm:$0xff] %v509
      %518 = vst [vmem:[#allocation2 + $0x50] sm:$0xff] %v510
      %519 = vst [vmem:[#allocation2 + $0x58] sm:$0xff] %v511
      %v520 = vld [vmem:[#allocation3] sm:$0xff]
      %v521 = vld [vmem:[#allocation3 + $0x8] sm:$0xff]
      %v522 = vld [vmem:[#allocation3 + $0x10] sm:$0xff]
      %v523 = vld [vmem:[#allocation3 + $0x18] sm:$0xff]
      %v524 = vld [vmem:[#allocation3 + $0x20] sm:$0xff]
      %v525 = vld [vmem:[%s3 + $0x60] sm:$0xff]
      %v526 = vld [vmem:[%s3 + $0x68] sm:$0xff]
      %v527 = vld [vmem:[%s3 + $0x70] sm:$0xff]
      %v528 = vld [vmem:[%s3 + $0x78] sm:$0xff]
      %533 = vrot.lane.b32.xlu0 %v525, 63
      %v534 = vpop.permute.xlu0 %533
      %535 = vrot.lane.b32.xlu0 %v526, 63
      %v536 = vpop.permute.xlu0 %535
      %537 = vrot.lane.b32.xlu0 %v527, 63
      %v538 = vpop.permute.xlu0 %537
      %539 = vrot.lane.b32.xlu0 %v528, 63
      %v540 = vpop.permute.xlu0 %539
      %vm541 = vcmask 515072
      %v542 = vsel %vm541, %v534, %v536
      %v543 = vsel %vm541, %v536, %v538
      %v544 = vsel %vm541, %v538, %v540
      %v550 = vmul.f32 %v520, %v534
      %v551 = vmul.f32 %v521, %v542
      %v552 = vmul.f32 %v522, %v543
      %v553 = vmul.f32 %v523, %v544
      %v554 = vmul.f32 %v524, %v540
      %560 = vrot.lane.b32.xlu0 %v550, 65
      %v561 = vpop.permute.xlu0 %560
      %562 = vrot.lane.b32.xlu0 %v551, 65
      %v563 = vpop.permute.xlu0 %562
      %564 = vrot.lane.b32.xlu0 %v552, 65
      %v565 = vpop.permute.xlu0 %564
      %566 = vrot.lane.b32.xlu0 %v553, 65
      %v567 = vpop.permute.xlu0 %566
      %568 = vrot.lane.b32.xlu0 %v554, 65
      %v569 = vpop.permute.xlu0 %568
      %vm570 = vcmask 531456
      %v571 = vsel %vm570, %v561, %v563
      %v572 = vsel %vm570, %v563, %v565
      %v573 = vsel %vm570, %v565, %v567
      %v574 = vsel %vm570, %v567, %v569
      %579 = vst [vmem:[#allocation2 + $0x60] sm:$0xff] %v571
      %580 = vst [vmem:[#allocation2 + $0x68] sm:$0xff] %v572
      %581 = vst [vmem:[#allocation2 + $0x70] sm:$0xff] %v573
      %582 = vst [vmem:[#allocation2 + $0x78] sm:$0xff] %v574
      %v583 = vld [vmem:[#allocation3] sm:$0xff]
      %v584 = vld [vmem:[#allocation3 + $0x8] sm:$0xff]
      %v585 = vld [vmem:[#allocation3 + $0x10] sm:$0xff]
      %v586 = vld [vmem:[#allocation3 + $0x18] sm:$0xff]
      %v587 = vld [vmem:[#allocation3 + $0x20] sm:$0xff]
      %593 = vrot.lane.b32.xlu0 %v583, 64
      %v594 = vpop.permute.xlu0 %593
      %595 = vrot.lane.b32.xlu0 %v584, 64
      %v596 = vpop.permute.xlu0 %595
      %597 = vrot.lane.b32.xlu0 %v585, 64
      %v598 = vpop.permute.xlu0 %597
      %599 = vrot.lane.b32.xlu0 %v586, 64
      %v600 = vpop.permute.xlu0 %599
      %601 = vrot.lane.b32.xlu0 %v587, 64
      %v602 = vpop.permute.xlu0 %601
      %vm603 = vcmask 523264
      %v604 = vsel %vm603, %v594, %v596
      %v605 = vsel %vm603, %v596, %v598
      %v606 = vsel %vm603, %v598, %v600
      %v607 = vsel %vm603, %v600, %v602
      %612 = vst [vmem:[#allocation2 + $0x80] sm:$0xff] %v604
      %613 = vst [vmem:[#allocation2 + $0x88] sm:$0xff] %v605
      %614 = vst [vmem:[#allocation2 + $0x90] sm:$0xff] %v606
      %615 = vst [vmem:[#allocation2 + $0x98] sm:$0xff] %v607
      %v616 = vld [vmem:[#allocation3] sm:$0xff]
      %v617 = vld [vmem:[#allocation3 + $0x8] sm:$0xff]
      %v618 = vld [vmem:[#allocation3 + $0x10] sm:$0xff]
      %v619 = vld [vmem:[#allocation3 + $0x18] sm:$0xff]
      %v620 = vld [vmem:[#allocation3 + $0x20] sm:$0xff]
      %v621 = vld [vmem:[%s3 + $0xa0] sm:$0xff]
      %v622 = vld [vmem:[%s3 + $0xa8] sm:$0xff]
      %v623 = vld [vmem:[%s3 + $0xb0] sm:$0xff]
      %v624 = vld [vmem:[%s3 + $0xb8] sm:$0xff]
      %629 = vrot.lane.b32.xlu0 %v621, 65
      %v630 = vpop.permute.xlu0 %629
      %631 = vrot.lane.b32.xlu0 %v622, 65
      %v632 = vpop.permute.xlu0 %631
      %633 = vrot.lane.b32.xlu0 %v623, 65
      %v634 = vpop.permute.xlu0 %633
      %635 = vrot.lane.b32.xlu0 %v624, 65
      %v636 = vpop.permute.xlu0 %635
      %v637 = vsel %vm570, %v630, %v632
      %v638 = vsel %vm570, %v632, %v634
      %v639 = vsel %vm570, %v634, %v636
      %v645 = vmul.f32 %v616, %v630
      %v646 = vmul.f32 %v617, %v637
      %v647 = vmul.f32 %v618, %v638
      %v648 = vmul.f32 %v619, %v639
      %v649 = vmul.f32 %v620, %v636
      %655 = vrot.lane.b32.xlu0 %v645, 63
      %v656 = vpop.permute.xlu0 %655
      %657 = vrot.lane.b32.xlu0 %v646, 63
      %v658 = vpop.permute.xlu0 %657
      %659 = vrot.lane.b32.xlu0 %v647, 63
      %v660 = vpop.permute.xlu0 %659
      %661 = vrot.lane.b32.xlu0 %v648, 63
      %v662 = vpop.permute.xlu0 %661
      %663 = vrot.lane.b32.xlu0 %v649, 63
      %v664 = vpop.permute.xlu0 %663
      %v665 = vsel %vm541, %v656, %v658
      %v666 = vsel %vm541, %v658, %v660
      %v667 = vsel %vm541, %v660, %v662
      %v668 = vsel %vm541, %v662, %v664
      %673 = vst [vmem:[#allocation2 + $0xa0] sm:$0xff] %v665
      %674 = vst [vmem:[#allocation2 + $0xa8] sm:$0xff] %v666
      %675 = vst [vmem:[#allocation2 + $0xb0] sm:$0xff] %v667
      %676 = vst [vmem:[#allocation2 + $0xb8] sm:$0xff] %v668
      %v677 = vld [vmem:[#allocation3] sm:$0xff]
      %v678 = vld [vmem:[#allocation3 + $0x8] sm:$0xff]
      %v679 = vld [vmem:[#allocation3 + $0x10] sm:$0xff]
      %v680 = vld [vmem:[#allocation3 + $0x18] sm:$0xff]
      %v681 = vld [vmem:[#allocation3 + $0x20] sm:$0xff]
      %v682 = vld [vmem:[%s3 + $0xc0] sm:$0xff]
      %v683 = vld [vmem:[%s3 + $0xc8] sm:$0xff]
      %v684 = vld [vmem:[%s3 + $0xd0] sm:$0xff]
      %v685 = vld [vmem:[%s3 + $0xd8] sm:$0xff]
      %690 = vrot.lane.b32.xlu0 %v682, 71
      %v691 = vpop.permute.xlu0 %690
      %692 = vrot.lane.b32.xlu0 %v683, 71
      %v693 = vpop.permute.xlu0 %692
      %694 = vrot.lane.b32.xlu0 %v684, 71
      %v695 = vpop.permute.xlu0 %694
      %696 = vrot.lane.b32.xlu0 %v685, 71
      %v697 = vpop.permute.xlu0 %696
      %v698 = vsel %vm507, %v691, %v693
      %v699 = vsel %vm507, %v693, %v695
      %v700 = vsel %vm507, %v695, %v697
      %v706 = vmul.f32 %v677, %v691
      %v707 = vmul.f32 %v678, %v698
      %v708 = vmul.f32 %v679, %v699
      %v709 = vmul.f32 %v680, %v700
      %v710 = vmul.f32 %v681, %v697
      %716 = vrot.lane.b32.xlu0 %v706, 57
      %v717 = vpop.permute.xlu0 %716
      %718 = vrot.lane.b32.xlu0 %v707, 57
      %v719 = vpop.permute.xlu0 %718
      %720 = vrot.lane.b32.xlu0 %v708, 57
      %v721 = vpop.permute.xlu0 %720
      %722 = vrot.lane.b32.xlu0 %v709, 57
      %v723 = vpop.permute.xlu0 %722
      %724 = vrot.lane.b32.xlu0 %v710, 57
      %v725 = vpop.permute.xlu0 %724
      %v726 = vsel %vm478, %v717, %v719
      %v727 = vsel %vm478, %v719, %v721
      %v728 = vsel %vm478, %v721, %v723
      %v729 = vsel %vm478, %v723, %v725
      %734 = vst [vmem:[#allocation2 + $0xc0] sm:$0xff] %v726
      %735 = vst [vmem:[#allocation2 + $0xc8] sm:$0xff] %v727
      %736 = vst [vmem:[#allocation2 + $0xd0] sm:$0xff] %v728
      %737 = vst [vmem:[#allocation2 + $0xd8] sm:$0xff] %v729
      %v738 = vld [vmem:[#allocation3] sm:$0xff]
      %v739 = vld [vmem:[#allocation3 + $0x8] sm:$0xff]
      %v740 = vld [vmem:[#allocation3 + $0x10] sm:$0xff]
      %v741 = vld [vmem:[#allocation3 + $0x18] sm:$0xff]
      %v742 = vld [vmem:[#allocation3 + $0x20] sm:$0xff]
      %v743 = vld [vmem:[%s3 + $0xe0] sm:$0xff]
      %v744 = vld [vmem:[%s3 + $0xe8] sm:$0xff]
      %v745 = vld [vmem:[%s3 + $0xf0] sm:$0xff]
      %v746 = vld [vmem:[%s3 + $0xf8] sm:$0xff]
      %751 = vrot.lane.b32.xlu0 %v743, 72
      %v752 = vpop.permute.xlu0 %751
      %753 = vrot.lane.b32.xlu0 %v744, 72
      %v754 = vpop.permute.xlu0 %753
      %755 = vrot.lane.b32.xlu0 %v745, 72
      %v756 = vpop.permute.xlu0 %755
      %757 = vrot.lane.b32.xlu0 %v746, 72
      %v758 = vpop.permute.xlu0 %757
      %v759 = vsel %vm444, %v752, %v754
      %v760 = vsel %vm444, %v754, %v756
      %v761 = vsel %vm444, %v756, %v758
      %v767 = vmul.f32 %v738, %v752
      %v768 = vmul.f32 %v739, %v759
      %v769 = vmul.f32 %v740, %v760
      %v770 = vmul.f32 %v741, %v761
      %v771 = vmul.f32 %v742, %v758
      %777 = vrot.lane.b32.xlu0 %v767, 56
      %v778 = vpop.permute.xlu0 %777
      %779 = vrot.lane.b32.xlu0 %v768, 56
      %v780 = vpop.permute.xlu0 %779
      %781 = vrot.lane.b32.xlu0 %v769, 56
      %v782 = vpop.permute.xlu0 %781
      %783 = vrot.lane.b32.xlu0 %v770, 56
      %v784 = vpop.permute.xlu0 %783
      %785 = vrot.lane.b32.xlu0 %v771, 56
      %v786 = vpop.permute.xlu0 %785
      %v787 = vsel %vm415, %v778, %v780
      %v788 = vsel %vm415, %v780, %v782
      %v789 = vsel %vm415, %v782, %v784
      %v790 = vsel %vm415, %v784, %v786
      %795 = vst [vmem:[#allocation2 + $0xe0] sm:$0xff] %v787
      %796 = vst [vmem:[#allocation2 + $0xe8] sm:$0xff] %v788
      %797 = vst [vmem:[#allocation2 + $0xf0] sm:$0xff] %v789
      %798 = vst [vmem:[#allocation2 + $0xf8] sm:$0xff] %v790
      %v799 = vld [vmem:[#allocation3] sm:$0xff]
      %v800 = vld [vmem:[#allocation3 + $0x8] sm:$0xff]
      %v801 = vld [vmem:[#allocation3 + $0x10] sm:$0xff]
      %v802 = vld [vmem:[#allocation3 + $0x18] sm:$0xff]
      %v803 = vld [vmem:[#allocation3 + $0x20] sm:$0xff]
      %v804 = vld [vmem:[%s3 + $0x100] sm:$0xff]
      %v805 = vld [vmem:[%s3 + $0x108] sm:$0xff]
      %v806 = vld [vmem:[%s3 + $0x110] sm:$0xff]
      %v807 = vld [vmem:[%s3 + $0x118] sm:$0xff]
      %812 = vrot.lane.b32.xlu0 %v804, 73
      %v813 = vpop.permute.xlu0 %812
      %814 = vrot.lane.b32.xlu0 %v805, 73
      %v815 = vpop.permute.xlu0 %814
      %816 = vrot.lane.b32.xlu0 %v806, 73
      %v817 = vpop.permute.xlu0 %816
      %818 = vrot.lane.b32.xlu0 %v807, 73
      %v819 = vpop.permute.xlu0 %818
      %v820 = vsel %vm381, %v813, %v815
      %v821 = vsel %vm381, %v815, %v817
      %v822 = vsel %vm381, %v817, %v819
      %v828 = vmul.f32 %v799, %v813
      %v829 = vmul.f32 %v800, %v820
      %v830 = vmul.f32 %v801, %v821
      %v831 = vmul.f32 %v802, %v822
      %v832 = vmul.f32 %v803, %v819
      %838 = vrot.lane.b32.xlu0 %v828, 55
      %v839 = vpop.permute.xlu0 %838
      %840 = vrot.lane.b32.xlu0 %v829, 55
      %v841 = vpop.permute.xlu0 %840
      %842 = vrot.lane.b32.xlu0 %v830, 55
      %v843 = vpop.permute.xlu0 %842
      %844 = vrot.lane.b32.xlu0 %v831, 55
      %v845 = vpop.permute.xlu0 %844
      %846 = vrot.lane.b32.xlu0 %v832, 55
      %v847 = vpop.permute.xlu0 %846
      %v848 = vsel %vm352, %v839, %v841
      %v849 = vsel %vm352, %v841, %v843
      %v850 = vsel %vm352, %v843, %v845
      %v851 = vsel %vm352, %v845, %v847
      %856 = vst [vmem:[#allocation2 + $0x100] sm:$0xff] %v848
      %857 = vst [vmem:[#allocation2 + $0x108] sm:$0xff] %v849
      %858 = vst [vmem:[#allocation2 + $0x110] sm:$0xff] %v850
      %859 = vst [vmem:[#allocation2 + $0x118] sm:$0xff] %v851
      %v860 = vld [vmem:[#allocation3] sm:$0xff]
      %v861 = vld [vmem:[#allocation3 + $0x8] sm:$0xff]
      %v862 = vld [vmem:[#allocation3 + $0x10] sm:$0xff]
      %v863 = vld [vmem:[#allocation3 + $0x18] sm:$0xff]
      %v864 = vld [vmem:[#allocation3 + $0x20] sm:$0xff]
      %v865 = vld [vmem:[%s3 + $0x120] sm:$0xff]
      %v866 = vld [vmem:[%s3 + $0x128] sm:$0xff]
      %v867 = vld [vmem:[%s3 + $0x130] sm:$0xff]
      %v868 = vld [vmem:[%s3 + $0x138] sm:$0xff]
      %873 = vrot.lane.b32.xlu0 %v865, 119
      %v874 = vpop.permute.xlu0 %873
      %875 = vrot.lane.b32.xlu0 %v866, 119
      %v876 = vpop.permute.xlu0 %875
      %877 = vrot.lane.b32.xlu0 %v867, 119
      %v878 = vpop.permute.xlu0 %877
      %879 = vrot.lane.b32.xlu0 %v868, 119
      %v880 = vpop.permute.xlu0 %879
      %vm881 = vcmask 973824
      %v882 = vsel %vm881, %v874, %v876
      %v883 = vsel %vm881, %v876, %v878
      %v884 = vsel %vm881, %v878, %v880
      %v890 = vmul.f32 %v860, %v874
      %v891 = vmul.f32 %v861, %v882
      %v892 = vmul.f32 %v862, %v883
      %v893 = vmul.f32 %v863, %v884
      %v894 = vmul.f32 %v864, %v880
      %900 = vrot.lane.b32.xlu0 %v890, 9
      %v901 = vpop.permute.xlu0 %900
      %902 = vrot.lane.b32.xlu0 %v891, 9
      %v903 = vpop.permute.xlu0 %902
      %904 = vrot.lane.b32.xlu0 %v892, 9
      %v905 = vpop.permute.xlu0 %904
      %906 = vrot.lane.b32.xlu0 %v893, 9
      %v907 = vpop.permute.xlu0 %906
      %908 = vrot.lane.b32.xlu0 %v894, 9
      %v909 = vpop.permute.xlu0 %908
      %vm910 = vcmask 72704
      %v911 = vsel %vm910, %v901, %v903
      %v912 = vsel %vm910, %v903, %v905
      %v913 = vsel %vm910, %v905, %v907
      %v914 = vsel %vm910, %v907, %v909
      %919 = vst [vmem:[#allocation2 + $0x120] sm:$0xff] %v911
      %920 = vst [vmem:[#allocation2 + $0x128] sm:$0xff] %v912
      %921 = vst [vmem:[#allocation2 + $0x130] sm:$0xff] %v913
      %922 = vst [vmem:[#allocation2 + $0x138] sm:$0xff] %v914
      %v923 = vld [vmem:[#allocation3] sm:$0xff]
      %v924 = vld [vmem:[#allocation3 + $0x8] sm:$0xff]
      %v925 = vld [vmem:[#allocation3 + $0x10] sm:$0xff]
      %v926 = vld [vmem:[#allocation3 + $0x18] sm:$0xff]
      %v927 = vld [vmem:[#allocation3 + $0x20] sm:$0xff]
      %v928 = vld [vmem:[%s3 + $0x140] sm:$0xff]
      %v929 = vld [vmem:[%s3 + $0x148] sm:$0xff]
      %v930 = vld [vmem:[%s3 + $0x150] sm:$0xff]
      %v931 = vld [vmem:[%s3 + $0x158] sm:$0xff]
      %936 = vrot.lane.b32.xlu0 %v928, 120
      %v937 = vpop.permute.xlu0 %936
      %938 = vrot.lane.b32.xlu0 %v929, 120
      %v939 = vpop.permute.xlu0 %938
      %940 = vrot.lane.b32.xlu0 %v930, 120
      %v941 = vpop.permute.xlu0 %940
      %942 = vrot.lane.b32.xlu0 %v931, 120
      %v943 = vpop.permute.xlu0 %942
      %vm944 = vcmask 982016
      %v945 = vsel %vm944, %v937, %v939
      %v946 = vsel %vm944, %v939, %v941
      %v947 = vsel %vm944, %v941, %v943
      %v953 = vmul.f32 %v923, %v937
      %v954 = vmul.f32 %v924, %v945
      %v955 = vmul.f32 %v925, %v946
      %v956 = vmul.f32 %v926, %v947
      %v957 = vmul.f32 %v927, %v943
      %963 = vrot.lane.b32.xlu0 %v953, 8
      %v964 = vpop.permute.xlu0 %963
      %965 = vrot.lane.b32.xlu0 %v954, 8
      %v966 = vpop.permute.xlu0 %965
      %967 = vrot.lane.b32.xlu0 %v955, 8
      %v968 = vpop.permute.xlu0 %967
      %969 = vrot.lane.b32.xlu0 %v956, 8
      %v970 = vpop.permute.xlu0 %969
      %971 = vrot.lane.b32.xlu0 %v957, 8
      %v972 = vpop.permute.xlu0 %971
      %vm973 = vcmask 64512
      %v974 = vsel %vm973, %v964, %v966
      %v975 = vsel %vm973, %v966, %v968
      %v976 = vsel %vm973, %v968, %v970
      %v977 = vsel %vm973, %v970, %v972
      %982 = vst [vmem:[#allocation2 + $0x140] sm:$0xff] %v974
      %983 = vst [vmem:[#allocation2 + $0x148] sm:$0xff] %v975
      %984 = vst [vmem:[#allocation2 + $0x150] sm:$0xff] %v976
      %985 = vst [vmem:[#allocation2 + $0x158] sm:$0xff] %v977
      %v986 = vld [vmem:[#allocation3] sm:$0xff]
      %v987 = vld [vmem:[#allocation3 + $0x8] sm:$0xff]
      %v988 = vld [vmem:[#allocation3 + $0x10] sm:$0xff]
      %v989 = vld [vmem:[#allocation3 + $0x18] sm:$0xff]
      %v990 = vld [vmem:[#allocation3 + $0x20] sm:$0xff]
      %v991 = vld [vmem:[%s3 + $0x160] sm:$0xff]
      %v992 = vld [vmem:[%s3 + $0x168] sm:$0xff]
      %v993 = vld [vmem:[%s3 + $0x170] sm:$0xff]
      %v994 = vld [vmem:[%s3 + $0x178] sm:$0xff]
      %999 = vrot.lane.b32.xlu0 %v991, 121
      %v1000 = vpop.permute.xlu0 %999
      %1001 = vrot.lane.b32.xlu0 %v992, 121
      %v1002 = vpop.permute.xlu0 %1001
      %1003 = vrot.lane.b32.xlu0 %v993, 121
      %v1004 = vpop.permute.xlu0 %1003
      %1005 = vrot.lane.b32.xlu0 %v994, 121
      %v1006 = vpop.permute.xlu0 %1005
      %vm1007 = vcmask 990208
      %v1008 = vsel %vm1007, %v1000, %v1002
      %v1009 = vsel %vm1007, %v1002, %v1004
      %v1010 = vsel %vm1007, %v1004, %v1006
      %v1016 = vmul.f32 %v986, %v1000
      %v1017 = vmul.f32 %v987, %v1008
      %v1018 = vmul.f32 %v988, %v1009
      %v1019 = vmul.f32 %v989, %v1010
      %v1020 = vmul.f32 %v990, %v1006
      %1026 = vrot.lane.b32.xlu0 %v1016, 7
      %v1027 = vpop.permute.xlu0 %1026
      %1028 = vrot.lane.b32.xlu0 %v1017, 7
      %v1029 = vpop.permute.xlu0 %1028
      %1030 = vrot.lane.b32.xlu0 %v1018, 7
      %v1031 = vpop.permute.xlu0 %1030
      %1032 = vrot.lane.b32.xlu0 %v1019, 7
      %v1033 = vpop.permute.xlu0 %1032
      %1034 = vrot.lane.b32.xlu0 %v1020, 7
      %v1035 = vpop.permute.xlu0 %1034
      %vm1036 = vcmask 56320
      %v1037 = vsel %vm1036, %v1027, %v1029
      %v1038 = vsel %vm1036, %v1029, %v1031
      %v1039 = vsel %vm1036, %v1031, %v1033
      %v1040 = vsel %vm1036, %v1033, %v1035
      %1045 = vst [vmem:[#allocation2 + $0x160] sm:$0xff] %v1037
      %1046 = vst [vmem:[#allocation2 + $0x168] sm:$0xff] %v1038
      %1047 = vst [vmem:[#allocation2 + $0x170] sm:$0xff] %v1039
      %1048 = vst [vmem:[#allocation2 + $0x178] sm:$0xff] %v1040
      %v1049 = vld [vmem:[#allocation3] sm:$0xff]
      %v1050 = vld [vmem:[#allocation3 + $0x8] sm:$0xff]
      %v1051 = vld [vmem:[#allocation3 + $0x10] sm:$0xff]
      %v1052 = vld [vmem:[#allocation3 + $0x18] sm:$0xff]
      %v1053 = vld [vmem:[#allocation3 + $0x20] sm:$0xff]
      %v1054 = vld [vmem:[%s3 + $0x180] sm:$0xff]
      %v1055 = vld [vmem:[%s3 + $0x188] sm:$0xff]
      %v1056 = vld [vmem:[%s3 + $0x190] sm:$0xff]
      %v1057 = vld [vmem:[%s3 + $0x198] sm:$0xff]
      %1062 = vrot.lane.b32.xlu0 %v1054, 127
      %v1063 = vpop.permute.xlu0 %1062
      %1064 = vrot.lane.b32.xlu0 %v1055, 127
      %v1065 = vpop.permute.xlu0 %1064
      %1066 = vrot.lane.b32.xlu0 %v1056, 127
      %v1067 = vpop.permute.xlu0 %1066
      %1068 = vrot.lane.b32.xlu0 %v1057, 127
      %v1069 = vpop.permute.xlu0 %1068
      %vm1070 = vcmask 1039360
      %v1071 = vsel %vm1070, %v1063, %v1065
      %v1072 = vsel %vm1070, %v1065, %v1067
      %v1073 = vsel %vm1070, %v1067, %v1069
      %v1079 = vmul.f32 %v1049, %v1063
      %v1080 = vmul.f32 %v1050, %v1071
      %v1081 = vmul.f32 %v1051, %v1072
      %v1082 = vmul.f32 %v1052, %v1073
      %v1083 = vmul.f32 %v1053, %v1069
      %1089 = vrot.lane.b32.xlu0 %v1079, 1
      %v1090 = vpop.permute.xlu0 %1089
      %1091 = vrot.lane.b32.xlu0 %v1080, 1
      %v1092 = vpop.permute.xlu0 %1091
      %1093 = vrot.lane.b32.xlu0 %v1081, 1
      %v1094 = vpop.permute.xlu0 %1093
      %1095 = vrot.lane.b32.xlu0 %v1082, 1
      %v1096 = vpop.permute.xlu0 %1095
      %1097 = vrot.lane.b32.xlu0 %v1083, 1
      %v1098 = vpop.permute.xlu0 %1097
      %vm1099 = vcmask 7168
      %v1100 = vsel %vm1099, %v1090, %v1092
      %v1101 = vsel %vm1099, %v1092, %v1094
      %v1102 = vsel %vm1099, %v1094, %v1096
      %v1103 = vsel %vm1099, %v1096, %v1098
      %1108 = vst [vmem:[#allocation2 + $0x180] sm:$0xff] %v1100
      %1109 = vst [vmem:[#allocation2 + $0x188] sm:$0xff] %v1101
      %1110 = vst [vmem:[#allocation2 + $0x190] sm:$0xff] %v1102
      %1111 = vst [vmem:[#allocation2 + $0x198] sm:$0xff] %v1103
      %v1112 = vld [vmem:[#allocation3 + $0x8] sm:$0xff]
      %v1113 = vld [vmem:[#allocation3 + $0x10] sm:$0xff]
      %v1114 = vld [vmem:[#allocation3 + $0x18] sm:$0xff]
      %v1115 = vld [vmem:[#allocation3 + $0x20] sm:$0xff]
      %1116 = vst [vmem:[#allocation2 + $0x1a0] sm:$0xff] %v1112
      %1117 = vst [vmem:[#allocation2 + $0x1a8] sm:$0xff] %v1113
      %1118 = vst [vmem:[#allocation2 + $0x1b0] sm:$0xff] %v1114
      %1119 = vst [vmem:[#allocation2 + $0x1b8] sm:$0xff] %v1115
      %v1120 = vld [vmem:[#allocation3 + $0x8] sm:$0xff]
      %v1121 = vld [vmem:[#allocation3 + $0x10] sm:$0xff]
      %v1122 = vld [vmem:[#allocation3 + $0x18] sm:$0xff]
      %v1123 = vld [vmem:[#allocation3 + $0x20] sm:$0xff]
      %v1124 = vld [vmem:[#allocation3 + $0x28] sm:$0xff]
      %v1125 = vld [vmem:[%s3 + $0x1c0] sm:$0xff]
      %v1126 = vld [vmem:[%s3 + $0x1c8] sm:$0xff]
      %v1127 = vld [vmem:[%s3 + $0x1d0] sm:$0xff]
      %v1128 = vld [vmem:[%s3 + $0x1d8] sm:$0xff]
      %1133 = vrot.lane.b32.xlu0 %v1125, 1
      %v1134 = vpop.permute.xlu0 %1133
      %1135 = vrot.lane.b32.xlu0 %v1126, 1
      %v1136 = vpop.permute.xlu0 %1135
      %1137 = vrot.lane.b32.xlu0 %v1127, 1
      %v1138 = vpop.permute.xlu0 %1137
      %1139 = vrot.lane.b32.xlu0 %v1128, 1
      %v1140 = vpop.permute.xlu0 %1139
      %v1141 = vsel %vm1099, %v1134, %v1136
      %v1142 = vsel %vm1099, %v1136, %v1138
      %v1143 = vsel %vm1099, %v1138, %v1140
      %v1149 = vmul.f32 %v1120, %v1134
      %v1150 = vmul.f32 %v1121, %v1141
      %v1151 = vmul.f32 %v1122, %v1142
      %v1152 = vmul.f32 %v1123, %v1143
      %v1153 = vmul.f32 %v1124, %v1140
      %1159 = vrot.lane.b32.xlu0 %v1149, 127
      %v1160 = vpop.permute.xlu0 %1159
      %1161 = vrot.lane.b32.xlu0 %v1150, 127
      %v1162 = vpop.permute.xlu0 %1161
      %1163 = vrot.lane.b32.xlu0 %v1151, 127
      %v1164 = vpop.permute.xlu0 %1163
      %1165 = vrot.lane.b32.xlu0 %v1152, 127
      %v1166 = vpop.permute.xlu0 %1165
      %1167 = vrot.lane.b32.xlu0 %v1153, 127
      %v1168 = vpop.permute.xlu0 %1167
      %v1169 = vsel %vm1070, %v1160, %v1162
      %v1170 = vsel %vm1070, %v1162, %v1164
      %v1171 = vsel %vm1070, %v1164, %v1166
      %v1172 = vsel %vm1070, %v1166, %v1168
      %1177 = vst [vmem:[#allocation2 + $0x1c0] sm:$0xff] %v1169
      %1178 = vst [vmem:[#allocation2 + $0x1c8] sm:$0xff] %v1170
      %1179 = vst [vmem:[#allocation2 + $0x1d0] sm:$0xff] %v1171
      %1180 = vst [vmem:[#allocation2 + $0x1d8] sm:$0xff] %v1172
      %v1181 = vld [vmem:[#allocation3 + $0x8] sm:$0xff]
      %v1182 = vld [vmem:[#allocation3 + $0x10] sm:$0xff]
      %v1183 = vld [vmem:[#allocation3 + $0x18] sm:$0xff]
      %v1184 = vld [vmem:[#allocation3 + $0x20] sm:$0xff]
      %v1185 = vld [vmem:[#allocation3 + $0x28] sm:$0xff]
      %v1186 = vld [vmem:[%s3 + $0x1e0] sm:$0xff]
      %v1187 = vld [vmem:[%s3 + $0x1e8] sm:$0xff]
      %v1188 = vld [vmem:[%s3 + $0x1f0] sm:$0xff]
      %v1189 = vld [vmem:[%s3 + $0x1f8] sm:$0xff]
      %1194 = vrot.lane.b32.xlu0 %v1186, 7
      %v1195 = vpop.permute.xlu0 %1194
      %1196 = vrot.lane.b32.xlu0 %v1187, 7
      %v1197 = vpop.permute.xlu0 %1196
      %1198 = vrot.lane.b32.xlu0 %v1188, 7
      %v1199 = vpop.permute.xlu0 %1198
      %1200 = vrot.lane.b32.xlu0 %v1189, 7
      %v1201 = vpop.permute.xlu0 %1200
      %v1202 = vsel %vm1036, %v1195, %v1197
      %v1203 = vsel %vm1036, %v1197, %v1199
      %v1204 = vsel %vm1036, %v1199, %v1201
      %v1210 = vmul.f32 %v1181, %v1195
      %v1211 = vmul.f32 %v1182, %v1202
      %v1212 = vmul.f32 %v1183, %v1203
      %v1213 = vmul.f32 %v1184, %v1204
      %v1214 = vmul.f32 %v1185, %v1201
      %1220 = vrot.lane.b32.xlu0 %v1210, 121
      %v1221 = vpop.permute.xlu0 %1220
      %1222 = vrot.lane.b32.xlu0 %v1211, 121
      %v1223 = vpop.permute.xlu0 %1222
      %1224 = vrot.lane.b32.xlu0 %v1212, 121
      %v1225 = vpop.permute.xlu0 %1224
      %1226 = vrot.lane.b32.xlu0 %v1213, 121
      %v1227 = vpop.permute.xlu0 %1226
      %1228 = vrot.lane.b32.xlu0 %v1214, 121
      %v1229 = vpop.permute.xlu0 %1228
      %v1230 = vsel %vm1007, %v1221, %v1223
      %v1231 = vsel %vm1007, %v1223, %v1225
      %v1232 = vsel %vm1007, %v1225, %v1227
      %v1233 = vsel %vm1007, %v1227, %v1229
      %1238 = vst [vmem:[#allocation2 + $0x1e0] sm:$0xff] %v1230
      %1239 = vst [vmem:[#allocation2 + $0x1e8] sm:$0xff] %v1231
      %1240 = vst [vmem:[#allocation2 + $0x1f0] sm:$0xff] %v1232
      %1241 = vst [vmem:[#allocation2 + $0x1f8] sm:$0xff] %v1233
      %v1242 = vld [vmem:[#allocation3 + $0x8] sm:$0xff]
      %v1243 = vld [vmem:[#allocation3 + $0x10] sm:$0xff]
      %v1244 = vld [vmem:[#allocation3 + $0x18] sm:$0xff]
      %v1245 = vld [vmem:[#allocation3 + $0x20] sm:$0xff]
      %v1246 = vld [vmem:[#allocation3 + $0x28] sm:$0xff]
      %v1247 = vld [vmem:[%s3 + $0x200] sm:$0xff]
      %v1248 = vld [vmem:[%s3 + $0x208] sm:$0xff]
      %v1249 = vld [vmem:[%s3 + $0x210] sm:$0xff]
      %v1250 = vld [vmem:[%s3 + $0x218] sm:$0xff]
      %1255 = vrot.lane.b32.xlu0 %v1247, 8
      %v1256 = vpop.permute.xlu0 %1255
      %1257 = vrot.lane.b32.xlu0 %v1248, 8
      %v1258 = vpop.permute.xlu0 %1257
      %1259 = vrot.lane.b32.xlu0 %v1249, 8
      %v1260 = vpop.permute.xlu0 %1259
      %1261 = vrot.lane.b32.xlu0 %v1250, 8
      %v1262 = vpop.permute.xlu0 %1261
      %v1263 = vsel %vm973, %v1256, %v1258
      %v1264 = vsel %vm973, %v1258, %v1260
      %v1265 = vsel %vm973, %v1260, %v1262
      %v1271 = vmul.f32 %v1242, %v1256
      %v1272 = vmul.f32 %v1243, %v1263
      %v1273 = vmul.f32 %v1244, %v1264
      %v1274 = vmul.f32 %v1245, %v1265
      %v1275 = vmul.f32 %v1246, %v1262
      %1281 = vrot.lane.b32.xlu0 %v1271, 120
      %v1282 = vpop.permute.xlu0 %1281
      %1283 = vrot.lane.b32.xlu0 %v1272, 120
      %v1284 = vpop.permute.xlu0 %1283
      %1285 = vrot.lane.b32.xlu0 %v1273, 120
      %v1286 = vpop.permute.xlu0 %1285
      %1287 = vrot.lane.b32.xlu0 %v1274, 120
      %v1288 = vpop.permute.xlu0 %1287
      %1289 = vrot.lane.b32.xlu0 %v1275, 120
      %v1290 = vpop.permute.xlu0 %1289
      %v1291 = vsel %vm944, %v1282, %v1284
      %v1292 = vsel %vm944, %v1284, %v1286
      %v1293 = vsel %vm944, %v1286, %v1288
      %v1294 = vsel %vm944, %v1288, %v1290
      %1299 = vst [vmem:[#allocation2 + $0x200] sm:$0xff] %v1291
      %1300 = vst [vmem:[#allocation2 + $0x208] sm:$0xff] %v1292
      %1301 = vst [vmem:[#allocation2 + $0x210] sm:$0xff] %v1293
      %1302 = vst [vmem:[#allocation2 + $0x218] sm:$0xff] %v1294
      %v1303 = vld [vmem:[#allocation3 + $0x8] sm:$0xff]
      %v1304 = vld [vmem:[#allocation3 + $0x10] sm:$0xff]
      %v1305 = vld [vmem:[#allocation3 + $0x18] sm:$0xff]
      %v1306 = vld [vmem:[#allocation3 + $0x20] sm:$0xff]
      %v1307 = vld [vmem:[#allocation3 + $0x28] sm:$0xff]
      %v1308 = vld [vmem:[%s3 + $0x220] sm:$0xff]
      %v1309 = vld [vmem:[%s3 + $0x228] sm:$0xff]
      %v1310 = vld [vmem:[%s3 + $0x230] sm:$0xff]
      %v1311 = vld [vmem:[%s3 + $0x238] sm:$0xff]
      %1316 = vrot.lane.b32.xlu0 %v1308, 9
      %v1317 = vpop.permute.xlu0 %1316
      %1318 = vrot.lane.b32.xlu0 %v1309, 9
      %v1319 = vpop.permute.xlu0 %1318
      %1320 = vrot.lane.b32.xlu0 %v1310, 9
      %v1321 = vpop.permute.xlu0 %1320
      %1322 = vrot.lane.b32.xlu0 %v1311, 9
      %v1323 = vpop.permute.xlu0 %1322
      %v1324 = vsel %vm910, %v1317, %v1319
      %v1325 = vsel %vm910, %v1319, %v1321
      %v1326 = vsel %vm910, %v1321, %v1323
      %v1332 = vmul.f32 %v1303, %v1317
      %v1333 = vmul.f32 %v1304, %v1324
      %v1334 = vmul.f32 %v1305, %v1325
      %v1335 = vmul.f32 %v1306, %v1326
      %v1336 = vmul.f32 %v1307, %v1323
      %1342 = vrot.lane.b32.xlu0 %v1332, 119
      %v1343 = vpop.permute.xlu0 %1342
      %1344 = vrot.lane.b32.xlu0 %v1333, 119
      %v1345 = vpop.permute.xlu0 %1344
      %1346 = vrot.lane.b32.xlu0 %v1334, 119
      %v1347 = vpop.permute.xlu0 %1346
      %1348 = vrot.lane.b32.xlu0 %v1335, 119
      %v1349 = vpop.permute.xlu0 %1348
      %1350 = vrot.lane.b32.xlu0 %v1336, 119
      %v1351 = vpop.permute.xlu0 %1350
      %v1352 = vsel %vm881, %v1343, %v1345
      %v1353 = vsel %vm881, %v1345, %v1347
      %v1354 = vsel %vm881, %v1347, %v1349
      %v1355 = vsel %vm881, %v1349, %v1351
      %1360 = vst [vmem:[#allocation2 + $0x220] sm:$0xff] %v1352
      %1361 = vst [vmem:[#allocation2 + $0x228] sm:$0xff] %v1353
      %1362 = vst [vmem:[#allocation2 + $0x230] sm:$0xff] %v1354
      %1363 = vst [vmem:[#allocation2 + $0x238] sm:$0xff] %v1355
      %v1364 = vld [vmem:[#allocation3 + $0x8] sm:$0xff]
      %v1365 = vld [vmem:[#allocation3 + $0x10] sm:$0xff]
      %v1366 = vld [vmem:[#allocation3 + $0x18] sm:$0xff]
      %v1367 = vld [vmem:[#allocation3 + $0x20] sm:$0xff]
      %v1368 = vld [vmem:[#allocation3 + $0x28] sm:$0xff]
      %v1369 = vld [vmem:[%s3 + $0x240] sm:$0xff]
      %v1370 = vld [vmem:[%s3 + $0x248] sm:$0xff]
      %v1371 = vld [vmem:[%s3 + $0x250] sm:$0xff]
      %v1372 = vld [vmem:[%s3 + $0x258] sm:$0xff]
      %1377 = vrot.lane.b32.xlu0 %v1369, 55
      %v1378 = vpop.permute.xlu0 %1377
      %1379 = vrot.lane.b32.xlu0 %v1370, 55
      %v1380 = vpop.permute.xlu0 %1379
      %1381 = vrot.lane.b32.xlu0 %v1371, 55
      %v1382 = vpop.permute.xlu0 %1381
      %1383 = vrot.lane.b32.xlu0 %v1372, 55
      %v1384 = vpop.permute.xlu0 %1383
      %v1385 = vsel %vm352, %v1378, %v1380
      %v1386 = vsel %vm352, %v1380, %v1382
      %v1387 = vsel %vm352, %v1382, %v1384
      %v1393 = vmul.f32 %v1364, %v1378
      %v1394 = vmul.f32 %v1365, %v1385
      %v1395 = vmul.f32 %v1366, %v1386
      %v1396 = vmul.f32 %v1367, %v1387
      %v1397 = vmul.f32 %v1368, %v1384
      %1403 = vrot.lane.b32.xlu0 %v1393, 73
      %v1404 = vpop.permute.xlu0 %1403
      %1405 = vrot.lane.b32.xlu0 %v1394, 73
      %v1406 = vpop.permute.xlu0 %1405
      %1407 = vrot.lane.b32.xlu0 %v1395, 73
      %v1408 = vpop.permute.xlu0 %1407
      %1409 = vrot.lane.b32.xlu0 %v1396, 73
      %v1410 = vpop.permute.xlu0 %1409
      %1411 = vrot.lane.b32.xlu0 %v1397, 73
      %v1412 = vpop.permute.xlu0 %1411
      %v1413 = vsel %vm381, %v1404, %v1406
      %v1414 = vsel %vm381, %v1406, %v1408
      %v1415 = vsel %vm381, %v1408, %v1410
      %v1416 = vsel %vm381, %v1410, %v1412
      %1421 = vst [vmem:[#allocation2 + $0x240] sm:$0xff] %v1413
      %1422 = vst [vmem:[#allocation2 + $0x248] sm:$0xff] %v1414
      %1423 = vst [vmem:[#allocation2 + $0x250] sm:$0xff] %v1415
      %1424 = vst [vmem:[#allocation2 + $0x258] sm:$0xff] %v1416
      %v1425 = vld [vmem:[#allocation3 + $0x8] sm:$0xff]
      %v1426 = vld [vmem:[#allocation3 + $0x10] sm:$0xff]
      %v1427 = vld [vmem:[#allocation3 + $0x18] sm:$0xff]
      %v1428 = vld [vmem:[#allocation3 + $0x20] sm:$0xff]
      %v1429 = vld [vmem:[#allocation3 + $0x28] sm:$0xff]
      %v1430 = vld [vmem:[%s3 + $0x260] sm:$0xff]
      %v1431 = vld [vmem:[%s3 + $0x268] sm:$0xff]
      %v1432 = vld [vmem:[%s3 + $0x270] sm:$0xff]
      %v1433 = vld [vmem:[%s3 + $0x278] sm:$0xff]
      %1438 = vrot.lane.b32.xlu0 %v1430, 56
      %v1439 = vpop.permute.xlu0 %1438
      %1440 = vrot.lane.b32.xlu0 %v1431, 56
      %v1441 = vpop.permute.xlu0 %1440
      %1442 = vrot.lane.b32.xlu0 %v1432, 56
      %v1443 = vpop.permute.xlu0 %1442
      %1444 = vrot.lane.b32.xlu0 %v1433, 56
      %v1445 = vpop.permute.xlu0 %1444
      %v1446 = vsel %vm415, %v1439, %v1441
      %v1447 = vsel %vm415, %v1441, %v1443
      %v1448 = vsel %vm415, %v1443, %v1445
      %v1454 = vmul.f32 %v1425, %v1439
      %v1455 = vmul.f32 %v1426, %v1446
      %v1456 = vmul.f32 %v1427, %v1447
      %v1457 = vmul.f32 %v1428, %v1448
      %v1458 = vmul.f32 %v1429, %v1445
      %1464 = vrot.lane.b32.xlu0 %v1454, 72
      %v1465 = vpop.permute.xlu0 %1464
      %1466 = vrot.lane.b32.xlu0 %v1455, 72
      %v1467 = vpop.permute.xlu0 %1466
      %1468 = vrot.lane.b32.xlu0 %v1456, 72
      %v1469 = vpop.permute.xlu0 %1468
      %1470 = vrot.lane.b32.xlu0 %v1457, 72
      %v1471 = vpop.permute.xlu0 %1470
      %1472 = vrot.lane.b32.xlu0 %v1458, 72
      %v1473 = vpop.permute.xlu0 %1472
      %v1474 = vsel %vm444, %v1465, %v1467
      %v1475 = vsel %vm444, %v1467, %v1469
      %v1476 = vsel %vm444, %v1469, %v1471
      %v1477 = vsel %vm444, %v1471, %v1473
      %1482 = vst [vmem:[#allocation2 + $0x260] sm:$0xff] %v1474
      %1483 = vst [vmem:[#allocation2 + $0x268] sm:$0xff] %v1475
      %1484 = vst [vmem:[#allocation2 + $0x270] sm:$0xff] %v1476
      %1485 = vst [vmem:[#allocation2 + $0x278] sm:$0xff] %v1477
      %v1486 = vld [vmem:[#allocation3 + $0x8] sm:$0xff]
      %v1487 = vld [vmem:[#allocation3 + $0x10] sm:$0xff]
      %v1488 = vld [vmem:[#allocation3 + $0x18] sm:$0xff]
      %v1489 = vld [vmem:[#allocation3 + $0x20] sm:$0xff]
      %v1490 = vld [vmem:[#allocation3 + $0x28] sm:$0xff]
      %v1491 = vld [vmem:[%s3 + $0x280] sm:$0xff]
      %v1492 = vld [vmem:[%s3 + $0x288] sm:$0xff]
      %v1493 = vld [vmem:[%s3 + $0x290] sm:$0xff]
      %v1494 = vld [vmem:[%s3 + $0x298] sm:$0xff]
      %1499 = vrot.lane.b32.xlu0 %v1491, 57
      %v1500 = vpop.permute.xlu0 %1499
      %1501 = vrot.lane.b32.xlu0 %v1492, 57
      %v1502 = vpop.permute.xlu0 %1501
      %1503 = vrot.lane.b32.xlu0 %v1493, 57
      %v1504 = vpop.permute.xlu0 %1503
      %1505 = vrot.lane.b32.xlu0 %v1494, 57
      %v1506 = vpop.permute.xlu0 %1505
      %v1507 = vsel %vm478, %v1500, %v1502
      %v1508 = vsel %vm478, %v1502, %v1504
      %v1509 = vsel %vm478, %v1504, %v1506
      %v1515 = vmul.f32 %v1486, %v1500
      %v1516 = vmul.f32 %v1487, %v1507
      %v1517 = vmul.f32 %v1488, %v1508
      %v1518 = vmul.f32 %v1489, %v1509
      %v1519 = vmul.f32 %v1490, %v1506
      %1525 = vrot.lane.b32.xlu0 %v1515, 71
      %v1526 = vpop.permute.xlu0 %1525
      %1527 = vrot.lane.b32.xlu0 %v1516, 71
      %v1528 = vpop.permute.xlu0 %1527
      %1529 = vrot.lane.b32.xlu0 %v1517, 71
      %v1530 = vpop.permute.xlu0 %1529
      %1531 = vrot.lane.b32.xlu0 %v1518, 71
      %v1532 = vpop.permute.xlu0 %1531
      %1533 = vrot.lane.b32.xlu0 %v1519, 71
      %v1534 = vpop.permute.xlu0 %1533
      %v1535 = vsel %vm507, %v1526, %v1528
      %v1536 = vsel %vm507, %v1528, %v1530
      %v1537 = vsel %vm507, %v1530, %v1532
      %v1538 = vsel %vm507, %v1532, %v1534
      %1543 = vst [vmem:[#allocation2 + $0x280] sm:$0xff] %v1535
      %1544 = vst [vmem:[#allocation2 + $0x288] sm:$0xff] %v1536
      %1545 = vst [vmem:[#allocation2 + $0x290] sm:$0xff] %v1537
      %1546 = vst [vmem:[#allocation2 + $0x298] sm:$0xff] %v1538
      %v1547 = vld [vmem:[#allocation3 + $0x8] sm:$0xff]
      %v1548 = vld [vmem:[#allocation3 + $0x10] sm:$0xff]
      %v1549 = vld [vmem:[#allocation3 + $0x18] sm:$0xff]
      %v1550 = vld [vmem:[#allocation3 + $0x20] sm:$0xff]
      %v1551 = vld [vmem:[#allocation3 + $0x28] sm:$0xff]
      %v1552 = vld [vmem:[%s3 + $0x2a0] sm:$0xff]
      %v1553 = vld [vmem:[%s3 + $0x2a8] sm:$0xff]
      %v1554 = vld [vmem:[%s3 + $0x2b0] sm:$0xff]
      %v1555 = vld [vmem:[%s3 + $0x2b8] sm:$0xff]
      %1560 = vrot.lane.b32.xlu0 %v1552, 63
      %v1561 = vpop.permute.xlu0 %1560
      %1562 = vrot.lane.b32.xlu0 %v1553, 63
      %v1563 = vpop.permute.xlu0 %1562
      %1564 = vrot.lane.b32.xlu0 %v1554, 63
      %v1565 = vpop.permute.xlu0 %1564
      %1566 = vrot.lane.b32.xlu0 %v1555, 63
      %v1567 = vpop.permute.xlu0 %1566
      %v1568 = vsel %vm541, %v1561, %v1563
      %v1569 = vsel %vm541, %v1563, %v1565
      %v1570 = vsel %vm541, %v1565, %v1567
      %v1576 = vmul.f32 %v1547, %v1561
      %v1577 = vmul.f32 %v1548, %v1568
      %v1578 = vmul.f32 %v1549, %v1569
      %v1579 = vmul.f32 %v1550, %v1570
      %v1580 = vmul.f32 %v1551, %v1567
      %1586 = vrot.lane.b32.xlu0 %v1576, 65
      %v1587 = vpop.permute.xlu0 %1586
      %1588 = vrot.lane.b32.xlu0 %v1577, 65
      %v1589 = vpop.permute.xlu0 %1588
      %1590 = vrot.lane.b32.xlu0 %v1578, 65
      %v1591 = vpop.permute.xlu0 %1590
      %1592 = vrot.lane.b32.xlu0 %v1579, 65
      %v1593 = vpop.permute.xlu0 %1592
      %1594 = vrot.lane.b32.xlu0 %v1580, 65
      %v1595 = vpop.permute.xlu0 %1594
      %v1596 = vsel %vm570, %v1587, %v1589
      %v1597 = vsel %vm570, %v1589, %v1591
      %v1598 = vsel %vm570, %v1591, %v1593
      %v1599 = vsel %vm570, %v1593, %v1595
      %1604 = vst [vmem:[#allocation2 + $0x2a0] sm:$0xff] %v1596
      %1605 = vst [vmem:[#allocation2 + $0x2a8] sm:$0xff] %v1597
      %1606 = vst [vmem:[#allocation2 + $0x2b0] sm:$0xff] %v1598
      %1607 = vst [vmem:[#allocation2 + $0x2b8] sm:$0xff] %v1599
      %v1608 = vld [vmem:[#allocation3 + $0x8] sm:$0xff]
      %v1609 = vld [vmem:[#allocation3 + $0x10] sm:$0xff]
      %v1610 = vld [vmem:[#allocation3 + $0x18] sm:$0xff]
      %v1611 = vld [vmem:[#allocation3 + $0x20] sm:$0xff]
      %v1612 = vld [vmem:[#allocation3 + $0x28] sm:$0xff]
      %1618 = vrot.lane.b32.xlu0 %v1608, 64
      %v1619 = vpop.permute.xlu0 %1618
      %1620 = vrot.lane.b32.xlu0 %v1609, 64
      %v1621 = vpop.permute.xlu0 %1620
      %1622 = vrot.lane.b32.xlu0 %v1610, 64
      %v1623 = vpop.permute.xlu0 %1622
      %1624 = vrot.lane.b32.xlu0 %v1611, 64
      %v1625 = vpop.permute.xlu0 %1624
      %1626 = vrot.lane.b32.xlu0 %v1612, 64
      %v1627 = vpop.permute.xlu0 %1626
      %v1628 = vsel %vm603, %v1619, %v1621
      %v1629 = vsel %vm603, %v1621, %v1623
      %v1630 = vsel %vm603, %v1623, %v1625
      %v1631 = vsel %vm603, %v1625, %v1627
      %1636 = vst [vmem:[#allocation2 + $0x2c0] sm:$0xff] %v1628
      %1637 = vst [vmem:[#allocation2 + $0x2c8] sm:$0xff] %v1629
      %1638 = vst [vmem:[#allocation2 + $0x2d0] sm:$0xff] %v1630
      %1639 = vst [vmem:[#allocation2 + $0x2d8] sm:$0xff] %v1631
      %v1640 = vld [vmem:[#allocation3 + $0x8] sm:$0xff]
      %v1641 = vld [vmem:[#allocation3 + $0x10] sm:$0xff]
      %v1642 = vld [vmem:[#allocation3 + $0x18] sm:$0xff]
      %v1643 = vld [vmem:[#allocation3 + $0x20] sm:$0xff]
      %v1644 = vld [vmem:[#allocation3 + $0x28] sm:$0xff]
      %v1645 = vld [vmem:[%s3 + $0x2e0] sm:$0xff]
      %v1646 = vld [vmem:[%s3 + $0x2e8] sm:$0xff]
      %v1647 = vld [vmem:[%s3 + $0x2f0] sm:$0xff]
      %v1648 = vld [vmem:[%s3 + $0x2f8] sm:$0xff]
      %1653 = vrot.lane.b32.xlu0 %v1645, 65
      %v1654 = vpop.permute.xlu0 %1653
      %1655 = vrot.lane.b32.xlu0 %v1646, 65
      %v1656 = vpop.permute.xlu0 %1655
      %1657 = vrot.lane.b32.xlu0 %v1647, 65
      %v1658 = vpop.permute.xlu0 %1657
      %1659 = vrot.lane.b32.xlu0 %v1648, 65
      %v1660 = vpop.permute.xlu0 %1659
      %v1661 = vsel %vm570, %v1654, %v1656
      %v1662 = vsel %vm570, %v1656, %v1658
      %v1663 = vsel %vm570, %v1658, %v1660
      %v1669 = vmul.f32 %v1640, %v1654
      %v1670 = vmul.f32 %v1641, %v1661
      %v1671 = vmul.f32 %v1642, %v1662
      %v1672 = vmul.f32 %v1643, %v1663
      %v1673 = vmul.f32 %v1644, %v1660
      %1679 = vrot.lane.b32.xlu0 %v1669, 63
      %v1680 = vpop.permute.xlu0 %1679
      %1681 = vrot.lane.b32.xlu0 %v1670, 63
      %v1682 = vpop.permute.xlu0 %1681
      %1683 = vrot.lane.b32.xlu0 %v1671, 63
      %v1684 = vpop.permute.xlu0 %1683
      %1685 = vrot.lane.b32.xlu0 %v1672, 63
      %v1686 = vpop.permute.xlu0 %1685
      %1687 = vrot.lane.b32.xlu0 %v1673, 63
      %v1688 = vpop.permute.xlu0 %1687
      %v1689 = vsel %vm541, %v1680, %v1682
      %v1690 = vsel %vm541, %v1682, %v1684
      %v1691 = vsel %vm541, %v1684, %v1686
      %v1692 = vsel %vm541, %v1686, %v1688
      %1697 = vst [vmem:[#allocation2 + $0x2e0] sm:$0xff] %v1689
      %1698 = vst [vmem:[#allocation2 + $0x2e8] sm:$0xff] %v1690
      %1699 = vst [vmem:[#allocation2 + $0x2f0] sm:$0xff] %v1691
      %1700 = vst [vmem:[#allocation2 + $0x2f8] sm:$0xff] %v1692
      %v1701 = vld [vmem:[#allocation3 + $0x8] sm:$0xff]
      %v1702 = vld [vmem:[#allocation3 + $0x10] sm:$0xff]
      %v1703 = vld [vmem:[#allocation3 + $0x18] sm:$0xff]
      %v1704 = vld [vmem:[#allocation3 + $0x20] sm:$0xff]
      %v1705 = vld [vmem:[#allocation3 + $0x28] sm:$0xff]
      %v1706 = vld [vmem:[%s3 + $0x300] sm:$0xff]
      %v1707 = vld [vmem:[%s3 + $0x308] sm:$0xff]
      %v1708 = vld [vmem:[%s3 + $0x310] sm:$0xff]
      %v1709 = vld [vmem:[%s3 + $0x318] sm:$0xff]
      %1714 = vrot.lane.b32.xlu0 %v1706, 71
      %v1715 = vpop.permute.xlu0 %1714
      %1716 = vrot.lane.b32.xlu0 %v1707, 71
      %v1717 = vpop.permute.xlu0 %1716
      %1718 = vrot.lane.b32.xlu0 %v1708, 71
      %v1719 = vpop.permute.xlu0 %1718
      %1720 = vrot.lane.b32.xlu0 %v1709, 71
      %v1721 = vpop.permute.xlu0 %1720
      %v1722 = vsel %vm507, %v1715, %v1717
      %v1723 = vsel %vm507, %v1717, %v1719
      %v1724 = vsel %vm507, %v1719, %v1721
      %v1730 = vmul.f32 %v1701, %v1715
      %v1731 = vmul.f32 %v1702, %v1722
      %v1732 = vmul.f32 %v1703, %v1723
      %v1733 = vmul.f32 %v1704, %v1724
      %v1734 = vmul.f32 %v1705, %v1721
      %1740 = vrot.lane.b32.xlu0 %v1730, 57
      %v1741 = vpop.permute.xlu0 %1740
      %1742 = vrot.lane.b32.xlu0 %v1731, 57
      %v1743 = vpop.permute.xlu0 %1742
      %1744 = vrot.lane.b32.xlu0 %v1732, 57
      %v1745 = vpop.permute.xlu0 %1744
      %1746 = vrot.lane.b32.xlu0 %v1733, 57
      %v1747 = vpop.permute.xlu0 %1746
      %1748 = vrot.lane.b32.xlu0 %v1734, 57
      %v1749 = vpop.permute.xlu0 %1748
      %v1750 = vsel %vm478, %v1741, %v1743
      %v1751 = vsel %vm478, %v1743, %v1745
      %v1752 = vsel %vm478, %v1745, %v1747
      %v1753 = vsel %vm478, %v1747, %v1749
      %1758 = vst [vmem:[#allocation2 + $0x300] sm:$0xff] %v1750
      %1759 = vst [vmem:[#allocation2 + $0x308] sm:$0xff] %v1751
      %1760 = vst [vmem:[#allocation2 + $0x310] sm:$0xff] %v1752
      %1761 = vst [vmem:[#allocation2 + $0x318] sm:$0xff] %v1753
      %v1762 = vld [vmem:[#allocation3 + $0x8] sm:$0xff]
      %v1763 = vld [vmem:[#allocation3 + $0x10] sm:$0xff]
      %v1764 = vld [vmem:[#allocation3 + $0x18] sm:$0xff]
      %v1765 = vld [vmem:[#allocation3 + $0x20] sm:$0xff]
      %v1766 = vld [vmem:[#allocation3 + $0x28] sm:$0xff]
      %v1767 = vld [vmem:[%s3 + $0x320] sm:$0xff]
      %v1768 = vld [vmem:[%s3 + $0x328] sm:$0xff]
      %v1769 = vld [vmem:[%s3 + $0x330] sm:$0xff]
      %v1770 = vld [vmem:[%s3 + $0x338] sm:$0xff]
      %1775 = vrot.lane.b32.xlu0 %v1767, 72
      %v1776 = vpop.permute.xlu0 %1775
      %1777 = vrot.lane.b32.xlu0 %v1768, 72
      %v1778 = vpop.permute.xlu0 %1777
      %1779 = vrot.lane.b32.xlu0 %v1769, 72
      %v1780 = vpop.permute.xlu0 %1779
      %1781 = vrot.lane.b32.xlu0 %v1770, 72
      %v1782 = vpop.permute.xlu0 %1781
      %v1783 = vsel %vm444, %v1776, %v1778
      %v1784 = vsel %vm444, %v1778, %v1780
      %v1785 = vsel %vm444, %v1780, %v1782
      %v1791 = vmul.f32 %v1762, %v1776
      %v1792 = vmul.f32 %v1763, %v1783
      %v1793 = vmul.f32 %v1764, %v1784
      %v1794 = vmul.f32 %v1765, %v1785
      %v1795 = vmul.f32 %v1766, %v1782
      %1801 = vrot.lane.b32.xlu0 %v1791, 56
      %v1802 = vpop.permute.xlu0 %1801
      %1803 = vrot.lane.b32.xlu0 %v1792, 56
      %v1804 = vpop.permute.xlu0 %1803
      %1805 = vrot.lane.b32.xlu0 %v1793, 56
      %v1806 = vpop.permute.xlu0 %1805
      %1807 = vrot.lane.b32.xlu0 %v1794, 56
      %v1808 = vpop.permute.xlu0 %1807
      %1809 = vrot.lane.b32.xlu0 %v1795, 56
      %v1810 = vpop.permute.xlu0 %1809
      %v1811 = vsel %vm415, %v1802, %v1804
      %v1812 = vsel %vm415, %v1804, %v1806
      %v1813 = vsel %vm415, %v1806, %v1808
      %v1814 = vsel %vm415, %v1808, %v1810
      %1819 = vst [vmem:[#allocation2 + $0x320] sm:$0xff] %v1811
      %1820 = vst [vmem:[#allocation2 + $0x328] sm:$0xff] %v1812
      %1821 = vst [vmem:[#allocation2 + $0x330] sm:$0xff] %v1813
      %1822 = vst [vmem:[#allocation2 + $0x338] sm:$0xff] %v1814
      %v1823 = vld [vmem:[#allocation3 + $0x8] sm:$0xff]
      %v1824 = vld [vmem:[#allocation3 + $0x10] sm:$0xff]
      %v1825 = vld [vmem:[#allocation3 + $0x18] sm:$0xff]
      %v1826 = vld [vmem:[#allocation3 + $0x20] sm:$0xff]
      %v1827 = vld [vmem:[#allocation3 + $0x28] sm:$0xff]
      %v1828 = vld [vmem:[%s3 + $0x340] sm:$0xff]
      %v1829 = vld [vmem:[%s3 + $0x348] sm:$0xff]
      %v1830 = vld [vmem:[%s3 + $0x350] sm:$0xff]
      %v1831 = vld [vmem:[%s3 + $0x358] sm:$0xff]
      %1836 = vrot.lane.b32.xlu0 %v1828, 73
      %v1837 = vpop.permute.xlu0 %1836
      %1838 = vrot.lane.b32.xlu0 %v1829, 73
      %v1839 = vpop.permute.xlu0 %1838
      %1840 = vrot.lane.b32.xlu0 %v1830, 73
      %v1841 = vpop.permute.xlu0 %1840
      %1842 = vrot.lane.b32.xlu0 %v1831, 73
      %v1843 = vpop.permute.xlu0 %1842
      %v1844 = vsel %vm381, %v1837, %v1839
      %v1845 = vsel %vm381, %v1839, %v1841
      %v1846 = vsel %vm381, %v1841, %v1843
      %v1852 = vmul.f32 %v1823, %v1837
      %v1853 = vmul.f32 %v1824, %v1844
      %v1854 = vmul.f32 %v1825, %v1845
      %v1855 = vmul.f32 %v1826, %v1846
      %v1856 = vmul.f32 %v1827, %v1843
      %1862 = vrot.lane.b32.xlu0 %v1852, 55
      %v1863 = vpop.permute.xlu0 %1862
      %1864 = vrot.lane.b32.xlu0 %v1853, 55
      %v1865 = vpop.permute.xlu0 %1864
      %1866 = vrot.lane.b32.xlu0 %v1854, 55
      %v1867 = vpop.permute.xlu0 %1866
      %1868 = vrot.lane.b32.xlu0 %v1855, 55
      %v1869 = vpop.permute.xlu0 %1868
      %1870 = vrot.lane.b32.xlu0 %v1856, 55
      %v1871 = vpop.permute.xlu0 %1870
      %v1872 = vsel %vm352, %v1863, %v1865
      %v1873 = vsel %vm352, %v1865, %v1867
      %v1874 = vsel %vm352, %v1867, %v1869
      %v1875 = vsel %vm352, %v1869, %v1871
      %1880 = vst [vmem:[#allocation2 + $0x340] sm:$0xff] %v1872
      %1881 = vst [vmem:[#allocation2 + $0x348] sm:$0xff] %v1873
      %1882 = vst [vmem:[#allocation2 + $0x350] sm:$0xff] %v1874
      %1883 = vst [vmem:[#allocation2 + $0x358] sm:$0xff] %v1875
      %v1884 = vld [vmem:[#allocation2] sm:$0xff]
      %v1885 = vld [vmem:[#allocation2 + $0x8] sm:$0xff]
      %v1886 = vld [vmem:[#allocation2 + $0x10] sm:$0xff]
      %v1887 = vld [vmem:[#allocation2 + $0x18] sm:$0xff]
      %v1888 = vld [vmem:[#allocation2 + $0x20] sm:$0xff]
      %v1889 = vld [vmem:[#allocation2 + $0x28] sm:$0xff]
      %v1890 = vld [vmem:[#allocation2 + $0x30] sm:$0xff]
      %v1891 = vld [vmem:[#allocation2 + $0x38] sm:$0xff]
      %v1892 = vld [vmem:[#allocation2 + $0x40] sm:$0xff]
      %v1893 = vld [vmem:[#allocation2 + $0x48] sm:$0xff]
      %v1894 = vld [vmem:[#allocation2 + $0x50] sm:$0xff]
      %v1895 = vld [vmem:[#allocation2 + $0x58] sm:$0xff]
      %v1896 = vld [vmem:[#allocation2 + $0x60] sm:$0xff]
      %v1897 = vld [vmem:[#allocation2 + $0x68] sm:$0xff]
      %v1898 = vld [vmem:[#allocation2 + $0x70] sm:$0xff]
      %v1899 = vld [vmem:[#allocation2 + $0x78] sm:$0xff]
      %v1900 = vld [vmem:[#allocation2 + $0x80] sm:$0xff]
      %v1901 = vld [vmem:[#allocation2 + $0x88] sm:$0xff]
      %v1902 = vld [vmem:[#allocation2 + $0x90] sm:$0xff]
      %v1903 = vld [vmem:[#allocation2 + $0x98] sm:$0xff]
      %v1904 = vld [vmem:[#allocation2 + $0xa0] sm:$0xff]
      %v1905 = vld [vmem:[#allocation2 + $0xa8] sm:$0xff]
      %v1906 = vld [vmem:[#allocation2 + $0xb0] sm:$0xff]
      %v1907 = vld [vmem:[#allocation2 + $0xb8] sm:$0xff]
      %v1908 = vld [vmem:[#allocation2 + $0xc0] sm:$0xff]
      %v1909 = vld [vmem:[#allocation2 + $0xc8] sm:$0xff]
      %v1910 = vld [vmem:[#allocation2 + $0xd0] sm:$0xff]
      %v1911 = vld [vmem:[#allocation2 + $0xd8] sm:$0xff]
      %v1912 = vld [vmem:[#allocation2 + $0xe0] sm:$0xff]
      %v1913 = vld [vmem:[#allocation2 + $0xe8] sm:$0xff]
      %v1914 = vld [vmem:[#allocation2 + $0xf0] sm:$0xff]
      %v1915 = vld [vmem:[#allocation2 + $0xf8] sm:$0xff]
      %v1916 = vld [vmem:[#allocation2 + $0x100] sm:$0xff]
      %v1917 = vld [vmem:[#allocation2 + $0x108] sm:$0xff]
      %v1918 = vld [vmem:[#allocation2 + $0x110] sm:$0xff]
      %v1919 = vld [vmem:[#allocation2 + $0x118] sm:$0xff]
      %v1920 = vld [vmem:[#allocation2 + $0x120] sm:$0xff]
      %v1921 = vld [vmem:[#allocation2 + $0x128] sm:$0xff]
      %v1922 = vld [vmem:[#allocation2 + $0x130] sm:$0xff]
      %v1923 = vld [vmem:[#allocation2 + $0x138] sm:$0xff]
      %v1924 = vld [vmem:[#allocation2 + $0x140] sm:$0xff]
      %v1925 = vld [vmem:[#allocation2 + $0x148] sm:$0xff]
      %v1926 = vld [vmem:[#allocation2 + $0x150] sm:$0xff]
      %v1927 = vld [vmem:[#allocation2 + $0x158] sm:$0xff]
      %v1928 = vld [vmem:[#allocation2 + $0x160] sm:$0xff]
      %v1929 = vld [vmem:[#allocation2 + $0x168] sm:$0xff]
      %v1930 = vld [vmem:[#allocation2 + $0x170] sm:$0xff]
      %v1931 = vld [vmem:[#allocation2 + $0x178] sm:$0xff]
      %v1932 = vld [vmem:[#allocation2 + $0x180] sm:$0xff]
      %v1933 = vld [vmem:[#allocation2 + $0x188] sm:$0xff]
      %v1934 = vld [vmem:[#allocation2 + $0x190] sm:$0xff]
      %v1935 = vld [vmem:[#allocation2 + $0x198] sm:$0xff]
      %v1936 = vld [vmem:[#allocation2 + $0x1a0] sm:$0xff]
      %v1937 = vld [vmem:[#allocation2 + $0x1a8] sm:$0xff]
      %v1938 = vld [vmem:[#allocation2 + $0x1b0] sm:$0xff]
      %v1939 = vld [vmem:[#allocation2 + $0x1b8] sm:$0xff]
      %v1940 = vld [vmem:[#allocation2 + $0x1c0] sm:$0xff]
      %v1941 = vld [vmem:[#allocation2 + $0x1c8] sm:$0xff]
      %v1942 = vld [vmem:[#allocation2 + $0x1d0] sm:$0xff]
      %v1943 = vld [vmem:[#allocation2 + $0x1d8] sm:$0xff]
      %v1944 = vld [vmem:[#allocation2 + $0x1e0] sm:$0xff]
      %v1945 = vld [vmem:[#allocation2 + $0x1e8] sm:$0xff]
      %v1946 = vld [vmem:[#allocation2 + $0x1f0] sm:$0xff]
      %v1947 = vld [vmem:[#allocation2 + $0x1f8] sm:$0xff]
      %v1948 = vld [vmem:[#allocation2 + $0x200] sm:$0xff]
      %v1949 = vld [vmem:[#allocation2 + $0x208] sm:$0xff]
      %v1950 = vld [vmem:[#allocation2 + $0x210] sm:$0xff]
      %v1951 = vld [vmem:[#allocation2 + $0x218] sm:$0xff]
      %v1952 = vld [vmem:[#allocation2 + $0x220] sm:$0xff]
      %v1953 = vld [vmem:[#allocation2 + $0x228] sm:$0xff]
      %v1954 = vld [vmem:[#allocation2 + $0x230] sm:$0xff]
      %v1955 = vld [vmem:[#allocation2 + $0x238] sm:$0xff]
      %v1956 = vld [vmem:[#allocation2 + $0x240] sm:$0xff]
      %v1957 = vld [vmem:[#allocation2 + $0x248] sm:$0xff]
      %v1958 = vld [vmem:[#allocation2 + $0x250] sm:$0xff]
      %v1959 = vld [vmem:[#allocation2 + $0x258] sm:$0xff]
      %v1960 = vld [vmem:[#allocation2 + $0x260] sm:$0xff]
      %v1961 = vld [vmem:[#allocation2 + $0x268] sm:$0xff]
      %v1962 = vld [vmem:[#allocation2 + $0x270] sm:$0xff]
      %v1963 = vld [vmem:[#allocation2 + $0x278] sm:$0xff]
      %v1964 = vld [vmem:[#allocation2 + $0x280] sm:$0xff]
      %v1965 = vld [vmem:[#allocation2 + $0x288] sm:$0xff]
      %v1966 = vld [vmem:[#allocation2 + $0x290] sm:$0xff]
      %v1967 = vld [vmem:[#allocation2 + $0x298] sm:$0xff]
      %v1968 = vld [vmem:[#allocation2 + $0x2a0] sm:$0xff]
      %v1969 = vld [vmem:[#allocation2 + $0x2a8] sm:$0xff]
      %v1970 = vld [vmem:[#allocation2 + $0x2b0] sm:$0xff]
      %v1971 = vld [vmem:[#allocation2 + $0x2b8] sm:$0xff]
      %v1972 = vld [vmem:[#allocation2 + $0x2c0] sm:$0xff]
      %v1973 = vld [vmem:[#allocation2 + $0x2c8] sm:$0xff]
      %v1974 = vld [vmem:[#allocation2 + $0x2d0] sm:$0xff]
      %v1975 = vld [vmem:[#allocation2 + $0x2d8] sm:$0xff]
      %v1976 = vld [vmem:[#allocation2 + $0x2e0] sm:$0xff]
      %v1977 = vld [vmem:[#allocation2 + $0x2e8] sm:$0xff]
      %v1978 = vld [vmem:[#allocation2 + $0x2f0] sm:$0xff]
      %v1979 = vld [vmem:[#allocation2 + $0x2f8] sm:$0xff]
      %v1980 = vld [vmem:[#allocation2 + $0x300] sm:$0xff]
      %v1981 = vld [vmem:[#allocation2 + $0x308] sm:$0xff]
      %v1982 = vld [vmem:[#allocation2 + $0x310] sm:$0xff]
      %v1983 = vld [vmem:[#allocation2 + $0x318] sm:$0xff]
      %v1984 = vld [vmem:[#allocation2 + $0x320] sm:$0xff]
      %v1985 = vld [vmem:[#allocation2 + $0x328] sm:$0xff]
      %v1986 = vld [vmem:[#allocation2 + $0x330] sm:$0xff]
      %v1987 = vld [vmem:[#allocation2 + $0x338] sm:$0xff]
      %v1988 = vld [vmem:[#allocation2 + $0x340] sm:$0xff]
      %v1989 = vld [vmem:[#allocation2 + $0x348] sm:$0xff]
      %v1990 = vld [vmem:[#allocation2 + $0x350] sm:$0xff]
      %v1991 = vld [vmem:[#allocation2 + $0x358] sm:$0xff]
      %v1992 = vld [vmem:[#allocation2 + $0x360] sm:$0xff]
      %v1993 = vld [vmem:[#allocation2 + $0x368] sm:$0xff]
      %v1994 = vld [vmem:[#allocation2 + $0x370] sm:$0xff]
      %v1995 = vld [vmem:[#allocation2 + $0x378] sm:$0xff]
      %v1996 = vld [vmem:[#allocation2 + $0x380] sm:$0xff]
      %v1997 = vld [vmem:[#allocation2 + $0x388] sm:$0xff]
      %v1998 = vld [vmem:[#allocation2 + $0x390] sm:$0xff]
      %v1999 = vld [vmem:[#allocation2 + $0x398] sm:$0xff]
      %v2000 = vld [vmem:[#allocation2 + $0x3a0] sm:$0xff]
      %v2001 = vld [vmem:[#allocation2 + $0x3a8] sm:$0xff]
      %v2002 = vld [vmem:[#allocation2 + $0x3b0] sm:$0xff]
      %v2003 = vld [vmem:[#allocation2 + $0x3b8] sm:$0xff]
      %v2004 = vld [vmem:[#allocation2 + $0x3c0] sm:$0xff]
      %v2005 = vld [vmem:[#allocation2 + $0x3c8] sm:$0xff]
      %v2006 = vld [vmem:[#allocation2 + $0x3d0] sm:$0xff]
      %v2007 = vld [vmem:[#allocation2 + $0x3d8] sm:$0xff]
      %v2008 = vld [vmem:[#allocation2 + $0x3e0] sm:$0xff]
      %v2009 = vld [vmem:[#allocation2 + $0x3e8] sm:$0xff]
      %v2010 = vld [vmem:[#allocation2 + $0x3f0] sm:$0xff]
      %v2011 = vld [vmem:[#allocation2 + $0x3f8] sm:$0xff]
      %2012 = vmatpush.msra.mxu0 %v1944
      %2013 = vmatpush.msra.mxu0 %v1940
      %2014 = vmatpush.msra.mxu0 %v1936
      %2015 = vmatpush.msra.mxu0 %v1932
      %2016 = vmatpush.msra.mxu0 %v1928
      %2017 = vmatpush.msra.mxu0 %v1924
      %2018 = vmatpush.msra.mxu0 %v1920
      %2019 = vmatpush.msra.mxu0 %v1916
      %2020 = vmatpush.msra.mxu0 %v1912
      %2021 = vmatpush.msra.mxu0 %v1908
      %2022 = vmatpush.msra.mxu0 %v1904
      %2023 = vmatpush.msra.mxu0 %v1900
      %2024 = vmatpush.msra.mxu0 %v1896
      %2025 = vmatpush.msra.mxu0 %v1892
      %2026 = vmatpush.msra.mxu0 %v1888
      %2027 = vmatpush.msra.mxu0 %v1884
      %2028 = vmatmul.f32.gmra.mxu0 %v255
      %v2029 = vpop.f32.mrf.mxu0
      %v2030 = vadd.f32 0.0, %v2029
      %2031 = vdwg.mxu0
      %2032 = vmatpush.msra.mxu0 %v2008
      %2033 = vmatpush.msra.mxu0 %v2004
      %2034 = vmatpush.msra.mxu0 %v2000
      %2035 = vmatpush.msra.mxu0 %v1996
      %2036 = vmatpush.msra.mxu0 %v1992
      %2037 = vmatpush.msra.mxu0 %v1988
      %2038 = vmatpush.msra.mxu0 %v1984
      %2039 = vmatpush.msra.mxu0 %v1980
      %2040 = vmatpush.msra.mxu0 %v1976
      %2041 = vmatpush.msra.mxu0 %v1972
      %2042 = vmatpush.msra.mxu0 %v1968
      %2043 = vmatpush.msra.mxu0 %v1964
      %2044 = vmatpush.msra.mxu0 %v1960
      %2045 = vmatpush.msra.mxu0 %v1956
      %2046 = vmatpush.msra.mxu0 %v1952
      %2047 = vmatpush.msra.mxu0 %v1948
      %2048 = vmatmul.f32.gmra.mxu0 %v256
      %v2049 = vpop.f32.mrf.mxu0
      %v2050 = vadd.f32 %v2030, %v2049
      %2051 = vdwg.mxu0
      %2052 = vmatpush.msra.mxu0 %v1945
      %2053 = vmatpush.msra.mxu0 %v1941
      %2054 = vmatpush.msra.mxu0 %v1937
      %2055 = vmatpush.msra.mxu0 %v1933
      %2056 = vmatpush.msra.mxu0 %v1929
      %2057 = vmatpush.msra.mxu0 %v1925
      %2058 = vmatpush.msra.mxu0 %v1921
      %2059 = vmatpush.msra.mxu0 %v1917
      %2060 = vmatpush.msra.mxu0 %v1913
      %2061 = vmatpush.msra.mxu0 %v1909
      %2062 = vmatpush.msra.mxu0 %v1905
      %2063 = vmatpush.msra.mxu0 %v1901
      %2064 = vmatpush.msra.mxu0 %v1897
      %2065 = vmatpush.msra.mxu0 %v1893
      %2066 = vmatpush.msra.mxu0 %v1889
      %2067 = vmatpush.msra.mxu0 %v1885
      %2068 = vmatmul.f32.gmra.mxu0 %v255
      %v2069 = vpop.f32.mrf.mxu0
      %v2070 = vadd.f32 0.0, %v2069
      %2071 = vdwg.mxu0
      %2072 = vmatpush.msra.mxu0 %v2009
      %2073 = vmatpush.msra.mxu0 %v2005
      %2074 = vmatpush.msra.mxu0 %v2001
      %2075 = vmatpush.msra.mxu0 %v1997
      %2076 = vmatpush.msra.mxu0 %v1993
      %2077 = vmatpush.msra.mxu0 %v1989
      %2078 = vmatpush.msra.mxu0 %v1985
      %2079 = vmatpush.msra.mxu0 %v1981
      %2080 = vmatpush.msra.mxu0 %v1977
      %2081 = vmatpush.msra.mxu0 %v1973
      %2082 = vmatpush.msra.mxu0 %v1969
      %2083 = vmatpush.msra.mxu0 %v1965
      %2084 = vmatpush.msra.mxu0 %v1961
      %2085 = vmatpush.msra.mxu0 %v1957
      %2086 = vmatpush.msra.mxu0 %v1953
      %2087 = vmatpush.msra.mxu0 %v1949
      %2088 = vmatmul.f32.gmra.mxu0 %v256
      %v2089 = vpop.f32.mrf.mxu0
      %v2090 = vadd.f32 %v2070, %v2089
      %2091 = vdwg.mxu0
      %2092 = vmatpush.msra.mxu0 %v1946
      %2093 = vmatpush.msra.mxu0 %v1942
      %2094 = vmatpush.msra.mxu0 %v1938
      %2095 = vmatpush.msra.mxu0 %v1934
      %2096 = vmatpush.msra.mxu0 %v1930
      %2097 = vmatpush.msra.mxu0 %v1926
      %2098 = vmatpush.msra.mxu0 %v1922
      %2099 = vmatpush.msra.mxu0 %v1918
      %2100 = vmatpush.msra.mxu0 %v1914
      %2101 = vmatpush.msra.mxu0 %v1910
      %2102 = vmatpush.msra.mxu0 %v1906
      %2103 = vmatpush.msra.mxu0 %v1902
      %2104 = vmatpush.msra.mxu0 %v1898
      %2105 = vmatpush.msra.mxu0 %v1894
      %2106 = vmatpush.msra.mxu0 %v1890
      %2107 = vmatpush.msra.mxu0 %v1886
      %2108 = vmatmul.f32.gmra.mxu0 %v255
      %v2109 = vpop.f32.mrf.mxu0
      %v2110 = vadd.f32 0.0, %v2109
      %2111 = vdwg.mxu0
      %2112 = vmatpush.msra.mxu0 %v2010
      %2113 = vmatpush.msra.mxu0 %v2006
      %2114 = vmatpush.msra.mxu0 %v2002
      %2115 = vmatpush.msra.mxu0 %v1998
      %2116 = vmatpush.msra.mxu0 %v1994
      %2117 = vmatpush.msra.mxu0 %v1990
      %2118 = vmatpush.msra.mxu0 %v1986
      %2119 = vmatpush.msra.mxu0 %v1982
      %2120 = vmatpush.msra.mxu0 %v1978
      %2121 = vmatpush.msra.mxu0 %v1974
      %2122 = vmatpush.msra.mxu0 %v1970
      %2123 = vmatpush.msra.mxu0 %v1966
      %2124 = vmatpush.msra.mxu0 %v1962
      %2125 = vmatpush.msra.mxu0 %v1958
      %2126 = vmatpush.msra.mxu0 %v1954
      %2127 = vmatpush.msra.mxu0 %v1950
      %2128 = vmatmul.f32.gmra.mxu0 %v256
      %v2129 = vpop.f32.mrf.mxu0
      %v2130 = vadd.f32 %v2110, %v2129
      %2131 = vdwg.mxu0
      %2132 = vmatpush.msra.mxu0 %v1947
      %2133 = vmatpush.msra.mxu0 %v1943
      %2134 = vmatpush.msra.mxu0 %v1939
      %2135 = vmatpush.msra.mxu0 %v1935
      %2136 = vmatpush.msra.mxu0 %v1931
      %2137 = vmatpush.msra.mxu0 %v1927
      %2138 = vmatpush.msra.mxu0 %v1923
      %2139 = vmatpush.msra.mxu0 %v1919
      %2140 = vmatpush.msra.mxu0 %v1915
      %2141 = vmatpush.msra.mxu0 %v1911
      %2142 = vmatpush.msra.mxu0 %v1907
      %2143 = vmatpush.msra.mxu0 %v1903
      %2144 = vmatpush.msra.mxu0 %v1899
      %2145 = vmatpush.msra.mxu0 %v1895
      %2146 = vmatpush.msra.mxu0 %v1891
      %2147 = vmatpush.msra.mxu0 %v1887
      %2148 = vmatmul.f32.gmra.mxu0 %v255
      %v2149 = vpop.f32.mrf.mxu0
      %v2150 = vadd.f32 0.0, %v2149
      %2151 = vdwg.mxu0
      %2152 = vmatpush.msra.mxu0 %v2011
      %2153 = vmatpush.msra.mxu0 %v2007
      %2154 = vmatpush.msra.mxu0 %v2003
      %2155 = vmatpush.msra.mxu0 %v1999
      %2156 = vmatpush.msra.mxu0 %v1995
      %2157 = vmatpush.msra.mxu0 %v1991
      %2158 = vmatpush.msra.mxu0 %v1987
      %2159 = vmatpush.msra.mxu0 %v1983
      %2160 = vmatpush.msra.mxu0 %v1979
      %2161 = vmatpush.msra.mxu0 %v1975
      %2162 = vmatpush.msra.mxu0 %v1971
      %2163 = vmatpush.msra.mxu0 %v1967
      %2164 = vmatpush.msra.mxu0 %v1963
      %2165 = vmatpush.msra.mxu0 %v1959
      %2166 = vmatpush.msra.mxu0 %v1955
      %2167 = vmatpush.msra.mxu0 %v1951
      %2168 = vmatmul.f32.gmra.mxu0 %v256
      %v2169 = vpop.f32.mrf.mxu0
      %v2170 = vadd.f32 %v2150, %v2169
      %2171 = vdwg.mxu0
      %2172 = vmatpush.msra.mxu0 %v274
      %2173 = vmatpush.msra.mxu0 %v273
      %2174 = vmatpush.msra.mxu0 %v272
      %2175 = vmatpush.msra.mxu0 %v271
      %2176 = vmatpush.msra.mxu0 %v270
      %2177 = vmatpush.msra.mxu0 %v269
      %2178 = vmatpush.msra.mxu0 %v268
      %2179 = vmatpush.msra.mxu0 %v267
      %2180 = vmatpush.msra.mxu0 %v266
      %2181 = vmatpush.msra.mxu0 %v265
      %2182 = vmatpush.msra.mxu0 %v264
      %2183 = vmatpush.msra.mxu0 %v263
      %2184 = vmatpush.msra.mxu0 %v262
      %2185 = vmatpush.msra.mxu0 %v261
      %2186 = vmatpush.msra.mxu0 %v260
      %2187 = vmatpush.msra.mxu0 %v259
      %2188 = vmatmul.f32.gmra.mxu0 %v2050
      %v2189 = vpop.f32.mrf.mxu0
      %v2190 = vadd.f32 0.0, %v2189
      %2191 = vdwg.mxu0
      %2192 = vmatpush.msra.mxu0 %v290
      %2193 = vmatpush.msra.mxu0 %v289
      %2194 = vmatpush.msra.mxu0 %v288
      %2195 = vmatpush.msra.mxu0 %v287
      %2196 = vmatpush.msra.mxu0 %v286
      %2197 = vmatpush.msra.mxu0 %v285
      %2198 = vmatpush.msra.mxu0 %v284
      %2199 = vmatpush.msra.mxu0 %v283
      %2200 = vmatpush.msra.mxu0 %v282
      %2201 = vmatpush.msra.mxu0 %v281
      %2202 = vmatpush.msra.mxu0 %v280
      %2203 = vmatpush.msra.mxu0 %v279
      %2204 = vmatpush.msra.mxu0 %v278
      %2205 = vmatpush.msra.mxu0 %v277
      %2206 = vmatpush.msra.mxu0 %v276
      %2207 = vmatpush.msra.mxu0 %v275
      %2208 = vmatmul.f32.gmra.mxu0 %v2090
      %v2209 = vpop.f32.mrf.mxu0
      %v2210 = vadd.f32 %v2190, %v2209
      %2211 = vdwg.mxu0
      %2212 = vmatpush.msra.mxu0 %v306
      %2213 = vmatpush.msra.mxu0 %v305
      %2214 = vmatpush.msra.mxu0 %v304
      %2215 = vmatpush.msra.mxu0 %v303
      %2216 = vmatpush.msra.mxu0 %v302
      %2217 = vmatpush.msra.mxu0 %v301
      %2218 = vmatpush.msra.mxu0 %v300
      %2219 = vmatpush.msra.mxu0 %v299
      %2220 = vmatpush.msra.mxu0 %v298
      %2221 = vmatpush.msra.mxu0 %v297
      %2222 = vmatpush.msra.mxu0 %v296
      %2223 = vmatpush.msra.mxu0 %v295
      %2224 = vmatpush.msra.mxu0 %v294
      %2225 = vmatpush.msra.mxu0 %v293
      %2226 = vmatpush.msra.mxu0 %v292
      %2227 = vmatpush.msra.mxu0 %v291
      %2228 = vmatmul.f32.gmra.mxu0 %v2130
      %v2229 = vpop.f32.mrf.mxu0
      %v2230 = vadd.f32 %v2210, %v2229
      %2231 = vdwg.mxu0
      %2232 = vmatpush.msra.mxu0 %v322
      %2233 = vmatpush.msra.mxu0 %v321
      %2234 = vmatpush.msra.mxu0 %v320
      %2235 = vmatpush.msra.mxu0 %v319
      %2236 = vmatpush.msra.mxu0 %v318
      %2237 = vmatpush.msra.mxu0 %v317
      %2238 = vmatpush.msra.mxu0 %v316
      %2239 = vmatpush.msra.mxu0 %v315
      %2240 = vmatpush.msra.mxu0 %v314
      %2241 = vmatpush.msra.mxu0 %v313
      %2242 = vmatpush.msra.mxu0 %v312
      %2243 = vmatpush.msra.mxu0 %v311
      %2244 = vmatpush.msra.mxu0 %v310
      %2245 = vmatpush.msra.mxu0 %v309
      %2246 = vmatpush.msra.mxu0 %v308
      %2247 = vmatpush.msra.mxu0 %v307
      %2248 = vmatmul.f32.gmra.mxu0 %v2170
      %v2249 = vpop.f32.mrf.mxu0
      %v2250 = vadd.f32 %v2230, %v2249
      %2251 = vdwg.mxu0
      %v2252 = vmul.f32 %v2050, %v2050
      %v2253 = vmul.f32 %v2090, %v2090
      %v2254 = vmul.f32 %v2130, %v2130
      %v2255 = vmul.f32 %v2170, %v2170
      %2256 = vmatpush.msra.mxu0 %v274
      %2257 = vmatpush.msra.mxu0 %v273
      %2258 = vmatpush.msra.mxu0 %v272
      %2259 = vmatpush.msra.mxu0 %v271
      %2260 = vmatpush.msra.mxu0 %v270
      %2261 = vmatpush.msra.mxu0 %v269
      %2262 = vmatpush.msra.mxu0 %v268
      %2263 = vmatpush.msra.mxu0 %v267
      %2264 = vmatpush.msra.mxu0 %v266
      %2265 = vmatpush.msra.mxu0 %v265
      %2266 = vmatpush.msra.mxu0 %v264
      %2267 = vmatpush.msra.mxu0 %v263
      %2268 = vmatpush.msra.mxu0 %v262
      %2269 = vmatpush.msra.mxu0 %v261
      %2270 = vmatpush.msra.mxu0 %v260
      %2271 = vmatpush.msra.mxu0 %v259
      %2272 = vmatmul.f32.gmra.mxu0 %v2252
      %v2273 = vpop.f32.mrf.mxu0
      %v2274 = vadd.f32 0.0, %v2273
      %2275 = vdwg.mxu0
      %2276 = vmatpush.msra.mxu0 %v290
      %2277 = vmatpush.msra.mxu0 %v289
      %2278 = vmatpush.msra.mxu0 %v288
      %2279 = vmatpush.msra.mxu0 %v287
      %2280 = vmatpush.msra.mxu0 %v286
      %2281 = vmatpush.msra.mxu0 %v285
      %2282 = vmatpush.msra.mxu0 %v284
      %2283 = vmatpush.msra.mxu0 %v283
      %2284 = vmatpush.msra.mxu0 %v282
      %2285 = vmatpush.msra.mxu0 %v281
      %2286 = vmatpush.msra.mxu0 %v280
      %2287 = vmatpush.msra.mxu0 %v279
      %2288 = vmatpush.msra.mxu0 %v278
      %2289 = vmatpush.msra.mxu0 %v277
      %2290 = vmatpush.msra.mxu0 %v276
      %2291 = vmatpush.msra.mxu0 %v275
      %2292 = vmatmul.f32.gmra.mxu0 %v2253
      %v2293 = vpop.f32.mrf.mxu0
      %v2294 = vadd.f32 %v2274, %v2293
      %2295 = vdwg.mxu0
      %2296 = vmatpush.msra.mxu0 %v306
      %2297 = vmatpush.msra.mxu0 %v305
      %2298 = vmatpush.msra.mxu0 %v304
      %2299 = vmatpush.msra.mxu0 %v303
      %2300 = vmatpush.msra.mxu0 %v302
      %2301 = vmatpush.msra.mxu0 %v301
      %2302 = vmatpush.msra.mxu0 %v300
      %2303 = vmatpush.msra.mxu0 %v299
      %2304 = vmatpush.msra.mxu0 %v298
      %2305 = vmatpush.msra.mxu0 %v297
      %2306 = vmatpush.msra.mxu0 %v296
      %2307 = vmatpush.msra.mxu0 %v295
      %2308 = vmatpush.msra.mxu0 %v294
      %2309 = vmatpush.msra.mxu0 %v293
      %2310 = vmatpush.msra.mxu0 %v292
      %2311 = vmatpush.msra.mxu0 %v291
      %2312 = vmatmul.f32.gmra.mxu0 %v2254
      %v2313 = vpop.f32.mrf.mxu0
      %v2314 = vadd.f32 %v2294, %v2313
      %2315 = vdwg.mxu0
      %2316 = vmatpush.msra.mxu0 %v322
      %2317 = vmatpush.msra.mxu0 %v321
      %2318 = vmatpush.msra.mxu0 %v320
      %2319 = vmatpush.msra.mxu0 %v319
      %2320 = vmatpush.msra.mxu0 %v318
      %2321 = vmatpush.msra.mxu0 %v317
      %2322 = vmatpush.msra.mxu0 %v316
      %2323 = vmatpush.msra.mxu0 %v315
      %2324 = vmatpush.msra.mxu0 %v314
      %2325 = vmatpush.msra.mxu0 %v313
      %2326 = vmatpush.msra.mxu0 %v312
      %2327 = vmatpush.msra.mxu0 %v311
      %2328 = vmatpush.msra.mxu0 %v310
      %2329 = vmatpush.msra.mxu0 %v309
      %2330 = vmatpush.msra.mxu0 %v308
      %2331 = vmatpush.msra.mxu0 %v307
      %2332 = vmatmul.f32.gmra.mxu0 %v2255
      %v2333 = vpop.f32.mrf.mxu0
      %v2334 = vadd.f32 %v2314, %v2333
      %2335 = vdwg.mxu0
      %v2336 = vmul.f32 %v2250, 0.001953125
      %v2337 = vmul.f32 %v2334, 0.001953125
      %v2338 = vmul.f32 %v2336, %v2336
      %v2339 = vsub.f32 %v2337, %v2338
      %2341 = vset.pattern.permute.xlu0 0
      %2342 = vperm.xlu0 %2341, %v2336
      %v2343 = vpop.permute.xlu0 %2342
      %v2345 = vsub.f32 %v2050, %v2343
      %v2346 = vsub.f32 %v2090, %v2343
      %v2347 = vsub.f32 %v2130, %v2343
      %v2348 = vsub.f32 %v2170, %v2343
      %v2349 = vadd.f32 %v2339, 1e-05
      %v2350 = vrsqrt.pop %v2349
      %v2351 = vmul.f32 %v2350, %v2349
      %v2352 = vmul.f32 %v2351, %v2350
      %v2353 = vmul.f32 0.5, %v2352
      %v2354 = vsub.f32 1.5, %v2353
      %v2355 = vmul.f32 %v2350, %v2354
      %vm2356 = vweird.f32 %v2349
      %vm2357 = vweird.f32 %v2350
      %vm2358 = vmor %vm2356, %vm2357
      %v2359 = vsel %vm2358, %v2350, %v2355
      %2361 = vset.pattern.permute.xlu0 0
      %2362 = vperm.xlu0 %2361, %v2359
      %v2363 = vpop.permute.xlu0 %2362
      %v2365 = vmul.f32 %v2345, %v2363
      %v2366 = vmul.f32 %v2346, %v2363
      %v2367 = vmul.f32 %v2347, %v2363
      %v2368 = vmul.f32 %v2348, %v2363
      %v2369 = vmax.f32 %v2365, 0.0
      %v2370 = vmax.f32 %v2366, 0.0
      %v2371 = vmax.f32 %v2367, 0.0
      %v2372 = vmax.f32 %v2368, 0.0
      %2373 = vst [vmem:[#allocation3 + $0x8] sm:$0xff] %v2369
      %2374 = vst [vmem:[#allocation3 + $0x10] sm:$0xff] %v2370
      %2375 = vst [vmem:[#allocation3 + $0x18] sm:$0xff] %v2371
      %2376 = vst [vmem:[#allocation3 + $0x20] sm:$0xff] %v2372
      %v2377 = vld [vmem:[#allocation3] sm:$0xff]
      %v2378 = vld [vmem:[#allocation3 + $0x8] sm:$0xff]
      %v2379 = vld [vmem:[#allocation3 + $0x10] sm:$0xff]
      %v2380 = vld [vmem:[#allocation3 + $0x18] sm:$0xff]
      %v2381 = vld [vmem:[#allocation3 + $0x20] sm:$0xff]
      %v2382 = vld [vmem:[%s3] sm:$0xff]
      %v2383 = vld [vmem:[%s3 + $0x8] sm:$0xff]
      %v2384 = vld [vmem:[%s3 + $0x10] sm:$0xff]
      %v2385 = vld [vmem:[%s3 + $0x18] sm:$0xff]
      %2390 = vrot.lane.b32.xlu0 %v2382, 55
      %v2391 = vpop.permute.xlu0 %2390
      %2392 = vrot.lane.b32.xlu0 %v2383, 55
      %v2393 = vpop.permute.xlu0 %2392
      %2394 = vrot.lane.b32.xlu0 %v2384, 55
      %v2395 = vpop.permute.xlu0 %2394
      %2396 = vrot.lane.b32.xlu0 %v2385, 55
      %v2397 = vpop.permute.xlu0 %2396
      %v2398 = vsel %vm352, %v2391, %v2393
      %v2399 = vsel %vm352, %v2393, %v2395
      %v2400 = vsel %vm352, %v2395, %v2397
      %v2406 = vmul.f32 %v2377, %v2391
      %v2407 = vmul.f32 %v2378, %v2398
      %v2408 = vmul.f32 %v2379, %v2399
      %v2409 = vmul.f32 %v2380, %v2400
      %v2410 = vmul.f32 %v2381, %v2397
      %2416 = vrot.lane.b32.xlu0 %v2406, 73
      %v2417 = vpop.permute.xlu0 %2416
      %2418 = vrot.lane.b32.xlu0 %v2407, 73
      %v2419 = vpop.permute.xlu0 %2418
      %2420 = vrot.lane.b32.xlu0 %v2408, 73
      %v2421 = vpop.permute.xlu0 %2420
      %2422 = vrot.lane.b32.xlu0 %v2409, 73
      %v2423 = vpop.permute.xlu0 %2422
      %2424 = vrot.lane.b32.xlu0 %v2410, 73
      %v2425 = vpop.permute.xlu0 %2424
      %v2426 = vsel %vm381, %v2417, %v2419
      %v2427 = vsel %vm381, %v2419, %v2421
      %v2428 = vsel %vm381, %v2421, %v2423
      %v2429 = vsel %vm381, %v2423, %v2425
      %2434 = vst [vmem:[#allocation2] sm:$0xff] %v2426
      %2435 = vst [vmem:[#allocation2 + $0x8] sm:$0xff] %v2427
      %2436 = vst [vmem:[#allocation2 + $0x10] sm:$0xff] %v2428
      %2437 = vst [vmem:[#allocation2 + $0x18] sm:$0xff] %v2429
      %v2438 = vld [vmem:[#allocation3] sm:$0xff]
      %v2439 = vld [vmem:[#allocation3 + $0x8] sm:$0xff]
      %v2440 = vld [vmem:[#allocation3 + $0x10] sm:$0xff]
      %v2441 = vld [vmem:[#allocation3 + $0x18] sm:$0xff]
      %v2442 = vld [vmem:[#allocation3 + $0x20] sm:$0xff]
      %v2443 = vld [vmem:[%s3 + $0x20] sm:$0xff]
      %v2444 = vld [vmem:[%s3 + $0x28] sm:$0xff]
      %v2445 = vld [vmem:[%s3 + $0x30] sm:$0xff]
      %v2446 = vld [vmem:[%s3 + $0x38] sm:$0xff]
      %2451 = vrot.lane.b32.xlu0 %v2443, 56
      %v2452 = vpop.permute.xlu0 %2451
      %2453 = vrot.lane.b32.xlu0 %v2444, 56
      %v2454 = vpop.permute.xlu0 %2453
      %2455 = vrot.lane.b32.xlu0 %v2445, 56
      %v2456 = vpop.permute.xlu0 %2455
      %2457 = vrot.lane.b32.xlu0 %v2446, 56
      %v2458 = vpop.permute.xlu0 %2457
      %v2459 = vsel %vm415, %v2452, %v2454
      %v2460 = vsel %vm415, %v2454, %v2456
      %v2461 = vsel %vm415, %v2456, %v2458
      %v2467 = vmul.f32 %v2438, %v2452
      %v2468 = vmul.f32 %v2439, %v2459
      %v2469 = vmul.f32 %v2440, %v2460
      %v2470 = vmul.f32 %v2441, %v2461
      %v2471 = vmul.f32 %v2442, %v2458
      %2477 = vrot.lane.b32.xlu0 %v2467, 72
      %v2478 = vpop.permute.xlu0 %2477
      %2479 = vrot.lane.b32.xlu0 %v2468, 72
      %v2480 = vpop.permute.xlu0 %2479
      %2481 = vrot.lane.b32.xlu0 %v2469, 72
      %v2482 = vpop.permute.xlu0 %2481
      %2483 = vrot.lane.b32.xlu0 %v2470, 72
      %v2484 = vpop.permute.xlu0 %2483
      %2485 = vrot.lane.b32.xlu0 %v2471, 72
      %v2486 = vpop.permute.xlu0 %2485
      %v2487 = vsel %vm444, %v2478, %v2480
      %v2488 = vsel %vm444, %v2480, %v2482
      %v2489 = vsel %vm444, %v2482, %v2484
      %v2490 = vsel %vm444, %v2484, %v2486
      %2495 = vst [vmem:[#allocation2 + $0x20] sm:$0xff] %v2487
      %2496 = vst [vmem:[#allocation2 + $0x28] sm:$0xff] %v2488
      %2497 = vst [vmem:[#allocation2 + $0x30] sm:$0xff] %v2489
      %2498 = vst [vmem:[#allocation2 + $0x38] sm:$0xff] %v2490
      %v2499 = vld [vmem:[#allocation3] sm:$0xff]
      %v2500 = vld [vmem:[#allocation3 + $0x8] sm:$0xff]
      %v2501 = vld [vmem:[#allocation3 + $0x10] sm:$0xff]
      %v2502 = vld [vmem:[#allocation3 + $0x18] sm:$0xff]
      %v2503 = vld [vmem:[#allocation3 + $0x20] sm:$0xff]
      %v2504 = vld [vmem:[%s3 + $0x40] sm:$0xff]
      %v2505 = vld [vmem:[%s3 + $0x48] sm:$0xff]
      %v2506 = vld [vmem:[%s3 + $0x50] sm:$0xff]
      %v2507 = vld [vmem:[%s3 + $0x58] sm:$0xff]
      %2512 = vrot.lane.b32.xlu0 %v2504, 57
      %v2513 = vpop.permute.xlu0 %2512
      %2514 = vrot.lane.b32.xlu0 %v2505, 57
      %v2515 = vpop.permute.xlu0 %2514
      %2516 = vrot.lane.b32.xlu0 %v2506, 57
      %v2517 = vpop.permute.xlu0 %2516
      %2518 = vrot.lane.b32.xlu0 %v2507, 57
      %v2519 = vpop.permute.xlu0 %2518
      %v2520 = vsel %vm478, %v2513, %v2515
      %v2521 = vsel %vm478, %v2515, %v2517
      %v2522 = vsel %vm478, %v2517, %v2519
      %v2528 = vmul.f32 %v2499, %v2513
      %v2529 = vmul.f32 %v2500, %v2520
      %v2530 = vmul.f32 %v2501, %v2521
      %v2531 = vmul.f32 %v2502, %v2522
      %v2532 = vmul.f32 %v2503, %v2519
      %2538 = vrot.lane.b32.xlu0 %v2528, 71
      %v2539 = vpop.permute.xlu0 %2538
      %2540 = vrot.lane.b32.xlu0 %v2529, 71
      %v2541 = vpop.permute.xlu0 %2540
      %2542 = vrot.lane.b32.xlu0 %v2530, 71
      %v2543 = vpop.permute.xlu0 %2542
      %2544 = vrot.lane.b32.xlu0 %v2531, 71
      %v2545 = vpop.permute.xlu0 %2544
      %2546 = vrot.lane.b32.xlu0 %v2532, 71
      %v2547 = vpop.permute.xlu0 %2546
      %v2548 = vsel %vm507, %v2539, %v2541
      %v2549 = vsel %vm507, %v2541, %v2543
      %v2550 = vsel %vm507, %v2543, %v2545
      %v2551 = vsel %vm507, %v2545, %v2547
      %2556 = vst [vmem:[#allocation2 + $0x40] sm:$0xff] %v2548
      %2557 = vst [vmem:[#allocation2 + $0x48] sm:$0xff] %v2549
      %2558 = vst [vmem:[#allocation2 + $0x50] sm:$0xff] %v2550
      %2559 = vst [vmem:[#allocation2 + $0x58] sm:$0xff] %v2551
      %v2560 = vld [vmem:[#allocation3] sm:$0xff]
      %v2561 = vld [vmem:[#allocation3 + $0x8] sm:$0xff]
      %v2562 = vld [vmem:[#allocation3 + $0x10] sm:$0xff]
      %v2563 = vld [vmem:[#allocation3 + $0x18] sm:$0xff]
      %v2564 = vld [vmem:[#allocation3 + $0x20] sm:$0xff]
      %v2565 = vld [vmem:[%s3 + $0x60] sm:$0xff]
      %v2566 = vld [vmem:[%s3 + $0x68] sm:$0xff]
      %v2567 = vld [vmem:[%s3 + $0x70] sm:$0xff]
      %v2568 = vld [vmem:[%s3 + $0x78] sm:$0xff]
      %2573 = vrot.lane.b32.xlu0 %v2565, 63
      %v2574 = vpop.permute.xlu0 %2573
      %2575 = vrot.lane.b32.xlu0 %v2566, 63
      %v2576 = vpop.permute.xlu0 %2575
      %2577 = vrot.lane.b32.xlu0 %v2567, 63
      %v2578 = vpop.permute.xlu0 %2577
      %2579 = vrot.lane.b32.xlu0 %v2568, 63
      %v2580 = vpop.permute.xlu0 %2579
      %v2581 = vsel %vm541, %v2574, %v2576
      %v2582 = vsel %vm541, %v2576, %v2578
      %v2583 = vsel %vm541, %v2578, %v2580
      %v2589 = vmul.f32 %v2560, %v2574
      %v2590 = vmul.f32 %v2561, %v2581
      %v2591 = vmul.f32 %v2562, %v2582
      %v2592 = vmul.f32 %v2563, %v2583
      %v2593 = vmul.f32 %v2564, %v2580
      %2599 = vrot.lane.b32.xlu0 %v2589, 65
      %v2600 = vpop.permute.xlu0 %2599
      %2601 = vrot.lane.b32.xlu0 %v2590, 65
      %v2602 = vpop.permute.xlu0 %2601
      %2603 = vrot.lane.b32.xlu0 %v2591, 65
      %v2604 = vpop.permute.xlu0 %2603
      %2605 = vrot.lane.b32.xlu0 %v2592, 65
      %v2606 = vpop.permute.xlu0 %2605
      %2607 = vrot.lane.b32.xlu0 %v2593, 65
      %v2608 = vpop.permute.xlu0 %2607
      %v2609 = vsel %vm570, %v2600, %v2602
      %v2610 = vsel %vm570, %v2602, %v2604
      %v2611 = vsel %vm570, %v2604, %v2606
      %v2612 = vsel %vm570, %v2606, %v2608
      %2617 = vst [vmem:[#allocation2 + $0x60] sm:$0xff] %v2609
      %2618 = vst [vmem:[#allocation2 + $0x68] sm:$0xff] %v2610
      %2619 = vst [vmem:[#allocation2 + $0x70] sm:$0xff] %v2611
      %2620 = vst [vmem:[#allocation2 + $0x78] sm:$0xff] %v2612
      %v2621 = vld [vmem:[#allocation3] sm:$0xff]
      %v2622 = vld [vmem:[#allocation3 + $0x8] sm:$0xff]
      %v2623 = vld [vmem:[#allocation3 + $0x10] sm:$0xff]
      %v2624 = vld [vmem:[#allocation3 + $0x18] sm:$0xff]
      %v2625 = vld [vmem:[#allocation3 + $0x20] sm:$0xff]
      %2631 = vrot.lane.b32.xlu0 %v2621, 64
      %v2632 = vpop.permute.xlu0 %2631
      %2633 = vrot.lane.b32.xlu0 %v2622, 64
      %v2634 = vpop.permute.xlu0 %2633
      %2635 = vrot.lane.b32.xlu0 %v2623, 64
      %v2636 = vpop.permute.xlu0 %2635
      %2637 = vrot.lane.b32.xlu0 %v2624, 64
      %v2638 = vpop.permute.xlu0 %2637
      %2639 = vrot.lane.b32.xlu0 %v2625, 64
      %v2640 = vpop.permute.xlu0 %2639
      %v2641 = vsel %vm603, %v2632, %v2634
      %v2642 = vsel %vm603, %v2634, %v2636
      %v2643 = vsel %vm603, %v2636, %v2638
      %v2644 = vsel %vm603, %v2638, %v2640
      %2649 = vst [vmem:[#allocation2 + $0x80] sm:$0xff] %v2641
      %2650 = vst [vmem:[#allocation2 + $0x88] sm:$0xff] %v2642
      %2651 = vst [vmem:[#allocation2 + $0x90] sm:$0xff] %v2643
      %2652 = vst [vmem:[#allocation2 + $0x98] sm:$0xff] %v2644
      %v2653 = vld [vmem:[#allocation3] sm:$0xff]
      %v2654 = vld [vmem:[#allocation3 + $0x8] sm:$0xff]
      %v2655 = vld [vmem:[#allocation3 + $0x10] sm:$0xff]
      %v2656 = vld [vmem:[#allocation3 + $0x18] sm:$0xff]
      %v2657 = vld [vmem:[#allocation3 + $0x20] sm:$0xff]
      %v2658 = vld [vmem:[%s3 + $0xa0] sm:$0xff]
      %v2659 = vld [vmem:[%s3 + $0xa8] sm:$0xff]
      %v2660 = vld [vmem:[%s3 + $0xb0] sm:$0xff]
      %v2661 = vld [vmem:[%s3 + $0xb8] sm:$0xff]
      %2666 = vrot.lane.b32.xlu0 %v2658, 65
      %v2667 = vpop.permute.xlu0 %2666
      %2668 = vrot.lane.b32.xlu0 %v2659, 65
      %v2669 = vpop.permute.xlu0 %2668
      %2670 = vrot.lane.b32.xlu0 %v2660, 65
      %v2671 = vpop.permute.xlu0 %2670
      %2672 = vrot.lane.b32.xlu0 %v2661, 65
      %v2673 = vpop.permute.xlu0 %2672
      %v2674 = vsel %vm570, %v2667, %v2669
      %v2675 = vsel %vm570, %v2669, %v2671
      %v2676 = vsel %vm570, %v2671, %v2673
      %v2682 = vmul.f32 %v2653, %v2667
      %v2683 = vmul.f32 %v2654, %v2674
      %v2684 = vmul.f32 %v2655, %v2675
      %v2685 = vmul.f32 %v2656, %v2676
      %v2686 = vmul.f32 %v2657, %v2673
      %2692 = vrot.lane.b32.xlu0 %v2682, 63
      %v2693 = vpop.permute.xlu0 %2692
      %2694 = vrot.lane.b32.xlu0 %v2683, 63
      %v2695 = vpop.permute.xlu0 %2694
      %2696 = vrot.lane.b32.xlu0 %v2684, 63
      %v2697 = vpop.permute.xlu0 %2696
      %2698 = vrot.lane.b32.xlu0 %v2685, 63
      %v2699 = vpop.permute.xlu0 %2698
      %2700 = vrot.lane.b32.xlu0 %v2686, 63
      %v2701 = vpop.permute.xlu0 %2700
      %v2702 = vsel %vm541, %v2693, %v2695
      %v2703 = vsel %vm541, %v2695, %v2697
      %v2704 = vsel %vm541, %v2697, %v2699
      %v2705 = vsel %vm541, %v2699, %v2701
      %2710 = vst [vmem:[#allocation2 + $0xa0] sm:$0xff] %v2702
      %2711 = vst [vmem:[#allocation2 + $0xa8] sm:$0xff] %v2703
      %2712 = vst [vmem:[#allocation2 + $0xb0] sm:$0xff] %v2704
      %2713 = vst [vmem:[#allocation2 + $0xb8] sm:$0xff] %v2705
      %v2714 = vld [vmem:[#allocation3] sm:$0xff]
      %v2715 = vld [vmem:[#allocation3 + $0x8] sm:$0xff]
      %v2716 = vld [vmem:[#allocation3 + $0x10] sm:$0xff]
      %v2717 = vld [vmem:[#allocation3 + $0x18] sm:$0xff]
      %v2718 = vld [vmem:[#allocation3 + $0x20] sm:$0xff]
      %v2719 = vld [vmem:[%s3 + $0xc0] sm:$0xff]
      %v2720 = vld [vmem:[%s3 + $0xc8] sm:$0xff]
      %v2721 = vld [vmem:[%s3 + $0xd0] sm:$0xff]
      %v2722 = vld [vmem:[%s3 + $0xd8] sm:$0xff]
      %2727 = vrot.lane.b32.xlu0 %v2719, 71
      %v2728 = vpop.permute.xlu0 %2727
      %2729 = vrot.lane.b32.xlu0 %v2720, 71
      %v2730 = vpop.permute.xlu0 %2729
      %2731 = vrot.lane.b32.xlu0 %v2721, 71
      %v2732 = vpop.permute.xlu0 %2731
      %2733 = vrot.lane.b32.xlu0 %v2722, 71
      %v2734 = vpop.permute.xlu0 %2733
      %v2735 = vsel %vm507, %v2728, %v2730
      %v2736 = vsel %vm507, %v2730, %v2732
      %v2737 = vsel %vm507, %v2732, %v2734
      %v2743 = vmul.f32 %v2714, %v2728
      %v2744 = vmul.f32 %v2715, %v2735
      %v2745 = vmul.f32 %v2716, %v2736
      %v2746 = vmul.f32 %v2717, %v2737
      %v2747 = vmul.f32 %v2718, %v2734
      %2753 = vrot.lane.b32.xlu0 %v2743, 57
      %v2754 = vpop.permute.xlu0 %2753
      %2755 = vrot.lane.b32.xlu0 %v2744, 57
      %v2756 = vpop.permute.xlu0 %2755
      %2757 = vrot.lane.b32.xlu0 %v2745, 57
      %v2758 = vpop.permute.xlu0 %2757
      %2759 = vrot.lane.b32.xlu0 %v2746, 57
      %v2760 = vpop.permute.xlu0 %2759
      %2761 = vrot.lane.b32.xlu0 %v2747, 57
      %v2762 = vpop.permute.xlu0 %2761
      %v2763 = vsel %vm478, %v2754, %v2756
      %v2764 = vsel %vm478, %v2756, %v2758
      %v2765 = vsel %vm478, %v2758, %v2760
      %v2766 = vsel %vm478, %v2760, %v2762
      %2771 = vst [vmem:[#allocation2 + $0xc0] sm:$0xff] %v2763
      %2772 = vst [vmem:[#allocation2 + $0xc8] sm:$0xff] %v2764
      %2773 = vst [vmem:[#allocation2 + $0xd0] sm:$0xff] %v2765
      %2774 = vst [vmem:[#allocation2 + $0xd8] sm:$0xff] %v2766
      %v2775 = vld [vmem:[#allocation3] sm:$0xff]
      %v2776 = vld [vmem:[#allocation3 + $0x8] sm:$0xff]
      %v2777 = vld [vmem:[#allocation3 + $0x10] sm:$0xff]
      %v2778 = vld [vmem:[#allocation3 + $0x18] sm:$0xff]
      %v2779 = vld [vmem:[#allocation3 + $0x20] sm:$0xff]
      %v2780 = vld [vmem:[%s3 + $0xe0] sm:$0xff]
      %v2781 = vld [vmem:[%s3 + $0xe8] sm:$0xff]
      %v2782 = vld [vmem:[%s3 + $0xf0] sm:$0xff]
      %v2783 = vld [vmem:[%s3 + $0xf8] sm:$0xff]
      %2788 = vrot.lane.b32.xlu0 %v2780, 72
      %v2789 = vpop.permute.xlu0 %2788
      %2790 = vrot.lane.b32.xlu0 %v2781, 72
      %v2791 = vpop.permute.xlu0 %2790
      %2792 = vrot.lane.b32.xlu0 %v2782, 72
      %v2793 = vpop.permute.xlu0 %2792
      %2794 = vrot.lane.b32.xlu0 %v2783, 72
      %v2795 = vpop.permute.xlu0 %2794
      %v2796 = vsel %vm444, %v2789, %v2791
      %v2797 = vsel %vm444, %v2791, %v2793
      %v2798 = vsel %vm444, %v2793, %v2795
      %v2804 = vmul.f32 %v2775, %v2789
      %v2805 = vmul.f32 %v2776, %v2796
      %v2806 = vmul.f32 %v2777, %v2797
      %v2807 = vmul.f32 %v2778, %v2798
      %v2808 = vmul.f32 %v2779, %v2795
      %2814 = vrot.lane.b32.xlu0 %v2804, 56
      %v2815 = vpop.permute.xlu0 %2814
      %2816 = vrot.lane.b32.xlu0 %v2805, 56
      %v2817 = vpop.permute.xlu0 %2816
      %2818 = vrot.lane.b32.xlu0 %v2806, 56
      %v2819 = vpop.permute.xlu0 %2818
      %2820 = vrot.lane.b32.xlu0 %v2807, 56
      %v2821 = vpop.permute.xlu0 %2820
      %2822 = vrot.lane.b32.xlu0 %v2808, 56
      %v2823 = vpop.permute.xlu0 %2822
      %v2824 = vsel %vm415, %v2815, %v2817
      %v2825 = vsel %vm415, %v2817, %v2819
      %v2826 = vsel %vm415, %v2819, %v2821
      %v2827 = vsel %vm415, %v2821, %v2823
      %2832 = vst [vmem:[#allocation2 + $0xe0] sm:$0xff] %v2824
      %2833 = vst [vmem:[#allocation2 + $0xe8] sm:$0xff] %v2825
      %2834 = vst [vmem:[#allocation2 + $0xf0] sm:$0xff] %v2826
      %2835 = vst [vmem:[#allocation2 + $0xf8] sm:$0xff] %v2827
      %v2836 = vld [vmem:[#allocation3] sm:$0xff]
      %v2837 = vld [vmem:[#allocation3 + $0x8] sm:$0xff]
      %v2838 = vld [vmem:[#allocation3 + $0x10] sm:$0xff]
      %v2839 = vld [vmem:[#allocation3 + $0x18] sm:$0xff]
      %v2840 = vld [vmem:[#allocation3 + $0x20] sm:$0xff]
      %v2841 = vld [vmem:[%s3 + $0x100] sm:$0xff]
      %v2842 = vld [vmem:[%s3 + $0x108] sm:$0xff]
      %v2843 = vld [vmem:[%s3 + $0x110] sm:$0xff]
      %v2844 = vld [vmem:[%s3 + $0x118] sm:$0xff]
      %2849 = vrot.lane.b32.xlu0 %v2841, 73
      %v2850 = vpop.permute.xlu0 %2849
      %2851 = vrot.lane.b32.xlu0 %v2842, 73
      %v2852 = vpop.permute.xlu0 %2851
      %2853 = vrot.lane.b32.xlu0 %v2843, 73
      %v2854 = vpop.permute.xlu0 %2853
      %2855 = vrot.lane.b32.xlu0 %v2844, 73
      %v2856 = vpop.permute.xlu0 %2855
      %v2857 = vsel %vm381, %v2850, %v2852
      %v2858 = vsel %vm381, %v2852, %v2854
      %v2859 = vsel %vm381, %v2854, %v2856
      %v2865 = vmul.f32 %v2836, %v2850
      %v2866 = vmul.f32 %v2837, %v2857
      %v2867 = vmul.f32 %v2838, %v2858
      %v2868 = vmul.f32 %v2839, %v2859
      %v2869 = vmul.f32 %v2840, %v2856
      %2875 = vrot.lane.b32.xlu0 %v2865, 55
      %v2876 = vpop.permute.xlu0 %2875
      %2877 = vrot.lane.b32.xlu0 %v2866, 55
      %v2878 = vpop.permute.xlu0 %2877
      %2879 = vrot.lane.b32.xlu0 %v2867, 55
      %v2880 = vpop.permute.xlu0 %2879
      %2881 = vrot.lane.b32.xlu0 %v2868, 55
      %v2882 = vpop.permute.xlu0 %2881
      %2883 = vrot.lane.b32.xlu0 %v2869, 55
      %v2884 = vpop.permute.xlu0 %2883
      %v2885 = vsel %vm352, %v2876, %v2878
      %v2886 = vsel %vm352, %v2878, %v2880
      %v2887 = vsel %vm352, %v2880, %v2882
      %v2888 = vsel %vm352, %v2882, %v2884
      %2893 = vst [vmem:[#allocation2 + $0x100] sm:$0xff] %v2885
      %2894 = vst [vmem:[#allocation2 + $0x108] sm:$0xff] %v2886
      %2895 = vst [vmem:[#allocation2 + $0x110] sm:$0xff] %v2887
      %2896 = vst [vmem:[#allocation2 + $0x118] sm:$0xff] %v2888
      %v2897 = vld [vmem:[#allocation3] sm:$0xff]
      %v2898 = vld [vmem:[#allocation3 + $0x8] sm:$0xff]
      %v2899 = vld [vmem:[#allocation3 + $0x10] sm:$0xff]
      %v2900 = vld [vmem:[#allocation3 + $0x18] sm:$0xff]
      %v2901 = vld [vmem:[#allocation3 + $0x20] sm:$0xff]
      %v2902 = vld [vmem:[%s3 + $0x120] sm:$0xff]
      %v2903 = vld [vmem:[%s3 + $0x128] sm:$0xff]
      %v2904 = vld [vmem:[%s3 + $0x130] sm:$0xff]
      %v2905 = vld [vmem:[%s3 + $0x138] sm:$0xff]
      %2910 = vrot.lane.b32.xlu0 %v2902, 119
      %v2911 = vpop.permute.xlu0 %2910
      %2912 = vrot.lane.b32.xlu0 %v2903, 119
      %v2913 = vpop.permute.xlu0 %2912
      %2914 = vrot.lane.b32.xlu0 %v2904, 119
      %v2915 = vpop.permute.xlu0 %2914
      %2916 = vrot.lane.b32.xlu0 %v2905, 119
      %v2917 = vpop.permute.xlu0 %2916
      %v2918 = vsel %vm881, %v2911, %v2913
      %v2919 = vsel %vm881, %v2913, %v2915
      %v2920 = vsel %vm881, %v2915, %v2917
      %v2926 = vmul.f32 %v2897, %v2911
      %v2927 = vmul.f32 %v2898, %v2918
      %v2928 = vmul.f32 %v2899, %v2919
      %v2929 = vmul.f32 %v2900, %v2920
      %v2930 = vmul.f32 %v2901, %v2917
      %2936 = vrot.lane.b32.xlu0 %v2926, 9
      %v2937 = vpop.permute.xlu0 %2936
      %2938 = vrot.lane.b32.xlu0 %v2927, 9
      %v2939 = vpop.permute.xlu0 %2938
      %2940 = vrot.lane.b32.xlu0 %v2928, 9
      %v2941 = vpop.permute.xlu0 %2940
      %2942 = vrot.lane.b32.xlu0 %v2929, 9
      %v2943 = vpop.permute.xlu0 %2942
      %2944 = vrot.lane.b32.xlu0 %v2930, 9
      %v2945 = vpop.permute.xlu0 %2944
      %v2946 = vsel %vm910, %v2937, %v2939
      %v2947 = vsel %vm910, %v2939, %v2941
      %v2948 = vsel %vm910, %v2941, %v2943
      %v2949 = vsel %vm910, %v2943, %v2945
      %2954 = vst [vmem:[#allocation2 + $0x120] sm:$0xff] %v2946
      %2955 = vst [vmem:[#allocation2 + $0x128] sm:$0xff] %v2947
      %2956 = vst [vmem:[#allocation2 + $0x130] sm:$0xff] %v2948
      %2957 = vst [vmem:[#allocation2 + $0x138] sm:$0xff] %v2949
      %v2958 = vld [vmem:[#allocation3] sm:$0xff]
      %v2959 = vld [vmem:[#allocation3 + $0x8] sm:$0xff]
      %v2960 = vld [vmem:[#allocation3 + $0x10] sm:$0xff]
      %v2961 = vld [vmem:[#allocation3 + $0x18] sm:$0xff]
      %v2962 = vld [vmem:[#allocation3 + $0x20] sm:$0xff]
      %v2963 = vld [vmem:[%s3 + $0x140] sm:$0xff]
      %v2964 = vld [vmem:[%s3 + $0x148] sm:$0xff]
      %v2965 = vld [vmem:[%s3 + $0x150] sm:$0xff]
      %v2966 = vld [vmem:[%s3 + $0x158] sm:$0xff]
      %2971 = vrot.lane.b32.xlu0 %v2963, 120
      %v2972 = vpop.permute.xlu0 %2971
      %2973 = vrot.lane.b32.xlu0 %v2964, 120
      %v2974 = vpop.permute.xlu0 %2973
      %2975 = vrot.lane.b32.xlu0 %v2965, 120
      %v2976 = vpop.permute.xlu0 %2975
      %2977 = vrot.lane.b32.xlu0 %v2966, 120
      %v2978 = vpop.permute.xlu0 %2977
      %v2979 = vsel %vm944, %v2972, %v2974
      %v2980 = vsel %vm944, %v2974, %v2976
      %v2981 = vsel %vm944, %v2976, %v2978
      %v2987 = vmul.f32 %v2958, %v2972
      %v2988 = vmul.f32 %v2959, %v2979
      %v2989 = vmul.f32 %v2960, %v2980
      %v2990 = vmul.f32 %v2961, %v2981
      %v2991 = vmul.f32 %v2962, %v2978
      %2997 = vrot.lane.b32.xlu0 %v2987, 8
      %v2998 = vpop.permute.xlu0 %2997
      %2999 = vrot.lane.b32.xlu0 %v2988, 8
      %v3000 = vpop.permute.xlu0 %2999
      %3001 = vrot.lane.b32.xlu0 %v2989, 8
      %v3002 = vpop.permute.xlu0 %3001
      %3003 = vrot.lane.b32.xlu0 %v2990, 8
      %v3004 = vpop.permute.xlu0 %3003
      %3005 = vrot.lane.b32.xlu0 %v2991, 8
      %v3006 = vpop.permute.xlu0 %3005
      %v3007 = vsel %vm973, %v2998, %v3000
      %v3008 = vsel %vm973, %v3000, %v3002
      %v3009 = vsel %vm973, %v3002, %v3004
      %v3010 = vsel %vm973, %v3004, %v3006
      %3015 = vst [vmem:[#allocation2 + $0x140] sm:$0xff] %v3007
      %3016 = vst [vmem:[#allocation2 + $0x148] sm:$0xff] %v3008
      %3017 = vst [vmem:[#allocation2 + $0x150] sm:$0xff] %v3009
      %3018 = vst [vmem:[#allocation2 + $0x158] sm:$0xff] %v3010
      %v3019 = vld [vmem:[#allocation3] sm:$0xff]
      %v3020 = vld [vmem:[#allocation3 + $0x8] sm:$0xff]
      %v3021 = vld [vmem:[#allocation3 + $0x10] sm:$0xff]
      %v3022 = vld [vmem:[#allocation3 + $0x18] sm:$0xff]
      %v3023 = vld [vmem:[#allocation3 + $0x20] sm:$0xff]
      %v3024 = vld [vmem:[%s3 + $0x160] sm:$0xff]
      %v3025 = vld [vmem:[%s3 + $0x168] sm:$0xff]
      %v3026 = vld [vmem:[%s3 + $0x170] sm:$0xff]
      %v3027 = vld [vmem:[%s3 + $0x178] sm:$0xff]
      %3032 = vrot.lane.b32.xlu0 %v3024, 121
      %v3033 = vpop.permute.xlu0 %3032
      %3034 = vrot.lane.b32.xlu0 %v3025, 121
      %v3035 = vpop.permute.xlu0 %3034
      %3036 = vrot.lane.b32.xlu0 %v3026, 121
      %v3037 = vpop.permute.xlu0 %3036
      %3038 = vrot.lane.b32.xlu0 %v3027, 121
      %v3039 = vpop.permute.xlu0 %3038
      %v3040 = vsel %vm1007, %v3033, %v3035
      %v3041 = vsel %vm1007, %v3035, %v3037
      %v3042 = vsel %vm1007, %v3037, %v3039
      %v3048 = vmul.f32 %v3019, %v3033
      %v3049 = vmul.f32 %v3020, %v3040
      %v3050 = vmul.f32 %v3021, %v3041
      %v3051 = vmul.f32 %v3022, %v3042
      %v3052 = vmul.f32 %v3023, %v3039
      %3058 = vrot.lane.b32.xlu0 %v3048, 7
      %v3059 = vpop.permute.xlu0 %3058
      %3060 = vrot.lane.b32.xlu0 %v3049, 7
      %v3061 = vpop.permute.xlu0 %3060
      %3062 = vrot.lane.b32.xlu0 %v3050, 7
      %v3063 = vpop.permute.xlu0 %3062
      %3064 = vrot.lane.b32.xlu0 %v3051, 7
      %v3065 = vpop.permute.xlu0 %3064
      %3066 = vrot.lane.b32.xlu0 %v3052, 7
      %v3067 = vpop.permute.xlu0 %3066
      %v3068 = vsel %vm1036, %v3059, %v3061
      %v3069 = vsel %vm1036, %v3061, %v3063
      %v3070 = vsel %vm1036, %v3063, %v3065
      %v3071 = vsel %vm1036, %v3065, %v3067
      %3076 = vst [vmem:[#allocation2 + $0x160] sm:$0xff] %v3068
      %3077 = vst [vmem:[#allocation2 + $0x168] sm:$0xff] %v3069
      %3078 = vst [vmem:[#allocation2 + $0x170] sm:$0xff] %v3070
      %3079 = vst [vmem:[#allocation2 + $0x178] sm:$0xff] %v3071
      %v3080 = vld [vmem:[#allocation3] sm:$0xff]
      %v3081 = vld [vmem:[#allocation3 + $0x8] sm:$0xff]
      %v3082 = vld [vmem:[#allocation3 + $0x10] sm:$0xff]
      %v3083 = vld [vmem:[#allocation3 + $0x18] sm:$0xff]
      %v3084 = vld [vmem:[#allocation3 + $0x20] sm:$0xff]
      %v3085 = vld [vmem:[%s3 + $0x180] sm:$0xff]
      %v3086 = vld [vmem:[%s3 + $0x188] sm:$0xff]
      %v3087 = vld [vmem:[%s3 + $0x190] sm:$0xff]
      %v3088 = vld [vmem:[%s3 + $0x198] sm:$0xff]
      %3093 = vrot.lane.b32.xlu0 %v3085, 127
      %v3094 = vpop.permute.xlu0 %3093
      %3095 = vrot.lane.b32.xlu0 %v3086, 127
      %v3096 = vpop.permute.xlu0 %3095
      %3097 = vrot.lane.b32.xlu0 %v3087, 127
      %v3098 = vpop.permute.xlu0 %3097
      %3099 = vrot.lane.b32.xlu0 %v3088, 127
      %v3100 = vpop.permute.xlu0 %3099
      %v3101 = vsel %vm1070, %v3094, %v3096
      %v3102 = vsel %vm1070, %v3096, %v3098
      %v3103 = vsel %vm1070, %v3098, %v3100
      %v3109 = vmul.f32 %v3080, %v3094
      %v3110 = vmul.f32 %v3081, %v3101
      %v3111 = vmul.f32 %v3082, %v3102
      %v3112 = vmul.f32 %v3083, %v3103
      %v3113 = vmul.f32 %v3084, %v3100
      %3119 = vrot.lane.b32.xlu0 %v3109, 1
      %v3120 = vpop.permute.xlu0 %3119
      %3121 = vrot.lane.b32.xlu0 %v3110, 1
      %v3122 = vpop.permute.xlu0 %3121
      %3123 = vrot.lane.b32.xlu0 %v3111, 1
      %v3124 = vpop.permute.xlu0 %3123
      %3125 = vrot.lane.b32.xlu0 %v3112, 1
      %v3126 = vpop.permute.xlu0 %3125
      %3127 = vrot.lane.b32.xlu0 %v3113, 1
      %v3128 = vpop.permute.xlu0 %3127
      %v3129 = vsel %vm1099, %v3120, %v3122
      %v3130 = vsel %vm1099, %v3122, %v3124
      %v3131 = vsel %vm1099, %v3124, %v3126
      %v3132 = vsel %vm1099, %v3126, %v3128
      %3137 = vst [vmem:[#allocation2 + $0x180] sm:$0xff] %v3129
      %3138 = vst [vmem:[#allocation2 + $0x188] sm:$0xff] %v3130
      %3139 = vst [vmem:[#allocation2 + $0x190] sm:$0xff] %v3131
      %3140 = vst [vmem:[#allocation2 + $0x198] sm:$0xff] %v3132
      %v3141 = vld [vmem:[#allocation3 + $0x8] sm:$0xff]
      %v3142 = vld [vmem:[#allocation3 + $0x10] sm:$0xff]
      %v3143 = vld [vmem:[#allocation3 + $0x18] sm:$0xff]
      %v3144 = vld [vmem:[#allocation3 + $0x20] sm:$0xff]
      %3145 = vst [vmem:[#allocation2 + $0x1a0] sm:$0xff] %v3141
      %3146 = vst [vmem:[#allocation2 + $0x1a8] sm:$0xff] %v3142
      %3147 = vst [vmem:[#allocation2 + $0x1b0] sm:$0xff] %v3143
      %3148 = vst [vmem:[#allocation2 + $0x1b8] sm:$0xff] %v3144
      %v3149 = vld [vmem:[#allocation3 + $0x8] sm:$0xff]
      %v3150 = vld [vmem:[#allocation3 + $0x10] sm:$0xff]
      %v3151 = vld [vmem:[#allocation3 + $0x18] sm:$0xff]
      %v3152 = vld [vmem:[#allocation3 + $0x20] sm:$0xff]
      %v3153 = vld [vmem:[#allocation3 + $0x28] sm:$0xff]
      %v3154 = vld [vmem:[%s3 + $0x1c0] sm:$0xff]
      %v3155 = vld [vmem:[%s3 + $0x1c8] sm:$0xff]
      %v3156 = vld [vmem:[%s3 + $0x1d0] sm:$0xff]
      %v3157 = vld [vmem:[%s3 + $0x1d8] sm:$0xff]
      %3162 = vrot.lane.b32.xlu0 %v3154, 1
      %v3163 = vpop.permute.xlu0 %3162
      %3164 = vrot.lane.b32.xlu0 %v3155, 1
      %v3165 = vpop.permute.xlu0 %3164
      %3166 = vrot.lane.b32.xlu0 %v3156, 1
      %v3167 = vpop.permute.xlu0 %3166
      %3168 = vrot.lane.b32.xlu0 %v3157, 1
      %v3169 = vpop.permute.xlu0 %3168
      %v3170 = vsel %vm1099, %v3163, %v3165
      %v3171 = vsel %vm1099, %v3165, %v3167
      %v3172 = vsel %vm1099, %v3167, %v3169
      %v3178 = vmul.f32 %v3149, %v3163
      %v3179 = vmul.f32 %v3150, %v3170
      %v3180 = vmul.f32 %v3151, %v3171
      %v3181 = vmul.f32 %v3152, %v3172
      %v3182 = vmul.f32 %v3153, %v3169
      %3188 = vrot.lane.b32.xlu0 %v3178, 127
      %v3189 = vpop.permute.xlu0 %3188
      %3190 = vrot.lane.b32.xlu0 %v3179, 127
      %v3191 = vpop.permute.xlu0 %3190
      %3192 = vrot.lane.b32.xlu0 %v3180, 127
      %v3193 = vpop.permute.xlu0 %3192
      %3194 = vrot.lane.b32.xlu0 %v3181, 127
      %v3195 = vpop.permute.xlu0 %3194
      %3196 = vrot.lane.b32.xlu0 %v3182, 127
      %v3197 = vpop.permute.xlu0 %3196
      %v3198 = vsel %vm1070, %v3189, %v3191
      %v3199 = vsel %vm1070, %v3191, %v3193
      %v3200 = vsel %vm1070, %v3193, %v3195
      %v3201 = vsel %vm1070, %v3195, %v3197
      %3206 = vst [vmem:[#allocation2 + $0x1c0] sm:$0xff] %v3198
      %3207 = vst [vmem:[#allocation2 + $0x1c8] sm:$0xff] %v3199
      %3208 = vst [vmem:[#allocation2 + $0x1d0] sm:$0xff] %v3200
      %3209 = vst [vmem:[#allocation2 + $0x1d8] sm:$0xff] %v3201
      %v3210 = vld [vmem:[#allocation3 + $0x8] sm:$0xff]
      %v3211 = vld [vmem:[#allocation3 + $0x10] sm:$0xff]
      %v3212 = vld [vmem:[#allocation3 + $0x18] sm:$0xff]
      %v3213 = vld [vmem:[#allocation3 + $0x20] sm:$0xff]
      %v3214 = vld [vmem:[#allocation3 + $0x28] sm:$0xff]
      %v3215 = vld [vmem:[%s3 + $0x1e0] sm:$0xff]
      %v3216 = vld [vmem:[%s3 + $0x1e8] sm:$0xff]
      %v3217 = vld [vmem:[%s3 + $0x1f0] sm:$0xff]
      %v3218 = vld [vmem:[%s3 + $0x1f8] sm:$0xff]
      %3223 = vrot.lane.b32.xlu0 %v3215, 7
      %v3224 = vpop.permute.xlu0 %3223
      %3225 = vrot.lane.b32.xlu0 %v3216, 7
      %v3226 = vpop.permute.xlu0 %3225
      %3227 = vrot.lane.b32.xlu0 %v3217, 7
      %v3228 = vpop.permute.xlu0 %3227
      %3229 = vrot.lane.b32.xlu0 %v3218, 7
      %v3230 = vpop.permute.xlu0 %3229
      %v3231 = vsel %vm1036, %v3224, %v3226
      %v3232 = vsel %vm1036, %v3226, %v3228
      %v3233 = vsel %vm1036, %v3228, %v3230
      %v3239 = vmul.f32 %v3210, %v3224
      %v3240 = vmul.f32 %v3211, %v3231
      %v3241 = vmul.f32 %v3212, %v3232
      %v3242 = vmul.f32 %v3213, %v3233
      %v3243 = vmul.f32 %v3214, %v3230
      %3249 = vrot.lane.b32.xlu0 %v3239, 121
      %v3250 = vpop.permute.xlu0 %3249
      %3251 = vrot.lane.b32.xlu0 %v3240, 121
      %v3252 = vpop.permute.xlu0 %3251
      %3253 = vrot.lane.b32.xlu0 %v3241, 121
      %v3254 = vpop.permute.xlu0 %3253
      %3255 = vrot.lane.b32.xlu0 %v3242, 121
      %v3256 = vpop.permute.xlu0 %3255
      %3257 = vrot.lane.b32.xlu0 %v3243, 121
      %v3258 = vpop.permute.xlu0 %3257
      %v3259 = vsel %vm1007, %v3250, %v3252
      %v3260 = vsel %vm1007, %v3252, %v3254
      %v3261 = vsel %vm1007, %v3254, %v3256
      %v3262 = vsel %vm1007, %v3256, %v3258
      %3267 = vst [vmem:[#allocation2 + $0x1e0] sm:$0xff] %v3259
      %3268 = vst [vmem:[#allocation2 + $0x1e8] sm:$0xff] %v3260
      %3269 = vst [vmem:[#allocation2 + $0x1f0] sm:$0xff] %v3261
      %3270 = vst [vmem:[#allocation2 + $0x1f8] sm:$0xff] %v3262
      %v3271 = vld [vmem:[#allocation3 + $0x8] sm:$0xff]
      %v3272 = vld [vmem:[#allocation3 + $0x10] sm:$0xff]
      %v3273 = vld [vmem:[#allocation3 + $0x18] sm:$0xff]
      %v3274 = vld [vmem:[#allocation3 + $0x20] sm:$0xff]
      %v3275 = vld [vmem:[#allocation3 + $0x28] sm:$0xff]
      %v3276 = vld [vmem:[%s3 + $0x200] sm:$0xff]
      %v3277 = vld [vmem:[%s3 + $0x208] sm:$0xff]
      %v3278 = vld [vmem:[%s3 + $0x210] sm:$0xff]
      %v3279 = vld [vmem:[%s3 + $0x218] sm:$0xff]
      %3284 = vrot.lane.b32.xlu0 %v3276, 8
      %v3285 = vpop.permute.xlu0 %3284
      %3286 = vrot.lane.b32.xlu0 %v3277, 8
      %v3287 = vpop.permute.xlu0 %3286
      %3288 = vrot.lane.b32.xlu0 %v3278, 8
      %v3289 = vpop.permute.xlu0 %3288
      %3290 = vrot.lane.b32.xlu0 %v3279, 8
      %v3291 = vpop.permute.xlu0 %3290
      %v3292 = vsel %vm973, %v3285, %v3287
      %v3293 = vsel %vm973, %v3287, %v3289
      %v3294 = vsel %vm973, %v3289, %v3291
      %v3300 = vmul.f32 %v3271, %v3285
      %v3301 = vmul.f32 %v3272, %v3292
      %v3302 = vmul.f32 %v3273, %v3293
      %v3303 = vmul.f32 %v3274, %v3294
      %v3304 = vmul.f32 %v3275, %v3291
      %3310 = vrot.lane.b32.xlu0 %v3300, 120
      %v3311 = vpop.permute.xlu0 %3310
      %3312 = vrot.lane.b32.xlu0 %v3301, 120
      %v3313 = vpop.permute.xlu0 %3312
      %3314 = vrot.lane.b32.xlu0 %v3302, 120
      %v3315 = vpop.permute.xlu0 %3314
      %3316 = vrot.lane.b32.xlu0 %v3303, 120
      %v3317 = vpop.permute.xlu0 %3316
      %3318 = vrot.lane.b32.xlu0 %v3304, 120
      %v3319 = vpop.permute.xlu0 %3318
      %v3320 = vsel %vm944, %v3311, %v3313
      %v3321 = vsel %vm944, %v3313, %v3315
      %v3322 = vsel %vm944, %v3315, %v3317
      %v3323 = vsel %vm944, %v3317, %v3319
      %3328 = vst [vmem:[#allocation2 + $0x200] sm:$0xff] %v3320
      %3329 = vst [vmem:[#allocation2 + $0x208] sm:$0xff] %v3321
      %3330 = vst [vmem:[#allocation2 + $0x210] sm:$0xff] %v3322
      %3331 = vst [vmem:[#allocation2 + $0x218] sm:$0xff] %v3323
      %v3332 = vld [vmem:[#allocation3 + $0x8] sm:$0xff]
      %v3333 = vld [vmem:[#allocation3 + $0x10] sm:$0xff]
      %v3334 = vld [vmem:[#allocation3 + $0x18] sm:$0xff]
      %v3335 = vld [vmem:[#allocation3 + $0x20] sm:$0xff]
      %v3336 = vld [vmem:[#allocation3 + $0x28] sm:$0xff]
      %v3337 = vld [vmem:[%s3 + $0x220] sm:$0xff]
      %v3338 = vld [vmem:[%s3 + $0x228] sm:$0xff]
      %v3339 = vld [vmem:[%s3 + $0x230] sm:$0xff]
      %v3340 = vld [vmem:[%s3 + $0x238] sm:$0xff]
      %3345 = vrot.lane.b32.xlu0 %v3337, 9
      %v3346 = vpop.permute.xlu0 %3345
      %3347 = vrot.lane.b32.xlu0 %v3338, 9
      %v3348 = vpop.permute.xlu0 %3347
      %3349 = vrot.lane.b32.xlu0 %v3339, 9
      %v3350 = vpop.permute.xlu0 %3349
      %3351 = vrot.lane.b32.xlu0 %v3340, 9
      %v3352 = vpop.permute.xlu0 %3351
      %v3353 = vsel %vm910, %v3346, %v3348
      %v3354 = vsel %vm910, %v3348, %v3350
      %v3355 = vsel %vm910, %v3350, %v3352
      %v3361 = vmul.f32 %v3332, %v3346
      %v3362 = vmul.f32 %v3333, %v3353
      %v3363 = vmul.f32 %v3334, %v3354
      %v3364 = vmul.f32 %v3335, %v3355
      %v3365 = vmul.f32 %v3336, %v3352
      %3371 = vrot.lane.b32.xlu0 %v3361, 119
      %v3372 = vpop.permute.xlu0 %3371
      %3373 = vrot.lane.b32.xlu0 %v3362, 119
      %v3374 = vpop.permute.xlu0 %3373
      %3375 = vrot.lane.b32.xlu0 %v3363, 119
      %v3376 = vpop.permute.xlu0 %3375
      %3377 = vrot.lane.b32.xlu0 %v3364, 119
      %v3378 = vpop.permute.xlu0 %3377
      %3379 = vrot.lane.b32.xlu0 %v3365, 119
      %v3380 = vpop.permute.xlu0 %3379
      %v3381 = vsel %vm881, %v3372, %v3374
      %v3382 = vsel %vm881, %v3374, %v3376
      %v3383 = vsel %vm881, %v3376, %v3378
      %v3384 = vsel %vm881, %v3378, %v3380
      %3389 = vst [vmem:[#allocation2 + $0x220] sm:$0xff] %v3381
      %3390 = vst [vmem:[#allocation2 + $0x228] sm:$0xff] %v3382
      %3391 = vst [vmem:[#allocation2 + $0x230] sm:$0xff] %v3383
      %3392 = vst [vmem:[#allocation2 + $0x238] sm:$0xff] %v3384
      %v3393 = vld [vmem:[#allocation3 + $0x8] sm:$0xff]
      %v3394 = vld [vmem:[#allocation3 + $0x10] sm:$0xff]
      %v3395 = vld [vmem:[#allocation3 + $0x18] sm:$0xff]
      %v3396 = vld [vmem:[#allocation3 + $0x20] sm:$0xff]
      %v3397 = vld [vmem:[#allocation3 + $0x28] sm:$0xff]
      %v3398 = vld [vmem:[%s3 + $0x240] sm:$0xff]
      %v3399 = vld [vmem:[%s3 + $0x248] sm:$0xff]
      %v3400 = vld [vmem:[%s3 + $0x250] sm:$0xff]
      %v3401 = vld [vmem:[%s3 + $0x258] sm:$0xff]
      %3406 = vrot.lane.b32.xlu0 %v3398, 55
      %v3407 = vpop.permute.xlu0 %3406
      %3408 = vrot.lane.b32.xlu0 %v3399, 55
      %v3409 = vpop.permute.xlu0 %3408
      %3410 = vrot.lane.b32.xlu0 %v3400, 55
      %v3411 = vpop.permute.xlu0 %3410
      %3412 = vrot.lane.b32.xlu0 %v3401, 55
      %v3413 = vpop.permute.xlu0 %3412
      %v3414 = vsel %vm352, %v3407, %v3409
      %v3415 = vsel %vm352, %v3409, %v3411
      %v3416 = vsel %vm352, %v3411, %v3413
      %v3422 = vmul.f32 %v3393, %v3407
      %v3423 = vmul.f32 %v3394, %v3414
      %v3424 = vmul.f32 %v3395, %v3415
      %v3425 = vmul.f32 %v3396, %v3416
      %v3426 = vmul.f32 %v3397, %v3413
      %3432 = vrot.lane.b32.xlu0 %v3422, 73
      %v3433 = vpop.permute.xlu0 %3432
      %3434 = vrot.lane.b32.xlu0 %v3423, 73
      %v3435 = vpop.permute.xlu0 %3434
      %3436 = vrot.lane.b32.xlu0 %v3424, 73
      %v3437 = vpop.permute.xlu0 %3436
      %3438 = vrot.lane.b32.xlu0 %v3425, 73
      %v3439 = vpop.permute.xlu0 %3438
      %3440 = vrot.lane.b32.xlu0 %v3426, 73
      %v3441 = vpop.permute.xlu0 %3440
      %v3442 = vsel %vm381, %v3433, %v3435
      %v3443 = vsel %vm381, %v3435, %v3437
      %v3444 = vsel %vm381, %v3437, %v3439
      %v3445 = vsel %vm381, %v3439, %v3441
      %3450 = vst [vmem:[#allocation2 + $0x240] sm:$0xff] %v3442
      %3451 = vst [vmem:[#allocation2 + $0x248] sm:$0xff] %v3443
      %3452 = vst [vmem:[#allocation2 + $0x250] sm:$0xff] %v3444
      %3453 = vst [vmem:[#allocation2 + $0x258] sm:$0xff] %v3445
      %v3454 = vld [vmem:[#allocation3 + $0x8] sm:$0xff]
      %v3455 = vld [vmem:[#allocation3 + $0x10] sm:$0xff]
      %v3456 = vld [vmem:[#allocation3 + $0x18] sm:$0xff]
      %v3457 = vld [vmem:[#allocation3 + $0x20] sm:$0xff]
      %v3458 = vld [vmem:[#allocation3 + $0x28] sm:$0xff]
      %v3459 = vld [vmem:[%s3 + $0x260] sm:$0xff]
      %v3460 = vld [vmem:[%s3 + $0x268] sm:$0xff]
      %v3461 = vld [vmem:[%s3 + $0x270] sm:$0xff]
      %v3462 = vld [vmem:[%s3 + $0x278] sm:$0xff]
      %3467 = vrot.lane.b32.xlu0 %v3459, 56
      %v3468 = vpop.permute.xlu0 %3467
      %3469 = vrot.lane.b32.xlu0 %v3460, 56
      %v3470 = vpop.permute.xlu0 %3469
      %3471 = vrot.lane.b32.xlu0 %v3461, 56
      %v3472 = vpop.permute.xlu0 %3471
      %3473 = vrot.lane.b32.xlu0 %v3462, 56
      %v3474 = vpop.permute.xlu0 %3473
      %v3475 = vsel %vm415, %v3468, %v3470
      %v3476 = vsel %vm415, %v3470, %v3472
      %v3477 = vsel %vm415, %v3472, %v3474
      %v3483 = vmul.f32 %v3454, %v3468
      %v3484 = vmul.f32 %v3455, %v3475
      %v3485 = vmul.f32 %v3456, %v3476
      %v3486 = vmul.f32 %v3457, %v3477
      %v3487 = vmul.f32 %v3458, %v3474
      %3493 = vrot.lane.b32.xlu0 %v3483, 72
      %v3494 = vpop.permute.xlu0 %3493
      %3495 = vrot.lane.b32.xlu0 %v3484, 72
      %v3496 = vpop.permute.xlu0 %3495
      %3497 = vrot.lane.b32.xlu0 %v3485, 72
      %v3498 = vpop.permute.xlu0 %3497
      %3499 = vrot.lane.b32.xlu0 %v3486, 72
      %v3500 = vpop.permute.xlu0 %3499
      %3501 = vrot.lane.b32.xlu0 %v3487, 72
      %v3502 = vpop.permute.xlu0 %3501
      %v3503 = vsel %vm444, %v3494, %v3496
      %v3504 = vsel %vm444, %v3496, %v3498
      %v3505 = vsel %vm444, %v3498, %v3500
      %v3506 = vsel %vm444, %v3500, %v3502
      %3511 = vst [vmem:[#allocation2 + $0x260] sm:$0xff] %v3503
      %3512 = vst [vmem:[#allocation2 + $0x268] sm:$0xff] %v3504
      %3513 = vst [vmem:[#allocation2 + $0x270] sm:$0xff] %v3505
      %3514 = vst [vmem:[#allocation2 + $0x278] sm:$0xff] %v3506
      %v3515 = vld [vmem:[#allocation3 + $0x8] sm:$0xff]
      %v3516 = vld [vmem:[#allocation3 + $0x10] sm:$0xff]
      %v3517 = vld [vmem:[#allocation3 + $0x18] sm:$0xff]
      %v3518 = vld [vmem:[#allocation3 + $0x20] sm:$0xff]
      %v3519 = vld [vmem:[#allocation3 + $0x28] sm:$0xff]
      %v3520 = vld [vmem:[%s3 + $0x280] sm:$0xff]
      %v3521 = vld [vmem:[%s3 + $0x288] sm:$0xff]
      %v3522 = vld [vmem:[%s3 + $0x290] sm:$0xff]
      %v3523 = vld [vmem:[%s3 + $0x298] sm:$0xff]
      %3528 = vrot.lane.b32.xlu0 %v3520, 57
      %v3529 = vpop.permute.xlu0 %3528
      %3530 = vrot.lane.b32.xlu0 %v3521, 57
      %v3531 = vpop.permute.xlu0 %3530
      %3532 = vrot.lane.b32.xlu0 %v3522, 57
      %v3533 = vpop.permute.xlu0 %3532
      %3534 = vrot.lane.b32.xlu0 %v3523, 57
      %v3535 = vpop.permute.xlu0 %3534
      %v3536 = vsel %vm478, %v3529, %v3531
      %v3537 = vsel %vm478, %v3531, %v3533
      %v3538 = vsel %vm478, %v3533, %v3535
      %v3544 = vmul.f32 %v3515, %v3529
      %v3545 = vmul.f32 %v3516, %v3536
      %v3546 = vmul.f32 %v3517, %v3537
      %v3547 = vmul.f32 %v3518, %v3538
      %v3548 = vmul.f32 %v3519, %v3535
      %3554 = vrot.lane.b32.xlu0 %v3544, 71
      %v3555 = vpop.permute.xlu0 %3554
      %3556 = vrot.lane.b32.xlu0 %v3545, 71
      %v3557 = vpop.permute.xlu0 %3556
      %3558 = vrot.lane.b32.xlu0 %v3546, 71
      %v3559 = vpop.permute.xlu0 %3558
      %3560 = vrot.lane.b32.xlu0 %v3547, 71
      %v3561 = vpop.permute.xlu0 %3560
      %3562 = vrot.lane.b32.xlu0 %v3548, 71
      %v3563 = vpop.permute.xlu0 %3562
      %v3564 = vsel %vm507, %v3555, %v3557
      %v3565 = vsel %vm507, %v3557, %v3559
      %v3566 = vsel %vm507, %v3559, %v3561
      %v3567 = vsel %vm507, %v3561, %v3563
      %3572 = vst [vmem:[#allocation2 + $0x280] sm:$0xff] %v3564
      %3573 = vst [vmem:[#allocation2 + $0x288] sm:$0xff] %v3565
      %3574 = vst [vmem:[#allocation2 + $0x290] sm:$0xff] %v3566
      %3575 = vst [vmem:[#allocation2 + $0x298] sm:$0xff] %v3567
      %v3576 = vld [vmem:[#allocation3 + $0x8] sm:$0xff]
      %v3577 = vld [vmem:[#allocation3 + $0x10] sm:$0xff]
      %v3578 = vld [vmem:[#allocation3 + $0x18] sm:$0xff]
      %v3579 = vld [vmem:[#allocation3 + $0x20] sm:$0xff]
      %v3580 = vld [vmem:[#allocation3 + $0x28] sm:$0xff]
      %v3581 = vld [vmem:[%s3 + $0x2a0] sm:$0xff]
      %v3582 = vld [vmem:[%s3 + $0x2a8] sm:$0xff]
      %v3583 = vld [vmem:[%s3 + $0x2b0] sm:$0xff]
      %v3584 = vld [vmem:[%s3 + $0x2b8] sm:$0xff]
      %3589 = vrot.lane.b32.xlu0 %v3581, 63
      %v3590 = vpop.permute.xlu0 %3589
      %3591 = vrot.lane.b32.xlu0 %v3582, 63
      %v3592 = vpop.permute.xlu0 %3591
      %3593 = vrot.lane.b32.xlu0 %v3583, 63
      %v3594 = vpop.permute.xlu0 %3593
      %3595 = vrot.lane.b32.xlu0 %v3584, 63
      %v3596 = vpop.permute.xlu0 %3595
      %v3597 = vsel %vm541, %v3590, %v3592
      %v3598 = vsel %vm541, %v3592, %v3594
      %v3599 = vsel %vm541, %v3594, %v3596
      %v3605 = vmul.f32 %v3576, %v3590
      %v3606 = vmul.f32 %v3577, %v3597
      %v3607 = vmul.f32 %v3578, %v3598
      %v3608 = vmul.f32 %v3579, %v3599
      %v3609 = vmul.f32 %v3580, %v3596
      %3615 = vrot.lane.b32.xlu0 %v3605, 65
      %v3616 = vpop.permute.xlu0 %3615
      %3617 = vrot.lane.b32.xlu0 %v3606, 65
      %v3618 = vpop.permute.xlu0 %3617
      %3619 = vrot.lane.b32.xlu0 %v3607, 65
      %v3620 = vpop.permute.xlu0 %3619
      %3621 = vrot.lane.b32.xlu0 %v3608, 65
      %v3622 = vpop.permute.xlu0 %3621
      %3623 = vrot.lane.b32.xlu0 %v3609, 65
      %v3624 = vpop.permute.xlu0 %3623
      %v3625 = vsel %vm570, %v3616, %v3618
      %v3626 = vsel %vm570, %v3618, %v3620
      %v3627 = vsel %vm570, %v3620, %v3622
      %v3628 = vsel %vm570, %v3622, %v3624
      %3633 = vst [vmem:[#allocation2 + $0x2a0] sm:$0xff] %v3625
      %3634 = vst [vmem:[#allocation2 + $0x2a8] sm:$0xff] %v3626
      %3635 = vst [vmem:[#allocation2 + $0x2b0] sm:$0xff] %v3627
      %3636 = vst [vmem:[#allocation2 + $0x2b8] sm:$0xff] %v3628
      %v3637 = vld [vmem:[#allocation3 + $0x8] sm:$0xff]
      %v3638 = vld [vmem:[#allocation3 + $0x10] sm:$0xff]
      %v3639 = vld [vmem:[#allocation3 + $0x18] sm:$0xff]
      %v3640 = vld [vmem:[#allocation3 + $0x20] sm:$0xff]
      %v3641 = vld [vmem:[#allocation3 + $0x28] sm:$0xff]
      %3647 = vrot.lane.b32.xlu0 %v3637, 64
      %v3648 = vpop.permute.xlu0 %3647
      %3649 = vrot.lane.b32.xlu0 %v3638, 64
      %v3650 = vpop.permute.xlu0 %3649
      %3651 = vrot.lane.b32.xlu0 %v3639, 64
      %v3652 = vpop.permute.xlu0 %3651
      %3653 = vrot.lane.b32.xlu0 %v3640, 64
      %v3654 = vpop.permute.xlu0 %3653
      %3655 = vrot.lane.b32.xlu0 %v3641, 64
      %v3656 = vpop.permute.xlu0 %3655
      %v3657 = vsel %vm603, %v3648, %v3650
      %v3658 = vsel %vm603, %v3650, %v3652
      %v3659 = vsel %vm603, %v3652, %v3654
      %v3660 = vsel %vm603, %v3654, %v3656
      %3665 = vst [vmem:[#allocation2 + $0x2c0] sm:$0xff] %v3657
      %3666 = vst [vmem:[#allocation2 + $0x2c8] sm:$0xff] %v3658
      %3667 = vst [vmem:[#allocation2 + $0x2d0] sm:$0xff] %v3659
      %3668 = vst [vmem:[#allocation2 + $0x2d8] sm:$0xff] %v3660
      %v3669 = vld [vmem:[#allocation3 + $0x8] sm:$0xff]
      %v3670 = vld [vmem:[#allocation3 + $0x10] sm:$0xff]
      %v3671 = vld [vmem:[#allocation3 + $0x18] sm:$0xff]
      %v3672 = vld [vmem:[#allocation3 + $0x20] sm:$0xff]
      %v3673 = vld [vmem:[#allocation3 + $0x28] sm:$0xff]
      %v3674 = vld [vmem:[%s3 + $0x2e0] sm:$0xff]
      %v3675 = vld [vmem:[%s3 + $0x2e8] sm:$0xff]
      %v3676 = vld [vmem:[%s3 + $0x2f0] sm:$0xff]
      %v3677 = vld [vmem:[%s3 + $0x2f8] sm:$0xff]
      %3682 = vrot.lane.b32.xlu0 %v3674, 65
      %v3683 = vpop.permute.xlu0 %3682
      %3684 = vrot.lane.b32.xlu0 %v3675, 65
      %v3685 = vpop.permute.xlu0 %3684
      %3686 = vrot.lane.b32.xlu0 %v3676, 65
      %v3687 = vpop.permute.xlu0 %3686
      %3688 = vrot.lane.b32.xlu0 %v3677, 65
      %v3689 = vpop.permute.xlu0 %3688
      %v3690 = vsel %vm570, %v3683, %v3685
      %v3691 = vsel %vm570, %v3685, %v3687
      %v3692 = vsel %vm570, %v3687, %v3689
      %v3698 = vmul.f32 %v3669, %v3683
      %v3699 = vmul.f32 %v3670, %v3690
      %v3700 = vmul.f32 %v3671, %v3691
      %v3701 = vmul.f32 %v3672, %v3692
      %v3702 = vmul.f32 %v3673, %v3689
      %3708 = vrot.lane.b32.xlu0 %v3698, 63
      %v3709 = vpop.permute.xlu0 %3708
      %3710 = vrot.lane.b32.xlu0 %v3699, 63
      %v3711 = vpop.permute.xlu0 %3710
      %3712 = vrot.lane.b32.xlu0 %v3700, 63
      %v3713 = vpop.permute.xlu0 %3712
      %3714 = vrot.lane.b32.xlu0 %v3701, 63
      %v3715 = vpop.permute.xlu0 %3714
      %3716 = vrot.lane.b32.xlu0 %v3702, 63
      %v3717 = vpop.permute.xlu0 %3716
      %v3718 = vsel %vm541, %v3709, %v3711
      %v3719 = vsel %vm541, %v3711, %v3713
      %v3720 = vsel %vm541, %v3713, %v3715
      %v3721 = vsel %vm541, %v3715, %v3717
      %3726 = vst [vmem:[#allocation2 + $0x2e0] sm:$0xff] %v3718
      %3727 = vst [vmem:[#allocation2 + $0x2e8] sm:$0xff] %v3719
      %3728 = vst [vmem:[#allocation2 + $0x2f0] sm:$0xff] %v3720
      %3729 = vst [vmem:[#allocation2 + $0x2f8] sm:$0xff] %v3721
      %v3730 = vld [vmem:[#allocation3 + $0x8] sm:$0xff]
      %v3731 = vld [vmem:[#allocation3 + $0x10] sm:$0xff]
      %v3732 = vld [vmem:[#allocation3 + $0x18] sm:$0xff]
      %v3733 = vld [vmem:[#allocation3 + $0x20] sm:$0xff]
      %v3734 = vld [vmem:[#allocation3 + $0x28] sm:$0xff]
      %v3735 = vld [vmem:[%s3 + $0x300] sm:$0xff]
      %v3736 = vld [vmem:[%s3 + $0x308] sm:$0xff]
      %v3737 = vld [vmem:[%s3 + $0x310] sm:$0xff]
      %v3738 = vld [vmem:[%s3 + $0x318] sm:$0xff]
      %3743 = vrot.lane.b32.xlu0 %v3735, 71
      %v3744 = vpop.permute.xlu0 %3743
      %3745 = vrot.lane.b32.xlu0 %v3736, 71
      %v3746 = vpop.permute.xlu0 %3745
      %3747 = vrot.lane.b32.xlu0 %v3737, 71
      %v3748 = vpop.permute.xlu0 %3747
      %3749 = vrot.lane.b32.xlu0 %v3738, 71
      %v3750 = vpop.permute.xlu0 %3749
      %v3751 = vsel %vm507, %v3744, %v3746
      %v3752 = vsel %vm507, %v3746, %v3748
      %v3753 = vsel %vm507, %v3748, %v3750
      %v3759 = vmul.f32 %v3730, %v3744
      %v3760 = vmul.f32 %v3731, %v3751
      %v3761 = vmul.f32 %v3732, %v3752
      %v3762 = vmul.f32 %v3733, %v3753
      %v3763 = vmul.f32 %v3734, %v3750
      %3769 = vrot.lane.b32.xlu0 %v3759, 57
      %v3770 = vpop.permute.xlu0 %3769
      %3771 = vrot.lane.b32.xlu0 %v3760, 57
      %v3772 = vpop.permute.xlu0 %3771
      %3773 = vrot.lane.b32.xlu0 %v3761, 57
      %v3774 = vpop.permute.xlu0 %3773
      %3775 = vrot.lane.b32.xlu0 %v3762, 57
      %v3776 = vpop.permute.xlu0 %3775
      %3777 = vrot.lane.b32.xlu0 %v3763, 57
      %v3778 = vpop.permute.xlu0 %3777
      %v3779 = vsel %vm478, %v3770, %v3772
      %v3780 = vsel %vm478, %v3772, %v3774
      %v3781 = vsel %vm478, %v3774, %v3776
      %v3782 = vsel %vm478, %v3776, %v3778
      %3787 = vst [vmem:[#allocation2 + $0x300] sm:$0xff] %v3779
      %3788 = vst [vmem:[#allocation2 + $0x308] sm:$0xff] %v3780
      %3789 = vst [vmem:[#allocation2 + $0x310] sm:$0xff] %v3781
      %3790 = vst [vmem:[#allocation2 + $0x318] sm:$0xff] %v3782
      %v3791 = vld [vmem:[#allocation3 + $0x8] sm:$0xff]
      %v3792 = vld [vmem:[#allocation3 + $0x10] sm:$0xff]
      %v3793 = vld [vmem:[#allocation3 + $0x18] sm:$0xff]
      %v3794 = vld [vmem:[#allocation3 + $0x20] sm:$0xff]
      %v3795 = vld [vmem:[#allocation3 + $0x28] sm:$0xff]
      %v3796 = vld [vmem:[%s3 + $0x320] sm:$0xff]
      %v3797 = vld [vmem:[%s3 + $0x328] sm:$0xff]
      %v3798 = vld [vmem:[%s3 + $0x330] sm:$0xff]
      %v3799 = vld [vmem:[%s3 + $0x338] sm:$0xff]
      %3804 = vrot.lane.b32.xlu0 %v3796, 72
      %v3805 = vpop.permute.xlu0 %3804
      %3806 = vrot.lane.b32.xlu0 %v3797, 72
      %v3807 = vpop.permute.xlu0 %3806
      %3808 = vrot.lane.b32.xlu0 %v3798, 72
      %v3809 = vpop.permute.xlu0 %3808
      %3810 = vrot.lane.b32.xlu0 %v3799, 72
      %v3811 = vpop.permute.xlu0 %3810
      %v3812 = vsel %vm444, %v3805, %v3807
      %v3813 = vsel %vm444, %v3807, %v3809
      %v3814 = vsel %vm444, %v3809, %v3811
      %v3820 = vmul.f32 %v3791, %v3805
      %v3821 = vmul.f32 %v3792, %v3812
      %v3822 = vmul.f32 %v3793, %v3813
      %v3823 = vmul.f32 %v3794, %v3814
      %v3824 = vmul.f32 %v3795, %v3811
      %3830 = vrot.lane.b32.xlu0 %v3820, 56
      %v3831 = vpop.permute.xlu0 %3830
      %3832 = vrot.lane.b32.xlu0 %v3821, 56
      %v3833 = vpop.permute.xlu0 %3832
      %3834 = vrot.lane.b32.xlu0 %v3822, 56
      %v3835 = vpop.permute.xlu0 %3834
      %3836 = vrot.lane.b32.xlu0 %v3823, 56
      %v3837 = vpop.permute.xlu0 %3836
      %3838 = vrot.lane.b32.xlu0 %v3824, 56
      %v3839 = vpop.permute.xlu0 %3838
      %v3840 = vsel %vm415, %v3831, %v3833
      %v3841 = vsel %vm415, %v3833, %v3835
      %v3842 = vsel %vm415, %v3835, %v3837
      %v3843 = vsel %vm415, %v3837, %v3839
      %3848 = vst [vmem:[#allocation2 + $0x320] sm:$0xff] %v3840
      %3849 = vst [vmem:[#allocation2 + $0x328] sm:$0xff] %v3841
      %3850 = vst [vmem:[#allocation2 + $0x330] sm:$0xff] %v3842
      %3851 = vst [vmem:[#allocation2 + $0x338] sm:$0xff] %v3843
      %v3852 = vld [vmem:[#allocation3 + $0x8] sm:$0xff]
      %v3853 = vld [vmem:[#allocation3 + $0x10] sm:$0xff]
      %v3854 = vld [vmem:[#allocation3 + $0x18] sm:$0xff]
      %v3855 = vld [vmem:[#allocation3 + $0x20] sm:$0xff]
      %v3856 = vld [vmem:[#allocation3 + $0x28] sm:$0xff]
      %v3857 = vld [vmem:[%s3 + $0x340] sm:$0xff]
      %v3858 = vld [vmem:[%s3 + $0x348] sm:$0xff]
      %v3859 = vld [vmem:[%s3 + $0x350] sm:$0xff]
      %v3860 = vld [vmem:[%s3 + $0x358] sm:$0xff]
      %3865 = vrot.lane.b32.xlu0 %v3857, 73
      %v3866 = vpop.permute.xlu0 %3865
      %3867 = vrot.lane.b32.xlu0 %v3858, 73
      %v3868 = vpop.permute.xlu0 %3867
      %3869 = vrot.lane.b32.xlu0 %v3859, 73
      %v3870 = vpop.permute.xlu0 %3869
      %3871 = vrot.lane.b32.xlu0 %v3860, 73
      %v3872 = vpop.permute.xlu0 %3871
      %v3873 = vsel %vm381, %v3866, %v3868
      %v3874 = vsel %vm381, %v3868, %v3870
      %v3875 = vsel %vm381, %v3870, %v3872
      %v3881 = vmul.f32 %v3852, %v3866
      %v3882 = vmul.f32 %v3853, %v3873
      %v3883 = vmul.f32 %v3854, %v3874
      %v3884 = vmul.f32 %v3855, %v3875
      %v3885 = vmul.f32 %v3856, %v3872
      %3891 = vrot.lane.b32.xlu0 %v3881, 55
      %v3892 = vpop.permute.xlu0 %3891
      %3893 = vrot.lane.b32.xlu0 %v3882, 55
      %v3894 = vpop.permute.xlu0 %3893
      %3895 = vrot.lane.b32.xlu0 %v3883, 55
      %v3896 = vpop.permute.xlu0 %3895
      %3897 = vrot.lane.b32.xlu0 %v3884, 55
      %v3898 = vpop.permute.xlu0 %3897
      %3899 = vrot.lane.b32.xlu0 %v3885, 55
      %v3900 = vpop.permute.xlu0 %3899
      %v3901 = vsel %vm352, %v3892, %v3894
      %v3902 = vsel %vm352, %v3894, %v3896
      %v3903 = vsel %vm352, %v3896, %v3898
      %v3904 = vsel %vm352, %v3898, %v3900
      %3909 = vst [vmem:[#allocation2 + $0x340] sm:$0xff] %v3901
      %3910 = vst [vmem:[#allocation2 + $0x348] sm:$0xff] %v3902
      %3911 = vst [vmem:[#allocation2 + $0x350] sm:$0xff] %v3903
      %3912 = vst [vmem:[#allocation2 + $0x358] sm:$0xff] %v3904
      %v3913 = vld [vmem:[#allocation2] sm:$0xff]
      %v3914 = vld [vmem:[#allocation2 + $0x8] sm:$0xff]
      %v3915 = vld [vmem:[#allocation2 + $0x10] sm:$0xff]
      %v3916 = vld [vmem:[#allocation2 + $0x18] sm:$0xff]
      %v3917 = vld [vmem:[#allocation2 + $0x20] sm:$0xff]
      %v3918 = vld [vmem:[#allocation2 + $0x28] sm:$0xff]
      %v3919 = vld [vmem:[#allocation2 + $0x30] sm:$0xff]
      %v3920 = vld [vmem:[#allocation2 + $0x38] sm:$0xff]
      %v3921 = vld [vmem:[#allocation2 + $0x40] sm:$0xff]
      %v3922 = vld [vmem:[#allocation2 + $0x48] sm:$0xff]
      %v3923 = vld [vmem:[#allocation2 + $0x50] sm:$0xff]
      %v3924 = vld [vmem:[#allocation2 + $0x58] sm:$0xff]
      %v3925 = vld [vmem:[#allocation2 + $0x60] sm:$0xff]
      %v3926 = vld [vmem:[#allocation2 + $0x68] sm:$0xff]
      %v3927 = vld [vmem:[#allocation2 + $0x70] sm:$0xff]
      %v3928 = vld [vmem:[#allocation2 + $0x78] sm:$0xff]
      %v3929 = vld [vmem:[#allocation2 + $0x80] sm:$0xff]
      %v3930 = vld [vmem:[#allocation2 + $0x88] sm:$0xff]
      %v3931 = vld [vmem:[#allocation2 + $0x90] sm:$0xff]
      %v3932 = vld [vmem:[#allocation2 + $0x98] sm:$0xff]
      %v3933 = vld [vmem:[#allocation2 + $0xa0] sm:$0xff]
      %v3934 = vld [vmem:[#allocation2 + $0xa8] sm:$0xff]
      %v3935 = vld [vmem:[#allocation2 + $0xb0] sm:$0xff]
      %v3936 = vld [vmem:[#allocation2 + $0xb8] sm:$0xff]
      %v3937 = vld [vmem:[#allocation2 + $0xc0] sm:$0xff]
      %v3938 = vld [vmem:[#allocation2 + $0xc8] sm:$0xff]
      %v3939 = vld [vmem:[#allocation2 + $0xd0] sm:$0xff]
      %v3940 = vld [vmem:[#allocation2 + $0xd8] sm:$0xff]
      %v3941 = vld [vmem:[#allocation2 + $0xe0] sm:$0xff]
      %v3942 = vld [vmem:[#allocation2 + $0xe8] sm:$0xff]
      %v3943 = vld [vmem:[#allocation2 + $0xf0] sm:$0xff]
      %v3944 = vld [vmem:[#allocation2 + $0xf8] sm:$0xff]
      %v3945 = vld [vmem:[#allocation2 + $0x100] sm:$0xff]
      %v3946 = vld [vmem:[#allocation2 + $0x108] sm:$0xff]
      %v3947 = vld [vmem:[#allocation2 + $0x110] sm:$0xff]
      %v3948 = vld [vmem:[#allocation2 + $0x118] sm:$0xff]
      %v3949 = vld [vmem:[#allocation2 + $0x120] sm:$0xff]
      %v3950 = vld [vmem:[#allocation2 + $0x128] sm:$0xff]
      %v3951 = vld [vmem:[#allocation2 + $0x130] sm:$0xff]
      %v3952 = vld [vmem:[#allocation2 + $0x138] sm:$0xff]
      %v3953 = vld [vmem:[#allocation2 + $0x140] sm:$0xff]
      %v3954 = vld [vmem:[#allocation2 + $0x148] sm:$0xff]
      %v3955 = vld [vmem:[#allocation2 + $0x150] sm:$0xff]
      %v3956 = vld [vmem:[#allocation2 + $0x158] sm:$0xff]
      %v3957 = vld [vmem:[#allocation2 + $0x160] sm:$0xff]
      %v3958 = vld [vmem:[#allocation2 + $0x168] sm:$0xff]
      %v3959 = vld [vmem:[#allocation2 + $0x170] sm:$0xff]
      %v3960 = vld [vmem:[#allocation2 + $0x178] sm:$0xff]
      %v3961 = vld [vmem:[#allocation2 + $0x180] sm:$0xff]
      %v3962 = vld [vmem:[#allocation2 + $0x188] sm:$0xff]
      %v3963 = vld [vmem:[#allocation2 + $0x190] sm:$0xff]
      %v3964 = vld [vmem:[#allocation2 + $0x198] sm:$0xff]
      %v3965 = vld [vmem:[#allocation2 + $0x1a0] sm:$0xff]
      %v3966 = vld [vmem:[#allocation2 + $0x1a8] sm:$0xff]
      %v3967 = vld [vmem:[#allocation2 + $0x1b0] sm:$0xff]
      %v3968 = vld [vmem:[#allocation2 + $0x1b8] sm:$0xff]
      %v3969 = vld [vmem:[#allocation2 + $0x1c0] sm:$0xff]
      %v3970 = vld [vmem:[#allocation2 + $0x1c8] sm:$0xff]
      %v3971 = vld [vmem:[#allocation2 + $0x1d0] sm:$0xff]
      %v3972 = vld [vmem:[#allocation2 + $0x1d8] sm:$0xff]
      %v3973 = vld [vmem:[#allocation2 + $0x1e0] sm:$0xff]
      %v3974 = vld [vmem:[#allocation2 + $0x1e8] sm:$0xff]
      %v3975 = vld [vmem:[#allocation2 + $0x1f0] sm:$0xff]
      %v3976 = vld [vmem:[#allocation2 + $0x1f8] sm:$0xff]
      %v3977 = vld [vmem:[#allocation2 + $0x200] sm:$0xff]
      %v3978 = vld [vmem:[#allocation2 + $0x208] sm:$0xff]
      %v3979 = vld [vmem:[#allocation2 + $0x210] sm:$0xff]
      %v3980 = vld [vmem:[#allocation2 + $0x218] sm:$0xff]
      %v3981 = vld [vmem:[#allocation2 + $0x220] sm:$0xff]
      %v3982 = vld [vmem:[#allocation2 + $0x228] sm:$0xff]
      %v3983 = vld [vmem:[#allocation2 + $0x230] sm:$0xff]
      %v3984 = vld [vmem:[#allocation2 + $0x238] sm:$0xff]
      %v3985 = vld [vmem:[#allocation2 + $0x240] sm:$0xff]
      %v3986 = vld [vmem:[#allocation2 + $0x248] sm:$0xff]
      %v3987 = vld [vmem:[#allocation2 + $0x250] sm:$0xff]
      %v3988 = vld [vmem:[#allocation2 + $0x258] sm:$0xff]
      %v3989 = vld [vmem:[#allocation2 + $0x260] sm:$0xff]
      %v3990 = vld [vmem:[#allocation2 + $0x268] sm:$0xff]
      %v3991 = vld [vmem:[#allocation2 + $0x270] sm:$0xff]
      %v3992 = vld [vmem:[#allocation2 + $0x278] sm:$0xff]
      %v3993 = vld [vmem:[#allocation2 + $0x280] sm:$0xff]
      %v3994 = vld [vmem:[#allocation2 + $0x288] sm:$0xff]
      %v3995 = vld [vmem:[#allocation2 + $0x290] sm:$0xff]
      %v3996 = vld [vmem:[#allocation2 + $0x298] sm:$0xff]
      %v3997 = vld [vmem:[#allocation2 + $0x2a0] sm:$0xff]
      %v3998 = vld [vmem:[#allocation2 + $0x2a8] sm:$0xff]
      %v3999 = vld [vmem:[#allocation2 + $0x2b0] sm:$0xff]
      %v4000 = vld [vmem:[#allocation2 + $0x2b8] sm:$0xff]
      %v4001 = vld [vmem:[#allocation2 + $0x2c0] sm:$0xff]
      %v4002 = vld [vmem:[#allocation2 + $0x2c8] sm:$0xff]
      %v4003 = vld [vmem:[#allocation2 + $0x2d0] sm:$0xff]
      %v4004 = vld [vmem:[#allocation2 + $0x2d8] sm:$0xff]
      %v4005 = vld [vmem:[#allocation2 + $0x2e0] sm:$0xff]
      %v4006 = vld [vmem:[#allocation2 + $0x2e8] sm:$0xff]
      %v4007 = vld [vmem:[#allocation2 + $0x2f0] sm:$0xff]
      %v4008 = vld [vmem:[#allocation2 + $0x2f8] sm:$0xff]
      %v4009 = vld [vmem:[#allocation2 + $0x300] sm:$0xff]
      %v4010 = vld [vmem:[#allocation2 + $0x308] sm:$0xff]
      %v4011 = vld [vmem:[#allocation2 + $0x310] sm:$0xff]
      %v4012 = vld [vmem:[#allocation2 + $0x318] sm:$0xff]
      %v4013 = vld [vmem:[#allocation2 + $0x320] sm:$0xff]
      %v4014 = vld [vmem:[#allocation2 + $0x328] sm:$0xff]
      %v4015 = vld [vmem:[#allocation2 + $0x330] sm:$0xff]
      %v4016 = vld [vmem:[#allocation2 + $0x338] sm:$0xff]
      %v4017 = vld [vmem:[#allocation2 + $0x340] sm:$0xff]
      %v4018 = vld [vmem:[#allocation2 + $0x348] sm:$0xff]
      %v4019 = vld [vmem:[#allocation2 + $0x350] sm:$0xff]
      %v4020 = vld [vmem:[#allocation2 + $0x358] sm:$0xff]
      %v4021 = vld [vmem:[#allocation2 + $0x360] sm:$0xff]
      %v4022 = vld [vmem:[#allocation2 + $0x368] sm:$0xff]
      %v4023 = vld [vmem:[#allocation2 + $0x370] sm:$0xff]
      %v4024 = vld [vmem:[#allocation2 + $0x378] sm:$0xff]
      %v4025 = vld [vmem:[#allocation2 + $0x380] sm:$0xff]
      %v4026 = vld [vmem:[#allocation2 + $0x388] sm:$0xff]
      %v4027 = vld [vmem:[#allocation2 + $0x390] sm:$0xff]
      %v4028 = vld [vmem:[#allocation2 + $0x398] sm:$0xff]
      %v4029 = vld [vmem:[#allocation2 + $0x3a0] sm:$0xff]
      %v4030 = vld [vmem:[#allocation2 + $0x3a8] sm:$0xff]
      %v4031 = vld [vmem:[#allocation2 + $0x3b0] sm:$0xff]
      %v4032 = vld [vmem:[#allocation2 + $0x3b8] sm:$0xff]
      %v4033 = vld [vmem:[#allocation2 + $0x3c0] sm:$0xff]
      %v4034 = vld [vmem:[#allocation2 + $0x3c8] sm:$0xff]
      %v4035 = vld [vmem:[#allocation2 + $0x3d0] sm:$0xff]
      %v4036 = vld [vmem:[#allocation2 + $0x3d8] sm:$0xff]
      %v4037 = vld [vmem:[#allocation2 + $0x3e0] sm:$0xff]
      %v4038 = vld [vmem:[#allocation2 + $0x3e8] sm:$0xff]
      %v4039 = vld [vmem:[#allocation2 + $0x3f0] sm:$0xff]
      %v4040 = vld [vmem:[#allocation2 + $0x3f8] sm:$0xff]
      %4041 = vmatpush.msra.mxu0 %v3973
      %4042 = vmatpush.msra.mxu0 %v3969
      %4043 = vmatpush.msra.mxu0 %v3965
      %4044 = vmatpush.msra.mxu0 %v3961
      %4045 = vmatpush.msra.mxu0 %v3957
      %4046 = vmatpush.msra.mxu0 %v3953
      %4047 = vmatpush.msra.mxu0 %v3949
      %4048 = vmatpush.msra.mxu0 %v3945
      %4049 = vmatpush.msra.mxu0 %v3941
      %4050 = vmatpush.msra.mxu0 %v3937
      %4051 = vmatpush.msra.mxu0 %v3933
      %4052 = vmatpush.msra.mxu0 %v3929
      %4053 = vmatpush.msra.mxu0 %v3925
      %4054 = vmatpush.msra.mxu0 %v3921
      %4055 = vmatpush.msra.mxu0 %v3917
      %4056 = vmatpush.msra.mxu0 %v3913
      %4057 = vmatmul.f32.gmra.mxu0 %v257
      %v4058 = vpop.f32.mrf.mxu0
      %v4059 = vadd.f32 0.0, %v4058
      %4060 = vdwg.mxu0
      %4061 = vmatpush.msra.mxu0 %v4037
      %4062 = vmatpush.msra.mxu0 %v4033
      %4063 = vmatpush.msra.mxu0 %v4029
      %4064 = vmatpush.msra.mxu0 %v4025
      %4065 = vmatpush.msra.mxu0 %v4021
      %4066 = vmatpush.msra.mxu0 %v4017
      %4067 = vmatpush.msra.mxu0 %v4013
      %4068 = vmatpush.msra.mxu0 %v4009
      %4069 = vmatpush.msra.mxu0 %v4005
      %4070 = vmatpush.msra.mxu0 %v4001
      %4071 = vmatpush.msra.mxu0 %v3997
      %4072 = vmatpush.msra.mxu0 %v3993
      %4073 = vmatpush.msra.mxu0 %v3989
      %4074 = vmatpush.msra.mxu0 %v3985
      %4075 = vmatpush.msra.mxu0 %v3981
      %4076 = vmatpush.msra.mxu0 %v3977
      %4077 = vmatmul.f32.gmra.mxu0 %v258
      %v4078 = vpop.f32.mrf.mxu0
      %v4079 = vadd.f32 %v4059, %v4078
      %4080 = vdwg.mxu0
      %4081 = vmatpush.msra.mxu0 %v3974
      %4082 = vmatpush.msra.mxu0 %v3970
      %4083 = vmatpush.msra.mxu0 %v3966
      %4084 = vmatpush.msra.mxu0 %v3962
      %4085 = vmatpush.msra.mxu0 %v3958
      %4086 = vmatpush.msra.mxu0 %v3954
      %4087 = vmatpush.msra.mxu0 %v3950
      %4088 = vmatpush.msra.mxu0 %v3946
      %4089 = vmatpush.msra.mxu0 %v3942
      %4090 = vmatpush.msra.mxu0 %v3938
      %4091 = vmatpush.msra.mxu0 %v3934
      %4092 = vmatpush.msra.mxu0 %v3930
      %4093 = vmatpush.msra.mxu0 %v3926
      %4094 = vmatpush.msra.mxu0 %v3922
      %4095 = vmatpush.msra.mxu0 %v3918
      %4096 = vmatpush.msra.mxu0 %v3914
      %4097 = vmatmul.f32.gmra.mxu0 %v257
      %v4098 = vpop.f32.mrf.mxu0
      %v4099 = vadd.f32 0.0, %v4098
      %4100 = vdwg.mxu0
      %4101 = vmatpush.msra.mxu0 %v4038
      %4102 = vmatpush.msra.mxu0 %v4034
      %4103 = vmatpush.msra.mxu0 %v4030
      %4104 = vmatpush.msra.mxu0 %v4026
      %4105 = vmatpush.msra.mxu0 %v4022
      %4106 = vmatpush.msra.mxu0 %v4018
      %4107 = vmatpush.msra.mxu0 %v4014
      %4108 = vmatpush.msra.mxu0 %v4010
      %4109 = vmatpush.msra.mxu0 %v4006
      %4110 = vmatpush.msra.mxu0 %v4002
      %4111 = vmatpush.msra.mxu0 %v3998
      %4112 = vmatpush.msra.mxu0 %v3994
      %4113 = vmatpush.msra.mxu0 %v3990
      %4114 = vmatpush.msra.mxu0 %v3986
      %4115 = vmatpush.msra.mxu0 %v3982
      %4116 = vmatpush.msra.mxu0 %v3978
      %4117 = vmatmul.f32.gmra.mxu0 %v258
      %v4118 = vpop.f32.mrf.mxu0
      %v4119 = vadd.f32 %v4099, %v4118
      %4120 = vdwg.mxu0
      %4121 = vmatpush.msra.mxu0 %v3975
      %4122 = vmatpush.msra.mxu0 %v3971
      %4123 = vmatpush.msra.mxu0 %v3967
      %4124 = vmatpush.msra.mxu0 %v3963
      %4125 = vmatpush.msra.mxu0 %v3959
      %4126 = vmatpush.msra.mxu0 %v3955
      %4127 = vmatpush.msra.mxu0 %v3951
      %4128 = vmatpush.msra.mxu0 %v3947
      %4129 = vmatpush.msra.mxu0 %v3943
      %4130 = vmatpush.msra.mxu0 %v3939
      %4131 = vmatpush.msra.mxu0 %v3935
      %4132 = vmatpush.msra.mxu0 %v3931
      %4133 = vmatpush.msra.mxu0 %v3927
      %4134 = vmatpush.msra.mxu0 %v3923
      %4135 = vmatpush.msra.mxu0 %v3919
      %4136 = vmatpush.msra.mxu0 %v3915
      %4137 = vmatmul.f32.gmra.mxu0 %v257
      %v4138 = vpop.f32.mrf.mxu0
      %v4139 = vadd.f32 0.0, %v4138
      %4140 = vdwg.mxu0
      %4141 = vmatpush.msra.mxu0 %v4039
      %4142 = vmatpush.msra.mxu0 %v4035
      %4143 = vmatpush.msra.mxu0 %v4031
      %4144 = vmatpush.msra.mxu0 %v4027
      %4145 = vmatpush.msra.mxu0 %v4023
      %4146 = vmatpush.msra.mxu0 %v4019
      %4147 = vmatpush.msra.mxu0 %v4015
      %4148 = vmatpush.msra.mxu0 %v4011
      %4149 = vmatpush.msra.mxu0 %v4007
      %4150 = vmatpush.msra.mxu0 %v4003
      %4151 = vmatpush.msra.mxu0 %v3999
      %4152 = vmatpush.msra.mxu0 %v3995
      %4153 = vmatpush.msra.mxu0 %v3991
      %4154 = vmatpush.msra.mxu0 %v3987
      %4155 = vmatpush.msra.mxu0 %v3983
      %4156 = vmatpush.msra.mxu0 %v3979
      %4157 = vmatmul.f32.gmra.mxu0 %v258
      %v4158 = vpop.f32.mrf.mxu0
      %v4159 = vadd.f32 %v4139, %v4158
      %4160 = vdwg.mxu0
      %4161 = vmatpush.msra.mxu0 %v3976
      %4162 = vmatpush.msra.mxu0 %v3972
      %4163 = vmatpush.msra.mxu0 %v3968
      %4164 = vmatpush.msra.mxu0 %v3964
      %4165 = vmatpush.msra.mxu0 %v3960
      %4166 = vmatpush.msra.mxu0 %v3956
      %4167 = vmatpush.msra.mxu0 %v3952
      %4168 = vmatpush.msra.mxu0 %v3948
      %4169 = vmatpush.msra.mxu0 %v3944
      %4170 = vmatpush.msra.mxu0 %v3940
      %4171 = vmatpush.msra.mxu0 %v3936
      %4172 = vmatpush.msra.mxu0 %v3932
      %4173 = vmatpush.msra.mxu0 %v3928
      %4174 = vmatpush.msra.mxu0 %v3924
      %4175 = vmatpush.msra.mxu0 %v3920
      %4176 = vmatpush.msra.mxu0 %v3916
      %4177 = vmatmul.f32.gmra.mxu0 %v257
      %v4178 = vpop.f32.mrf.mxu0
      %v4179 = vadd.f32 0.0, %v4178
      %4180 = vdwg.mxu0
      %4181 = vmatpush.msra.mxu0 %v4040
      %4182 = vmatpush.msra.mxu0 %v4036
      %4183 = vmatpush.msra.mxu0 %v4032
      %4184 = vmatpush.msra.mxu0 %v4028
      %4185 = vmatpush.msra.mxu0 %v4024
      %4186 = vmatpush.msra.mxu0 %v4020
      %4187 = vmatpush.msra.mxu0 %v4016
      %4188 = vmatpush.msra.mxu0 %v4012
      %4189 = vmatpush.msra.mxu0 %v4008
      %4190 = vmatpush.msra.mxu0 %v4004
      %4191 = vmatpush.msra.mxu0 %v4000
      %4192 = vmatpush.msra.mxu0 %v3996
      %4193 = vmatpush.msra.mxu0 %v3992
      %4194 = vmatpush.msra.mxu0 %v3988
      %4195 = vmatpush.msra.mxu0 %v3984
      %4196 = vmatpush.msra.mxu0 %v3980
      %4197 = vmatmul.f32.gmra.mxu0 %v258
      %v4198 = vpop.f32.mrf.mxu0
      %v4199 = vadd.f32 %v4179, %v4198
      %4200 = vdwg.mxu0
      %4201 = vmatpush.msra.mxu0 %v274
      %4202 = vmatpush.msra.mxu0 %v273
      %4203 = vmatpush.msra.mxu0 %v272
      %4204 = vmatpush.msra.mxu0 %v271
      %4205 = vmatpush.msra.mxu0 %v270
      %4206 = vmatpush.msra.mxu0 %v269
      %4207 = vmatpush.msra.mxu0 %v268
      %4208 = vmatpush.msra.mxu0 %v267
      %4209 = vmatpush.msra.mxu0 %v266
      %4210 = vmatpush.msra.mxu0 %v265
      %4211 = vmatpush.msra.mxu0 %v264
      %4212 = vmatpush.msra.mxu0 %v263
      %4213 = vmatpush.msra.mxu0 %v262
      %4214 = vmatpush.msra.mxu0 %v261
      %4215 = vmatpush.msra.mxu0 %v260
      %4216 = vmatpush.msra.mxu0 %v259
      %4217 = vmatmul.f32.gmra.mxu0 %v4079
      %v4218 = vpop.f32.mrf.mxu0
      %v4219 = vadd.f32 0.0, %v4218
      %4220 = vdwg.mxu0
      %4221 = vmatpush.msra.mxu0 %v290
      %4222 = vmatpush.msra.mxu0 %v289
      %4223 = vmatpush.msra.mxu0 %v288
      %4224 = vmatpush.msra.mxu0 %v287
      %4225 = vmatpush.msra.mxu0 %v286
      %4226 = vmatpush.msra.mxu0 %v285
      %4227 = vmatpush.msra.mxu0 %v284
      %4228 = vmatpush.msra.mxu0 %v283
      %4229 = vmatpush.msra.mxu0 %v282
      %4230 = vmatpush.msra.mxu0 %v281
      %4231 = vmatpush.msra.mxu0 %v280
      %4232 = vmatpush.msra.mxu0 %v279
      %4233 = vmatpush.msra.mxu0 %v278
      %4234 = vmatpush.msra.mxu0 %v277
      %4235 = vmatpush.msra.mxu0 %v276
      %4236 = vmatpush.msra.mxu0 %v275
      %4237 = vmatmul.f32.gmra.mxu0 %v4119
      %v4238 = vpop.f32.mrf.mxu0
      %v4239 = vadd.f32 %v4219, %v4238
      %4240 = vdwg.mxu0
      %4241 = vmatpush.msra.mxu0 %v306
      %4242 = vmatpush.msra.mxu0 %v305
      %4243 = vmatpush.msra.mxu0 %v304
      %4244 = vmatpush.msra.mxu0 %v303
      %4245 = vmatpush.msra.mxu0 %v302
      %4246 = vmatpush.msra.mxu0 %v301
      %4247 = vmatpush.msra.mxu0 %v300
      %4248 = vmatpush.msra.mxu0 %v299
      %4249 = vmatpush.msra.mxu0 %v298
      %4250 = vmatpush.msra.mxu0 %v297
      %4251 = vmatpush.msra.mxu0 %v296
      %4252 = vmatpush.msra.mxu0 %v295
      %4253 = vmatpush.msra.mxu0 %v294
      %4254 = vmatpush.msra.mxu0 %v293
      %4255 = vmatpush.msra.mxu0 %v292
      %4256 = vmatpush.msra.mxu0 %v291
      %4257 = vmatmul.f32.gmra.mxu0 %v4159
      %v4258 = vpop.f32.mrf.mxu0
      %v4259 = vadd.f32 %v4239, %v4258
      %4260 = vdwg.mxu0
      %4261 = vmatpush.msra.mxu0 %v322
      %4262 = vmatpush.msra.mxu0 %v321
      %4263 = vmatpush.msra.mxu0 %v320
      %4264 = vmatpush.msra.mxu0 %v319
      %4265 = vmatpush.msra.mxu0 %v318
      %4266 = vmatpush.msra.mxu0 %v317
      %4267 = vmatpush.msra.mxu0 %v316
      %4268 = vmatpush.msra.mxu0 %v315
      %4269 = vmatpush.msra.mxu0 %v314
      %4270 = vmatpush.msra.mxu0 %v313
      %4271 = vmatpush.msra.mxu0 %v312
      %4272 = vmatpush.msra.mxu0 %v311
      %4273 = vmatpush.msra.mxu0 %v310
      %4274 = vmatpush.msra.mxu0 %v309
      %4275 = vmatpush.msra.mxu0 %v308
      %4276 = vmatpush.msra.mxu0 %v307
      %4277 = vmatmul.f32.gmra.mxu0 %v4199
      %v4278 = vpop.f32.mrf.mxu0
      %v4279 = vadd.f32 %v4259, %v4278
      %4280 = vdwg.mxu0
      %v4281 = vmul.f32 %v4079, %v4079
      %v4282 = vmul.f32 %v4119, %v4119
      %v4283 = vmul.f32 %v4159, %v4159
      %v4284 = vmul.f32 %v4199, %v4199
      %4285 = vmatpush.msra.mxu0 %v274
      %4286 = vmatpush.msra.mxu0 %v273
      %4287 = vmatpush.msra.mxu0 %v272
      %4288 = vmatpush.msra.mxu0 %v271
      %4289 = vmatpush.msra.mxu0 %v270
      %4290 = vmatpush.msra.mxu0 %v269
      %4291 = vmatpush.msra.mxu0 %v268
      %4292 = vmatpush.msra.mxu0 %v267
      %4293 = vmatpush.msra.mxu0 %v266
      %4294 = vmatpush.msra.mxu0 %v265
      %4295 = vmatpush.msra.mxu0 %v264
      %4296 = vmatpush.msra.mxu0 %v263
      %4297 = vmatpush.msra.mxu0 %v262
      %4298 = vmatpush.msra.mxu0 %v261
      %4299 = vmatpush.msra.mxu0 %v260
      %4300 = vmatpush.msra.mxu0 %v259
      %4301 = vmatmul.f32.gmra.mxu0 %v4281
      %v4302 = vpop.f32.mrf.mxu0
      %v4303 = vadd.f32 0.0, %v4302
      %4304 = vdwg.mxu0
      %4305 = vmatpush.msra.mxu0 %v290
      %4306 = vmatpush.msra.mxu0 %v289
      %4307 = vmatpush.msra.mxu0 %v288
      %4308 = vmatpush.msra.mxu0 %v287
      %4309 = vmatpush.msra.mxu0 %v286
      %4310 = vmatpush.msra.mxu0 %v285
      %4311 = vmatpush.msra.mxu0 %v284
      %4312 = vmatpush.msra.mxu0 %v283
      %4313 = vmatpush.msra.mxu0 %v282
      %4314 = vmatpush.msra.mxu0 %v281
      %4315 = vmatpush.msra.mxu0 %v280
      %4316 = vmatpush.msra.mxu0 %v279
      %4317 = vmatpush.msra.mxu0 %v278
      %4318 = vmatpush.msra.mxu0 %v277
      %4319 = vmatpush.msra.mxu0 %v276
      %4320 = vmatpush.msra.mxu0 %v275
      %4321 = vmatmul.f32.gmra.mxu0 %v4282
      %v4322 = vpop.f32.mrf.mxu0
      %v4323 = vadd.f32 %v4303, %v4322
      %4324 = vdwg.mxu0
      %4325 = vmatpush.msra.mxu0 %v306
      %4326 = vmatpush.msra.mxu0 %v305
      %4327 = vmatpush.msra.mxu0 %v304
      %4328 = vmatpush.msra.mxu0 %v303
      %4329 = vmatpush.msra.mxu0 %v302
      %4330 = vmatpush.msra.mxu0 %v301
      %4331 = vmatpush.msra.mxu0 %v300
      %4332 = vmatpush.msra.mxu0 %v299
      %4333 = vmatpush.msra.mxu0 %v298
      %4334 = vmatpush.msra.mxu0 %v297
      %4335 = vmatpush.msra.mxu0 %v296
      %4336 = vmatpush.msra.mxu0 %v295
      %4337 = vmatpush.msra.mxu0 %v294
      %4338 = vmatpush.msra.mxu0 %v293
      %4339 = vmatpush.msra.mxu0 %v292
      %4340 = vmatpush.msra.mxu0 %v291
      %4341 = vmatmul.f32.gmra.mxu0 %v4283
      %v4342 = vpop.f32.mrf.mxu0
      %v4343 = vadd.f32 %v4323, %v4342
      %4344 = vdwg.mxu0
      %4345 = vmatpush.msra.mxu0 %v322
      %4346 = vmatpush.msra.mxu0 %v321
      %4347 = vmatpush.msra.mxu0 %v320
      %4348 = vmatpush.msra.mxu0 %v319
      %4349 = vmatpush.msra.mxu0 %v318
      %4350 = vmatpush.msra.mxu0 %v317
      %4351 = vmatpush.msra.mxu0 %v316
      %4352 = vmatpush.msra.mxu0 %v315
      %4353 = vmatpush.msra.mxu0 %v314
      %4354 = vmatpush.msra.mxu0 %v313
      %4355 = vmatpush.msra.mxu0 %v312
      %4356 = vmatpush.msra.mxu0 %v311
      %4357 = vmatpush.msra.mxu0 %v310
      %4358 = vmatpush.msra.mxu0 %v309
      %4359 = vmatpush.msra.mxu0 %v308
      %4360 = vmatpush.msra.mxu0 %v307
      %4361 = vmatmul.f32.gmra.mxu0 %v4284
      %v4362 = vpop.f32.mrf.mxu0
      %v4363 = vadd.f32 %v4343, %v4362
      %4364 = vdwg.mxu0
      %v4365 = vmul.f32 %v4279, 0.001953125
      %v4366 = vmul.f32 %v4363, 0.001953125
      %v4367 = vmul.f32 %v4365, %v4365
      %v4368 = vsub.f32 %v4366, %v4367
      %4370 = vset.pattern.permute.xlu0 0
      %4371 = vperm.xlu0 %4370, %v4365
      %v4372 = vpop.permute.xlu0 %4371
      %v4374 = vsub.f32 %v4079, %v4372
      %v4375 = vsub.f32 %v4119, %v4372
      %v4376 = vsub.f32 %v4159, %v4372
      %v4377 = vsub.f32 %v4199, %v4372
      %v4378 = vadd.f32 %v4368, 1e-05
      %v4379 = vrsqrt.pop %v4378
      %v4380 = vmul.f32 %v4379, %v4378
      %v4381 = vmul.f32 %v4380, %v4379
      %v4382 = vmul.f32 0.5, %v4381
      %v4383 = vsub.f32 1.5, %v4382
      %v4384 = vmul.f32 %v4379, %v4383
      %vm4385 = vweird.f32 %v4378
      %vm4386 = vweird.f32 %v4379
      %vm4387 = vmor %vm4385, %vm4386
      %v4388 = vsel %vm4387, %v4379, %v4384
      %4390 = vset.pattern.permute.xlu0 0
      %4391 = vperm.xlu0 %4390, %v4388
      %v4392 = vpop.permute.xlu0 %4391
      %v4394 = vmul.f32 %v4374, %v4392
      %v4395 = vmul.f32 %v4375, %v4392
      %v4396 = vmul.f32 %v4376, %v4392
      %v4397 = vmul.f32 %v4377, %v4392
      %v4398 = vadd.f32 %v323, %v4394
      %v4399 = vadd.f32 %v324, %v4395
      %v4400 = vadd.f32 %v325, %v4396
      %v4401 = vadd.f32 %v326, %v4397
      %4402 = vst [vmem:[%s231] sm:$0xff] %v4398
      %4403 = vst [vmem:[%s231 + $0x8] sm:$0xff] %v4399
      %4404 = vst [vmem:[%s231 + $0x10] sm:$0xff] %v4400
      %4405 = vst [vmem:[%s231 + $0x18] sm:$0xff] %v4401
      %s4406 = scalar_lea.vmem %s224, 32
      %v4407 = vld [vmem:[%s4406] sm:$0xff]
      %v4408 = vld [vmem:[%s4406 + $0x8] sm:$0xff]
      %v4409 = vld [vmem:[%s4406 + $0x10] sm:$0xff]
      %v4410 = vld [vmem:[%s4406 + $0x18] sm:$0xff]
      %4411 = vst [vmem:[#allocation3 + $0x8] sm:$0xff] %v4407
      %4412 = vst [vmem:[#allocation3 + $0x10] sm:$0xff] %v4408
      %4413 = vst [vmem:[#allocation3 + $0x18] sm:$0xff] %v4409
      %4414 = vst [vmem:[#allocation3 + $0x20] sm:$0xff] %v4410
      %v4415 = vld [vmem:[#allocation3] sm:$0xff]
      %v4416 = vld [vmem:[#allocation3 + $0x8] sm:$0xff]
      %v4417 = vld [vmem:[#allocation3 + $0x10] sm:$0xff]
      %v4418 = vld [vmem:[#allocation3 + $0x18] sm:$0xff]
      %v4419 = vld [vmem:[#allocation3 + $0x20] sm:$0xff]
      %v4420 = vld [vmem:[%s3] sm:$0xff]
      %v4421 = vld [vmem:[%s3 + $0x8] sm:$0xff]
      %v4422 = vld [vmem:[%s3 + $0x10] sm:$0xff]
      %v4423 = vld [vmem:[%s3 + $0x18] sm:$0xff]
      %4428 = vrot.lane.b32.xlu0 %v4420, 55
      %v4429 = vpop.permute.xlu0 %4428
      %4430 = vrot.lane.b32.xlu0 %v4421, 55
      %v4431 = vpop.permute.xlu0 %4430
      %4432 = vrot.lane.b32.xlu0 %v4422, 55
      %v4433 = vpop.permute.xlu0 %4432
      %4434 = vrot.lane.b32.xlu0 %v4423, 55
      %v4435 = vpop.permute.xlu0 %4434
      %v4436 = vsel %vm352, %v4429, %v4431
      %v4437 = vsel %vm352, %v4431, %v4433
      %v4438 = vsel %vm352, %v4433, %v4435
      %v4444 = vmul.f32 %v4415, %v4429
      %v4445 = vmul.f32 %v4416, %v4436
      %v4446 = vmul.f32 %v4417, %v4437
      %v4447 = vmul.f32 %v4418, %v4438
      %v4448 = vmul.f32 %v4419, %v4435
      %4454 = vrot.lane.b32.xlu0 %v4444, 73
      %v4455 = vpop.permute.xlu0 %4454
      %4456 = vrot.lane.b32.xlu0 %v4445, 73
      %v4457 = vpop.permute.xlu0 %4456
      %4458 = vrot.lane.b32.xlu0 %v4446, 73
      %v4459 = vpop.permute.xlu0 %4458
      %4460 = vrot.lane.b32.xlu0 %v4447, 73
      %v4461 = vpop.permute.xlu0 %4460
      %4462 = vrot.lane.b32.xlu0 %v4448, 73
      %v4463 = vpop.permute.xlu0 %4462
      %v4464 = vsel %vm381, %v4455, %v4457
      %v4465 = vsel %vm381, %v4457, %v4459
      %v4466 = vsel %vm381, %v4459, %v4461
      %v4467 = vsel %vm381, %v4461, %v4463
      %4472 = vst [vmem:[#allocation2] sm:$0xff] %v4464
      %4473 = vst [vmem:[#allocation2 + $0x8] sm:$0xff] %v4465
      %4474 = vst [vmem:[#allocation2 + $0x10] sm:$0xff] %v4466
      %4475 = vst [vmem:[#allocation2 + $0x18] sm:$0xff] %v4467
      %v4476 = vld [vmem:[#allocation3] sm:$0xff]
      %v4477 = vld [vmem:[#allocation3 + $0x8] sm:$0xff]
      %v4478 = vld [vmem:[#allocation3 + $0x10] sm:$0xff]
      %v4479 = vld [vmem:[#allocation3 + $0x18] sm:$0xff]
      %v4480 = vld [vmem:[#allocation3 + $0x20] sm:$0xff]
      %v4481 = vld [vmem:[%s3 + $0x20] sm:$0xff]
      %v4482 = vld [vmem:[%s3 + $0x28] sm:$0xff]
      %v4483 = vld [vmem:[%s3 + $0x30] sm:$0xff]
      %v4484 = vld [vmem:[%s3 + $0x38] sm:$0xff]
      %4489 = vrot.lane.b32.xlu0 %v4481, 56
      %v4490 = vpop.permute.xlu0 %4489
      %4491 = vrot.lane.b32.xlu0 %v4482, 56
      %v4492 = vpop.permute.xlu0 %4491
      %4493 = vrot.lane.b32.xlu0 %v4483, 56
      %v4494 = vpop.permute.xlu0 %4493
      %4495 = vrot.lane.b32.xlu0 %v4484, 56
      %v4496 = vpop.permute.xlu0 %4495
      %v4497 = vsel %vm415, %v4490, %v4492
      %v4498 = vsel %vm415, %v4492, %v4494
      %v4499 = vsel %vm415, %v4494, %v4496
      %v4505 = vmul.f32 %v4476, %v4490
      %v4506 = vmul.f32 %v4477, %v4497
      %v4507 = vmul.f32 %v4478, %v4498
      %v4508 = vmul.f32 %v4479, %v4499
      %v4509 = vmul.f32 %v4480, %v4496
      %4515 = vrot.lane.b32.xlu0 %v4505, 72
      %v4516 = vpop.permute.xlu0 %4515
      %4517 = vrot.lane.b32.xlu0 %v4506, 72
      %v4518 = vpop.permute.xlu0 %4517
      %4519 = vrot.lane.b32.xlu0 %v4507, 72
      %v4520 = vpop.permute.xlu0 %4519
      %4521 = vrot.lane.b32.xlu0 %v4508, 72
      %v4522 = vpop.permute.xlu0 %4521
      %4523 = vrot.lane.b32.xlu0 %v4509, 72
      %v4524 = vpop.permute.xlu0 %4523
      %v4525 = vsel %vm444, %v4516, %v4518
      %v4526 = vsel %vm444, %v4518, %v4520
      %v4527 = vsel %vm444, %v4520, %v4522
      %v4528 = vsel %vm444, %v4522, %v4524
      %4533 = vst [vmem:[#allocation2 + $0x20] sm:$0xff] %v4525
      %4534 = vst [vmem:[#allocation2 + $0x28] sm:$0xff] %v4526
      %4535 = vst [vmem:[#allocation2 + $0x30] sm:$0xff] %v4527
      %4536 = vst [vmem:[#allocation2 + $0x38] sm:$0xff] %v4528
      %v4537 = vld [vmem:[#allocation3] sm:$0xff]
      %v4538 = vld [vmem:[#allocation3 + $0x8] sm:$0xff]
      %v4539 = vld [vmem:[#allocation3 + $0x10] sm:$0xff]
      %v4540 = vld [vmem:[#allocation3 + $0x18] sm:$0xff]
      %v4541 = vld [vmem:[#allocation3 + $0x20] sm:$0xff]
      %v4542 = vld [vmem:[%s3 + $0x40] sm:$0xff]
      %v4543 = vld [vmem:[%s3 + $0x48] sm:$0xff]
      %v4544 = vld [vmem:[%s3 + $0x50] sm:$0xff]
      %v4545 = vld [vmem:[%s3 + $0x58] sm:$0xff]
      %4550 = vrot.lane.b32.xlu0 %v4542, 57
      %v4551 = vpop.permute.xlu0 %4550
      %4552 = vrot.lane.b32.xlu0 %v4543, 57
      %v4553 = vpop.permute.xlu0 %4552
      %4554 = vrot.lane.b32.xlu0 %v4544, 57
      %v4555 = vpop.permute.xlu0 %4554
      %4556 = vrot.lane.b32.xlu0 %v4545, 57
      %v4557 = vpop.permute.xlu0 %4556
      %v4558 = vsel %vm478, %v4551, %v4553
      %v4559 = vsel %vm478, %v4553, %v4555
      %v4560 = vsel %vm478, %v4555, %v4557
      %v4566 = vmul.f32 %v4537, %v4551
      %v4567 = vmul.f32 %v4538, %v4558
      %v4568 = vmul.f32 %v4539, %v4559
      %v4569 = vmul.f32 %v4540, %v4560
      %v4570 = vmul.f32 %v4541, %v4557
      %4576 = vrot.lane.b32.xlu0 %v4566, 71
      %v4577 = vpop.permute.xlu0 %4576
      %4578 = vrot.lane.b32.xlu0 %v4567, 71
      %v4579 = vpop.permute.xlu0 %4578
      %4580 = vrot.lane.b32.xlu0 %v4568, 71
      %v4581 = vpop.permute.xlu0 %4580
      %4582 = vrot.lane.b32.xlu0 %v4569, 71
      %v4583 = vpop.permute.xlu0 %4582
      %4584 = vrot.lane.b32.xlu0 %v4570, 71
      %v4585 = vpop.permute.xlu0 %4584
      %v4586 = vsel %vm507, %v4577, %v4579
      %v4587 = vsel %vm507, %v4579, %v4581
      %v4588 = vsel %vm507, %v4581, %v4583
      %v4589 = vsel %vm507, %v4583, %v4585
      %4594 = vst [vmem:[#allocation2 + $0x40] sm:$0xff] %v4586
      %4595 = vst [vmem:[#allocation2 + $0x48] sm:$0xff] %v4587
      %4596 = vst [vmem:[#allocation2 + $0x50] sm:$0xff] %v4588
      %4597 = vst [vmem:[#allocation2 + $0x58] sm:$0xff] %v4589
      %v4598 = vld [vmem:[#allocation3] sm:$0xff]
      %v4599 = vld [vmem:[#allocation3 + $0x8] sm:$0xff]
      %v4600 = vld [vmem:[#allocation3 + $0x10] sm:$0xff]
      %v4601 = vld [vmem:[#allocation3 + $0x18] sm:$0xff]
      %v4602 = vld [vmem:[#allocation3 + $0x20] sm:$0xff]
      %v4603 = vld [vmem:[%s3 + $0x60] sm:$0xff]
      %v4604 = vld [vmem:[%s3 + $0x68] sm:$0xff]
      %v4605 = vld [vmem:[%s3 + $0x70] sm:$0xff]
      %v4606 = vld [vmem:[%s3 + $0x78] sm:$0xff]
      %4611 = vrot.lane.b32.xlu0 %v4603, 63
      %v4612 = vpop.permute.xlu0 %4611
      %4613 = vrot.lane.b32.xlu0 %v4604, 63
      %v4614 = vpop.permute.xlu0 %4613
      %4615 = vrot.lane.b32.xlu0 %v4605, 63
      %v4616 = vpop.permute.xlu0 %4615
      %4617 = vrot.lane.b32.xlu0 %v4606, 63
      %v4618 = vpop.permute.xlu0 %4617
      %v4619 = vsel %vm541, %v4612, %v4614
      %v4620 = vsel %vm541, %v4614, %v4616
      %v4621 = vsel %vm541, %v4616, %v4618
      %v4627 = vmul.f32 %v4598, %v4612
      %v4628 = vmul.f32 %v4599, %v4619
      %v4629 = vmul.f32 %v4600, %v4620
      %v4630 = vmul.f32 %v4601, %v4621
      %v4631 = vmul.f32 %v4602, %v4618
      %4637 = vrot.lane.b32.xlu0 %v4627, 65
      %v4638 = vpop.permute.xlu0 %4637
      %4639 = vrot.lane.b32.xlu0 %v4628, 65
      %v4640 = vpop.permute.xlu0 %4639
      %4641 = vrot.lane.b32.xlu0 %v4629, 65
      %v4642 = vpop.permute.xlu0 %4641
      %4643 = vrot.lane.b32.xlu0 %v4630, 65
      %v4644 = vpop.permute.xlu0 %4643
      %4645 = vrot.lane.b32.xlu0 %v4631, 65
      %v4646 = vpop.permute.xlu0 %4645
      %v4647 = vsel %vm570, %v4638, %v4640
      %v4648 = vsel %vm570, %v4640, %v4642
      %v4649 = vsel %vm570, %v4642, %v4644
      %v4650 = vsel %vm570, %v4644, %v4646
      %4655 = vst [vmem:[#allocation2 + $0x60] sm:$0xff] %v4647
      %4656 = vst [vmem:[#allocation2 + $0x68] sm:$0xff] %v4648
      %4657 = vst [vmem:[#allocation2 + $0x70] sm:$0xff] %v4649
      %4658 = vst [vmem:[#allocation2 + $0x78] sm:$0xff] %v4650
      %v4659 = vld [vmem:[#allocation3] sm:$0xff]
      %v4660 = vld [vmem:[#allocation3 + $0x8] sm:$0xff]
      %v4661 = vld [vmem:[#allocation3 + $0x10] sm:$0xff]
      %v4662 = vld [vmem:[#allocation3 + $0x18] sm:$0xff]
      %v4663 = vld [vmem:[#allocation3 + $0x20] sm:$0xff]
      %4669 = vrot.lane.b32.xlu0 %v4659, 64
      %v4670 = vpop.permute.xlu0 %4669
      %4671 = vrot.lane.b32.xlu0 %v4660, 64
      %v4672 = vpop.permute.xlu0 %4671
      %4673 = vrot.lane.b32.xlu0 %v4661, 64
      %v4674 = vpop.permute.xlu0 %4673
      %4675 = vrot.lane.b32.xlu0 %v4662, 64
      %v4676 = vpop.permute.xlu0 %4675
      %4677 = vrot.lane.b32.xlu0 %v4663, 64
      %v4678 = vpop.permute.xlu0 %4677
      %v4679 = vsel %vm603, %v4670, %v4672
      %v4680 = vsel %vm603, %v4672, %v4674
      %v4681 = vsel %vm603, %v4674, %v4676
      %v4682 = vsel %vm603, %v4676, %v4678
      %4687 = vst [vmem:[#allocation2 + $0x80] sm:$0xff] %v4679
      %4688 = vst [vmem:[#allocation2 + $0x88] sm:$0xff] %v4680
      %4689 = vst [vmem:[#allocation2 + $0x90] sm:$0xff] %v4681
      %4690 = vst [vmem:[#allocation2 + $0x98] sm:$0xff] %v4682
      %v4691 = vld [vmem:[#allocation3] sm:$0xff]
      %v4692 = vld [vmem:[#allocation3 + $0x8] sm:$0xff]
      %v4693 = vld [vmem:[#allocation3 + $0x10] sm:$0xff]
      %v4694 = vld [vmem:[#allocation3 + $0x18] sm:$0xff]
      %v4695 = vld [vmem:[#allocation3 + $0x20] sm:$0xff]
      %v4696 = vld [vmem:[%s3 + $0xa0] sm:$0xff]
      %v4697 = vld [vmem:[%s3 + $0xa8] sm:$0xff]
      %v4698 = vld [vmem:[%s3 + $0xb0] sm:$0xff]
      %v4699 = vld [vmem:[%s3 + $0xb8] sm:$0xff]
      %4704 = vrot.lane.b32.xlu0 %v4696, 65
      %v4705 = vpop.permute.xlu0 %4704
      %4706 = vrot.lane.b32.xlu0 %v4697, 65
      %v4707 = vpop.permute.xlu0 %4706
      %4708 = vrot.lane.b32.xlu0 %v4698, 65
      %v4709 = vpop.permute.xlu0 %4708
      %4710 = vrot.lane.b32.xlu0 %v4699, 65
      %v4711 = vpop.permute.xlu0 %4710
      %v4712 = vsel %vm570, %v4705, %v4707
      %v4713 = vsel %vm570, %v4707, %v4709
      %v4714 = vsel %vm570, %v4709, %v4711
      %v4720 = vmul.f32 %v4691, %v4705
      %v4721 = vmul.f32 %v4692, %v4712
      %v4722 = vmul.f32 %v4693, %v4713
      %v4723 = vmul.f32 %v4694, %v4714
      %v4724 = vmul.f32 %v4695, %v4711
      %4730 = vrot.lane.b32.xlu0 %v4720, 63
      %v4731 = vpop.permute.xlu0 %4730
      %4732 = vrot.lane.b32.xlu0 %v4721, 63
      %v4733 = vpop.permute.xlu0 %4732
      %4734 = vrot.lane.b32.xlu0 %v4722, 63
      %v4735 = vpop.permute.xlu0 %4734
      %4736 = vrot.lane.b32.xlu0 %v4723, 63
      %v4737 = vpop.permute.xlu0 %4736
      %4738 = vrot.lane.b32.xlu0 %v4724, 63
      %v4739 = vpop.permute.xlu0 %4738
      %v4740 = vsel %vm541, %v4731, %v4733
      %v4741 = vsel %vm541, %v4733, %v4735
      %v4742 = vsel %vm541, %v4735, %v4737
      %v4743 = vsel %vm541, %v4737, %v4739
      %4748 = vst [vmem:[#allocation2 + $0xa0] sm:$0xff] %v4740
      %4749 = vst [vmem:[#allocation2 + $0xa8] sm:$0xff] %v4741
      %4750 = vst [vmem:[#allocation2 + $0xb0] sm:$0xff] %v4742
      %4751 = vst [vmem:[#allocation2 + $0xb8] sm:$0xff] %v4743
      %v4752 = vld [vmem:[#allocation3] sm:$0xff]
      %v4753 = vld [vmem:[#allocation3 + $0x8] sm:$0xff]
      %v4754 = vld [vmem:[#allocation3 + $0x10] sm:$0xff]
      %v4755 = vld [vmem:[#allocation3 + $0x18] sm:$0xff]
      %v4756 = vld [vmem:[#allocation3 + $0x20] sm:$0xff]
      %v4757 = vld [vmem:[%s3 + $0xc0] sm:$0xff]
      %v4758 = vld [vmem:[%s3 + $0xc8] sm:$0xff]
      %v4759 = vld [vmem:[%s3 + $0xd0] sm:$0xff]
      %v4760 = vld [vmem:[%s3 + $0xd8] sm:$0xff]
      %4765 = vrot.lane.b32.xlu0 %v4757, 71
      %v4766 = vpop.permute.xlu0 %4765
      %4767 = vrot.lane.b32.xlu0 %v4758, 71
      %v4768 = vpop.permute.xlu0 %4767
      %4769 = vrot.lane.b32.xlu0 %v4759, 71
      %v4770 = vpop.permute.xlu0 %4769
      %4771 = vrot.lane.b32.xlu0 %v4760, 71
      %v4772 = vpop.permute.xlu0 %4771
      %v4773 = vsel %vm507, %v4766, %v4768
      %v4774 = vsel %vm507, %v4768, %v4770
      %v4775 = vsel %vm507, %v4770, %v4772
      %v4781 = vmul.f32 %v4752, %v4766
      %v4782 = vmul.f32 %v4753, %v4773
      %v4783 = vmul.f32 %v4754, %v4774
      %v4784 = vmul.f32 %v4755, %v4775
      %v4785 = vmul.f32 %v4756, %v4772
      %4791 = vrot.lane.b32.xlu0 %v4781, 57
      %v4792 = vpop.permute.xlu0 %4791
      %4793 = vrot.lane.b32.xlu0 %v4782, 57
      %v4794 = vpop.permute.xlu0 %4793
      %4795 = vrot.lane.b32.xlu0 %v4783, 57
      %v4796 = vpop.permute.xlu0 %4795
      %4797 = vrot.lane.b32.xlu0 %v4784, 57
      %v4798 = vpop.permute.xlu0 %4797
      %4799 = vrot.lane.b32.xlu0 %v4785, 57
      %v4800 = vpop.permute.xlu0 %4799
      %v4801 = vsel %vm478, %v4792, %v4794
      %v4802 = vsel %vm478, %v4794, %v4796
      %v4803 = vsel %vm478, %v4796, %v4798
      %v4804 = vsel %vm478, %v4798, %v4800
      %4809 = vst [vmem:[#allocation2 + $0xc0] sm:$0xff] %v4801
      %4810 = vst [vmem:[#allocation2 + $0xc8] sm:$0xff] %v4802
      %4811 = vst [vmem:[#allocation2 + $0xd0] sm:$0xff] %v4803
      %4812 = vst [vmem:[#allocation2 + $0xd8] sm:$0xff] %v4804
      %v4813 = vld [vmem:[#allocation3] sm:$0xff]
      %v4814 = vld [vmem:[#allocation3 + $0x8] sm:$0xff]
      %v4815 = vld [vmem:[#allocation3 + $0x10] sm:$0xff]
      %v4816 = vld [vmem:[#allocation3 + $0x18] sm:$0xff]
      %v4817 = vld [vmem:[#allocation3 + $0x20] sm:$0xff]
      %v4818 = vld [vmem:[%s3 + $0xe0] sm:$0xff]
      %v4819 = vld [vmem:[%s3 + $0xe8] sm:$0xff]
      %v4820 = vld [vmem:[%s3 + $0xf0] sm:$0xff]
      %v4821 = vld [vmem:[%s3 + $0xf8] sm:$0xff]
      %4826 = vrot.lane.b32.xlu0 %v4818, 72
      %v4827 = vpop.permute.xlu0 %4826
      %4828 = vrot.lane.b32.xlu0 %v4819, 72
      %v4829 = vpop.permute.xlu0 %4828
      %4830 = vrot.lane.b32.xlu0 %v4820, 72
      %v4831 = vpop.permute.xlu0 %4830
      %4832 = vrot.lane.b32.xlu0 %v4821, 72
      %v4833 = vpop.permute.xlu0 %4832
      %v4834 = vsel %vm444, %v4827, %v4829
      %v4835 = vsel %vm444, %v4829, %v4831
      %v4836 = vsel %vm444, %v4831, %v4833
      %v4842 = vmul.f32 %v4813, %v4827
      %v4843 = vmul.f32 %v4814, %v4834
      %v4844 = vmul.f32 %v4815, %v4835
      %v4845 = vmul.f32 %v4816, %v4836
      %v4846 = vmul.f32 %v4817, %v4833
      %4852 = vrot.lane.b32.xlu0 %v4842, 56
      %v4853 = vpop.permute.xlu0 %4852
      %4854 = vrot.lane.b32.xlu0 %v4843, 56
      %v4855 = vpop.permute.xlu0 %4854
      %4856 = vrot.lane.b32.xlu0 %v4844, 56
      %v4857 = vpop.permute.xlu0 %4856
      %4858 = vrot.lane.b32.xlu0 %v4845, 56
      %v4859 = vpop.permute.xlu0 %4858
      %4860 = vrot.lane.b32.xlu0 %v4846, 56
      %v4861 = vpop.permute.xlu0 %4860
      %v4862 = vsel %vm415, %v4853, %v4855
      %v4863 = vsel %vm415, %v4855, %v4857
      %v4864 = vsel %vm415, %v4857, %v4859
      %v4865 = vsel %vm415, %v4859, %v4861
      %4870 = vst [vmem:[#allocation2 + $0xe0] sm:$0xff] %v4862
      %4871 = vst [vmem:[#allocation2 + $0xe8] sm:$0xff] %v4863
      %4872 = vst [vmem:[#allocation2 + $0xf0] sm:$0xff] %v4864
      %4873 = vst [vmem:[#allocation2 + $0xf8] sm:$0xff] %v4865
      %v4874 = vld [vmem:[#allocation3] sm:$0xff]
      %v4875 = vld [vmem:[#allocation3 + $0x8] sm:$0xff]
      %v4876 = vld [vmem:[#allocation3 + $0x10] sm:$0xff]
      %v4877 = vld [vmem:[#allocation3 + $0x18] sm:$0xff]
      %v4878 = vld [vmem:[#allocation3 + $0x20] sm:$0xff]
      %v4879 = vld [vmem:[%s3 + $0x100] sm:$0xff]
      %v4880 = vld [vmem:[%s3 + $0x108] sm:$0xff]
      %v4881 = vld [vmem:[%s3 + $0x110] sm:$0xff]
      %v4882 = vld [vmem:[%s3 + $0x118] sm:$0xff]
      %4887 = vrot.lane.b32.xlu0 %v4879, 73
      %v4888 = vpop.permute.xlu0 %4887
      %4889 = vrot.lane.b32.xlu0 %v4880, 73
      %v4890 = vpop.permute.xlu0 %4889
      %4891 = vrot.lane.b32.xlu0 %v4881, 73
      %v4892 = vpop.permute.xlu0 %4891
      %4893 = vrot.lane.b32.xlu0 %v4882, 73
      %v4894 = vpop.permute.xlu0 %4893
      %v4895 = vsel %vm381, %v4888, %v4890
      %v4896 = vsel %vm381, %v4890, %v4892
      %v4897 = vsel %vm381, %v4892, %v4894
      %v4903 = vmul.f32 %v4874, %v4888
      %v4904 = vmul.f32 %v4875, %v4895
      %v4905 = vmul.f32 %v4876, %v4896
      %v4906 = vmul.f32 %v4877, %v4897
      %v4907 = vmul.f32 %v4878, %v4894
      %4913 = vrot.lane.b32.xlu0 %v4903, 55
      %v4914 = vpop.permute.xlu0 %4913
      %4915 = vrot.lane.b32.xlu0 %v4904, 55
      %v4916 = vpop.permute.xlu0 %4915
      %4917 = vrot.lane.b32.xlu0 %v4905, 55
      %v4918 = vpop.permute.xlu0 %4917
      %4919 = vrot.lane.b32.xlu0 %v4906, 55
      %v4920 = vpop.permute.xlu0 %4919
      %4921 = vrot.lane.b32.xlu0 %v4907, 55
      %v4922 = vpop.permute.xlu0 %4921
      %v4923 = vsel %vm352, %v4914, %v4916
      %v4924 = vsel %vm352, %v4916, %v4918
      %v4925 = vsel %vm352, %v4918, %v4920
      %v4926 = vsel %vm352, %v4920, %v4922
      %4931 = vst [vmem:[#allocation2 + $0x100] sm:$0xff] %v4923
      %4932 = vst [vmem:[#allocation2 + $0x108] sm:$0xff] %v4924
      %4933 = vst [vmem:[#allocation2 + $0x110] sm:$0xff] %v4925
      %4934 = vst [vmem:[#allocation2 + $0x118] sm:$0xff] %v4926
      %v4935 = vld [vmem:[#allocation3] sm:$0xff]
      %v4936 = vld [vmem:[#allocation3 + $0x8] sm:$0xff]
      %v4937 = vld [vmem:[#allocation3 + $0x10] sm:$0xff]
      %v4938 = vld [vmem:[#allocation3 + $0x18] sm:$0xff]
      %v4939 = vld [vmem:[#allocation3 + $0x20] sm:$0xff]
      %v4940 = vld [vmem:[%s3 + $0x120] sm:$0xff]
      %v4941 = vld [vmem:[%s3 + $0x128] sm:$0xff]
      %v4942 = vld [vmem:[%s3 + $0x130] sm:$0xff]
      %v4943 = vld [vmem:[%s3 + $0x138] sm:$0xff]
      %4948 = vrot.lane.b32.xlu0 %v4940, 119
      %v4949 = vpop.permute.xlu0 %4948
      %4950 = vrot.lane.b32.xlu0 %v4941, 119
      %v4951 = vpop.permute.xlu0 %4950
      %4952 = vrot.lane.b32.xlu0 %v4942, 119
      %v4953 = vpop.permute.xlu0 %4952
      %4954 = vrot.lane.b32.xlu0 %v4943, 119
      %v4955 = vpop.permute.xlu0 %4954
      %v4956 = vsel %vm881, %v4949, %v4951
      %v4957 = vsel %vm881, %v4951, %v4953
      %v4958 = vsel %vm881, %v4953, %v4955
      %v4964 = vmul.f32 %v4935, %v4949
      %v4965 = vmul.f32 %v4936, %v4956
      %v4966 = vmul.f32 %v4937, %v4957
      %v4967 = vmul.f32 %v4938, %v4958
      %v4968 = vmul.f32 %v4939, %v4955
      %4974 = vrot.lane.b32.xlu0 %v4964, 9
      %v4975 = vpop.permute.xlu0 %4974
      %4976 = vrot.lane.b32.xlu0 %v4965, 9
      %v4977 = vpop.permute.xlu0 %4976
      %4978 = vrot.lane.b32.xlu0 %v4966, 9
      %v4979 = vpop.permute.xlu0 %4978
      %4980 = vrot.lane.b32.xlu0 %v4967, 9
      %v4981 = vpop.permute.xlu0 %4980
      %4982 = vrot.lane.b32.xlu0 %v4968, 9
      %v4983 = vpop.permute.xlu0 %4982
      %v4984 = vsel %vm910, %v4975, %v4977
      %v4985 = vsel %vm910, %v4977, %v4979
      %v4986 = vsel %vm910, %v4979, %v4981
      %v4987 = vsel %vm910, %v4981, %v4983
      %4992 = vst [vmem:[#allocation2 + $0x120] sm:$0xff] %v4984
      %4993 = vst [vmem:[#allocation2 + $0x128] sm:$0xff] %v4985
      %4994 = vst [vmem:[#allocation2 + $0x130] sm:$0xff] %v4986
      %4995 = vst [vmem:[#allocation2 + $0x138] sm:$0xff] %v4987
      %v4996 = vld [vmem:[#allocation3] sm:$0xff]
      %v4997 = vld [vmem:[#allocation3 + $0x8] sm:$0xff]
      %v4998 = vld [vmem:[#allocation3 + $0x10] sm:$0xff]
      %v4999 = vld [vmem:[#allocation3 + $0x18] sm:$0xff]
      %v5000 = vld [vmem:[#allocation3 + $0x20] sm:$0xff]
      %v5001 = vld [vmem:[%s3 + $0x140] sm:$0xff]
      %v5002 = vld [vmem:[%s3 + $0x148] sm:$0xff]
      %v5003 = vld [vmem:[%s3 + $0x150] sm:$0xff]
      %v5004 = vld [vmem:[%s3 + $0x158] sm:$0xff]
      %5009 = vrot.lane.b32.xlu0 %v5001, 120
      %v5010 = vpop.permute.xlu0 %5009
      %5011 = vrot.lane.b32.xlu0 %v5002, 120
      %v5012 = vpop.permute.xlu0 %5011
      %5013 = vrot.lane.b32.xlu0 %v5003, 120
      %v5014 = vpop.permute.xlu0 %5013
      %5015 = vrot.lane.b32.xlu0 %v5004, 120
      %v5016 = vpop.permute.xlu0 %5015
      %v5017 = vsel %vm944, %v5010, %v5012
      %v5018 = vsel %vm944, %v5012, %v5014
      %v5019 = vsel %vm944, %v5014, %v5016
      %v5025 = vmul.f32 %v4996, %v5010
      %v5026 = vmul.f32 %v4997, %v5017
      %v5027 = vmul.f32 %v4998, %v5018
      %v5028 = vmul.f32 %v4999, %v5019
      %v5029 = vmul.f32 %v5000, %v5016
      %5035 = vrot.lane.b32.xlu0 %v5025, 8
      %v5036 = vpop.permute.xlu0 %5035
      %5037 = vrot.lane.b32.xlu0 %v5026, 8
      %v5038 = vpop.permute.xlu0 %5037
      %5039 = vrot.lane.b32.xlu0 %v5027, 8
      %v5040 = vpop.permute.xlu0 %5039
      %5041 = vrot.lane.b32.xlu0 %v5028, 8
      %v5042 = vpop.permute.xlu0 %5041
      %5043 = vrot.lane.b32.xlu0 %v5029, 8
      %v5044 = vpop.permute.xlu0 %5043
      %v5045 = vsel %vm973, %v5036, %v5038
      %v5046 = vsel %vm973, %v5038, %v5040
      %v5047 = vsel %vm973, %v5040, %v5042
      %v5048 = vsel %vm973, %v5042, %v5044
      %5053 = vst [vmem:[#allocation2 + $0x140] sm:$0xff] %v5045
      %5054 = vst [vmem:[#allocation2 + $0x148] sm:$0xff] %v5046
      %5055 = vst [vmem:[#allocation2 + $0x150] sm:$0xff] %v5047
      %5056 = vst [vmem:[#allocation2 + $0x158] sm:$0xff] %v5048
      %v5057 = vld [vmem:[#allocation3] sm:$0xff]
      %v5058 = vld [vmem:[#allocation3 + $0x8] sm:$0xff]
      %v5059 = vld [vmem:[#allocation3 + $0x10] sm:$0xff]
      %v5060 = vld [vmem:[#allocation3 + $0x18] sm:$0xff]
      %v5061 = vld [vmem:[#allocation3 + $0x20] sm:$0xff]
      %v5062 = vld [vmem:[%s3 + $0x160] sm:$0xff]
      %v5063 = vld [vmem:[%s3 + $0x168] sm:$0xff]
      %v5064 = vld [vmem:[%s3 + $0x170] sm:$0xff]
      %v5065 = vld [vmem:[%s3 + $0x178] sm:$0xff]
      %5070 = vrot.lane.b32.xlu0 %v5062, 121
      %v5071 = vpop.permute.xlu0 %5070
      %5072 = vrot.lane.b32.xlu0 %v5063, 121
      %v5073 = vpop.permute.xlu0 %5072
      %5074 = vrot.lane.b32.xlu0 %v5064, 121
      %v5075 = vpop.permute.xlu0 %5074
      %5076 = vrot.lane.b32.xlu0 %v5065, 121
      %v5077 = vpop.permute.xlu0 %5076
      %v5078 = vsel %vm1007, %v5071, %v5073
      %v5079 = vsel %vm1007, %v5073, %v5075
      %v5080 = vsel %vm1007, %v5075, %v5077
      %v5086 = vmul.f32 %v5057, %v5071
      %v5087 = vmul.f32 %v5058, %v5078
      %v5088 = vmul.f32 %v5059, %v5079
      %v5089 = vmul.f32 %v5060, %v5080
      %v5090 = vmul.f32 %v5061, %v5077
      %5096 = vrot.lane.b32.xlu0 %v5086, 7
      %v5097 = vpop.permute.xlu0 %5096
      %5098 = vrot.lane.b32.xlu0 %v5087, 7
      %v5099 = vpop.permute.xlu0 %5098
      %5100 = vrot.lane.b32.xlu0 %v5088, 7
      %v5101 = vpop.permute.xlu0 %5100
      %5102 = vrot.lane.b32.xlu0 %v5089, 7
      %v5103 = vpop.permute.xlu0 %5102
      %5104 = vrot.lane.b32.xlu0 %v5090, 7
      %v5105 = vpop.permute.xlu0 %5104
      %v5106 = vsel %vm1036, %v5097, %v5099
      %v5107 = vsel %vm1036, %v5099, %v5101
      %v5108 = vsel %vm1036, %v5101, %v5103
      %v5109 = vsel %vm1036, %v5103, %v5105
      %5114 = vst [vmem:[#allocation2 + $0x160] sm:$0xff] %v5106
      %5115 = vst [vmem:[#allocation2 + $0x168] sm:$0xff] %v5107
      %5116 = vst [vmem:[#allocation2 + $0x170] sm:$0xff] %v5108
      %5117 = vst [vmem:[#allocation2 + $0x178] sm:$0xff] %v5109
      %v5118 = vld [vmem:[#allocation3] sm:$0xff]
      %v5119 = vld [vmem:[#allocation3 + $0x8] sm:$0xff]
      %v5120 = vld [vmem:[#allocation3 + $0x10] sm:$0xff]
      %v5121 = vld [vmem:[#allocation3 + $0x18] sm:$0xff]
      %v5122 = vld [vmem:[#allocation3 + $0x20] sm:$0xff]
      %v5123 = vld [vmem:[%s3 + $0x180] sm:$0xff]
      %v5124 = vld [vmem:[%s3 + $0x188] sm:$0xff]
      %v5125 = vld [vmem:[%s3 + $0x190] sm:$0xff]
      %v5126 = vld [vmem:[%s3 + $0x198] sm:$0xff]
      %5131 = vrot.lane.b32.xlu0 %v5123, 127
      %v5132 = vpop.permute.xlu0 %5131
      %5133 = vrot.lane.b32.xlu0 %v5124, 127
      %v5134 = vpop.permute.xlu0 %5133
      %5135 = vrot.lane.b32.xlu0 %v5125, 127
      %v5136 = vpop.permute.xlu0 %5135
      %5137 = vrot.lane.b32.xlu0 %v5126, 127
      %v5138 = vpop.permute.xlu0 %5137
      %v5139 = vsel %vm1070, %v5132, %v5134
      %v5140 = vsel %vm1070, %v5134, %v5136
      %v5141 = vsel %vm1070, %v5136, %v5138
      %v5147 = vmul.f32 %v5118, %v5132
      %v5148 = vmul.f32 %v5119, %v5139
      %v5149 = vmul.f32 %v5120, %v5140
      %v5150 = vmul.f32 %v5121, %v5141
      %v5151 = vmul.f32 %v5122, %v5138
      %5157 = vrot.lane.b32.xlu0 %v5147, 1
      %v5158 = vpop.permute.xlu0 %5157
      %5159 = vrot.lane.b32.xlu0 %v5148, 1
      %v5160 = vpop.permute.xlu0 %5159
      %5161 = vrot.lane.b32.xlu0 %v5149, 1
      %v5162 = vpop.permute.xlu0 %5161
      %5163 = vrot.lane.b32.xlu0 %v5150, 1
      %v5164 = vpop.permute.xlu0 %5163
      %5165 = vrot.lane.b32.xlu0 %v5151, 1
      %v5166 = vpop.permute.xlu0 %5165
      %v5167 = vsel %vm1099, %v5158, %v5160
      %v5168 = vsel %vm1099, %v5160, %v5162
      %v5169 = vsel %vm1099, %v5162, %v5164
      %v5170 = vsel %vm1099, %v5164, %v5166
      %5175 = vst [vmem:[#allocation2 + $0x180] sm:$0xff] %v5167
      %5176 = vst [vmem:[#allocation2 + $0x188] sm:$0xff] %v5168
      %5177 = vst [vmem:[#allocation2 + $0x190] sm:$0xff] %v5169
      %5178 = vst [vmem:[#allocation2 + $0x198] sm:$0xff] %v5170
      %v5179 = vld [vmem:[#allocation3 + $0x8] sm:$0xff]
      %v5180 = vld [vmem:[#allocation3 + $0x10] sm:$0xff]
      %v5181 = vld [vmem:[#allocation3 + $0x18] sm:$0xff]
      %v5182 = vld [vmem:[#allocation3 + $0x20] sm:$0xff]
      %5183 = vst [vmem:[#allocation2 + $0x1a0] sm:$0xff] %v5179
      %5184 = vst [vmem:[#allocation2 + $0x1a8] sm:$0xff] %v5180
      %5185 = vst [vmem:[#allocation2 + $0x1b0] sm:$0xff] %v5181
      %5186 = vst [vmem:[#allocation2 + $0x1b8] sm:$0xff] %v5182
      %v5187 = vld [vmem:[#allocation3 + $0x8] sm:$0xff]
      %v5188 = vld [vmem:[#allocation3 + $0x10] sm:$0xff]
      %v5189 = vld [vmem:[#allocation3 + $0x18] sm:$0xff]
      %v5190 = vld [vmem:[#allocation3 + $0x20] sm:$0xff]
      %v5191 = vld [vmem:[#allocation3 + $0x28] sm:$0xff]
      %v5192 = vld [vmem:[%s3 + $0x1c0] sm:$0xff]
      %v5193 = vld [vmem:[%s3 + $0x1c8] sm:$0xff]
      %v5194 = vld [vmem:[%s3 + $0x1d0] sm:$0xff]
      %v5195 = vld [vmem:[%s3 + $0x1d8] sm:$0xff]
      %5200 = vrot.lane.b32.xlu0 %v5192, 1
      %v5201 = vpop.permute.xlu0 %5200
      %5202 = vrot.lane.b32.xlu0 %v5193, 1
      %v5203 = vpop.permute.xlu0 %5202
      %5204 = vrot.lane.b32.xlu0 %v5194, 1
      %v5205 = vpop.permute.xlu0 %5204
      %5206 = vrot.lane.b32.xlu0 %v5195, 1
      %v5207 = vpop.permute.xlu0 %5206
      %v5208 = vsel %vm1099, %v5201, %v5203
      %v5209 = vsel %vm1099, %v5203, %v5205
      %v5210 = vsel %vm1099, %v5205, %v5207
      %v5216 = vmul.f32 %v5187, %v5201
      %v5217 = vmul.f32 %v5188, %v5208
      %v5218 = vmul.f32 %v5189, %v5209
      %v5219 = vmul.f32 %v5190, %v5210
      %v5220 = vmul.f32 %v5191, %v5207
      %5226 = vrot.lane.b32.xlu0 %v5216, 127
      %v5227 = vpop.permute.xlu0 %5226
      %5228 = vrot.lane.b32.xlu0 %v5217, 127
      %v5229 = vpop.permute.xlu0 %5228
      %5230 = vrot.lane.b32.xlu0 %v5218, 127
      %v5231 = vpop.permute.xlu0 %5230
      %5232 = vrot.lane.b32.xlu0 %v5219, 127
      %v5233 = vpop.permute.xlu0 %5232
      %5234 = vrot.lane.b32.xlu0 %v5220, 127
      %v5235 = vpop.permute.xlu0 %5234
      %v5236 = vsel %vm1070, %v5227, %v5229
      %v5237 = vsel %vm1070, %v5229, %v5231
      %v5238 = vsel %vm1070, %v5231, %v5233
      %v5239 = vsel %vm1070, %v5233, %v5235
      %5244 = vst [vmem:[#allocation2 + $0x1c0] sm:$0xff] %v5236
      %5245 = vst [vmem:[#allocation2 + $0x1c8] sm:$0xff] %v5237
      %5246 = vst [vmem:[#allocation2 + $0x1d0] sm:$0xff] %v5238
      %5247 = vst [vmem:[#allocation2 + $0x1d8] sm:$0xff] %v5239
      %v5248 = vld [vmem:[#allocation3 + $0x8] sm:$0xff]
      %v5249 = vld [vmem:[#allocation3 + $0x10] sm:$0xff]
      %v5250 = vld [vmem:[#allocation3 + $0x18] sm:$0xff]
      %v5251 = vld [vmem:[#allocation3 + $0x20] sm:$0xff]
      %v5252 = vld [vmem:[#allocation3 + $0x28] sm:$0xff]
      %v5253 = vld [vmem:[%s3 + $0x1e0] sm:$0xff]
      %v5254 = vld [vmem:[%s3 + $0x1e8] sm:$0xff]
      %v5255 = vld [vmem:[%s3 + $0x1f0] sm:$0xff]
      %v5256 = vld [vmem:[%s3 + $0x1f8] sm:$0xff]
      %5261 = vrot.lane.b32.xlu0 %v5253, 7
      %v5262 = vpop.permute.xlu0 %5261
      %5263 = vrot.lane.b32.xlu0 %v5254, 7
      %v5264 = vpop.permute.xlu0 %5263
      %5265 = vrot.lane.b32.xlu0 %v5255, 7
      %v5266 = vpop.permute.xlu0 %5265
      %5267 = vrot.lane.b32.xlu0 %v5256, 7
      %v5268 = vpop.permute.xlu0 %5267
      %v5269 = vsel %vm1036, %v5262, %v5264
      %v5270 = vsel %vm1036, %v5264, %v5266
      %v5271 = vsel %vm1036, %v5266, %v5268
      %v5277 = vmul.f32 %v5248, %v5262
      %v5278 = vmul.f32 %v5249, %v5269
      %v5279 = vmul.f32 %v5250, %v5270
      %v5280 = vmul.f32 %v5251, %v5271
      %v5281 = vmul.f32 %v5252, %v5268
      %5287 = vrot.lane.b32.xlu0 %v5277, 121
      %v5288 = vpop.permute.xlu0 %5287
      %5289 = vrot.lane.b32.xlu0 %v5278, 121
      %v5290 = vpop.permute.xlu0 %5289
      %5291 = vrot.lane.b32.xlu0 %v5279, 121
      %v5292 = vpop.permute.xlu0 %5291
      %5293 = vrot.lane.b32.xlu0 %v5280, 121
      %v5294 = vpop.permute.xlu0 %5293
      %5295 = vrot.lane.b32.xlu0 %v5281, 121
      %v5296 = vpop.permute.xlu0 %5295
      %v5297 = vsel %vm1007, %v5288, %v5290
      %v5298 = vsel %vm1007, %v5290, %v5292
      %v5299 = vsel %vm1007, %v5292, %v5294
      %v5300 = vsel %vm1007, %v5294, %v5296
      %5305 = vst [vmem:[#allocation2 + $0x1e0] sm:$0xff] %v5297
      %5306 = vst [vmem:[#allocation2 + $0x1e8] sm:$0xff] %v5298
      %5307 = vst [vmem:[#allocation2 + $0x1f0] sm:$0xff] %v5299
      %5308 = vst [vmem:[#allocation2 + $0x1f8] sm:$0xff] %v5300
      %v5309 = vld [vmem:[#allocation3 + $0x8] sm:$0xff]
      %v5310 = vld [vmem:[#allocation3 + $0x10] sm:$0xff]
      %v5311 = vld [vmem:[#allocation3 + $0x18] sm:$0xff]
      %v5312 = vld [vmem:[#allocation3 + $0x20] sm:$0xff]
      %v5313 = vld [vmem:[#allocation3 + $0x28] sm:$0xff]
      %v5314 = vld [vmem:[%s3 + $0x200] sm:$0xff]
      %v5315 = vld [vmem:[%s3 + $0x208] sm:$0xff]
      %v5316 = vld [vmem:[%s3 + $0x210] sm:$0xff]
      %v5317 = vld [vmem:[%s3 + $0x218] sm:$0xff]
      %5322 = vrot.lane.b32.xlu0 %v5314, 8
      %v5323 = vpop.permute.xlu0 %5322
      %5324 = vrot.lane.b32.xlu0 %v5315, 8
      %v5325 = vpop.permute.xlu0 %5324
      %5326 = vrot.lane.b32.xlu0 %v5316, 8
      %v5327 = vpop.permute.xlu0 %5326
      %5328 = vrot.lane.b32.xlu0 %v5317, 8
      %v5329 = vpop.permute.xlu0 %5328
      %v5330 = vsel %vm973, %v5323, %v5325
      %v5331 = vsel %vm973, %v5325, %v5327
      %v5332 = vsel %vm973, %v5327, %v5329
      %v5338 = vmul.f32 %v5309, %v5323
      %v5339 = vmul.f32 %v5310, %v5330
      %v5340 = vmul.f32 %v5311, %v5331
      %v5341 = vmul.f32 %v5312, %v5332
      %v5342 = vmul.f32 %v5313, %v5329
      %5348 = vrot.lane.b32.xlu0 %v5338, 120
      %v5349 = vpop.permute.xlu0 %5348
      %5350 = vrot.lane.b32.xlu0 %v5339, 120
      %v5351 = vpop.permute.xlu0 %5350
      %5352 = vrot.lane.b32.xlu0 %v5340, 120
      %v5353 = vpop.permute.xlu0 %5352
      %5354 = vrot.lane.b32.xlu0 %v5341, 120
      %v5355 = vpop.permute.xlu0 %5354
      %5356 = vrot.lane.b32.xlu0 %v5342, 120
      %v5357 = vpop.permute.xlu0 %5356
      %v5358 = vsel %vm944, %v5349, %v5351
      %v5359 = vsel %vm944, %v5351, %v5353
      %v5360 = vsel %vm944, %v5353, %v5355
      %v5361 = vsel %vm944, %v5355, %v5357
      %5366 = vst [vmem:[#allocation2 + $0x200] sm:$0xff] %v5358
      %5367 = vst [vmem:[#allocation2 + $0x208] sm:$0xff] %v5359
      %5368 = vst [vmem:[#allocation2 + $0x210] sm:$0xff] %v5360
      %5369 = vst [vmem:[#allocation2 + $0x218] sm:$0xff] %v5361
      %v5370 = vld [vmem:[#allocation3 + $0x8] sm:$0xff]
      %v5371 = vld [vmem:[#allocation3 + $0x10] sm:$0xff]
      %v5372 = vld [vmem:[#allocation3 + $0x18] sm:$0xff]
      %v5373 = vld [vmem:[#allocation3 + $0x20] sm:$0xff]
      %v5374 = vld [vmem:[#allocation3 + $0x28] sm:$0xff]
      %v5375 = vld [vmem:[%s3 + $0x220] sm:$0xff]
      %v5376 = vld [vmem:[%s3 + $0x228] sm:$0xff]
      %v5377 = vld [vmem:[%s3 + $0x230] sm:$0xff]
      %v5378 = vld [vmem:[%s3 + $0x238] sm:$0xff]
      %5383 = vrot.lane.b32.xlu0 %v5375, 9
      %v5384 = vpop.permute.xlu0 %5383
      %5385 = vrot.lane.b32.xlu0 %v5376, 9
      %v5386 = vpop.permute.xlu0 %5385
      %5387 = vrot.lane.b32.xlu0 %v5377, 9
      %v5388 = vpop.permute.xlu0 %5387
      %5389 = vrot.lane.b32.xlu0 %v5378, 9
      %v5390 = vpop.permute.xlu0 %5389
      %v5391 = vsel %vm910, %v5384, %v5386
      %v5392 = vsel %vm910, %v5386, %v5388
      %v5393 = vsel %vm910, %v5388, %v5390
      %v5399 = vmul.f32 %v5370, %v5384
      %v5400 = vmul.f32 %v5371, %v5391
      %v5401 = vmul.f32 %v5372, %v5392
      %v5402 = vmul.f32 %v5373, %v5393
      %v5403 = vmul.f32 %v5374, %v5390
      %5409 = vrot.lane.b32.xlu0 %v5399, 119
      %v5410 = vpop.permute.xlu0 %5409
      %5411 = vrot.lane.b32.xlu0 %v5400, 119
      %v5412 = vpop.permute.xlu0 %5411
      %5413 = vrot.lane.b32.xlu0 %v5401, 119
      %v5414 = vpop.permute.xlu0 %5413
      %5415 = vrot.lane.b32.xlu0 %v5402, 119
      %v5416 = vpop.permute.xlu0 %5415
      %5417 = vrot.lane.b32.xlu0 %v5403, 119
      %v5418 = vpop.permute.xlu0 %5417
      %v5419 = vsel %vm881, %v5410, %v5412
      %v5420 = vsel %vm881, %v5412, %v5414
      %v5421 = vsel %vm881, %v5414, %v5416
      %v5422 = vsel %vm881, %v5416, %v5418
      %5427 = vst [vmem:[#allocation2 + $0x220] sm:$0xff] %v5419
      %5428 = vst [vmem:[#allocation2 + $0x228] sm:$0xff] %v5420
      %5429 = vst [vmem:[#allocation2 + $0x230] sm:$0xff] %v5421
      %5430 = vst [vmem:[#allocation2 + $0x238] sm:$0xff] %v5422
      %v5431 = vld [vmem:[#allocation3 + $0x8] sm:$0xff]
      %v5432 = vld [vmem:[#allocation3 + $0x10] sm:$0xff]
      %v5433 = vld [vmem:[#allocation3 + $0x18] sm:$0xff]
      %v5434 = vld [vmem:[#allocation3 + $0x20] sm:$0xff]
      %v5435 = vld [vmem:[#allocation3 + $0x28] sm:$0xff]
      %v5436 = vld [vmem:[%s3 + $0x240] sm:$0xff]
      %v5437 = vld [vmem:[%s3 + $0x248] sm:$0xff]
      %v5438 = vld [vmem:[%s3 + $0x250] sm:$0xff]
      %v5439 = vld [vmem:[%s3 + $0x258] sm:$0xff]
      %5444 = vrot.lane.b32.xlu0 %v5436, 55
      %v5445 = vpop.permute.xlu0 %5444
      %5446 = vrot.lane.b32.xlu0 %v5437, 55
      %v5447 = vpop.permute.xlu0 %5446
      %5448 = vrot.lane.b32.xlu0 %v5438, 55
      %v5449 = vpop.permute.xlu0 %5448
      %5450 = vrot.lane.b32.xlu0 %v5439, 55
      %v5451 = vpop.permute.xlu0 %5450
      %v5452 = vsel %vm352, %v5445, %v5447
      %v5453 = vsel %vm352, %v5447, %v5449
      %v5454 = vsel %vm352, %v5449, %v5451
      %v5460 = vmul.f32 %v5431, %v5445
      %v5461 = vmul.f32 %v5432, %v5452
      %v5462 = vmul.f32 %v5433, %v5453
      %v5463 = vmul.f32 %v5434, %v5454
      %v5464 = vmul.f32 %v5435, %v5451
      %5470 = vrot.lane.b32.xlu0 %v5460, 73
      %v5471 = vpop.permute.xlu0 %5470
      %5472 = vrot.lane.b32.xlu0 %v5461, 73
      %v5473 = vpop.permute.xlu0 %5472
      %5474 = vrot.lane.b32.xlu0 %v5462, 73
      %v5475 = vpop.permute.xlu0 %5474
      %5476 = vrot.lane.b32.xlu0 %v5463, 73
      %v5477 = vpop.permute.xlu0 %5476
      %5478 = vrot.lane.b32.xlu0 %v5464, 73
      %v5479 = vpop.permute.xlu0 %5478
      %v5480 = vsel %vm381, %v5471, %v5473
      %v5481 = vsel %vm381, %v5473, %v5475
      %v5482 = vsel %vm381, %v5475, %v5477
      %v5483 = vsel %vm381, %v5477, %v5479
      %5488 = vst [vmem:[#allocation2 + $0x240] sm:$0xff] %v5480
      %5489 = vst [vmem:[#allocation2 + $0x248] sm:$0xff] %v5481
      %5490 = vst [vmem:[#allocation2 + $0x250] sm:$0xff] %v5482
      %5491 = vst [vmem:[#allocation2 + $0x258] sm:$0xff] %v5483
      %v5492 = vld [vmem:[#allocation3 + $0x8] sm:$0xff]
      %v5493 = vld [vmem:[#allocation3 + $0x10] sm:$0xff]
      %v5494 = vld [vmem:[#allocation3 + $0x18] sm:$0xff]
      %v5495 = vld [vmem:[#allocation3 + $0x20] sm:$0xff]
      %v5496 = vld [vmem:[#allocation3 + $0x28] sm:$0xff]
      %v5497 = vld [vmem:[%s3 + $0x260] sm:$0xff]
      %v5498 = vld [vmem:[%s3 + $0x268] sm:$0xff]
      %v5499 = vld [vmem:[%s3 + $0x270] sm:$0xff]
      %v5500 = vld [vmem:[%s3 + $0x278] sm:$0xff]
      %5505 = vrot.lane.b32.xlu0 %v5497, 56
      %v5506 = vpop.permute.xlu0 %5505
      %5507 = vrot.lane.b32.xlu0 %v5498, 56
      %v5508 = vpop.permute.xlu0 %5507
      %5509 = vrot.lane.b32.xlu0 %v5499, 56
      %v5510 = vpop.permute.xlu0 %5509
      %5511 = vrot.lane.b32.xlu0 %v5500, 56
      %v5512 = vpop.permute.xlu0 %5511
      %v5513 = vsel %vm415, %v5506, %v5508
      %v5514 = vsel %vm415, %v5508, %v5510
      %v5515 = vsel %vm415, %v5510, %v5512
      %v5521 = vmul.f32 %v5492, %v5506
      %v5522 = vmul.f32 %v5493, %v5513
      %v5523 = vmul.f32 %v5494, %v5514
      %v5524 = vmul.f32 %v5495, %v5515
      %v5525 = vmul.f32 %v5496, %v5512
      %5531 = vrot.lane.b32.xlu0 %v5521, 72
      %v5532 = vpop.permute.xlu0 %5531
      %5533 = vrot.lane.b32.xlu0 %v5522, 72
      %v5534 = vpop.permute.xlu0 %5533
      %5535 = vrot.lane.b32.xlu0 %v5523, 72
      %v5536 = vpop.permute.xlu0 %5535
      %5537 = vrot.lane.b32.xlu0 %v5524, 72
      %v5538 = vpop.permute.xlu0 %5537
      %5539 = vrot.lane.b32.xlu0 %v5525, 72
      %v5540 = vpop.permute.xlu0 %5539
      %v5541 = vsel %vm444, %v5532, %v5534
      %v5542 = vsel %vm444, %v5534, %v5536
      %v5543 = vsel %vm444, %v5536, %v5538
      %v5544 = vsel %vm444, %v5538, %v5540
      %5549 = vst [vmem:[#allocation2 + $0x260] sm:$0xff] %v5541
      %5550 = vst [vmem:[#allocation2 + $0x268] sm:$0xff] %v5542
      %5551 = vst [vmem:[#allocation2 + $0x270] sm:$0xff] %v5543
      %5552 = vst [vmem:[#allocation2 + $0x278] sm:$0xff] %v5544
      %v5553 = vld [vmem:[#allocation3 + $0x8] sm:$0xff]
      %v5554 = vld [vmem:[#allocation3 + $0x10] sm:$0xff]
      %v5555 = vld [vmem:[#allocation3 + $0x18] sm:$0xff]
      %v5556 = vld [vmem:[#allocation3 + $0x20] sm:$0xff]
      %v5557 = vld [vmem:[#allocation3 + $0x28] sm:$0xff]
      %v5558 = vld [vmem:[%s3 + $0x280] sm:$0xff]
      %v5559 = vld [vmem:[%s3 + $0x288] sm:$0xff]
      %v5560 = vld [vmem:[%s3 + $0x290] sm:$0xff]
      %v5561 = vld [vmem:[%s3 + $0x298] sm:$0xff]
      %5566 = vrot.lane.b32.xlu0 %v5558, 57
      %v5567 = vpop.permute.xlu0 %5566
      %5568 = vrot.lane.b32.xlu0 %v5559, 57
      %v5569 = vpop.permute.xlu0 %5568
      %5570 = vrot.lane.b32.xlu0 %v5560, 57
      %v5571 = vpop.permute.xlu0 %5570
      %5572 = vrot.lane.b32.xlu0 %v5561, 57
      %v5573 = vpop.permute.xlu0 %5572
      %v5574 = vsel %vm478, %v5567, %v5569
      %v5575 = vsel %vm478, %v5569, %v5571
      %v5576 = vsel %vm478, %v5571, %v5573
      %v5582 = vmul.f32 %v5553, %v5567
      %v5583 = vmul.f32 %v5554, %v5574
      %v5584 = vmul.f32 %v5555, %v5575
      %v5585 = vmul.f32 %v5556, %v5576
      %v5586 = vmul.f32 %v5557, %v5573
      %5592 = vrot.lane.b32.xlu0 %v5582, 71
      %v5593 = vpop.permute.xlu0 %5592
      %5594 = vrot.lane.b32.xlu0 %v5583, 71
      %v5595 = vpop.permute.xlu0 %5594
      %5596 = vrot.lane.b32.xlu0 %v5584, 71
      %v5597 = vpop.permute.xlu0 %5596
      %5598 = vrot.lane.b32.xlu0 %v5585, 71
      %v5599 = vpop.permute.xlu0 %5598
      %5600 = vrot.lane.b32.xlu0 %v5586, 71
      %v5601 = vpop.permute.xlu0 %5600
      %v5602 = vsel %vm507, %v5593, %v5595
      %v5603 = vsel %vm507, %v5595, %v5597
      %v5604 = vsel %vm507, %v5597, %v5599
      %v5605 = vsel %vm507, %v5599, %v5601
      %5610 = vst [vmem:[#allocation2 + $0x280] sm:$0xff] %v5602
      %5611 = vst [vmem:[#allocation2 + $0x288] sm:$0xff] %v5603
      %5612 = vst [vmem:[#allocation2 + $0x290] sm:$0xff] %v5604
      %5613 = vst [vmem:[#allocation2 + $0x298] sm:$0xff] %v5605
      %v5614 = vld [vmem:[#allocation3 + $0x8] sm:$0xff]
      %v5615 = vld [vmem:[#allocation3 + $0x10] sm:$0xff]
      %v5616 = vld [vmem:[#allocation3 + $0x18] sm:$0xff]
      %v5617 = vld [vmem:[#allocation3 + $0x20] sm:$0xff]
      %v5618 = vld [vmem:[#allocation3 + $0x28] sm:$0xff]
      %v5619 = vld [vmem:[%s3 + $0x2a0] sm:$0xff]
      %v5620 = vld [vmem:[%s3 + $0x2a8] sm:$0xff]
      %v5621 = vld [vmem:[%s3 + $0x2b0] sm:$0xff]
      %v5622 = vld [vmem:[%s3 + $0x2b8] sm:$0xff]
      %5627 = vrot.lane.b32.xlu0 %v5619, 63
      %v5628 = vpop.permute.xlu0 %5627
      %5629 = vrot.lane.b32.xlu0 %v5620, 63
      %v5630 = vpop.permute.xlu0 %5629
      %5631 = vrot.lane.b32.xlu0 %v5621, 63
      %v5632 = vpop.permute.xlu0 %5631
      %5633 = vrot.lane.b32.xlu0 %v5622, 63
      %v5634 = vpop.permute.xlu0 %5633
      %v5635 = vsel %vm541, %v5628, %v5630
      %v5636 = vsel %vm541, %v5630, %v5632
      %v5637 = vsel %vm541, %v5632, %v5634
      %v5643 = vmul.f32 %v5614, %v5628
      %v5644 = vmul.f32 %v5615, %v5635
      %v5645 = vmul.f32 %v5616, %v5636
      %v5646 = vmul.f32 %v5617, %v5637
      %v5647 = vmul.f32 %v5618, %v5634
      %5653 = vrot.lane.b32.xlu0 %v5643, 65
      %v5654 = vpop.permute.xlu0 %5653
      %5655 = vrot.lane.b32.xlu0 %v5644, 65
      %v5656 = vpop.permute.xlu0 %5655
      %5657 = vrot.lane.b32.xlu0 %v5645, 65
      %v5658 = vpop.permute.xlu0 %5657
      %5659 = vrot.lane.b32.xlu0 %v5646, 65
      %v5660 = vpop.permute.xlu0 %5659
      %5661 = vrot.lane.b32.xlu0 %v5647, 65
      %v5662 = vpop.permute.xlu0 %5661
      %v5663 = vsel %vm570, %v5654, %v5656
      %v5664 = vsel %vm570, %v5656, %v5658
      %v5665 = vsel %vm570, %v5658, %v5660
      %v5666 = vsel %vm570, %v5660, %v5662
      %5671 = vst [vmem:[#allocation2 + $0x2a0] sm:$0xff] %v5663
      %5672 = vst [vmem:[#allocation2 + $0x2a8] sm:$0xff] %v5664
      %5673 = vst [vmem:[#allocation2 + $0x2b0] sm:$0xff] %v5665
      %5674 = vst [vmem:[#allocation2 + $0x2b8] sm:$0xff] %v5666
      %v5675 = vld [vmem:[#allocation3 + $0x8] sm:$0xff]
      %v5676 = vld [vmem:[#allocation3 + $0x10] sm:$0xff]
      %v5677 = vld [vmem:[#allocation3 + $0x18] sm:$0xff]
      %v5678 = vld [vmem:[#allocation3 + $0x20] sm:$0xff]
      %v5679 = vld [vmem:[#allocation3 + $0x28] sm:$0xff]
      %5685 = vrot.lane.b32.xlu0 %v5675, 64
      %v5686 = vpop.permute.xlu0 %5685
      %5687 = vrot.lane.b32.xlu0 %v5676, 64
      %v5688 = vpop.permute.xlu0 %5687
      %5689 = vrot.lane.b32.xlu0 %v5677, 64
      %v5690 = vpop.permute.xlu0 %5689
      %5691 = vrot.lane.b32.xlu0 %v5678, 64
      %v5692 = vpop.permute.xlu0 %5691
      %5693 = vrot.lane.b32.xlu0 %v5679, 64
      %v5694 = vpop.permute.xlu0 %5693
      %v5695 = vsel %vm603, %v5686, %v5688
      %v5696 = vsel %vm603, %v5688, %v5690
      %v5697 = vsel %vm603, %v5690, %v5692
      %v5698 = vsel %vm603, %v5692, %v5694
      %5703 = vst [vmem:[#allocation2 + $0x2c0] sm:$0xff] %v5695
      %5704 = vst [vmem:[#allocation2 + $0x2c8] sm:$0xff] %v5696
      %5705 = vst [vmem:[#allocation2 + $0x2d0] sm:$0xff] %v5697
      %5706 = vst [vmem:[#allocation2 + $0x2d8] sm:$0xff] %v5698
      %v5707 = vld [vmem:[#allocation3 + $0x8] sm:$0xff]
      %v5708 = vld [vmem:[#allocation3 + $0x10] sm:$0xff]
      %v5709 = vld [vmem:[#allocation3 + $0x18] sm:$0xff]
      %v5710 = vld [vmem:[#allocation3 + $0x20] sm:$0xff]
      %v5711 = vld [vmem:[#allocation3 + $0x28] sm:$0xff]
      %v5712 = vld [vmem:[%s3 + $0x2e0] sm:$0xff]
      %v5713 = vld [vmem:[%s3 + $0x2e8] sm:$0xff]
      %v5714 = vld [vmem:[%s3 + $0x2f0] sm:$0xff]
      %v5715 = vld [vmem:[%s3 + $0x2f8] sm:$0xff]
      %5720 = vrot.lane.b32.xlu0 %v5712, 65
      %v5721 = vpop.permute.xlu0 %5720
      %5722 = vrot.lane.b32.xlu0 %v5713, 65
      %v5723 = vpop.permute.xlu0 %5722
      %5724 = vrot.lane.b32.xlu0 %v5714, 65
      %v5725 = vpop.permute.xlu0 %5724
      %5726 = vrot.lane.b32.xlu0 %v5715, 65
      %v5727 = vpop.permute.xlu0 %5726
      %v5728 = vsel %vm570, %v5721, %v5723
      %v5729 = vsel %vm570, %v5723, %v5725
      %v5730 = vsel %vm570, %v5725, %v5727
      %v5736 = vmul.f32 %v5707, %v5721
      %v5737 = vmul.f32 %v5708, %v5728
      %v5738 = vmul.f32 %v5709, %v5729
      %v5739 = vmul.f32 %v5710, %v5730
      %v5740 = vmul.f32 %v5711, %v5727
      %5746 = vrot.lane.b32.xlu0 %v5736, 63
      %v5747 = vpop.permute.xlu0 %5746
      %5748 = vrot.lane.b32.xlu0 %v5737, 63
      %v5749 = vpop.permute.xlu0 %5748
      %5750 = vrot.lane.b32.xlu0 %v5738, 63
      %v5751 = vpop.permute.xlu0 %5750
      %5752 = vrot.lane.b32.xlu0 %v5739, 63
      %v5753 = vpop.permute.xlu0 %5752
      %5754 = vrot.lane.b32.xlu0 %v5740, 63
      %v5755 = vpop.permute.xlu0 %5754
      %v5756 = vsel %vm541, %v5747, %v5749
      %v5757 = vsel %vm541, %v5749, %v5751
      %v5758 = vsel %vm541, %v5751, %v5753
      %v5759 = vsel %vm541, %v5753, %v5755
      %5764 = vst [vmem:[#allocation2 + $0x2e0] sm:$0xff] %v5756
      %5765 = vst [vmem:[#allocation2 + $0x2e8] sm:$0xff] %v5757
      %5766 = vst [vmem:[#allocation2 + $0x2f0] sm:$0xff] %v5758
      %5767 = vst [vmem:[#allocation2 + $0x2f8] sm:$0xff] %v5759
      %v5768 = vld [vmem:[#allocation3 + $0x8] sm:$0xff]
      %v5769 = vld [vmem:[#allocation3 + $0x10] sm:$0xff]
      %v5770 = vld [vmem:[#allocation3 + $0x18] sm:$0xff]
      %v5771 = vld [vmem:[#allocation3 + $0x20] sm:$0xff]
      %v5772 = vld [vmem:[#allocation3 + $0x28] sm:$0xff]
      %v5773 = vld [vmem:[%s3 + $0x300] sm:$0xff]
      %v5774 = vld [vmem:[%s3 + $0x308] sm:$0xff]
      %v5775 = vld [vmem:[%s3 + $0x310] sm:$0xff]
      %v5776 = vld [vmem:[%s3 + $0x318] sm:$0xff]
      %5781 = vrot.lane.b32.xlu0 %v5773, 71
      %v5782 = vpop.permute.xlu0 %5781
      %5783 = vrot.lane.b32.xlu0 %v5774, 71
      %v5784 = vpop.permute.xlu0 %5783
      %5785 = vrot.lane.b32.xlu0 %v5775, 71
      %v5786 = vpop.permute.xlu0 %5785
      %5787 = vrot.lane.b32.xlu0 %v5776, 71
      %v5788 = vpop.permute.xlu0 %5787
      %v5789 = vsel %vm507, %v5782, %v5784
      %v5790 = vsel %vm507, %v5784, %v5786
      %v5791 = vsel %vm507, %v5786, %v5788
      %v5797 = vmul.f32 %v5768, %v5782
      %v5798 = vmul.f32 %v5769, %v5789
      %v5799 = vmul.f32 %v5770, %v5790
      %v5800 = vmul.f32 %v5771, %v5791
      %v5801 = vmul.f32 %v5772, %v5788
      %5807 = vrot.lane.b32.xlu0 %v5797, 57
      %v5808 = vpop.permute.xlu0 %5807
      %5809 = vrot.lane.b32.xlu0 %v5798, 57
      %v5810 = vpop.permute.xlu0 %5809
      %5811 = vrot.lane.b32.xlu0 %v5799, 57
      %v5812 = vpop.permute.xlu0 %5811
      %5813 = vrot.lane.b32.xlu0 %v5800, 57
      %v5814 = vpop.permute.xlu0 %5813
      %5815 = vrot.lane.b32.xlu0 %v5801, 57
      %v5816 = vpop.permute.xlu0 %5815
      %v5817 = vsel %vm478, %v5808, %v5810
      %v5818 = vsel %vm478, %v5810, %v5812
      %v5819 = vsel %vm478, %v5812, %v5814
      %v5820 = vsel %vm478, %v5814, %v5816
      %5825 = vst [vmem:[#allocation2 + $0x300] sm:$0xff] %v5817
      %5826 = vst [vmem:[#allocation2 + $0x308] sm:$0xff] %v5818
      %5827 = vst [vmem:[#allocation2 + $0x310] sm:$0xff] %v5819
      %5828 = vst [vmem:[#allocation2 + $0x318] sm:$0xff] %v5820
      %v5829 = vld [vmem:[#allocation3 + $0x8] sm:$0xff]
      %v5830 = vld [vmem:[#allocation3 + $0x10] sm:$0xff]
      %v5831 = vld [vmem:[#allocation3 + $0x18] sm:$0xff]
      %v5832 = vld [vmem:[#allocation3 + $0x20] sm:$0xff]
      %v5833 = vld [vmem:[#allocation3 + $0x28] sm:$0xff]
      %v5834 = vld [vmem:[%s3 + $0x320] sm:$0xff]
      %v5835 = vld [vmem:[%s3 + $0x328] sm:$0xff]
      %v5836 = vld [vmem:[%s3 + $0x330] sm:$0xff]
      %v5837 = vld [vmem:[%s3 + $0x338] sm:$0xff]
      %5842 = vrot.lane.b32.xlu0 %v5834, 72
      %v5843 = vpop.permute.xlu0 %5842
      %5844 = vrot.lane.b32.xlu0 %v5835, 72
      %v5845 = vpop.permute.xlu0 %5844
      %5846 = vrot.lane.b32.xlu0 %v5836, 72
      %v5847 = vpop.permute.xlu0 %5846
      %5848 = vrot.lane.b32.xlu0 %v5837, 72
      %v5849 = vpop.permute.xlu0 %5848
      %v5850 = vsel %vm444, %v5843, %v5845
      %v5851 = vsel %vm444, %v5845, %v5847
      %v5852 = vsel %vm444, %v5847, %v5849
      %v5858 = vmul.f32 %v5829, %v5843
      %v5859 = vmul.f32 %v5830, %v5850
      %v5860 = vmul.f32 %v5831, %v5851
      %v5861 = vmul.f32 %v5832, %v5852
      %v5862 = vmul.f32 %v5833, %v5849
      %5868 = vrot.lane.b32.xlu0 %v5858, 56
      %v5869 = vpop.permute.xlu0 %5868
      %5870 = vrot.lane.b32.xlu0 %v5859, 56
      %v5871 = vpop.permute.xlu0 %5870
      %5872 = vrot.lane.b32.xlu0 %v5860, 56
      %v5873 = vpop.permute.xlu0 %5872
      %5874 = vrot.lane.b32.xlu0 %v5861, 56
      %v5875 = vpop.permute.xlu0 %5874
      %5876 = vrot.lane.b32.xlu0 %v5862, 56
      %v5877 = vpop.permute.xlu0 %5876
      %v5878 = vsel %vm415, %v5869, %v5871
      %v5879 = vsel %vm415, %v5871, %v5873
      %v5880 = vsel %vm415, %v5873, %v5875
      %v5881 = vsel %vm415, %v5875, %v5877
      %5886 = vst [vmem:[#allocation2 + $0x320] sm:$0xff] %v5878
      %5887 = vst [vmem:[#allocation2 + $0x328] sm:$0xff] %v5879
      %5888 = vst [vmem:[#allocation2 + $0x330] sm:$0xff] %v5880
      %5889 = vst [vmem:[#allocation2 + $0x338] sm:$0xff] %v5881
      %v5890 = vld [vmem:[#allocation3 + $0x8] sm:$0xff]
      %v5891 = vld [vmem:[#allocation3 + $0x10] sm:$0xff]
      %v5892 = vld [vmem:[#allocation3 + $0x18] sm:$0xff]
      %v5893 = vld [vmem:[#allocation3 + $0x20] sm:$0xff]
      %v5894 = vld [vmem:[#allocation3 + $0x28] sm:$0xff]
      %v5895 = vld [vmem:[%s3 + $0x340] sm:$0xff]
      %v5896 = vld [vmem:[%s3 + $0x348] sm:$0xff]
      %v5897 = vld [vmem:[%s3 + $0x350] sm:$0xff]
      %v5898 = vld [vmem:[%s3 + $0x358] sm:$0xff]
      %5903 = vrot.lane.b32.xlu0 %v5895, 73
      %v5904 = vpop.permute.xlu0 %5903
      %5905 = vrot.lane.b32.xlu0 %v5896, 73
      %v5906 = vpop.permute.xlu0 %5905
      %5907 = vrot.lane.b32.xlu0 %v5897, 73
      %v5908 = vpop.permute.xlu0 %5907
      %5909 = vrot.lane.b32.xlu0 %v5898, 73
      %v5910 = vpop.permute.xlu0 %5909
      %v5911 = vsel %vm381, %v5904, %v5906
      %v5912 = vsel %vm381, %v5906, %v5908
      %v5913 = vsel %vm381, %v5908, %v5910
      %v5919 = vmul.f32 %v5890, %v5904
      %v5920 = vmul.f32 %v5891, %v5911
      %v5921 = vmul.f32 %v5892, %v5912
      %v5922 = vmul.f32 %v5893, %v5913
      %v5923 = vmul.f32 %v5894, %v5910
      %5929 = vrot.lane.b32.xlu0 %v5919, 55
      %v5930 = vpop.permute.xlu0 %5929
      %5931 = vrot.lane.b32.xlu0 %v5920, 55
      %v5932 = vpop.permute.xlu0 %5931
      %5933 = vrot.lane.b32.xlu0 %v5921, 55
      %v5934 = vpop.permute.xlu0 %5933
      %5935 = vrot.lane.b32.xlu0 %v5922, 55
      %v5936 = vpop.permute.xlu0 %5935
      %5937 = vrot.lane.b32.xlu0 %v5923, 55
      %v5938 = vpop.permute.xlu0 %5937
      %v5939 = vsel %vm352, %v5930, %v5932
      %v5940 = vsel %vm352, %v5932, %v5934
      %v5941 = vsel %vm352, %v5934, %v5936
      %v5942 = vsel %vm352, %v5936, %v5938
      %5947 = vst [vmem:[#allocation2 + $0x340] sm:$0xff] %v5939
      %5948 = vst [vmem:[#allocation2 + $0x348] sm:$0xff] %v5940
      %5949 = vst [vmem:[#allocation2 + $0x350] sm:$0xff] %v5941
      %5950 = vst [vmem:[#allocation2 + $0x358] sm:$0xff] %v5942
      %v5951 = vld [vmem:[#allocation2] sm:$0xff]
      %v5952 = vld [vmem:[#allocation2 + $0x8] sm:$0xff]
      %v5953 = vld [vmem:[#allocation2 + $0x10] sm:$0xff]
      %v5954 = vld [vmem:[#allocation2 + $0x18] sm:$0xff]
      %v5955 = vld [vmem:[#allocation2 + $0x20] sm:$0xff]
      %v5956 = vld [vmem:[#allocation2 + $0x28] sm:$0xff]
      %v5957 = vld [vmem:[#allocation2 + $0x30] sm:$0xff]
      %v5958 = vld [vmem:[#allocation2 + $0x38] sm:$0xff]
      %v5959 = vld [vmem:[#allocation2 + $0x40] sm:$0xff]
      %v5960 = vld [vmem:[#allocation2 + $0x48] sm:$0xff]
      %v5961 = vld [vmem:[#allocation2 + $0x50] sm:$0xff]
      %v5962 = vld [vmem:[#allocation2 + $0x58] sm:$0xff]
      %v5963 = vld [vmem:[#allocation2 + $0x60] sm:$0xff]
      %v5964 = vld [vmem:[#allocation2 + $0x68] sm:$0xff]
      %v5965 = vld [vmem:[#allocation2 + $0x70] sm:$0xff]
      %v5966 = vld [vmem:[#allocation2 + $0x78] sm:$0xff]
      %v5967 = vld [vmem:[#allocation2 + $0x80] sm:$0xff]
      %v5968 = vld [vmem:[#allocation2 + $0x88] sm:$0xff]
      %v5969 = vld [vmem:[#allocation2 + $0x90] sm:$0xff]
      %v5970 = vld [vmem:[#allocation2 + $0x98] sm:$0xff]
      %v5971 = vld [vmem:[#allocation2 + $0xa0] sm:$0xff]
      %v5972 = vld [vmem:[#allocation2 + $0xa8] sm:$0xff]
      %v5973 = vld [vmem:[#allocation2 + $0xb0] sm:$0xff]
      %v5974 = vld [vmem:[#allocation2 + $0xb8] sm:$0xff]
      %v5975 = vld [vmem:[#allocation2 + $0xc0] sm:$0xff]
      %v5976 = vld [vmem:[#allocation2 + $0xc8] sm:$0xff]
      %v5977 = vld [vmem:[#allocation2 + $0xd0] sm:$0xff]
      %v5978 = vld [vmem:[#allocation2 + $0xd8] sm:$0xff]
      %v5979 = vld [vmem:[#allocation2 + $0xe0] sm:$0xff]
      %v5980 = vld [vmem:[#allocation2 + $0xe8] sm:$0xff]
      %v5981 = vld [vmem:[#allocation2 + $0xf0] sm:$0xff]
      %v5982 = vld [vmem:[#allocation2 + $0xf8] sm:$0xff]
      %v5983 = vld [vmem:[#allocation2 + $0x100] sm:$0xff]
      %v5984 = vld [vmem:[#allocation2 + $0x108] sm:$0xff]
      %v5985 = vld [vmem:[#allocation2 + $0x110] sm:$0xff]
      %v5986 = vld [vmem:[#allocation2 + $0x118] sm:$0xff]
      %v5987 = vld [vmem:[#allocation2 + $0x120] sm:$0xff]
      %v5988 = vld [vmem:[#allocation2 + $0x128] sm:$0xff]
      %v5989 = vld [vmem:[#allocation2 + $0x130] sm:$0xff]
      %v5990 = vld [vmem:[#allocation2 + $0x138] sm:$0xff]
      %v5991 = vld [vmem:[#allocation2 + $0x140] sm:$0xff]
      %v5992 = vld [vmem:[#allocation2 + $0x148] sm:$0xff]
      %v5993 = vld [vmem:[#allocation2 + $0x150] sm:$0xff]
      %v5994 = vld [vmem:[#allocation2 + $0x158] sm:$0xff]
      %v5995 = vld [vmem:[#allocation2 + $0x160] sm:$0xff]
      %v5996 = vld [vmem:[#allocation2 + $0x168] sm:$0xff]
      %v5997 = vld [vmem:[#allocation2 + $0x170] sm:$0xff]
      %v5998 = vld [vmem:[#allocation2 + $0x178] sm:$0xff]
      %v5999 = vld [vmem:[#allocation2 + $0x180] sm:$0xff]
      %v6000 = vld [vmem:[#allocation2 + $0x188] sm:$0xff]
      %v6001 = vld [vmem:[#allocation2 + $0x190] sm:$0xff]
      %v6002 = vld [vmem:[#allocation2 + $0x198] sm:$0xff]
      %v6003 = vld [vmem:[#allocation2 + $0x1a0] sm:$0xff]
      %v6004 = vld [vmem:[#allocation2 + $0x1a8] sm:$0xff]
      %v6005 = vld [vmem:[#allocation2 + $0x1b0] sm:$0xff]
      %v6006 = vld [vmem:[#allocation2 + $0x1b8] sm:$0xff]
      %v6007 = vld [vmem:[#allocation2 + $0x1c0] sm:$0xff]
      %v6008 = vld [vmem:[#allocation2 + $0x1c8] sm:$0xff]
      %v6009 = vld [vmem:[#allocation2 + $0x1d0] sm:$0xff]
      %v6010 = vld [vmem:[#allocation2 + $0x1d8] sm:$0xff]
      %v6011 = vld [vmem:[#allocation2 + $0x1e0] sm:$0xff]
      %v6012 = vld [vmem:[#allocation2 + $0x1e8] sm:$0xff]
      %v6013 = vld [vmem:[#allocation2 + $0x1f0] sm:$0xff]
      %v6014 = vld [vmem:[#allocation2 + $0x1f8] sm:$0xff]
      %v6015 = vld [vmem:[#allocation2 + $0x200] sm:$0xff]
      %v6016 = vld [vmem:[#allocation2 + $0x208] sm:$0xff]
      %v6017 = vld [vmem:[#allocation2 + $0x210] sm:$0xff]
      %v6018 = vld [vmem:[#allocation2 + $0x218] sm:$0xff]
      %v6019 = vld [vmem:[#allocation2 + $0x220] sm:$0xff]
      %v6020 = vld [vmem:[#allocation2 + $0x228] sm:$0xff]
      %v6021 = vld [vmem:[#allocation2 + $0x230] sm:$0xff]
      %v6022 = vld [vmem:[#allocation2 + $0x238] sm:$0xff]
      %v6023 = vld [vmem:[#allocation2 + $0x240] sm:$0xff]
      %v6024 = vld [vmem:[#allocation2 + $0x248] sm:$0xff]
      %v6025 = vld [vmem:[#allocation2 + $0x250] sm:$0xff]
      %v6026 = vld [vmem:[#allocation2 + $0x258] sm:$0xff]
      %v6027 = vld [vmem:[#allocation2 + $0x260] sm:$0xff]
      %v6028 = vld [vmem:[#allocation2 + $0x268] sm:$0xff]
      %v6029 = vld [vmem:[#allocation2 + $0x270] sm:$0xff]
      %v6030 = vld [vmem:[#allocation2 + $0x278] sm:$0xff]
      %v6031 = vld [vmem:[#allocation2 + $0x280] sm:$0xff]
      %v6032 = vld [vmem:[#allocation2 + $0x288] sm:$0xff]
      %v6033 = vld [vmem:[#allocation2 + $0x290] sm:$0xff]
      %v6034 = vld [vmem:[#allocation2 + $0x298] sm:$0xff]
      %v6035 = vld [vmem:[#allocation2 + $0x2a0] sm:$0xff]
      %v6036 = vld [vmem:[#allocation2 + $0x2a8] sm:$0xff]
      %v6037 = vld [vmem:[#allocation2 + $0x2b0] sm:$0xff]
      %v6038 = vld [vmem:[#allocation2 + $0x2b8] sm:$0xff]
      %v6039 = vld [vmem:[#allocation2 + $0x2c0] sm:$0xff]
      %v6040 = vld [vmem:[#allocation2 + $0x2c8] sm:$0xff]
      %v6041 = vld [vmem:[#allocation2 + $0x2d0] sm:$0xff]
      %v6042 = vld [vmem:[#allocation2 + $0x2d8] sm:$0xff]
      %v6043 = vld [vmem:[#allocation2 + $0x2e0] sm:$0xff]
      %v6044 = vld [vmem:[#allocation2 + $0x2e8] sm:$0xff]
      %v6045 = vld [vmem:[#allocation2 + $0x2f0] sm:$0xff]
      %v6046 = vld [vmem:[#allocation2 + $0x2f8] sm:$0xff]
      %v6047 = vld [vmem:[#allocation2 + $0x300] sm:$0xff]
      %v6048 = vld [vmem:[#allocation2 + $0x308] sm:$0xff]
      %v6049 = vld [vmem:[#allocation2 + $0x310] sm:$0xff]
      %v6050 = vld [vmem:[#allocation2 + $0x318] sm:$0xff]
      %v6051 = vld [vmem:[#allocation2 + $0x320] sm:$0xff]
      %v6052 = vld [vmem:[#allocation2 + $0x328] sm:$0xff]
      %v6053 = vld [vmem:[#allocation2 + $0x330] sm:$0xff]
      %v6054 = vld [vmem:[#allocation2 + $0x338] sm:$0xff]
      %v6055 = vld [vmem:[#allocation2 + $0x340] sm:$0xff]
      %v6056 = vld [vmem:[#allocation2 + $0x348] sm:$0xff]
      %v6057 = vld [vmem:[#allocation2 + $0x350] sm:$0xff]
      %v6058 = vld [vmem:[#allocation2 + $0x358] sm:$0xff]
      %v6059 = vld [vmem:[#allocation2 + $0x360] sm:$0xff]
      %v6060 = vld [vmem:[#allocation2 + $0x368] sm:$0xff]
      %v6061 = vld [vmem:[#allocation2 + $0x370] sm:$0xff]
      %v6062 = vld [vmem:[#allocation2 + $0x378] sm:$0xff]
      %v6063 = vld [vmem:[#allocation2 + $0x380] sm:$0xff]
      %v6064 = vld [vmem:[#allocation2 + $0x388] sm:$0xff]
      %v6065 = vld [vmem:[#allocation2 + $0x390] sm:$0xff]
      %v6066 = vld [vmem:[#allocation2 + $0x398] sm:$0xff]
      %v6067 = vld [vmem:[#allocation2 + $0x3a0] sm:$0xff]
      %v6068 = vld [vmem:[#allocation2 + $0x3a8] sm:$0xff]
      %v6069 = vld [vmem:[#allocation2 + $0x3b0] sm:$0xff]
      %v6070 = vld [vmem:[#allocation2 + $0x3b8] sm:$0xff]
      %v6071 = vld [vmem:[#allocation2 + $0x3c0] sm:$0xff]
      %v6072 = vld [vmem:[#allocation2 + $0x3c8] sm:$0xff]
      %v6073 = vld [vmem:[#allocation2 + $0x3d0] sm:$0xff]
      %v6074 = vld [vmem:[#allocation2 + $0x3d8] sm:$0xff]
      %v6075 = vld [vmem:[#allocation2 + $0x3e0] sm:$0xff]
      %v6076 = vld [vmem:[#allocation2 + $0x3e8] sm:$0xff]
      %v6077 = vld [vmem:[#allocation2 + $0x3f0] sm:$0xff]
      %v6078 = vld [vmem:[#allocation2 + $0x3f8] sm:$0xff]
      %6079 = vmatpush.msra.mxu0 %v6011
      %6080 = vmatpush.msra.mxu0 %v6007
      %6081 = vmatpush.msra.mxu0 %v6003
      %6082 = vmatpush.msra.mxu0 %v5999
      %6083 = vmatpush.msra.mxu0 %v5995
      %6084 = vmatpush.msra.mxu0 %v5991
      %6085 = vmatpush.msra.mxu0 %v5987
      %6086 = vmatpush.msra.mxu0 %v5983
      %6087 = vmatpush.msra.mxu0 %v5979
      %6088 = vmatpush.msra.mxu0 %v5975
      %6089 = vmatpush.msra.mxu0 %v5971
      %6090 = vmatpush.msra.mxu0 %v5967
      %6091 = vmatpush.msra.mxu0 %v5963
      %6092 = vmatpush.msra.mxu0 %v5959
      %6093 = vmatpush.msra.mxu0 %v5955
      %6094 = vmatpush.msra.mxu0 %v5951
      %6095 = vmatmul.f32.gmra.mxu0 %v255
      %v6096 = vpop.f32.mrf.mxu0
      %v6097 = vadd.f32 0.0, %v6096
      %6098 = vdwg.mxu0
      %6099 = vmatpush.msra.mxu0 %v6075
      %6100 = vmatpush.msra.mxu0 %v6071
      %6101 = vmatpush.msra.mxu0 %v6067
      %6102 = vmatpush.msra.mxu0 %v6063
      %6103 = vmatpush.msra.mxu0 %v6059
      %6104 = vmatpush.msra.mxu0 %v6055
      %6105 = vmatpush.msra.mxu0 %v6051
      %6106 = vmatpush.msra.mxu0 %v6047
      %6107 = vmatpush.msra.mxu0 %v6043
      %6108 = vmatpush.msra.mxu0 %v6039
      %6109 = vmatpush.msra.mxu0 %v6035
      %6110 = vmatpush.msra.mxu0 %v6031
      %6111 = vmatpush.msra.mxu0 %v6027
      %6112 = vmatpush.msra.mxu0 %v6023
      %6113 = vmatpush.msra.mxu0 %v6019
      %6114 = vmatpush.msra.mxu0 %v6015
      %6115 = vmatmul.f32.gmra.mxu0 %v256
      %v6116 = vpop.f32.mrf.mxu0
      %v6117 = vadd.f32 %v6097, %v6116
      %6118 = vdwg.mxu0
      %6119 = vmatpush.msra.mxu0 %v6012
      %6120 = vmatpush.msra.mxu0 %v6008
      %6121 = vmatpush.msra.mxu0 %v6004
      %6122 = vmatpush.msra.mxu0 %v6000
      %6123 = vmatpush.msra.mxu0 %v5996
      %6124 = vmatpush.msra.mxu0 %v5992
      %6125 = vmatpush.msra.mxu0 %v5988
      %6126 = vmatpush.msra.mxu0 %v5984
      %6127 = vmatpush.msra.mxu0 %v5980
      %6128 = vmatpush.msra.mxu0 %v5976
      %6129 = vmatpush.msra.mxu0 %v5972
      %6130 = vmatpush.msra.mxu0 %v5968
      %6131 = vmatpush.msra.mxu0 %v5964
      %6132 = vmatpush.msra.mxu0 %v5960
      %6133 = vmatpush.msra.mxu0 %v5956
      %6134 = vmatpush.msra.mxu0 %v5952
      %6135 = vmatmul.f32.gmra.mxu0 %v255
      %v6136 = vpop.f32.mrf.mxu0
      %v6137 = vadd.f32 0.0, %v6136
      %6138 = vdwg.mxu0
      %6139 = vmatpush.msra.mxu0 %v6076
      %6140 = vmatpush.msra.mxu0 %v6072
      %6141 = vmatpush.msra.mxu0 %v6068
      %6142 = vmatpush.msra.mxu0 %v6064
      %6143 = vmatpush.msra.mxu0 %v6060
      %6144 = vmatpush.msra.mxu0 %v6056
      %6145 = vmatpush.msra.mxu0 %v6052
      %6146 = vmatpush.msra.mxu0 %v6048
      %6147 = vmatpush.msra.mxu0 %v6044
      %6148 = vmatpush.msra.mxu0 %v6040
      %6149 = vmatpush.msra.mxu0 %v6036
      %6150 = vmatpush.msra.mxu0 %v6032
      %6151 = vmatpush.msra.mxu0 %v6028
      %6152 = vmatpush.msra.mxu0 %v6024
      %6153 = vmatpush.msra.mxu0 %v6020
      %6154 = vmatpush.msra.mxu0 %v6016
      %6155 = vmatmul.f32.gmra.mxu0 %v256
      %v6156 = vpop.f32.mrf.mxu0
      %v6157 = vadd.f32 %v6137, %v6156
      %6158 = vdwg.mxu0
      %6159 = vmatpush.msra.mxu0 %v6013
      %6160 = vmatpush.msra.mxu0 %v6009
      %6161 = vmatpush.msra.mxu0 %v6005
      %6162 = vmatpush.msra.mxu0 %v6001
      %6163 = vmatpush.msra.mxu0 %v5997
      %6164 = vmatpush.msra.mxu0 %v5993
      %6165 = vmatpush.msra.mxu0 %v5989
      %6166 = vmatpush.msra.mxu0 %v5985
      %6167 = vmatpush.msra.mxu0 %v5981
      %6168 = vmatpush.msra.mxu0 %v5977
      %6169 = vmatpush.msra.mxu0 %v5973
      %6170 = vmatpush.msra.mxu0 %v5969
      %6171 = vmatpush.msra.mxu0 %v5965
      %6172 = vmatpush.msra.mxu0 %v5961
      %6173 = vmatpush.msra.mxu0 %v5957
      %6174 = vmatpush.msra.mxu0 %v5953
      %6175 = vmatmul.f32.gmra.mxu0 %v255
      %v6176 = vpop.f32.mrf.mxu0
      %v6177 = vadd.f32 0.0, %v6176
      %6178 = vdwg.mxu0
      %6179 = vmatpush.msra.mxu0 %v6077
      %6180 = vmatpush.msra.mxu0 %v6073
      %6181 = vmatpush.msra.mxu0 %v6069
      %6182 = vmatpush.msra.mxu0 %v6065
      %6183 = vmatpush.msra.mxu0 %v6061
      %6184 = vmatpush.msra.mxu0 %v6057
      %6185 = vmatpush.msra.mxu0 %v6053
      %6186 = vmatpush.msra.mxu0 %v6049
      %6187 = vmatpush.msra.mxu0 %v6045
      %6188 = vmatpush.msra.mxu0 %v6041
      %6189 = vmatpush.msra.mxu0 %v6037
      %6190 = vmatpush.msra.mxu0 %v6033
      %6191 = vmatpush.msra.mxu0 %v6029
      %6192 = vmatpush.msra.mxu0 %v6025
      %6193 = vmatpush.msra.mxu0 %v6021
      %6194 = vmatpush.msra.mxu0 %v6017
      %6195 = vmatmul.f32.gmra.mxu0 %v256
      %v6196 = vpop.f32.mrf.mxu0
      %v6197 = vadd.f32 %v6177, %v6196
      %6198 = vdwg.mxu0
      %6199 = vmatpush.msra.mxu0 %v6014
      %6200 = vmatpush.msra.mxu0 %v6010
      %6201 = vmatpush.msra.mxu0 %v6006
      %6202 = vmatpush.msra.mxu0 %v6002
      %6203 = vmatpush.msra.mxu0 %v5998
      %6204 = vmatpush.msra.mxu0 %v5994
      %6205 = vmatpush.msra.mxu0 %v5990
      %6206 = vmatpush.msra.mxu0 %v5986
      %6207 = vmatpush.msra.mxu0 %v5982
      %6208 = vmatpush.msra.mxu0 %v5978
      %6209 = vmatpush.msra.mxu0 %v5974
      %6210 = vmatpush.msra.mxu0 %v5970
      %6211 = vmatpush.msra.mxu0 %v5966
      %6212 = vmatpush.msra.mxu0 %v5962
      %6213 = vmatpush.msra.mxu0 %v5958
      %6214 = vmatpush.msra.mxu0 %v5954
      %6215 = vmatmul.f32.gmra.mxu0 %v255
      %v6216 = vpop.f32.mrf.mxu0
      %v6217 = vadd.f32 0.0, %v6216
      %6218 = vdwg.mxu0
      %6219 = vmatpush.msra.mxu0 %v6078
      %6220 = vmatpush.msra.mxu0 %v6074
      %6221 = vmatpush.msra.mxu0 %v6070
      %6222 = vmatpush.msra.mxu0 %v6066
      %6223 = vmatpush.msra.mxu0 %v6062
      %6224 = vmatpush.msra.mxu0 %v6058
      %6225 = vmatpush.msra.mxu0 %v6054
      %6226 = vmatpush.msra.mxu0 %v6050
      %6227 = vmatpush.msra.mxu0 %v6046
      %6228 = vmatpush.msra.mxu0 %v6042
      %6229 = vmatpush.msra.mxu0 %v6038
      %6230 = vmatpush.msra.mxu0 %v6034
      %6231 = vmatpush.msra.mxu0 %v6030
      %6232 = vmatpush.msra.mxu0 %v6026
      %6233 = vmatpush.msra.mxu0 %v6022
      %6234 = vmatpush.msra.mxu0 %v6018
      %6235 = vmatmul.f32.gmra.mxu0 %v256
      %v6236 = vpop.f32.mrf.mxu0
      %v6237 = vadd.f32 %v6217, %v6236
      %6238 = vdwg.mxu0
      %6239 = vmatpush.msra.mxu0 %v274
      %6240 = vmatpush.msra.mxu0 %v273
      %6241 = vmatpush.msra.mxu0 %v272
      %6242 = vmatpush.msra.mxu0 %v271
      %6243 = vmatpush.msra.mxu0 %v270
      %6244 = vmatpush.msra.mxu0 %v269
      %6245 = vmatpush.msra.mxu0 %v268
      %6246 = vmatpush.msra.mxu0 %v267
      %6247 = vmatpush.msra.mxu0 %v266
      %6248 = vmatpush.msra.mxu0 %v265
      %6249 = vmatpush.msra.mxu0 %v264
      %6250 = vmatpush.msra.mxu0 %v263
      %6251 = vmatpush.msra.mxu0 %v262
      %6252 = vmatpush.msra.mxu0 %v261
      %6253 = vmatpush.msra.mxu0 %v260
      %6254 = vmatpush.msra.mxu0 %v259
      %6255 = vmatmul.f32.gmra.mxu0 %v6117
      %v6256 = vpop.f32.mrf.mxu0
      %v6257 = vadd.f32 0.0, %v6256
      %6258 = vdwg.mxu0
      %6259 = vmatpush.msra.mxu0 %v290
      %6260 = vmatpush.msra.mxu0 %v289
      %6261 = vmatpush.msra.mxu0 %v288
      %6262 = vmatpush.msra.mxu0 %v287
      %6263 = vmatpush.msra.mxu0 %v286
      %6264 = vmatpush.msra.mxu0 %v285
      %6265 = vmatpush.msra.mxu0 %v284
      %6266 = vmatpush.msra.mxu0 %v283
      %6267 = vmatpush.msra.mxu0 %v282
      %6268 = vmatpush.msra.mxu0 %v281
      %6269 = vmatpush.msra.mxu0 %v280
      %6270 = vmatpush.msra.mxu0 %v279
      %6271 = vmatpush.msra.mxu0 %v278
      %6272 = vmatpush.msra.mxu0 %v277
      %6273 = vmatpush.msra.mxu0 %v276
      %6274 = vmatpush.msra.mxu0 %v275
      %6275 = vmatmul.f32.gmra.mxu0 %v6157
      %v6276 = vpop.f32.mrf.mxu0
      %v6277 = vadd.f32 %v6257, %v6276
      %6278 = vdwg.mxu0
      %6279 = vmatpush.msra.mxu0 %v306
      %6280 = vmatpush.msra.mxu0 %v305
      %6281 = vmatpush.msra.mxu0 %v304
      %6282 = vmatpush.msra.mxu0 %v303
      %6283 = vmatpush.msra.mxu0 %v302
      %6284 = vmatpush.msra.mxu0 %v301
      %6285 = vmatpush.msra.mxu0 %v300
      %6286 = vmatpush.msra.mxu0 %v299
      %6287 = vmatpush.msra.mxu0 %v298
      %6288 = vmatpush.msra.mxu0 %v297
      %6289 = vmatpush.msra.mxu0 %v296
      %6290 = vmatpush.msra.mxu0 %v295
      %6291 = vmatpush.msra.mxu0 %v294
      %6292 = vmatpush.msra.mxu0 %v293
      %6293 = vmatpush.msra.mxu0 %v292
      %6294 = vmatpush.msra.mxu0 %v291
      %6295 = vmatmul.f32.gmra.mxu0 %v6197
      %v6296 = vpop.f32.mrf.mxu0
      %v6297 = vadd.f32 %v6277, %v6296
      %6298 = vdwg.mxu0
      %6299 = vmatpush.msra.mxu0 %v322
      %6300 = vmatpush.msra.mxu0 %v321
      %6301 = vmatpush.msra.mxu0 %v320
      %6302 = vmatpush.msra.mxu0 %v319
      %6303 = vmatpush.msra.mxu0 %v318
      %6304 = vmatpush.msra.mxu0 %v317
      %6305 = vmatpush.msra.mxu0 %v316
      %6306 = vmatpush.msra.mxu0 %v315
      %6307 = vmatpush.msra.mxu0 %v314
      %6308 = vmatpush.msra.mxu0 %v313
      %6309 = vmatpush.msra.mxu0 %v312
      %6310 = vmatpush.msra.mxu0 %v311
      %6311 = vmatpush.msra.mxu0 %v310
      %6312 = vmatpush.msra.mxu0 %v309
      %6313 = vmatpush.msra.mxu0 %v308
      %6314 = vmatpush.msra.mxu0 %v307
      %6315 = vmatmul.f32.gmra.mxu0 %v6237
      %v6316 = vpop.f32.mrf.mxu0
      %v6317 = vadd.f32 %v6297, %v6316
      %6318 = vdwg.mxu0
      %v6319 = vmul.f32 %v6117, %v6117
      %v6320 = vmul.f32 %v6157, %v6157
      %v6321 = vmul.f32 %v6197, %v6197
      %v6322 = vmul.f32 %v6237, %v6237
      %6323 = vmatpush.msra.mxu0 %v274
      %6324 = vmatpush.msra.mxu0 %v273
      %6325 = vmatpush.msra.mxu0 %v272
      %6326 = vmatpush.msra.mxu0 %v271
      %6327 = vmatpush.msra.mxu0 %v270
      %6328 = vmatpush.msra.mxu0 %v269
      %6329 = vmatpush.msra.mxu0 %v268
      %6330 = vmatpush.msra.mxu0 %v267
      %6331 = vmatpush.msra.mxu0 %v266
      %6332 = vmatpush.msra.mxu0 %v265
      %6333 = vmatpush.msra.mxu0 %v264
      %6334 = vmatpush.msra.mxu0 %v263
      %6335 = vmatpush.msra.mxu0 %v262
      %6336 = vmatpush.msra.mxu0 %v261
      %6337 = vmatpush.msra.mxu0 %v260
      %6338 = vmatpush.msra.mxu0 %v259
      %6339 = vmatmul.f32.gmra.mxu0 %v6319
      %v6340 = vpop.f32.mrf.mxu0
      %v6341 = vadd.f32 0.0, %v6340
      %6342 = vdwg.mxu0
      %6343 = vmatpush.msra.mxu0 %v290
      %6344 = vmatpush.msra.mxu0 %v289
      %6345 = vmatpush.msra.mxu0 %v288
      %6346 = vmatpush.msra.mxu0 %v287
      %6347 = vmatpush.msra.mxu0 %v286
      %6348 = vmatpush.msra.mxu0 %v285
      %6349 = vmatpush.msra.mxu0 %v284
      %6350 = vmatpush.msra.mxu0 %v283
      %6351 = vmatpush.msra.mxu0 %v282
      %6352 = vmatpush.msra.mxu0 %v281
      %6353 = vmatpush.msra.mxu0 %v280
      %6354 = vmatpush.msra.mxu0 %v279
      %6355 = vmatpush.msra.mxu0 %v278
      %6356 = vmatpush.msra.mxu0 %v277
      %6357 = vmatpush.msra.mxu0 %v276
      %6358 = vmatpush.msra.mxu0 %v275
      %6359 = vmatmul.f32.gmra.mxu0 %v6320
      %v6360 = vpop.f32.mrf.mxu0
      %v6361 = vadd.f32 %v6341, %v6360
      %6362 = vdwg.mxu0
      %6363 = vmatpush.msra.mxu0 %v306
      %6364 = vmatpush.msra.mxu0 %v305
      %6365 = vmatpush.msra.mxu0 %v304
      %6366 = vmatpush.msra.mxu0 %v303
      %6367 = vmatpush.msra.mxu0 %v302
      %6368 = vmatpush.msra.mxu0 %v301
      %6369 = vmatpush.msra.mxu0 %v300
      %6370 = vmatpush.msra.mxu0 %v299
      %6371 = vmatpush.msra.mxu0 %v298
      %6372 = vmatpush.msra.mxu0 %v297
      %6373 = vmatpush.msra.mxu0 %v296
      %6374 = vmatpush.msra.mxu0 %v295
      %6375 = vmatpush.msra.mxu0 %v294
      %6376 = vmatpush.msra.mxu0 %v293
      %6377 = vmatpush.msra.mxu0 %v292
      %6378 = vmatpush.msra.mxu0 %v291
      %6379 = vmatmul.f32.gmra.mxu0 %v6321
      %v6380 = vpop.f32.mrf.mxu0
      %v6381 = vadd.f32 %v6361, %v6380
      %6382 = vdwg.mxu0
      %6383 = vmatpush.msra.mxu0 %v322
      %6384 = vmatpush.msra.mxu0 %v321
      %6385 = vmatpush.msra.mxu0 %v320
      %6386 = vmatpush.msra.mxu0 %v319
      %6387 = vmatpush.msra.mxu0 %v318
      %6388 = vmatpush.msra.mxu0 %v317
      %6389 = vmatpush.msra.mxu0 %v316
      %6390 = vmatpush.msra.mxu0 %v315
      %6391 = vmatpush.msra.mxu0 %v314
      %6392 = vmatpush.msra.mxu0 %v313
      %6393 = vmatpush.msra.mxu0 %v312
      %6394 = vmatpush.msra.mxu0 %v311
      %6395 = vmatpush.msra.mxu0 %v310
      %6396 = vmatpush.msra.mxu0 %v309
      %6397 = vmatpush.msra.mxu0 %v308
      %6398 = vmatpush.msra.mxu0 %v307
      %6399 = vmatmul.f32.gmra.mxu0 %v6322
      %v6400 = vpop.f32.mrf.mxu0
      %v6401 = vadd.f32 %v6381, %v6400
      %6402 = vdwg.mxu0
      %v6403 = vmul.f32 %v6317, 0.001953125
      %v6404 = vmul.f32 %v6401, 0.001953125
      %v6405 = vmul.f32 %v6403, %v6403
      %v6406 = vsub.f32 %v6404, %v6405
      %6408 = vset.pattern.permute.xlu0 0
      %6409 = vperm.xlu0 %6408, %v6403
      %v6410 = vpop.permute.xlu0 %6409
      %v6412 = vsub.f32 %v6117, %v6410
      %v6413 = vsub.f32 %v6157, %v6410
      %v6414 = vsub.f32 %v6197, %v6410
      %v6415 = vsub.f32 %v6237, %v6410
      %v6416 = vadd.f32 %v6406, 1e-05
      %v6417 = vrsqrt.pop %v6416
      %v6418 = vmul.f32 %v6417, %v6416
      %v6419 = vmul.f32 %v6418, %v6417
      %v6420 = vmul.f32 0.5, %v6419
      %v6421 = vsub.f32 1.5, %v6420
      %v6422 = vmul.f32 %v6417, %v6421
      %vm6423 = vweird.f32 %v6416
      %vm6424 = vweird.f32 %v6417
      %vm6425 = vmor %vm6423, %vm6424
      %v6426 = vsel %vm6425, %v6417, %v6422
      %6428 = vset.pattern.permute.xlu0 0
      %6429 = vperm.xlu0 %6428, %v6426
      %v6430 = vpop.permute.xlu0 %6429
      %v6432 = vmul.f32 %v6412, %v6430
      %v6433 = vmul.f32 %v6413, %v6430
      %v6434 = vmul.f32 %v6414, %v6430
      %v6435 = vmul.f32 %v6415, %v6430
      %v6436 = vmax.f32 %v6432, 0.0
      %v6437 = vmax.f32 %v6433, 0.0
      %v6438 = vmax.f32 %v6434, 0.0
      %v6439 = vmax.f32 %v6435, 0.0
      %6440 = vst [vmem:[#allocation3 + $0x8] sm:$0xff] %v6436
      %6441 = vst [vmem:[#allocation3 + $0x10] sm:$0xff] %v6437
      %6442 = vst [vmem:[#allocation3 + $0x18] sm:$0xff] %v6438
      %6443 = vst [vmem:[#allocation3 + $0x20] sm:$0xff] %v6439
      %v6444 = vld [vmem:[#allocation3] sm:$0xff]
      %v6445 = vld [vmem:[#allocation3 + $0x8] sm:$0xff]
      %v6446 = vld [vmem:[#allocation3 + $0x10] sm:$0xff]
      %v6447 = vld [vmem:[#allocation3 + $0x18] sm:$0xff]
      %v6448 = vld [vmem:[#allocation3 + $0x20] sm:$0xff]
      %v6449 = vld [vmem:[%s3] sm:$0xff]
      %v6450 = vld [vmem:[%s3 + $0x8] sm:$0xff]
      %v6451 = vld [vmem:[%s3 + $0x10] sm:$0xff]
      %v6452 = vld [vmem:[%s3 + $0x18] sm:$0xff]
      %6457 = vrot.lane.b32.xlu0 %v6449, 55
      %v6458 = vpop.permute.xlu0 %6457
      %6459 = vrot.lane.b32.xlu0 %v6450, 55
      %v6460 = vpop.permute.xlu0 %6459
      %6461 = vrot.lane.b32.xlu0 %v6451, 55
      %v6462 = vpop.permute.xlu0 %6461
      %6463 = vrot.lane.b32.xlu0 %v6452, 55
      %v6464 = vpop.permute.xlu0 %6463
      %v6465 = vsel %vm352, %v6458, %v6460
      %v6466 = vsel %vm352, %v6460, %v6462
      %v6467 = vsel %vm352, %v6462, %v6464
      %v6473 = vmul.f32 %v6444, %v6458
      %v6474 = vmul.f32 %v6445, %v6465
      %v6475 = vmul.f32 %v6446, %v6466
      %v6476 = vmul.f32 %v6447, %v6467
      %v6477 = vmul.f32 %v6448, %v6464
      %6483 = vrot.lane.b32.xlu0 %v6473, 73
      %v6484 = vpop.permute.xlu0 %6483
      %6485 = vrot.lane.b32.xlu0 %v6474, 73
      %v6486 = vpop.permute.xlu0 %6485
      %6487 = vrot.lane.b32.xlu0 %v6475, 73
      %v6488 = vpop.permute.xlu0 %6487
      %6489 = vrot.lane.b32.xlu0 %v6476, 73
      %v6490 = vpop.permute.xlu0 %6489
      %6491 = vrot.lane.b32.xlu0 %v6477, 73
      %v6492 = vpop.permute.xlu0 %6491
      %v6493 = vsel %vm381, %v6484, %v6486
      %v6494 = vsel %vm381, %v6486, %v6488
      %v6495 = vsel %vm381, %v6488, %v6490
      %v6496 = vsel %vm381, %v6490, %v6492
      %6501 = vst [vmem:[#allocation2] sm:$0xff] %v6493
      %6502 = vst [vmem:[#allocation2 + $0x8] sm:$0xff] %v6494
      %6503 = vst [vmem:[#allocation2 + $0x10] sm:$0xff] %v6495
      %6504 = vst [vmem:[#allocation2 + $0x18] sm:$0xff] %v6496
      %v6505 = vld [vmem:[#allocation3] sm:$0xff]
      %v6506 = vld [vmem:[#allocation3 + $0x8] sm:$0xff]
      %v6507 = vld [vmem:[#allocation3 + $0x10] sm:$0xff]
      %v6508 = vld [vmem:[#allocation3 + $0x18] sm:$0xff]
      %v6509 = vld [vmem:[#allocation3 + $0x20] sm:$0xff]
      %v6510 = vld [vmem:[%s3 + $0x20] sm:$0xff]
      %v6511 = vld [vmem:[%s3 + $0x28] sm:$0xff]
      %v6512 = vld [vmem:[%s3 + $0x30] sm:$0xff]
      %v6513 = vld [vmem:[%s3 + $0x38] sm:$0xff]
      %6518 = vrot.lane.b32.xlu0 %v6510, 56
      %v6519 = vpop.permute.xlu0 %6518
      %6520 = vrot.lane.b32.xlu0 %v6511, 56
      %v6521 = vpop.permute.xlu0 %6520
      %6522 = vrot.lane.b32.xlu0 %v6512, 56
      %v6523 = vpop.permute.xlu0 %6522
      %6524 = vrot.lane.b32.xlu0 %v6513, 56
      %v6525 = vpop.permute.xlu0 %6524
      %v6526 = vsel %vm415, %v6519, %v6521
      %v6527 = vsel %vm415, %v6521, %v6523
      %v6528 = vsel %vm415, %v6523, %v6525
      %v6534 = vmul.f32 %v6505, %v6519
      %v6535 = vmul.f32 %v6506, %v6526
      %v6536 = vmul.f32 %v6507, %v6527
      %v6537 = vmul.f32 %v6508, %v6528
      %v6538 = vmul.f32 %v6509, %v6525
      %6544 = vrot.lane.b32.xlu0 %v6534, 72
      %v6545 = vpop.permute.xlu0 %6544
      %6546 = vrot.lane.b32.xlu0 %v6535, 72
      %v6547 = vpop.permute.xlu0 %6546
      %6548 = vrot.lane.b32.xlu0 %v6536, 72
      %v6549 = vpop.permute.xlu0 %6548
      %6550 = vrot.lane.b32.xlu0 %v6537, 72
      %v6551 = vpop.permute.xlu0 %6550
      %6552 = vrot.lane.b32.xlu0 %v6538, 72
      %v6553 = vpop.permute.xlu0 %6552
      %v6554 = vsel %vm444, %v6545, %v6547
      %v6555 = vsel %vm444, %v6547, %v6549
      %v6556 = vsel %vm444, %v6549, %v6551
      %v6557 = vsel %vm444, %v6551, %v6553
      %6562 = vst [vmem:[#allocation2 + $0x20] sm:$0xff] %v6554
      %6563 = vst [vmem:[#allocation2 + $0x28] sm:$0xff] %v6555
      %6564 = vst [vmem:[#allocation2 + $0x30] sm:$0xff] %v6556
      %6565 = vst [vmem:[#allocation2 + $0x38] sm:$0xff] %v6557
      %v6566 = vld [vmem:[#allocation3] sm:$0xff]
      %v6567 = vld [vmem:[#allocation3 + $0x8] sm:$0xff]
      %v6568 = vld [vmem:[#allocation3 + $0x10] sm:$0xff]
      %v6569 = vld [vmem:[#allocation3 + $0x18] sm:$0xff]
      %v6570 = vld [vmem:[#allocation3 + $0x20] sm:$0xff]
      %v6571 = vld [vmem:[%s3 + $0x40] sm:$0xff]
      %v6572 = vld [vmem:[%s3 + $0x48] sm:$0xff]
      %v6573 = vld [vmem:[%s3 + $0x50] sm:$0xff]
      %v6574 = vld [vmem:[%s3 + $0x58] sm:$0xff]
      %6579 = vrot.lane.b32.xlu0 %v6571, 57
      %v6580 = vpop.permute.xlu0 %6579
      %6581 = vrot.lane.b32.xlu0 %v6572, 57
      %v6582 = vpop.permute.xlu0 %6581
      %6583 = vrot.lane.b32.xlu0 %v6573, 57
      %v6584 = vpop.permute.xlu0 %6583
      %6585 = vrot.lane.b32.xlu0 %v6574, 57
      %v6586 = vpop.permute.xlu0 %6585
      %v6587 = vsel %vm478, %v6580, %v6582
      %v6588 = vsel %vm478, %v6582, %v6584
      %v6589 = vsel %vm478, %v6584, %v6586
      %v6595 = vmul.f32 %v6566, %v6580
      %v6596 = vmul.f32 %v6567, %v6587
      %v6597 = vmul.f32 %v6568, %v6588
      %v6598 = vmul.f32 %v6569, %v6589
      %v6599 = vmul.f32 %v6570, %v6586
      %6605 = vrot.lane.b32.xlu0 %v6595, 71
      %v6606 = vpop.permute.xlu0 %6605
      %6607 = vrot.lane.b32.xlu0 %v6596, 71
      %v6608 = vpop.permute.xlu0 %6607
      %6609 = vrot.lane.b32.xlu0 %v6597, 71
      %v6610 = vpop.permute.xlu0 %6609
      %6611 = vrot.lane.b32.xlu0 %v6598, 71
      %v6612 = vpop.permute.xlu0 %6611
      %6613 = vrot.lane.b32.xlu0 %v6599, 71
      %v6614 = vpop.permute.xlu0 %6613
      %v6615 = vsel %vm507, %v6606, %v6608
      %v6616 = vsel %vm507, %v6608, %v6610
      %v6617 = vsel %vm507, %v6610, %v6612
      %v6618 = vsel %vm507, %v6612, %v6614
      %6623 = vst [vmem:[#allocation2 + $0x40] sm:$0xff] %v6615
      %6624 = vst [vmem:[#allocation2 + $0x48] sm:$0xff] %v6616
      %6625 = vst [vmem:[#allocation2 + $0x50] sm:$0xff] %v6617
      %6626 = vst [vmem:[#allocation2 + $0x58] sm:$0xff] %v6618
      %v6627 = vld [vmem:[#allocation3] sm:$0xff]
      %v6628 = vld [vmem:[#allocation3 + $0x8] sm:$0xff]
      %v6629 = vld [vmem:[#allocation3 + $0x10] sm:$0xff]
      %v6630 = vld [vmem:[#allocation3 + $0x18] sm:$0xff]
      %v6631 = vld [vmem:[#allocation3 + $0x20] sm:$0xff]
      %v6632 = vld [vmem:[%s3 + $0x60] sm:$0xff]
      %v6633 = vld [vmem:[%s3 + $0x68] sm:$0xff]
      %v6634 = vld [vmem:[%s3 + $0x70] sm:$0xff]
      %v6635 = vld [vmem:[%s3 + $0x78] sm:$0xff]
      %6640 = vrot.lane.b32.xlu0 %v6632, 63
      %v6641 = vpop.permute.xlu0 %6640
      %6642 = vrot.lane.b32.xlu0 %v6633, 63
      %v6643 = vpop.permute.xlu0 %6642
      %6644 = vrot.lane.b32.xlu0 %v6634, 63
      %v6645 = vpop.permute.xlu0 %6644
      %6646 = vrot.lane.b32.xlu0 %v6635, 63
      %v6647 = vpop.permute.xlu0 %6646
      %v6648 = vsel %vm541, %v6641, %v6643
      %v6649 = vsel %vm541, %v6643, %v6645
      %v6650 = vsel %vm541, %v6645, %v6647
      %v6656 = vmul.f32 %v6627, %v6641
      %v6657 = vmul.f32 %v6628, %v6648
      %v6658 = vmul.f32 %v6629, %v6649
      %v6659 = vmul.f32 %v6630, %v6650
      %v6660 = vmul.f32 %v6631, %v6647
      %6666 = vrot.lane.b32.xlu0 %v6656, 65
      %v6667 = vpop.permute.xlu0 %6666
      %6668 = vrot.lane.b32.xlu0 %v6657, 65
      %v6669 = vpop.permute.xlu0 %6668
      %6670 = vrot.lane.b32.xlu0 %v6658, 65
      %v6671 = vpop.permute.xlu0 %6670
      %6672 = vrot.lane.b32.xlu0 %v6659, 65
      %v6673 = vpop.permute.xlu0 %6672
      %6674 = vrot.lane.b32.xlu0 %v6660, 65
      %v6675 = vpop.permute.xlu0 %6674
      %v6676 = vsel %vm570, %v6667, %v6669
      %v6677 = vsel %vm570, %v6669, %v6671
      %v6678 = vsel %vm570, %v6671, %v6673
      %v6679 = vsel %vm570, %v6673, %v6675
      %6684 = vst [vmem:[#allocation2 + $0x60] sm:$0xff] %v6676
      %6685 = vst [vmem:[#allocation2 + $0x68] sm:$0xff] %v6677
      %6686 = vst [vmem:[#allocation2 + $0x70] sm:$0xff] %v6678
      %6687 = vst [vmem:[#allocation2 + $0x78] sm:$0xff] %v6679
      %v6688 = vld [vmem:[#allocation3] sm:$0xff]
      %v6689 = vld [vmem:[#allocation3 + $0x8] sm:$0xff]
      %v6690 = vld [vmem:[#allocation3 + $0x10] sm:$0xff]
      %v6691 = vld [vmem:[#allocation3 + $0x18] sm:$0xff]
      %v6692 = vld [vmem:[#allocation3 + $0x20] sm:$0xff]
      %6698 = vrot.lane.b32.xlu0 %v6688, 64
      %v6699 = vpop.permute.xlu0 %6698
      %6700 = vrot.lane.b32.xlu0 %v6689, 64
      %v6701 = vpop.permute.xlu0 %6700
      %6702 = vrot.lane.b32.xlu0 %v6690, 64
      %v6703 = vpop.permute.xlu0 %6702
      %6704 = vrot.lane.b32.xlu0 %v6691, 64
      %v6705 = vpop.permute.xlu0 %6704
      %6706 = vrot.lane.b32.xlu0 %v6692, 64
      %v6707 = vpop.permute.xlu0 %6706
      %v6708 = vsel %vm603, %v6699, %v6701
      %v6709 = vsel %vm603, %v6701, %v6703
      %v6710 = vsel %vm603, %v6703, %v6705
      %v6711 = vsel %vm603, %v6705, %v6707
      %6716 = vst [vmem:[#allocation2 + $0x80] sm:$0xff] %v6708
      %6717 = vst [vmem:[#allocation2 + $0x88] sm:$0xff] %v6709
      %6718 = vst [vmem:[#allocation2 + $0x90] sm:$0xff] %v6710
      %6719 = vst [vmem:[#allocation2 + $0x98] sm:$0xff] %v6711
      %v6720 = vld [vmem:[#allocation3] sm:$0xff]
      %v6721 = vld [vmem:[#allocation3 + $0x8] sm:$0xff]
      %v6722 = vld [vmem:[#allocation3 + $0x10] sm:$0xff]
      %v6723 = vld [vmem:[#allocation3 + $0x18] sm:$0xff]
      %v6724 = vld [vmem:[#allocation3 + $0x20] sm:$0xff]
      %v6725 = vld [vmem:[%s3 + $0xa0] sm:$0xff]
      %v6726 = vld [vmem:[%s3 + $0xa8] sm:$0xff]
      %v6727 = vld [vmem:[%s3 + $0xb0] sm:$0xff]
      %v6728 = vld [vmem:[%s3 + $0xb8] sm:$0xff]
      %6733 = vrot.lane.b32.xlu0 %v6725, 65
      %v6734 = vpop.permute.xlu0 %6733
      %6735 = vrot.lane.b32.xlu0 %v6726, 65
      %v6736 = vpop.permute.xlu0 %6735
      %6737 = vrot.lane.b32.xlu0 %v6727, 65
      %v6738 = vpop.permute.xlu0 %6737
      %6739 = vrot.lane.b32.xlu0 %v6728, 65
      %v6740 = vpop.permute.xlu0 %6739
      %v6741 = vsel %vm570, %v6734, %v6736
      %v6742 = vsel %vm570, %v6736, %v6738
      %v6743 = vsel %vm570, %v6738, %v6740
      %v6749 = vmul.f32 %v6720, %v6734
      %v6750 = vmul.f32 %v6721, %v6741
      %v6751 = vmul.f32 %v6722, %v6742
      %v6752 = vmul.f32 %v6723, %v6743
      %v6753 = vmul.f32 %v6724, %v6740
      %6759 = vrot.lane.b32.xlu0 %v6749, 63
      %v6760 = vpop.permute.xlu0 %6759
      %6761 = vrot.lane.b32.xlu0 %v6750, 63
      %v6762 = vpop.permute.xlu0 %6761
      %6763 = vrot.lane.b32.xlu0 %v6751, 63
      %v6764 = vpop.permute.xlu0 %6763
      %6765 = vrot.lane.b32.xlu0 %v6752, 63
      %v6766 = vpop.permute.xlu0 %6765
      %6767 = vrot.lane.b32.xlu0 %v6753, 63
      %v6768 = vpop.permute.xlu0 %6767
      %v6769 = vsel %vm541, %v6760, %v6762
      %v6770 = vsel %vm541, %v6762, %v6764
      %v6771 = vsel %vm541, %v6764, %v6766
      %v6772 = vsel %vm541, %v6766, %v6768
      %6777 = vst [vmem:[#allocation2 + $0xa0] sm:$0xff] %v6769
      %6778 = vst [vmem:[#allocation2 + $0xa8] sm:$0xff] %v6770
      %6779 = vst [vmem:[#allocation2 + $0xb0] sm:$0xff] %v6771
      %6780 = vst [vmem:[#allocation2 + $0xb8] sm:$0xff] %v6772
      %v6781 = vld [vmem:[#allocation3] sm:$0xff]
      %v6782 = vld [vmem:[#allocation3 + $0x8] sm:$0xff]
      %v6783 = vld [vmem:[#allocation3 + $0x10] sm:$0xff]
      %v6784 = vld [vmem:[#allocation3 + $0x18] sm:$0xff]
      %v6785 = vld [vmem:[#allocation3 + $0x20] sm:$0xff]
      %v6786 = vld [vmem:[%s3 + $0xc0] sm:$0xff]
      %v6787 = vld [vmem:[%s3 + $0xc8] sm:$0xff]
      %v6788 = vld [vmem:[%s3 + $0xd0] sm:$0xff]
      %v6789 = vld [vmem:[%s3 + $0xd8] sm:$0xff]
      %6794 = vrot.lane.b32.xlu0 %v6786, 71
      %v6795 = vpop.permute.xlu0 %6794
      %6796 = vrot.lane.b32.xlu0 %v6787, 71
      %v6797 = vpop.permute.xlu0 %6796
      %6798 = vrot.lane.b32.xlu0 %v6788, 71
      %v6799 = vpop.permute.xlu0 %6798
      %6800 = vrot.lane.b32.xlu0 %v6789, 71
      %v6801 = vpop.permute.xlu0 %6800
      %v6802 = vsel %vm507, %v6795, %v6797
      %v6803 = vsel %vm507, %v6797, %v6799
      %v6804 = vsel %vm507, %v6799, %v6801
      %v6810 = vmul.f32 %v6781, %v6795
      %v6811 = vmul.f32 %v6782, %v6802
      %v6812 = vmul.f32 %v6783, %v6803
      %v6813 = vmul.f32 %v6784, %v6804
      %v6814 = vmul.f32 %v6785, %v6801
      %6820 = vrot.lane.b32.xlu0 %v6810, 57
      %v6821 = vpop.permute.xlu0 %6820
      %6822 = vrot.lane.b32.xlu0 %v6811, 57
      %v6823 = vpop.permute.xlu0 %6822
      %6824 = vrot.lane.b32.xlu0 %v6812, 57
      %v6825 = vpop.permute.xlu0 %6824
      %6826 = vrot.lane.b32.xlu0 %v6813, 57
      %v6827 = vpop.permute.xlu0 %6826
      %6828 = vrot.lane.b32.xlu0 %v6814, 57
      %v6829 = vpop.permute.xlu0 %6828
      %v6830 = vsel %vm478, %v6821, %v6823
      %v6831 = vsel %vm478, %v6823, %v6825
      %v6832 = vsel %vm478, %v6825, %v6827
      %v6833 = vsel %vm478, %v6827, %v6829
      %6838 = vst [vmem:[#allocation2 + $0xc0] sm:$0xff] %v6830
      %6839 = vst [vmem:[#allocation2 + $0xc8] sm:$0xff] %v6831
      %6840 = vst [vmem:[#allocation2 + $0xd0] sm:$0xff] %v6832
      %6841 = vst [vmem:[#allocation2 + $0xd8] sm:$0xff] %v6833
      %v6842 = vld [vmem:[#allocation3] sm:$0xff]
      %v6843 = vld [vmem:[#allocation3 + $0x8] sm:$0xff]
      %v6844 = vld [vmem:[#allocation3 + $0x10] sm:$0xff]
      %v6845 = vld [vmem:[#allocation3 + $0x18] sm:$0xff]
      %v6846 = vld [vmem:[#allocation3 + $0x20] sm:$0xff]
      %v6847 = vld [vmem:[%s3 + $0xe0] sm:$0xff]
      %v6848 = vld [vmem:[%s3 + $0xe8] sm:$0xff]
      %v6849 = vld [vmem:[%s3 + $0xf0] sm:$0xff]
      %v6850 = vld [vmem:[%s3 + $0xf8] sm:$0xff]
      %6855 = vrot.lane.b32.xlu0 %v6847, 72
      %v6856 = vpop.permute.xlu0 %6855
      %6857 = vrot.lane.b32.xlu0 %v6848, 72
      %v6858 = vpop.permute.xlu0 %6857
      %6859 = vrot.lane.b32.xlu0 %v6849, 72
      %v6860 = vpop.permute.xlu0 %6859
      %6861 = vrot.lane.b32.xlu0 %v6850, 72
      %v6862 = vpop.permute.xlu0 %6861
      %v6863 = vsel %vm444, %v6856, %v6858
      %v6864 = vsel %vm444, %v6858, %v6860
      %v6865 = vsel %vm444, %v6860, %v6862
      %v6871 = vmul.f32 %v6842, %v6856
      %v6872 = vmul.f32 %v6843, %v6863
      %v6873 = vmul.f32 %v6844, %v6864
      %v6874 = vmul.f32 %v6845, %v6865
      %v6875 = vmul.f32 %v6846, %v6862
      %6881 = vrot.lane.b32.xlu0 %v6871, 56
      %v6882 = vpop.permute.xlu0 %6881
      %6883 = vrot.lane.b32.xlu0 %v6872, 56
      %v6884 = vpop.permute.xlu0 %6883
      %6885 = vrot.lane.b32.xlu0 %v6873, 56
      %v6886 = vpop.permute.xlu0 %6885
      %6887 = vrot.lane.b32.xlu0 %v6874, 56
      %v6888 = vpop.permute.xlu0 %6887
      %6889 = vrot.lane.b32.xlu0 %v6875, 56
      %v6890 = vpop.permute.xlu0 %6889
      %v6891 = vsel %vm415, %v6882, %v6884
      %v6892 = vsel %vm415, %v6884, %v6886
      %v6893 = vsel %vm415, %v6886, %v6888
      %v6894 = vsel %vm415, %v6888, %v6890
      %6899 = vst [vmem:[#allocation2 + $0xe0] sm:$0xff] %v6891
      %6900 = vst [vmem:[#allocation2 + $0xe8] sm:$0xff] %v6892
      %6901 = vst [vmem:[#allocation2 + $0xf0] sm:$0xff] %v6893
      %6902 = vst [vmem:[#allocation2 + $0xf8] sm:$0xff] %v6894
      %v6903 = vld [vmem:[#allocation3] sm:$0xff]
      %v6904 = vld [vmem:[#allocation3 + $0x8] sm:$0xff]
      %v6905 = vld [vmem:[#allocation3 + $0x10] sm:$0xff]
      %v6906 = vld [vmem:[#allocation3 + $0x18] sm:$0xff]
      %v6907 = vld [vmem:[#allocation3 + $0x20] sm:$0xff]
      %v6908 = vld [vmem:[%s3 + $0x100] sm:$0xff]
      %v6909 = vld [vmem:[%s3 + $0x108] sm:$0xff]
      %v6910 = vld [vmem:[%s3 + $0x110] sm:$0xff]
      %v6911 = vld [vmem:[%s3 + $0x118] sm:$0xff]
      %6916 = vrot.lane.b32.xlu0 %v6908, 73
      %v6917 = vpop.permute.xlu0 %6916
      %6918 = vrot.lane.b32.xlu0 %v6909, 73
      %v6919 = vpop.permute.xlu0 %6918
      %6920 = vrot.lane.b32.xlu0 %v6910, 73
      %v6921 = vpop.permute.xlu0 %6920
      %6922 = vrot.lane.b32.xlu0 %v6911, 73
      %v6923 = vpop.permute.xlu0 %6922
      %v6924 = vsel %vm381, %v6917, %v6919
      %v6925 = vsel %vm381, %v6919, %v6921
      %v6926 = vsel %vm381, %v6921, %v6923
      %v6932 = vmul.f32 %v6903, %v6917
      %v6933 = vmul.f32 %v6904, %v6924
      %v6934 = vmul.f32 %v6905, %v6925
      %v6935 = vmul.f32 %v6906, %v6926
      %v6936 = vmul.f32 %v6907, %v6923
      %6942 = vrot.lane.b32.xlu0 %v6932, 55
      %v6943 = vpop.permute.xlu0 %6942
      %6944 = vrot.lane.b32.xlu0 %v6933, 55
      %v6945 = vpop.permute.xlu0 %6944
      %6946 = vrot.lane.b32.xlu0 %v6934, 55
      %v6947 = vpop.permute.xlu0 %6946
      %6948 = vrot.lane.b32.xlu0 %v6935, 55
      %v6949 = vpop.permute.xlu0 %6948
      %6950 = vrot.lane.b32.xlu0 %v6936, 55
      %v6951 = vpop.permute.xlu0 %6950
      %v6952 = vsel %vm352, %v6943, %v6945
      %v6953 = vsel %vm352, %v6945, %v6947
      %v6954 = vsel %vm352, %v6947, %v6949
      %v6955 = vsel %vm352, %v6949, %v6951
      %6960 = vst [vmem:[#allocation2 + $0x100] sm:$0xff] %v6952
      %6961 = vst [vmem:[#allocation2 + $0x108] sm:$0xff] %v6953
      %6962 = vst [vmem:[#allocation2 + $0x110] sm:$0xff] %v6954
      %6963 = vst [vmem:[#allocation2 + $0x118] sm:$0xff] %v6955
      %v6964 = vld [vmem:[#allocation3] sm:$0xff]
      %v6965 = vld [vmem:[#allocation3 + $0x8] sm:$0xff]
      %v6966 = vld [vmem:[#allocation3 + $0x10] sm:$0xff]
      %v6967 = vld [vmem:[#allocation3 + $0x18] sm:$0xff]
      %v6968 = vld [vmem:[#allocation3 + $0x20] sm:$0xff]
      %v6969 = vld [vmem:[%s3 + $0x120] sm:$0xff]
      %v6970 = vld [vmem:[%s3 + $0x128] sm:$0xff]
      %v6971 = vld [vmem:[%s3 + $0x130] sm:$0xff]
      %v6972 = vld [vmem:[%s3 + $0x138] sm:$0xff]
      %6977 = vrot.lane.b32.xlu0 %v6969, 119
      %v6978 = vpop.permute.xlu0 %6977
      %6979 = vrot.lane.b32.xlu0 %v6970, 119
      %v6980 = vpop.permute.xlu0 %6979
      %6981 = vrot.lane.b32.xlu0 %v6971, 119
      %v6982 = vpop.permute.xlu0 %6981
      %6983 = vrot.lane.b32.xlu0 %v6972, 119
      %v6984 = vpop.permute.xlu0 %6983
      %v6985 = vsel %vm881, %v6978, %v6980
      %v6986 = vsel %vm881, %v6980, %v6982
      %v6987 = vsel %vm881, %v6982, %v6984
      %v6993 = vmul.f32 %v6964, %v6978
      %v6994 = vmul.f32 %v6965, %v6985
      %v6995 = vmul.f32 %v6966, %v6986
      %v6996 = vmul.f32 %v6967, %v6987
      %v6997 = vmul.f32 %v6968, %v6984
      %7003 = vrot.lane.b32.xlu0 %v6993, 9
      %v7004 = vpop.permute.xlu0 %7003
      %7005 = vrot.lane.b32.xlu0 %v6994, 9
      %v7006 = vpop.permute.xlu0 %7005
      %7007 = vrot.lane.b32.xlu0 %v6995, 9
      %v7008 = vpop.permute.xlu0 %7007
      %7009 = vrot.lane.b32.xlu0 %v6996, 9
      %v7010 = vpop.permute.xlu0 %7009
      %7011 = vrot.lane.b32.xlu0 %v6997, 9
      %v7012 = vpop.permute.xlu0 %7011
      %v7013 = vsel %vm910, %v7004, %v7006
      %v7014 = vsel %vm910, %v7006, %v7008
      %v7015 = vsel %vm910, %v7008, %v7010
      %v7016 = vsel %vm910, %v7010, %v7012
      %7021 = vst [vmem:[#allocation2 + $0x120] sm:$0xff] %v7013
      %7022 = vst [vmem:[#allocation2 + $0x128] sm:$0xff] %v7014
      %7023 = vst [vmem:[#allocation2 + $0x130] sm:$0xff] %v7015
      %7024 = vst [vmem:[#allocation2 + $0x138] sm:$0xff] %v7016
      %v7025 = vld [vmem:[#allocation3] sm:$0xff]
      %v7026 = vld [vmem:[#allocation3 + $0x8] sm:$0xff]
      %v7027 = vld [vmem:[#allocation3 + $0x10] sm:$0xff]
      %v7028 = vld [vmem:[#allocation3 + $0x18] sm:$0xff]
      %v7029 = vld [vmem:[#allocation3 + $0x20] sm:$0xff]
      %v7030 = vld [vmem:[%s3 + $0x140] sm:$0xff]
      %v7031 = vld [vmem:[%s3 + $0x148] sm:$0xff]
      %v7032 = vld [vmem:[%s3 + $0x150] sm:$0xff]
      %v7033 = vld [vmem:[%s3 + $0x158] sm:$0xff]
      %7038 = vrot.lane.b32.xlu0 %v7030, 120
      %v7039 = vpop.permute.xlu0 %7038
      %7040 = vrot.lane.b32.xlu0 %v7031, 120
      %v7041 = vpop.permute.xlu0 %7040
      %7042 = vrot.lane.b32.xlu0 %v7032, 120
      %v7043 = vpop.permute.xlu0 %7042
      %7044 = vrot.lane.b32.xlu0 %v7033, 120
      %v7045 = vpop.permute.xlu0 %7044
      %v7046 = vsel %vm944, %v7039, %v7041
      %v7047 = vsel %vm944, %v7041, %v7043
      %v7048 = vsel %vm944, %v7043, %v7045
      %v7054 = vmul.f32 %v7025, %v7039
      %v7055 = vmul.f32 %v7026, %v7046
      %v7056 = vmul.f32 %v7027, %v7047
      %v7057 = vmul.f32 %v7028, %v7048
      %v7058 = vmul.f32 %v7029, %v7045
      %7064 = vrot.lane.b32.xlu0 %v7054, 8
      %v7065 = vpop.permute.xlu0 %7064
      %7066 = vrot.lane.b32.xlu0 %v7055, 8
      %v7067 = vpop.permute.xlu0 %7066
      %7068 = vrot.lane.b32.xlu0 %v7056, 8
      %v7069 = vpop.permute.xlu0 %7068
      %7070 = vrot.lane.b32.xlu0 %v7057, 8
      %v7071 = vpop.permute.xlu0 %7070
      %7072 = vrot.lane.b32.xlu0 %v7058, 8
      %v7073 = vpop.permute.xlu0 %7072
      %v7074 = vsel %vm973, %v7065, %v7067
      %v7075 = vsel %vm973, %v7067, %v7069
      %v7076 = vsel %vm973, %v7069, %v7071
      %v7077 = vsel %vm973, %v7071, %v7073
      %7082 = vst [vmem:[#allocation2 + $0x140] sm:$0xff] %v7074
      %7083 = vst [vmem:[#allocation2 + $0x148] sm:$0xff] %v7075
      %7084 = vst [vmem:[#allocation2 + $0x150] sm:$0xff] %v7076
      %7085 = vst [vmem:[#allocation2 + $0x158] sm:$0xff] %v7077
      %v7086 = vld [vmem:[#allocation3] sm:$0xff]
      %v7087 = vld [vmem:[#allocation3 + $0x8] sm:$0xff]
      %v7088 = vld [vmem:[#allocation3 + $0x10] sm:$0xff]
      %v7089 = vld [vmem:[#allocation3 + $0x18] sm:$0xff]
      %v7090 = vld [vmem:[#allocation3 + $0x20] sm:$0xff]
      %v7091 = vld [vmem:[%s3 + $0x160] sm:$0xff]
      %v7092 = vld [vmem:[%s3 + $0x168] sm:$0xff]
      %v7093 = vld [vmem:[%s3 + $0x170] sm:$0xff]
      %v7094 = vld [vmem:[%s3 + $0x178] sm:$0xff]
      %7099 = vrot.lane.b32.xlu0 %v7091, 121
      %v7100 = vpop.permute.xlu0 %7099
      %7101 = vrot.lane.b32.xlu0 %v7092, 121
      %v7102 = vpop.permute.xlu0 %7101
      %7103 = vrot.lane.b32.xlu0 %v7093, 121
      %v7104 = vpop.permute.xlu0 %7103
      %7105 = vrot.lane.b32.xlu0 %v7094, 121
      %v7106 = vpop.permute.xlu0 %7105
      %v7107 = vsel %vm1007, %v7100, %v7102
      %v7108 = vsel %vm1007, %v7102, %v7104
      %v7109 = vsel %vm1007, %v7104, %v7106
      %v7115 = vmul.f32 %v7086, %v7100
      %v7116 = vmul.f32 %v7087, %v7107
      %v7117 = vmul.f32 %v7088, %v7108
      %v7118 = vmul.f32 %v7089, %v7109
      %v7119 = vmul.f32 %v7090, %v7106
      %7125 = vrot.lane.b32.xlu0 %v7115, 7
      %v7126 = vpop.permute.xlu0 %7125
      %7127 = vrot.lane.b32.xlu0 %v7116, 7
      %v7128 = vpop.permute.xlu0 %7127
      %7129 = vrot.lane.b32.xlu0 %v7117, 7
      %v7130 = vpop.permute.xlu0 %7129
      %7131 = vrot.lane.b32.xlu0 %v7118, 7
      %v7132 = vpop.permute.xlu0 %7131
      %7133 = vrot.lane.b32.xlu0 %v7119, 7
      %v7134 = vpop.permute.xlu0 %7133
      %v7135 = vsel %vm1036, %v7126, %v7128
      %v7136 = vsel %vm1036, %v7128, %v7130
      %v7137 = vsel %vm1036, %v7130, %v7132
      %v7138 = vsel %vm1036, %v7132, %v7134
      %7143 = vst [vmem:[#allocation2 + $0x160] sm:$0xff] %v7135
      %7144 = vst [vmem:[#allocation2 + $0x168] sm:$0xff] %v7136
      %7145 = vst [vmem:[#allocation2 + $0x170] sm:$0xff] %v7137
      %7146 = vst [vmem:[#allocation2 + $0x178] sm:$0xff] %v7138
      %v7147 = vld [vmem:[#allocation3] sm:$0xff]
      %v7148 = vld [vmem:[#allocation3 + $0x8] sm:$0xff]
      %v7149 = vld [vmem:[#allocation3 + $0x10] sm:$0xff]
      %v7150 = vld [vmem:[#allocation3 + $0x18] sm:$0xff]
      %v7151 = vld [vmem:[#allocation3 + $0x20] sm:$0xff]
      %v7152 = vld [vmem:[%s3 + $0x180] sm:$0xff]
      %v7153 = vld [vmem:[%s3 + $0x188] sm:$0xff]
      %v7154 = vld [vmem:[%s3 + $0x190] sm:$0xff]
      %v7155 = vld [vmem:[%s3 + $0x198] sm:$0xff]
      %7160 = vrot.lane.b32.xlu0 %v7152, 127
      %v7161 = vpop.permute.xlu0 %7160
      %7162 = vrot.lane.b32.xlu0 %v7153, 127
      %v7163 = vpop.permute.xlu0 %7162
      %7164 = vrot.lane.b32.xlu0 %v7154, 127
      %v7165 = vpop.permute.xlu0 %7164
      %7166 = vrot.lane.b32.xlu0 %v7155, 127
      %v7167 = vpop.permute.xlu0 %7166
      %v7168 = vsel %vm1070, %v7161, %v7163
      %v7169 = vsel %vm1070, %v7163, %v7165
      %v7170 = vsel %vm1070, %v7165, %v7167
      %v7176 = vmul.f32 %v7147, %v7161
      %v7177 = vmul.f32 %v7148, %v7168
      %v7178 = vmul.f32 %v7149, %v7169
      %v7179 = vmul.f32 %v7150, %v7170
      %v7180 = vmul.f32 %v7151, %v7167
      %7186 = vrot.lane.b32.xlu0 %v7176, 1
      %v7187 = vpop.permute.xlu0 %7186
      %7188 = vrot.lane.b32.xlu0 %v7177, 1
      %v7189 = vpop.permute.xlu0 %7188
      %7190 = vrot.lane.b32.xlu0 %v7178, 1
      %v7191 = vpop.permute.xlu0 %7190
      %7192 = vrot.lane.b32.xlu0 %v7179, 1
      %v7193 = vpop.permute.xlu0 %7192
      %7194 = vrot.lane.b32.xlu0 %v7180, 1
      %v7195 = vpop.permute.xlu0 %7194
      %v7196 = vsel %vm1099, %v7187, %v7189
      %v7197 = vsel %vm1099, %v7189, %v7191
      %v7198 = vsel %vm1099, %v7191, %v7193
      %v7199 = vsel %vm1099, %v7193, %v7195
      %7204 = vst [vmem:[#allocation2 + $0x180] sm:$0xff] %v7196
      %7205 = vst [vmem:[#allocation2 + $0x188] sm:$0xff] %v7197
      %7206 = vst [vmem:[#allocation2 + $0x190] sm:$0xff] %v7198
      %7207 = vst [vmem:[#allocation2 + $0x198] sm:$0xff] %v7199
      %v7208 = vld [vmem:[#allocation3 + $0x8] sm:$0xff]
      %v7209 = vld [vmem:[#allocation3 + $0x10] sm:$0xff]
      %v7210 = vld [vmem:[#allocation3 + $0x18] sm:$0xff]
      %v7211 = vld [vmem:[#allocation3 + $0x20] sm:$0xff]
      %7212 = vst [vmem:[#allocation2 + $0x1a0] sm:$0xff] %v7208
      %7213 = vst [vmem:[#allocation2 + $0x1a8] sm:$0xff] %v7209
      %7214 = vst [vmem:[#allocation2 + $0x1b0] sm:$0xff] %v7210
      %7215 = vst [vmem:[#allocation2 + $0x1b8] sm:$0xff] %v7211
      %v7216 = vld [vmem:[#allocation3 + $0x8] sm:$0xff]
      %v7217 = vld [vmem:[#allocation3 + $0x10] sm:$0xff]
      %v7218 = vld [vmem:[#allocation3 + $0x18] sm:$0xff]
      %v7219 = vld [vmem:[#allocation3 + $0x20] sm:$0xff]
      %v7220 = vld [vmem:[#allocation3 + $0x28] sm:$0xff]
      %v7221 = vld [vmem:[%s3 + $0x1c0] sm:$0xff]
      %v7222 = vld [vmem:[%s3 + $0x1c8] sm:$0xff]
      %v7223 = vld [vmem:[%s3 + $0x1d0] sm:$0xff]
      %v7224 = vld [vmem:[%s3 + $0x1d8] sm:$0xff]
      %7229 = vrot.lane.b32.xlu0 %v7221, 1
      %v7230 = vpop.permute.xlu0 %7229
      %7231 = vrot.lane.b32.xlu0 %v7222, 1
      %v7232 = vpop.permute.xlu0 %7231
      %7233 = vrot.lane.b32.xlu0 %v7223, 1
      %v7234 = vpop.permute.xlu0 %7233
      %7235 = vrot.lane.b32.xlu0 %v7224, 1
      %v7236 = vpop.permute.xlu0 %7235
      %v7237 = vsel %vm1099, %v7230, %v7232
      %v7238 = vsel %vm1099, %v7232, %v7234
      %v7239 = vsel %vm1099, %v7234, %v7236
      %v7245 = vmul.f32 %v7216, %v7230
      %v7246 = vmul.f32 %v7217, %v7237
      %v7247 = vmul.f32 %v7218, %v7238
      %v7248 = vmul.f32 %v7219, %v7239
      %v7249 = vmul.f32 %v7220, %v7236
      %7255 = vrot.lane.b32.xlu0 %v7245, 127
      %v7256 = vpop.permute.xlu0 %7255
      %7257 = vrot.lane.b32.xlu0 %v7246, 127
      %v7258 = vpop.permute.xlu0 %7257
      %7259 = vrot.lane.b32.xlu0 %v7247, 127
      %v7260 = vpop.permute.xlu0 %7259
      %7261 = vrot.lane.b32.xlu0 %v7248, 127
      %v7262 = vpop.permute.xlu0 %7261
      %7263 = vrot.lane.b32.xlu0 %v7249, 127
      %v7264 = vpop.permute.xlu0 %7263
      %v7265 = vsel %vm1070, %v7256, %v7258
      %v7266 = vsel %vm1070, %v7258, %v7260
      %v7267 = vsel %vm1070, %v7260, %v7262
      %v7268 = vsel %vm1070, %v7262, %v7264
      %7273 = vst [vmem:[#allocation2 + $0x1c0] sm:$0xff] %v7265
      %7274 = vst [vmem:[#allocation2 + $0x1c8] sm:$0xff] %v7266
      %7275 = vst [vmem:[#allocation2 + $0x1d0] sm:$0xff] %v7267
      %7276 = vst [vmem:[#allocation2 + $0x1d8] sm:$0xff] %v7268
      %v7277 = vld [vmem:[#allocation3 + $0x8] sm:$0xff]
      %v7278 = vld [vmem:[#allocation3 + $0x10] sm:$0xff]
      %v7279 = vld [vmem:[#allocation3 + $0x18] sm:$0xff]
      %v7280 = vld [vmem:[#allocation3 + $0x20] sm:$0xff]
      %v7281 = vld [vmem:[#allocation3 + $0x28] sm:$0xff]
      %v7282 = vld [vmem:[%s3 + $0x1e0] sm:$0xff]
      %v7283 = vld [vmem:[%s3 + $0x1e8] sm:$0xff]
      %v7284 = vld [vmem:[%s3 + $0x1f0] sm:$0xff]
      %v7285 = vld [vmem:[%s3 + $0x1f8] sm:$0xff]
      %7290 = vrot.lane.b32.xlu0 %v7282, 7
      %v7291 = vpop.permute.xlu0 %7290
      %7292 = vrot.lane.b32.xlu0 %v7283, 7
      %v7293 = vpop.permute.xlu0 %7292
      %7294 = vrot.lane.b32.xlu0 %v7284, 7
      %v7295 = vpop.permute.xlu0 %7294
      %7296 = vrot.lane.b32.xlu0 %v7285, 7
      %v7297 = vpop.permute.xlu0 %7296
      %v7298 = vsel %vm1036, %v7291, %v7293
      %v7299 = vsel %vm1036, %v7293, %v7295
      %v7300 = vsel %vm1036, %v7295, %v7297
      %v7306 = vmul.f32 %v7277, %v7291
      %v7307 = vmul.f32 %v7278, %v7298
      %v7308 = vmul.f32 %v7279, %v7299
      %v7309 = vmul.f32 %v7280, %v7300
      %v7310 = vmul.f32 %v7281, %v7297
      %7316 = vrot.lane.b32.xlu0 %v7306, 121
      %v7317 = vpop.permute.xlu0 %7316
      %7318 = vrot.lane.b32.xlu0 %v7307, 121
      %v7319 = vpop.permute.xlu0 %7318
      %7320 = vrot.lane.b32.xlu0 %v7308, 121
      %v7321 = vpop.permute.xlu0 %7320
      %7322 = vrot.lane.b32.xlu0 %v7309, 121
      %v7323 = vpop.permute.xlu0 %7322
      %7324 = vrot.lane.b32.xlu0 %v7310, 121
      %v7325 = vpop.permute.xlu0 %7324
      %v7326 = vsel %vm1007, %v7317, %v7319
      %v7327 = vsel %vm1007, %v7319, %v7321
      %v7328 = vsel %vm1007, %v7321, %v7323
      %v7329 = vsel %vm1007, %v7323, %v7325
      %7334 = vst [vmem:[#allocation2 + $0x1e0] sm:$0xff] %v7326
      %7335 = vst [vmem:[#allocation2 + $0x1e8] sm:$0xff] %v7327
      %7336 = vst [vmem:[#allocation2 + $0x1f0] sm:$0xff] %v7328
      %7337 = vst [vmem:[#allocation2 + $0x1f8] sm:$0xff] %v7329
      %v7338 = vld [vmem:[#allocation3 + $0x8] sm:$0xff]
      %v7339 = vld [vmem:[#allocation3 + $0x10] sm:$0xff]
      %v7340 = vld [vmem:[#allocation3 + $0x18] sm:$0xff]
      %v7341 = vld [vmem:[#allocation3 + $0x20] sm:$0xff]
      %v7342 = vld [vmem:[#allocation3 + $0x28] sm:$0xff]
      %v7343 = vld [vmem:[%s3 + $0x200] sm:$0xff]
      %v7344 = vld [vmem:[%s3 + $0x208] sm:$0xff]
      %v7345 = vld [vmem:[%s3 + $0x210] sm:$0xff]
      %v7346 = vld [vmem:[%s3 + $0x218] sm:$0xff]
      %7351 = vrot.lane.b32.xlu0 %v7343, 8
      %v7352 = vpop.permute.xlu0 %7351
      %7353 = vrot.lane.b32.xlu0 %v7344, 8
      %v7354 = vpop.permute.xlu0 %7353
      %7355 = vrot.lane.b32.xlu0 %v7345, 8
      %v7356 = vpop.permute.xlu0 %7355
      %7357 = vrot.lane.b32.xlu0 %v7346, 8
      %v7358 = vpop.permute.xlu0 %7357
      %v7359 = vsel %vm973, %v7352, %v7354
      %v7360 = vsel %vm973, %v7354, %v7356
      %v7361 = vsel %vm973, %v7356, %v7358
      %v7367 = vmul.f32 %v7338, %v7352
      %v7368 = vmul.f32 %v7339, %v7359
      %v7369 = vmul.f32 %v7340, %v7360
      %v7370 = vmul.f32 %v7341, %v7361
      %v7371 = vmul.f32 %v7342, %v7358
      %7377 = vrot.lane.b32.xlu0 %v7367, 120
      %v7378 = vpop.permute.xlu0 %7377
      %7379 = vrot.lane.b32.xlu0 %v7368, 120
      %v7380 = vpop.permute.xlu0 %7379
      %7381 = vrot.lane.b32.xlu0 %v7369, 120
      %v7382 = vpop.permute.xlu0 %7381
      %7383 = vrot.lane.b32.xlu0 %v7370, 120
      %v7384 = vpop.permute.xlu0 %7383
      %7385 = vrot.lane.b32.xlu0 %v7371, 120
      %v7386 = vpop.permute.xlu0 %7385
      %v7387 = vsel %vm944, %v7378, %v7380
      %v7388 = vsel %vm944, %v7380, %v7382
      %v7389 = vsel %vm944, %v7382, %v7384
      %v7390 = vsel %vm944, %v7384, %v7386
      %7395 = vst [vmem:[#allocation2 + $0x200] sm:$0xff] %v7387
      %7396 = vst [vmem:[#allocation2 + $0x208] sm:$0xff] %v7388
      %7397 = vst [vmem:[#allocation2 + $0x210] sm:$0xff] %v7389
      %7398 = vst [vmem:[#allocation2 + $0x218] sm:$0xff] %v7390
      %v7399 = vld [vmem:[#allocation3 + $0x8] sm:$0xff]
      %v7400 = vld [vmem:[#allocation3 + $0x10] sm:$0xff]
      %v7401 = vld [vmem:[#allocation3 + $0x18] sm:$0xff]
      %v7402 = vld [vmem:[#allocation3 + $0x20] sm:$0xff]
      %v7403 = vld [vmem:[#allocation3 + $0x28] sm:$0xff]
      %v7404 = vld [vmem:[%s3 + $0x220] sm:$0xff]
      %v7405 = vld [vmem:[%s3 + $0x228] sm:$0xff]
      %v7406 = vld [vmem:[%s3 + $0x230] sm:$0xff]
      %v7407 = vld [vmem:[%s3 + $0x238] sm:$0xff]
      %7412 = vrot.lane.b32.xlu0 %v7404, 9
      %v7413 = vpop.permute.xlu0 %7412
      %7414 = vrot.lane.b32.xlu0 %v7405, 9
      %v7415 = vpop.permute.xlu0 %7414
      %7416 = vrot.lane.b32.xlu0 %v7406, 9
      %v7417 = vpop.permute.xlu0 %7416
      %7418 = vrot.lane.b32.xlu0 %v7407, 9
      %v7419 = vpop.permute.xlu0 %7418
      %v7420 = vsel %vm910, %v7413, %v7415
      %v7421 = vsel %vm910, %v7415, %v7417
      %v7422 = vsel %vm910, %v7417, %v7419
      %v7428 = vmul.f32 %v7399, %v7413
      %v7429 = vmul.f32 %v7400, %v7420
      %v7430 = vmul.f32 %v7401, %v7421
      %v7431 = vmul.f32 %v7402, %v7422
      %v7432 = vmul.f32 %v7403, %v7419
      %7438 = vrot.lane.b32.xlu0 %v7428, 119
      %v7439 = vpop.permute.xlu0 %7438
      %7440 = vrot.lane.b32.xlu0 %v7429, 119
      %v7441 = vpop.permute.xlu0 %7440
      %7442 = vrot.lane.b32.xlu0 %v7430, 119
      %v7443 = vpop.permute.xlu0 %7442
      %7444 = vrot.lane.b32.xlu0 %v7431, 119
      %v7445 = vpop.permute.xlu0 %7444
      %7446 = vrot.lane.b32.xlu0 %v7432, 119
      %v7447 = vpop.permute.xlu0 %7446
      %v7448 = vsel %vm881, %v7439, %v7441
      %v7449 = vsel %vm881, %v7441, %v7443
      %v7450 = vsel %vm881, %v7443, %v7445
      %v7451 = vsel %vm881, %v7445, %v7447
      %7456 = vst [vmem:[#allocation2 + $0x220] sm:$0xff] %v7448
      %7457 = vst [vmem:[#allocation2 + $0x228] sm:$0xff] %v7449
      %7458 = vst [vmem:[#allocation2 + $0x230] sm:$0xff] %v7450
      %7459 = vst [vmem:[#allocation2 + $0x238] sm:$0xff] %v7451
      %v7460 = vld [vmem:[#allocation3 + $0x8] sm:$0xff]
      %v7461 = vld [vmem:[#allocation3 + $0x10] sm:$0xff]
      %v7462 = vld [vmem:[#allocation3 + $0x18] sm:$0xff]
      %v7463 = vld [vmem:[#allocation3 + $0x20] sm:$0xff]
      %v7464 = vld [vmem:[#allocation3 + $0x28] sm:$0xff]
      %v7465 = vld [vmem:[%s3 + $0x240] sm:$0xff]
      %v7466 = vld [vmem:[%s3 + $0x248] sm:$0xff]
      %v7467 = vld [vmem:[%s3 + $0x250] sm:$0xff]
      %v7468 = vld [vmem:[%s3 + $0x258] sm:$0xff]
      %7473 = vrot.lane.b32.xlu0 %v7465, 55
      %v7474 = vpop.permute.xlu0 %7473
      %7475 = vrot.lane.b32.xlu0 %v7466, 55
      %v7476 = vpop.permute.xlu0 %7475
      %7477 = vrot.lane.b32.xlu0 %v7467, 55
      %v7478 = vpop.permute.xlu0 %7477
      %7479 = vrot.lane.b32.xlu0 %v7468, 55
      %v7480 = vpop.permute.xlu0 %7479
      %v7481 = vsel %vm352, %v7474, %v7476
      %v7482 = vsel %vm352, %v7476, %v7478
      %v7483 = vsel %vm352, %v7478, %v7480
      %v7489 = vmul.f32 %v7460, %v7474
      %v7490 = vmul.f32 %v7461, %v7481
      %v7491 = vmul.f32 %v7462, %v7482
      %v7492 = vmul.f32 %v7463, %v7483
      %v7493 = vmul.f32 %v7464, %v7480
      %7499 = vrot.lane.b32.xlu0 %v7489, 73
      %v7500 = vpop.permute.xlu0 %7499
      %7501 = vrot.lane.b32.xlu0 %v7490, 73
      %v7502 = vpop.permute.xlu0 %7501
      %7503 = vrot.lane.b32.xlu0 %v7491, 73
      %v7504 = vpop.permute.xlu0 %7503
      %7505 = vrot.lane.b32.xlu0 %v7492, 73
      %v7506 = vpop.permute.xlu0 %7505
      %7507 = vrot.lane.b32.xlu0 %v7493, 73
      %v7508 = vpop.permute.xlu0 %7507
      %v7509 = vsel %vm381, %v7500, %v7502
      %v7510 = vsel %vm381, %v7502, %v7504
      %v7511 = vsel %vm381, %v7504, %v7506
      %v7512 = vsel %vm381, %v7506, %v7508
      %7517 = vst [vmem:[#allocation2 + $0x240] sm:$0xff] %v7509
      %7518 = vst [vmem:[#allocation2 + $0x248] sm:$0xff] %v7510
      %7519 = vst [vmem:[#allocation2 + $0x250] sm:$0xff] %v7511
      %7520 = vst [vmem:[#allocation2 + $0x258] sm:$0xff] %v7512
      %v7521 = vld [vmem:[#allocation3 + $0x8] sm:$0xff]
      %v7522 = vld [vmem:[#allocation3 + $0x10] sm:$0xff]
      %v7523 = vld [vmem:[#allocation3 + $0x18] sm:$0xff]
      %v7524 = vld [vmem:[#allocation3 + $0x20] sm:$0xff]
      %v7525 = vld [vmem:[#allocation3 + $0x28] sm:$0xff]
      %v7526 = vld [vmem:[%s3 + $0x260] sm:$0xff]
      %v7527 = vld [vmem:[%s3 + $0x268] sm:$0xff]
      %v7528 = vld [vmem:[%s3 + $0x270] sm:$0xff]
      %v7529 = vld [vmem:[%s3 + $0x278] sm:$0xff]
      %7534 = vrot.lane.b32.xlu0 %v7526, 56
      %v7535 = vpop.permute.xlu0 %7534
      %7536 = vrot.lane.b32.xlu0 %v7527, 56
      %v7537 = vpop.permute.xlu0 %7536
      %7538 = vrot.lane.b32.xlu0 %v7528, 56
      %v7539 = vpop.permute.xlu0 %7538
      %7540 = vrot.lane.b32.xlu0 %v7529, 56
      %v7541 = vpop.permute.xlu0 %7540
      %v7542 = vsel %vm415, %v7535, %v7537
      %v7543 = vsel %vm415, %v7537, %v7539
      %v7544 = vsel %vm415, %v7539, %v7541
      %v7550 = vmul.f32 %v7521, %v7535
      %v7551 = vmul.f32 %v7522, %v7542
      %v7552 = vmul.f32 %v7523, %v7543
      %v7553 = vmul.f32 %v7524, %v7544
      %v7554 = vmul.f32 %v7525, %v7541
      %7560 = vrot.lane.b32.xlu0 %v7550, 72
      %v7561 = vpop.permute.xlu0 %7560
      %7562 = vrot.lane.b32.xlu0 %v7551, 72
      %v7563 = vpop.permute.xlu0 %7562
      %7564 = vrot.lane.b32.xlu0 %v7552, 72
      %v7565 = vpop.permute.xlu0 %7564
      %7566 = vrot.lane.b32.xlu0 %v7553, 72
      %v7567 = vpop.permute.xlu0 %7566
      %7568 = vrot.lane.b32.xlu0 %v7554, 72
      %v7569 = vpop.permute.xlu0 %7568
      %v7570 = vsel %vm444, %v7561, %v7563
      %v7571 = vsel %vm444, %v7563, %v7565
      %v7572 = vsel %vm444, %v7565, %v7567
      %v7573 = vsel %vm444, %v7567, %v7569
      %7578 = vst [vmem:[#allocation2 + $0x260] sm:$0xff] %v7570
      %7579 = vst [vmem:[#allocation2 + $0x268] sm:$0xff] %v7571
      %7580 = vst [vmem:[#allocation2 + $0x270] sm:$0xff] %v7572
      %7581 = vst [vmem:[#allocation2 + $0x278] sm:$0xff] %v7573
      %v7582 = vld [vmem:[#allocation3 + $0x8] sm:$0xff]
      %v7583 = vld [vmem:[#allocation3 + $0x10] sm:$0xff]
      %v7584 = vld [vmem:[#allocation3 + $0x18] sm:$0xff]
      %v7585 = vld [vmem:[#allocation3 + $0x20] sm:$0xff]
      %v7586 = vld [vmem:[#allocation3 + $0x28] sm:$0xff]
      %v7587 = vld [vmem:[%s3 + $0x280] sm:$0xff]
      %v7588 = vld [vmem:[%s3 + $0x288] sm:$0xff]
      %v7589 = vld [vmem:[%s3 + $0x290] sm:$0xff]
      %v7590 = vld [vmem:[%s3 + $0x298] sm:$0xff]
      %7595 = vrot.lane.b32.xlu0 %v7587, 57
      %v7596 = vpop.permute.xlu0 %7595
      %7597 = vrot.lane.b32.xlu0 %v7588, 57
      %v7598 = vpop.permute.xlu0 %7597
      %7599 = vrot.lane.b32.xlu0 %v7589, 57
      %v7600 = vpop.permute.xlu0 %7599
      %7601 = vrot.lane.b32.xlu0 %v7590, 57
      %v7602 = vpop.permute.xlu0 %7601
      %v7603 = vsel %vm478, %v7596, %v7598
      %v7604 = vsel %vm478, %v7598, %v7600
      %v7605 = vsel %vm478, %v7600, %v7602
      %v7611 = vmul.f32 %v7582, %v7596
      %v7612 = vmul.f32 %v7583, %v7603
      %v7613 = vmul.f32 %v7584, %v7604
      %v7614 = vmul.f32 %v7585, %v7605
      %v7615 = vmul.f32 %v7586, %v7602
      %7621 = vrot.lane.b32.xlu0 %v7611, 71
      %v7622 = vpop.permute.xlu0 %7621
      %7623 = vrot.lane.b32.xlu0 %v7612, 71
      %v7624 = vpop.permute.xlu0 %7623
      %7625 = vrot.lane.b32.xlu0 %v7613, 71
      %v7626 = vpop.permute.xlu0 %7625
      %7627 = vrot.lane.b32.xlu0 %v7614, 71
      %v7628 = vpop.permute.xlu0 %7627
      %7629 = vrot.lane.b32.xlu0 %v7615, 71
      %v7630 = vpop.permute.xlu0 %7629
      %v7631 = vsel %vm507, %v7622, %v7624
      %v7632 = vsel %vm507, %v7624, %v7626
      %v7633 = vsel %vm507, %v7626, %v7628
      %v7634 = vsel %vm507, %v7628, %v7630
      %7639 = vst [vmem:[#allocation2 + $0x280] sm:$0xff] %v7631
      %7640 = vst [vmem:[#allocation2 + $0x288] sm:$0xff] %v7632
      %7641 = vst [vmem:[#allocation2 + $0x290] sm:$0xff] %v7633
      %7642 = vst [vmem:[#allocation2 + $0x298] sm:$0xff] %v7634
      %v7643 = vld [vmem:[#allocation3 + $0x8] sm:$0xff]
      %v7644 = vld [vmem:[#allocation3 + $0x10] sm:$0xff]
      %v7645 = vld [vmem:[#allocation3 + $0x18] sm:$0xff]
      %v7646 = vld [vmem:[#allocation3 + $0x20] sm:$0xff]
      %v7647 = vld [vmem:[#allocation3 + $0x28] sm:$0xff]
      %v7648 = vld [vmem:[%s3 + $0x2a0] sm:$0xff]
      %v7649 = vld [vmem:[%s3 + $0x2a8] sm:$0xff]
      %v7650 = vld [vmem:[%s3 + $0x2b0] sm:$0xff]
      %v7651 = vld [vmem:[%s3 + $0x2b8] sm:$0xff]
      %7656 = vrot.lane.b32.xlu0 %v7648, 63
      %v7657 = vpop.permute.xlu0 %7656
      %7658 = vrot.lane.b32.xlu0 %v7649, 63
      %v7659 = vpop.permute.xlu0 %7658
      %7660 = vrot.lane.b32.xlu0 %v7650, 63
      %v7661 = vpop.permute.xlu0 %7660
      %7662 = vrot.lane.b32.xlu0 %v7651, 63
      %v7663 = vpop.permute.xlu0 %7662
      %v7664 = vsel %vm541, %v7657, %v7659
      %v7665 = vsel %vm541, %v7659, %v7661
      %v7666 = vsel %vm541, %v7661, %v7663
      %v7672 = vmul.f32 %v7643, %v7657
      %v7673 = vmul.f32 %v7644, %v7664
      %v7674 = vmul.f32 %v7645, %v7665
      %v7675 = vmul.f32 %v7646, %v7666
      %v7676 = vmul.f32 %v7647, %v7663
      %7682 = vrot.lane.b32.xlu0 %v7672, 65
      %v7683 = vpop.permute.xlu0 %7682
      %7684 = vrot.lane.b32.xlu0 %v7673, 65
      %v7685 = vpop.permute.xlu0 %7684
      %7686 = vrot.lane.b32.xlu0 %v7674, 65
      %v7687 = vpop.permute.xlu0 %7686
      %7688 = vrot.lane.b32.xlu0 %v7675, 65
      %v7689 = vpop.permute.xlu0 %7688
      %7690 = vrot.lane.b32.xlu0 %v7676, 65
      %v7691 = vpop.permute.xlu0 %7690
      %v7692 = vsel %vm570, %v7683, %v7685
      %v7693 = vsel %vm570, %v7685, %v7687
      %v7694 = vsel %vm570, %v7687, %v7689
      %v7695 = vsel %vm570, %v7689, %v7691
      %7700 = vst [vmem:[#allocation2 + $0x2a0] sm:$0xff] %v7692
      %7701 = vst [vmem:[#allocation2 + $0x2a8] sm:$0xff] %v7693
      %7702 = vst [vmem:[#allocation2 + $0x2b0] sm:$0xff] %v7694
      %7703 = vst [vmem:[#allocation2 + $0x2b8] sm:$0xff] %v7695
      %v7704 = vld [vmem:[#allocation3 + $0x8] sm:$0xff]
      %v7705 = vld [vmem:[#allocation3 + $0x10] sm:$0xff]
      %v7706 = vld [vmem:[#allocation3 + $0x18] sm:$0xff]
      %v7707 = vld [vmem:[#allocation3 + $0x20] sm:$0xff]
      %v7708 = vld [vmem:[#allocation3 + $0x28] sm:$0xff]
      %7714 = vrot.lane.b32.xlu0 %v7704, 64
      %v7715 = vpop.permute.xlu0 %7714
      %7716 = vrot.lane.b32.xlu0 %v7705, 64
      %v7717 = vpop.permute.xlu0 %7716
      %7718 = vrot.lane.b32.xlu0 %v7706, 64
      %v7719 = vpop.permute.xlu0 %7718
      %7720 = vrot.lane.b32.xlu0 %v7707, 64
      %v7721 = vpop.permute.xlu0 %7720
      %7722 = vrot.lane.b32.xlu0 %v7708, 64
      %v7723 = vpop.permute.xlu0 %7722
      %v7724 = vsel %vm603, %v7715, %v7717
      %v7725 = vsel %vm603, %v7717, %v7719
      %v7726 = vsel %vm603, %v7719, %v7721
      %v7727 = vsel %vm603, %v7721, %v7723
      %7732 = vst [vmem:[#allocation2 + $0x2c0] sm:$0xff] %v7724
      %7733 = vst [vmem:[#allocation2 + $0x2c8] sm:$0xff] %v7725
      %7734 = vst [vmem:[#allocation2 + $0x2d0] sm:$0xff] %v7726
      %7735 = vst [vmem:[#allocation2 + $0x2d8] sm:$0xff] %v7727
      %v7736 = vld [vmem:[#allocation3 + $0x8] sm:$0xff]
      %v7737 = vld [vmem:[#allocation3 + $0x10] sm:$0xff]
      %v7738 = vld [vmem:[#allocation3 + $0x18] sm:$0xff]
      %v7739 = vld [vmem:[#allocation3 + $0x20] sm:$0xff]
      %v7740 = vld [vmem:[#allocation3 + $0x28] sm:$0xff]
      %v7741 = vld [vmem:[%s3 + $0x2e0] sm:$0xff]
      %v7742 = vld [vmem:[%s3 + $0x2e8] sm:$0xff]
      %v7743 = vld [vmem:[%s3 + $0x2f0] sm:$0xff]
      %v7744 = vld [vmem:[%s3 + $0x2f8] sm:$0xff]
      %7749 = vrot.lane.b32.xlu0 %v7741, 65
      %v7750 = vpop.permute.xlu0 %7749
      %7751 = vrot.lane.b32.xlu0 %v7742, 65
      %v7752 = vpop.permute.xlu0 %7751
      %7753 = vrot.lane.b32.xlu0 %v7743, 65
      %v7754 = vpop.permute.xlu0 %7753
      %7755 = vrot.lane.b32.xlu0 %v7744, 65
      %v7756 = vpop.permute.xlu0 %7755
      %v7757 = vsel %vm570, %v7750, %v7752
      %v7758 = vsel %vm570, %v7752, %v7754
      %v7759 = vsel %vm570, %v7754, %v7756
      %v7765 = vmul.f32 %v7736, %v7750
      %v7766 = vmul.f32 %v7737, %v7757
      %v7767 = vmul.f32 %v7738, %v7758
      %v7768 = vmul.f32 %v7739, %v7759
      %v7769 = vmul.f32 %v7740, %v7756
      %7775 = vrot.lane.b32.xlu0 %v7765, 63
      %v7776 = vpop.permute.xlu0 %7775
      %7777 = vrot.lane.b32.xlu0 %v7766, 63
      %v7778 = vpop.permute.xlu0 %7777
      %7779 = vrot.lane.b32.xlu0 %v7767, 63
      %v7780 = vpop.permute.xlu0 %7779
      %7781 = vrot.lane.b32.xlu0 %v7768, 63
      %v7782 = vpop.permute.xlu0 %7781
      %7783 = vrot.lane.b32.xlu0 %v7769, 63
      %v7784 = vpop.permute.xlu0 %7783
      %v7785 = vsel %vm541, %v7776, %v7778
      %v7786 = vsel %vm541, %v7778, %v7780
      %v7787 = vsel %vm541, %v7780, %v7782
      %v7788 = vsel %vm541, %v7782, %v7784
      %7793 = vst [vmem:[#allocation2 + $0x2e0] sm:$0xff] %v7785
      %7794 = vst [vmem:[#allocation2 + $0x2e8] sm:$0xff] %v7786
      %7795 = vst [vmem:[#allocation2 + $0x2f0] sm:$0xff] %v7787
      %7796 = vst [vmem:[#allocation2 + $0x2f8] sm:$0xff] %v7788
      %v7797 = vld [vmem:[#allocation3 + $0x8] sm:$0xff]
      %v7798 = vld [vmem:[#allocation3 + $0x10] sm:$0xff]
      %v7799 = vld [vmem:[#allocation3 + $0x18] sm:$0xff]
      %v7800 = vld [vmem:[#allocation3 + $0x20] sm:$0xff]
      %v7801 = vld [vmem:[#allocation3 + $0x28] sm:$0xff]
      %v7802 = vld [vmem:[%s3 + $0x300] sm:$0xff]
      %v7803 = vld [vmem:[%s3 + $0x308] sm:$0xff]
      %v7804 = vld [vmem:[%s3 + $0x310] sm:$0xff]
      %v7805 = vld [vmem:[%s3 + $0x318] sm:$0xff]
      %7810 = vrot.lane.b32.xlu0 %v7802, 71
      %v7811 = vpop.permute.xlu0 %7810
      %7812 = vrot.lane.b32.xlu0 %v7803, 71
      %v7813 = vpop.permute.xlu0 %7812
      %7814 = vrot.lane.b32.xlu0 %v7804, 71
      %v7815 = vpop.permute.xlu0 %7814
      %7816 = vrot.lane.b32.xlu0 %v7805, 71
      %v7817 = vpop.permute.xlu0 %7816
      %v7818 = vsel %vm507, %v7811, %v7813
      %v7819 = vsel %vm507, %v7813, %v7815
      %v7820 = vsel %vm507, %v7815, %v7817
      %v7826 = vmul.f32 %v7797, %v7811
      %v7827 = vmul.f32 %v7798, %v7818
      %v7828 = vmul.f32 %v7799, %v7819
      %v7829 = vmul.f32 %v7800, %v7820
      %v7830 = vmul.f32 %v7801, %v7817
      %7836 = vrot.lane.b32.xlu0 %v7826, 57
      %v7837 = vpop.permute.xlu0 %7836
      %7838 = vrot.lane.b32.xlu0 %v7827, 57
      %v7839 = vpop.permute.xlu0 %7838
      %7840 = vrot.lane.b32.xlu0 %v7828, 57
      %v7841 = vpop.permute.xlu0 %7840
      %7842 = vrot.lane.b32.xlu0 %v7829, 57
      %v7843 = vpop.permute.xlu0 %7842
      %7844 = vrot.lane.b32.xlu0 %v7830, 57
      %v7845 = vpop.permute.xlu0 %7844
      %v7846 = vsel %vm478, %v7837, %v7839
      %v7847 = vsel %vm478, %v7839, %v7841
      %v7848 = vsel %vm478, %v7841, %v7843
      %v7849 = vsel %vm478, %v7843, %v7845
      %7854 = vst [vmem:[#allocation2 + $0x300] sm:$0xff] %v7846
      %7855 = vst [vmem:[#allocation2 + $0x308] sm:$0xff] %v7847
      %7856 = vst [vmem:[#allocation2 + $0x310] sm:$0xff] %v7848
      %7857 = vst [vmem:[#allocation2 + $0x318] sm:$0xff] %v7849
      %v7858 = vld [vmem:[#allocation3 + $0x8] sm:$0xff]
      %v7859 = vld [vmem:[#allocation3 + $0x10] sm:$0xff]
      %v7860 = vld [vmem:[#allocation3 + $0x18] sm:$0xff]
      %v7861 = vld [vmem:[#allocation3 + $0x20] sm:$0xff]
      %v7862 = vld [vmem:[#allocation3 + $0x28] sm:$0xff]
      %v7863 = vld [vmem:[%s3 + $0x320] sm:$0xff]
      %v7864 = vld [vmem:[%s3 + $0x328] sm:$0xff]
      %v7865 = vld [vmem:[%s3 + $0x330] sm:$0xff]
      %v7866 = vld [vmem:[%s3 + $0x338] sm:$0xff]
      %7871 = vrot.lane.b32.xlu0 %v7863, 72
      %v7872 = vpop.permute.xlu0 %7871
      %7873 = vrot.lane.b32.xlu0 %v7864, 72
      %v7874 = vpop.permute.xlu0 %7873
      %7875 = vrot.lane.b32.xlu0 %v7865, 72
      %v7876 = vpop.permute.xlu0 %7875
      %7877 = vrot.lane.b32.xlu0 %v7866, 72
      %v7878 = vpop.permute.xlu0 %7877
      %v7879 = vsel %vm444, %v7872, %v7874
      %v7880 = vsel %vm444, %v7874, %v7876
      %v7881 = vsel %vm444, %v7876, %v7878
      %v7887 = vmul.f32 %v7858, %v7872
      %v7888 = vmul.f32 %v7859, %v7879
      %v7889 = vmul.f32 %v7860, %v7880
      %v7890 = vmul.f32 %v7861, %v7881
      %v7891 = vmul.f32 %v7862, %v7878
      %7897 = vrot.lane.b32.xlu0 %v7887, 56
      %v7898 = vpop.permute.xlu0 %7897
      %7899 = vrot.lane.b32.xlu0 %v7888, 56
      %v7900 = vpop.permute.xlu0 %7899
      %7901 = vrot.lane.b32.xlu0 %v7889, 56
      %v7902 = vpop.permute.xlu0 %7901
      %7903 = vrot.lane.b32.xlu0 %v7890, 56
      %v7904 = vpop.permute.xlu0 %7903
      %7905 = vrot.lane.b32.xlu0 %v7891, 56
      %v7906 = vpop.permute.xlu0 %7905
      %v7907 = vsel %vm415, %v7898, %v7900
      %v7908 = vsel %vm415, %v7900, %v7902
      %v7909 = vsel %vm415, %v7902, %v7904
      %v7910 = vsel %vm415, %v7904, %v7906
      %7915 = vst [vmem:[#allocation2 + $0x320] sm:$0xff] %v7907
      %7916 = vst [vmem:[#allocation2 + $0x328] sm:$0xff] %v7908
      %7917 = vst [vmem:[#allocation2 + $0x330] sm:$0xff] %v7909
      %7918 = vst [vmem:[#allocation2 + $0x338] sm:$0xff] %v7910
      %v7919 = vld [vmem:[#allocation3 + $0x8] sm:$0xff]
      %v7920 = vld [vmem:[#allocation3 + $0x10] sm:$0xff]
      %v7921 = vld [vmem:[#allocation3 + $0x18] sm:$0xff]
      %v7922 = vld [vmem:[#allocation3 + $0x20] sm:$0xff]
      %v7923 = vld [vmem:[#allocation3 + $0x28] sm:$0xff]
      %v7924 = vld [vmem:[%s3 + $0x340] sm:$0xff]
      %v7925 = vld [vmem:[%s3 + $0x348] sm:$0xff]
      %v7926 = vld [vmem:[%s3 + $0x350] sm:$0xff]
      %v7927 = vld [vmem:[%s3 + $0x358] sm:$0xff]
      %7932 = vrot.lane.b32.xlu0 %v7924, 73
      %v7933 = vpop.permute.xlu0 %7932
      %7934 = vrot.lane.b32.xlu0 %v7925, 73
      %v7935 = vpop.permute.xlu0 %7934
      %7936 = vrot.lane.b32.xlu0 %v7926, 73
      %v7937 = vpop.permute.xlu0 %7936
      %7938 = vrot.lane.b32.xlu0 %v7927, 73
      %v7939 = vpop.permute.xlu0 %7938
      %v7940 = vsel %vm381, %v7933, %v7935
      %v7941 = vsel %vm381, %v7935, %v7937
      %v7942 = vsel %vm381, %v7937, %v7939
      %v7948 = vmul.f32 %v7919, %v7933
      %v7949 = vmul.f32 %v7920, %v7940
      %v7950 = vmul.f32 %v7921, %v7941
      %v7951 = vmul.f32 %v7922, %v7942
      %v7952 = vmul.f32 %v7923, %v7939
      %7958 = vrot.lane.b32.xlu0 %v7948, 55
      %v7959 = vpop.permute.xlu0 %7958
      %7960 = vrot.lane.b32.xlu0 %v7949, 55
      %v7961 = vpop.permute.xlu0 %7960
      %7962 = vrot.lane.b32.xlu0 %v7950, 55
      %v7963 = vpop.permute.xlu0 %7962
      %7964 = vrot.lane.b32.xlu0 %v7951, 55
      %v7965 = vpop.permute.xlu0 %7964
      %7966 = vrot.lane.b32.xlu0 %v7952, 55
      %v7967 = vpop.permute.xlu0 %7966
      %v7968 = vsel %vm352, %v7959, %v7961
      %v7969 = vsel %vm352, %v7961, %v7963
      %v7970 = vsel %vm352, %v7963, %v7965
      %v7971 = vsel %vm352, %v7965, %v7967
      %7976 = vst [vmem:[#allocation2 + $0x340] sm:$0xff] %v7968
      %7977 = vst [vmem:[#allocation2 + $0x348] sm:$0xff] %v7969
      %7978 = vst [vmem:[#allocation2 + $0x350] sm:$0xff] %v7970
      %7979 = vst [vmem:[#allocation2 + $0x358] sm:$0xff] %v7971
      %v7980 = vld [vmem:[#allocation2] sm:$0xff]
      %v7981 = vld [vmem:[#allocation2 + $0x8] sm:$0xff]
      %v7982 = vld [vmem:[#allocation2 + $0x10] sm:$0xff]
      %v7983 = vld [vmem:[#allocation2 + $0x18] sm:$0xff]
      %v7984 = vld [vmem:[#allocation2 + $0x20] sm:$0xff]
      %v7985 = vld [vmem:[#allocation2 + $0x28] sm:$0xff]
      %v7986 = vld [vmem:[#allocation2 + $0x30] sm:$0xff]
      %v7987 = vld [vmem:[#allocation2 + $0x38] sm:$0xff]
      %v7988 = vld [vmem:[#allocation2 + $0x40] sm:$0xff]
      %v7989 = vld [vmem:[#allocation2 + $0x48] sm:$0xff]
      %v7990 = vld [vmem:[#allocation2 + $0x50] sm:$0xff]
      %v7991 = vld [vmem:[#allocation2 + $0x58] sm:$0xff]
      %v7992 = vld [vmem:[#allocation2 + $0x60] sm:$0xff]
      %v7993 = vld [vmem:[#allocation2 + $0x68] sm:$0xff]
      %v7994 = vld [vmem:[#allocation2 + $0x70] sm:$0xff]
      %v7995 = vld [vmem:[#allocation2 + $0x78] sm:$0xff]
      %v7996 = vld [vmem:[#allocation2 + $0x80] sm:$0xff]
      %v7997 = vld [vmem:[#allocation2 + $0x88] sm:$0xff]
      %v7998 = vld [vmem:[#allocation2 + $0x90] sm:$0xff]
      %v7999 = vld [vmem:[#allocation2 + $0x98] sm:$0xff]
      %v8000 = vld [vmem:[#allocation2 + $0xa0] sm:$0xff]
      %v8001 = vld [vmem:[#allocation2 + $0xa8] sm:$0xff]
      %v8002 = vld [vmem:[#allocation2 + $0xb0] sm:$0xff]
      %v8003 = vld [vmem:[#allocation2 + $0xb8] sm:$0xff]
      %v8004 = vld [vmem:[#allocation2 + $0xc0] sm:$0xff]
      %v8005 = vld [vmem:[#allocation2 + $0xc8] sm:$0xff]
      %v8006 = vld [vmem:[#allocation2 + $0xd0] sm:$0xff]
      %v8007 = vld [vmem:[#allocation2 + $0xd8] sm:$0xff]
      %v8008 = vld [vmem:[#allocation2 + $0xe0] sm:$0xff]
      %v8009 = vld [vmem:[#allocation2 + $0xe8] sm:$0xff]
      %v8010 = vld [vmem:[#allocation2 + $0xf0] sm:$0xff]
      %v8011 = vld [vmem:[#allocation2 + $0xf8] sm:$0xff]
      %v8012 = vld [vmem:[#allocation2 + $0x100] sm:$0xff]
      %v8013 = vld [vmem:[#allocation2 + $0x108] sm:$0xff]
      %v8014 = vld [vmem:[#allocation2 + $0x110] sm:$0xff]
      %v8015 = vld [vmem:[#allocation2 + $0x118] sm:$0xff]
      %v8016 = vld [vmem:[#allocation2 + $0x120] sm:$0xff]
      %v8017 = vld [vmem:[#allocation2 + $0x128] sm:$0xff]
      %v8018 = vld [vmem:[#allocation2 + $0x130] sm:$0xff]
      %v8019 = vld [vmem:[#allocation2 + $0x138] sm:$0xff]
      %v8020 = vld [vmem:[#allocation2 + $0x140] sm:$0xff]
      %v8021 = vld [vmem:[#allocation2 + $0x148] sm:$0xff]
      %v8022 = vld [vmem:[#allocation2 + $0x150] sm:$0xff]
      %v8023 = vld [vmem:[#allocation2 + $0x158] sm:$0xff]
      %v8024 = vld [vmem:[#allocation2 + $0x160] sm:$0xff]
      %v8025 = vld [vmem:[#allocation2 + $0x168] sm:$0xff]
      %v8026 = vld [vmem:[#allocation2 + $0x170] sm:$0xff]
      %v8027 = vld [vmem:[#allocation2 + $0x178] sm:$0xff]
      %v8028 = vld [vmem:[#allocation2 + $0x180] sm:$0xff]
      %v8029 = vld [vmem:[#allocation2 + $0x188] sm:$0xff]
      %v8030 = vld [vmem:[#allocation2 + $0x190] sm:$0xff]
      %v8031 = vld [vmem:[#allocation2 + $0x198] sm:$0xff]
      %v8032 = vld [vmem:[#allocation2 + $0x1a0] sm:$0xff]
      %v8033 = vld [vmem:[#allocation2 + $0x1a8] sm:$0xff]
      %v8034 = vld [vmem:[#allocation2 + $0x1b0] sm:$0xff]
      %v8035 = vld [vmem:[#allocation2 + $0x1b8] sm:$0xff]
      %v8036 = vld [vmem:[#allocation2 + $0x1c0] sm:$0xff]
      %v8037 = vld [vmem:[#allocation2 + $0x1c8] sm:$0xff]
      %v8038 = vld [vmem:[#allocation2 + $0x1d0] sm:$0xff]
      %v8039 = vld [vmem:[#allocation2 + $0x1d8] sm:$0xff]
      %v8040 = vld [vmem:[#allocation2 + $0x1e0] sm:$0xff]
      %v8041 = vld [vmem:[#allocation2 + $0x1e8] sm:$0xff]
      %v8042 = vld [vmem:[#allocation2 + $0x1f0] sm:$0xff]
      %v8043 = vld [vmem:[#allocation2 + $0x1f8] sm:$0xff]
      %v8044 = vld [vmem:[#allocation2 + $0x200] sm:$0xff]
      %v8045 = vld [vmem:[#allocation2 + $0x208] sm:$0xff]
      %v8046 = vld [vmem:[#allocation2 + $0x210] sm:$0xff]
      %v8047 = vld [vmem:[#allocation2 + $0x218] sm:$0xff]
      %v8048 = vld [vmem:[#allocation2 + $0x220] sm:$0xff]
      %v8049 = vld [vmem:[#allocation2 + $0x228] sm:$0xff]
      %v8050 = vld [vmem:[#allocation2 + $0x230] sm:$0xff]
      %v8051 = vld [vmem:[#allocation2 + $0x238] sm:$0xff]
      %v8052 = vld [vmem:[#allocation2 + $0x240] sm:$0xff]
      %v8053 = vld [vmem:[#allocation2 + $0x248] sm:$0xff]
      %v8054 = vld [vmem:[#allocation2 + $0x250] sm:$0xff]
      %v8055 = vld [vmem:[#allocation2 + $0x258] sm:$0xff]
      %v8056 = vld [vmem:[#allocation2 + $0x260] sm:$0xff]
      %v8057 = vld [vmem:[#allocation2 + $0x268] sm:$0xff]
      %v8058 = vld [vmem:[#allocation2 + $0x270] sm:$0xff]
      %v8059 = vld [vmem:[#allocation2 + $0x278] sm:$0xff]
      %v8060 = vld [vmem:[#allocation2 + $0x280] sm:$0xff]
      %v8061 = vld [vmem:[#allocation2 + $0x288] sm:$0xff]
      %v8062 = vld [vmem:[#allocation2 + $0x290] sm:$0xff]
      %v8063 = vld [vmem:[#allocation2 + $0x298] sm:$0xff]
      %v8064 = vld [vmem:[#allocation2 + $0x2a0] sm:$0xff]
      %v8065 = vld [vmem:[#allocation2 + $0x2a8] sm:$0xff]
      %v8066 = vld [vmem:[#allocation2 + $0x2b0] sm:$0xff]
      %v8067 = vld [vmem:[#allocation2 + $0x2b8] sm:$0xff]
      %v8068 = vld [vmem:[#allocation2 + $0x2c0] sm:$0xff]
      %v8069 = vld [vmem:[#allocation2 + $0x2c8] sm:$0xff]
      %v8070 = vld [vmem:[#allocation2 + $0x2d0] sm:$0xff]
      %v8071 = vld [vmem:[#allocation2 + $0x2d8] sm:$0xff]
      %v8072 = vld [vmem:[#allocation2 + $0x2e0] sm:$0xff]
      %v8073 = vld [vmem:[#allocation2 + $0x2e8] sm:$0xff]
      %v8074 = vld [vmem:[#allocation2 + $0x2f0] sm:$0xff]
      %v8075 = vld [vmem:[#allocation2 + $0x2f8] sm:$0xff]
      %v8076 = vld [vmem:[#allocation2 + $0x300] sm:$0xff]
      %v8077 = vld [vmem:[#allocation2 + $0x308] sm:$0xff]
      %v8078 = vld [vmem:[#allocation2 + $0x310] sm:$0xff]
      %v8079 = vld [vmem:[#allocation2 + $0x318] sm:$0xff]
      %v8080 = vld [vmem:[#allocation2 + $0x320] sm:$0xff]
      %v8081 = vld [vmem:[#allocation2 + $0x328] sm:$0xff]
      %v8082 = vld [vmem:[#allocation2 + $0x330] sm:$0xff]
      %v8083 = vld [vmem:[#allocation2 + $0x338] sm:$0xff]
      %v8084 = vld [vmem:[#allocation2 + $0x340] sm:$0xff]
      %v8085 = vld [vmem:[#allocation2 + $0x348] sm:$0xff]
      %v8086 = vld [vmem:[#allocation2 + $0x350] sm:$0xff]
      %v8087 = vld [vmem:[#allocation2 + $0x358] sm:$0xff]
      %v8088 = vld [vmem:[#allocation2 + $0x360] sm:$0xff]
      %v8089 = vld [vmem:[#allocation2 + $0x368] sm:$0xff]
      %v8090 = vld [vmem:[#allocation2 + $0x370] sm:$0xff]
      %v8091 = vld [vmem:[#allocation2 + $0x378] sm:$0xff]
      %v8092 = vld [vmem:[#allocation2 + $0x380] sm:$0xff]
      %v8093 = vld [vmem:[#allocation2 + $0x388] sm:$0xff]
      %v8094 = vld [vmem:[#allocation2 + $0x390] sm:$0xff]
      %v8095 = vld [vmem:[#allocation2 + $0x398] sm:$0xff]
      %v8096 = vld [vmem:[#allocation2 + $0x3a0] sm:$0xff]
      %v8097 = vld [vmem:[#allocation2 + $0x3a8] sm:$0xff]
      %v8098 = vld [vmem:[#allocation2 + $0x3b0] sm:$0xff]
      %v8099 = vld [vmem:[#allocation2 + $0x3b8] sm:$0xff]
      %v8100 = vld [vmem:[#allocation2 + $0x3c0] sm:$0xff]
      %v8101 = vld [vmem:[#allocation2 + $0x3c8] sm:$0xff]
      %v8102 = vld [vmem:[#allocation2 + $0x3d0] sm:$0xff]
      %v8103 = vld [vmem:[#allocation2 + $0x3d8] sm:$0xff]
      %v8104 = vld [vmem:[#allocation2 + $0x3e0] sm:$0xff]
      %v8105 = vld [vmem:[#allocation2 + $0x3e8] sm:$0xff]
      %v8106 = vld [vmem:[#allocation2 + $0x3f0] sm:$0xff]
      %v8107 = vld [vmem:[#allocation2 + $0x3f8] sm:$0xff]
      %8108 = vmatpush.msra.mxu0 %v8040
      %8109 = vmatpush.msra.mxu0 %v8036
      %8110 = vmatpush.msra.mxu0 %v8032
      %8111 = vmatpush.msra.mxu0 %v8028
      %8112 = vmatpush.msra.mxu0 %v8024
      %8113 = vmatpush.msra.mxu0 %v8020
      %8114 = vmatpush.msra.mxu0 %v8016
      %8115 = vmatpush.msra.mxu0 %v8012
      %8116 = vmatpush.msra.mxu0 %v8008
      %8117 = vmatpush.msra.mxu0 %v8004
      %8118 = vmatpush.msra.mxu0 %v8000
      %8119 = vmatpush.msra.mxu0 %v7996
      %8120 = vmatpush.msra.mxu0 %v7992
      %8121 = vmatpush.msra.mxu0 %v7988
      %8122 = vmatpush.msra.mxu0 %v7984
      %8123 = vmatpush.msra.mxu0 %v7980
      %8124 = vmatmul.f32.gmra.mxu0 %v257
      %v8125 = vpop.f32.mrf.mxu0
      %v8126 = vadd.f32 0.0, %v8125
      %8127 = vdwg.mxu0
      %8128 = vmatpush.msra.mxu0 %v8104
      %8129 = vmatpush.msra.mxu0 %v8100
      %8130 = vmatpush.msra.mxu0 %v8096
      %8131 = vmatpush.msra.mxu0 %v8092
      %8132 = vmatpush.msra.mxu0 %v8088
      %8133 = vmatpush.msra.mxu0 %v8084
      %8134 = vmatpush.msra.mxu0 %v8080
      %8135 = vmatpush.msra.mxu0 %v8076
      %8136 = vmatpush.msra.mxu0 %v8072
      %8137 = vmatpush.msra.mxu0 %v8068
      %8138 = vmatpush.msra.mxu0 %v8064
      %8139 = vmatpush.msra.mxu0 %v8060
      %8140 = vmatpush.msra.mxu0 %v8056
      %8141 = vmatpush.msra.mxu0 %v8052
      %8142 = vmatpush.msra.mxu0 %v8048
      %8143 = vmatpush.msra.mxu0 %v8044
      %8144 = vmatmul.f32.gmra.mxu0 %v258
      %v8145 = vpop.f32.mrf.mxu0
      %v8146 = vadd.f32 %v8126, %v8145
      %8147 = vdwg.mxu0
      %8148 = vmatpush.msra.mxu0 %v8041
      %8149 = vmatpush.msra.mxu0 %v8037
      %8150 = vmatpush.msra.mxu0 %v8033
      %8151 = vmatpush.msra.mxu0 %v8029
      %8152 = vmatpush.msra.mxu0 %v8025
      %8153 = vmatpush.msra.mxu0 %v8021
      %8154 = vmatpush.msra.mxu0 %v8017
      %8155 = vmatpush.msra.mxu0 %v8013
      %8156 = vmatpush.msra.mxu0 %v8009
      %8157 = vmatpush.msra.mxu0 %v8005
      %8158 = vmatpush.msra.mxu0 %v8001
      %8159 = vmatpush.msra.mxu0 %v7997
      %8160 = vmatpush.msra.mxu0 %v7993
      %8161 = vmatpush.msra.mxu0 %v7989
      %8162 = vmatpush.msra.mxu0 %v7985
      %8163 = vmatpush.msra.mxu0 %v7981
      %8164 = vmatmul.f32.gmra.mxu0 %v257
      %v8165 = vpop.f32.mrf.mxu0
      %v8166 = vadd.f32 0.0, %v8165
      %8167 = vdwg.mxu0
      %8168 = vmatpush.msra.mxu0 %v8105
      %8169 = vmatpush.msra.mxu0 %v8101
      %8170 = vmatpush.msra.mxu0 %v8097
      %8171 = vmatpush.msra.mxu0 %v8093
      %8172 = vmatpush.msra.mxu0 %v8089
      %8173 = vmatpush.msra.mxu0 %v8085
      %8174 = vmatpush.msra.mxu0 %v8081
      %8175 = vmatpush.msra.mxu0 %v8077
      %8176 = vmatpush.msra.mxu0 %v8073
      %8177 = vmatpush.msra.mxu0 %v8069
      %8178 = vmatpush.msra.mxu0 %v8065
      %8179 = vmatpush.msra.mxu0 %v8061
      %8180 = vmatpush.msra.mxu0 %v8057
      %8181 = vmatpush.msra.mxu0 %v8053
      %8182 = vmatpush.msra.mxu0 %v8049
      %8183 = vmatpush.msra.mxu0 %v8045
      %8184 = vmatmul.f32.gmra.mxu0 %v258
      %v8185 = vpop.f32.mrf.mxu0
      %v8186 = vadd.f32 %v8166, %v8185
      %8187 = vdwg.mxu0
      %8188 = vmatpush.msra.mxu0 %v8042
      %8189 = vmatpush.msra.mxu0 %v8038
      %8190 = vmatpush.msra.mxu0 %v8034
      %8191 = vmatpush.msra.mxu0 %v8030
      %8192 = vmatpush.msra.mxu0 %v8026
      %8193 = vmatpush.msra.mxu0 %v8022
      %8194 = vmatpush.msra.mxu0 %v8018
      %8195 = vmatpush.msra.mxu0 %v8014
      %8196 = vmatpush.msra.mxu0 %v8010
      %8197 = vmatpush.msra.mxu0 %v8006
      %8198 = vmatpush.msra.mxu0 %v8002
      %8199 = vmatpush.msra.mxu0 %v7998
      %8200 = vmatpush.msra.mxu0 %v7994
      %8201 = vmatpush.msra.mxu0 %v7990
      %8202 = vmatpush.msra.mxu0 %v7986
      %8203 = vmatpush.msra.mxu0 %v7982
      %8204 = vmatmul.f32.gmra.mxu0 %v257
      %v8205 = vpop.f32.mrf.mxu0
      %v8206 = vadd.f32 0.0, %v8205
      %8207 = vdwg.mxu0
      %8208 = vmatpush.msra.mxu0 %v8106
      %8209 = vmatpush.msra.mxu0 %v8102
      %8210 = vmatpush.msra.mxu0 %v8098
      %8211 = vmatpush.msra.mxu0 %v8094
      %8212 = vmatpush.msra.mxu0 %v8090
      %8213 = vmatpush.msra.mxu0 %v8086
      %8214 = vmatpush.msra.mxu0 %v8082
      %8215 = vmatpush.msra.mxu0 %v8078
      %8216 = vmatpush.msra.mxu0 %v8074
      %8217 = vmatpush.msra.mxu0 %v8070
      %8218 = vmatpush.msra.mxu0 %v8066
      %8219 = vmatpush.msra.mxu0 %v8062
      %8220 = vmatpush.msra.mxu0 %v8058
      %8221 = vmatpush.msra.mxu0 %v8054
      %8222 = vmatpush.msra.mxu0 %v8050
      %8223 = vmatpush.msra.mxu0 %v8046
      %8224 = vmatmul.f32.gmra.mxu0 %v258
      %v8225 = vpop.f32.mrf.mxu0
      %v8226 = vadd.f32 %v8206, %v8225
      %8227 = vdwg.mxu0
      %8228 = vmatpush.msra.mxu0 %v8043
      %8229 = vmatpush.msra.mxu0 %v8039
      %8230 = vmatpush.msra.mxu0 %v8035
      %8231 = vmatpush.msra.mxu0 %v8031
      %8232 = vmatpush.msra.mxu0 %v8027
      %8233 = vmatpush.msra.mxu0 %v8023
      %8234 = vmatpush.msra.mxu0 %v8019
      %8235 = vmatpush.msra.mxu0 %v8015
      %8236 = vmatpush.msra.mxu0 %v8011
      %8237 = vmatpush.msra.mxu0 %v8007
      %8238 = vmatpush.msra.mxu0 %v8003
      %8239 = vmatpush.msra.mxu0 %v7999
      %8240 = vmatpush.msra.mxu0 %v7995
      %8241 = vmatpush.msra.mxu0 %v7991
      %8242 = vmatpush.msra.mxu0 %v7987
      %8243 = vmatpush.msra.mxu0 %v7983
      %8244 = vmatmul.f32.gmra.mxu0 %v257
      %v8245 = vpop.f32.mrf.mxu0
      %v8246 = vadd.f32 0.0, %v8245
      %8247 = vdwg.mxu0
      %8248 = vmatpush.msra.mxu0 %v8107
      %8249 = vmatpush.msra.mxu0 %v8103
      %8250 = vmatpush.msra.mxu0 %v8099
      %8251 = vmatpush.msra.mxu0 %v8095
      %8252 = vmatpush.msra.mxu0 %v8091
      %8253 = vmatpush.msra.mxu0 %v8087
      %8254 = vmatpush.msra.mxu0 %v8083
      %8255 = vmatpush.msra.mxu0 %v8079
      %8256 = vmatpush.msra.mxu0 %v8075
      %8257 = vmatpush.msra.mxu0 %v8071
      %8258 = vmatpush.msra.mxu0 %v8067
      %8259 = vmatpush.msra.mxu0 %v8063
      %8260 = vmatpush.msra.mxu0 %v8059
      %8261 = vmatpush.msra.mxu0 %v8055
      %8262 = vmatpush.msra.mxu0 %v8051
      %8263 = vmatpush.msra.mxu0 %v8047
      %8264 = vmatmul.f32.gmra.mxu0 %v258
      %v8265 = vpop.f32.mrf.mxu0
      %v8266 = vadd.f32 %v8246, %v8265
      %8267 = vdwg.mxu0
      %8268 = vmatpush.msra.mxu0 %v274
      %8269 = vmatpush.msra.mxu0 %v273
      %8270 = vmatpush.msra.mxu0 %v272
      %8271 = vmatpush.msra.mxu0 %v271
      %8272 = vmatpush.msra.mxu0 %v270
      %8273 = vmatpush.msra.mxu0 %v269
      %8274 = vmatpush.msra.mxu0 %v268
      %8275 = vmatpush.msra.mxu0 %v267
      %8276 = vmatpush.msra.mxu0 %v266
      %8277 = vmatpush.msra.mxu0 %v265
      %8278 = vmatpush.msra.mxu0 %v264
      %8279 = vmatpush.msra.mxu0 %v263
      %8280 = vmatpush.msra.mxu0 %v262
      %8281 = vmatpush.msra.mxu0 %v261
      %8282 = vmatpush.msra.mxu0 %v260
      %8283 = vmatpush.msra.mxu0 %v259
      %8284 = vmatmul.f32.gmra.mxu0 %v8146
      %v8285 = vpop.f32.mrf.mxu0
      %v8286 = vadd.f32 0.0, %v8285
      %8287 = vdwg.mxu0
      %8288 = vmatpush.msra.mxu0 %v290
      %8289 = vmatpush.msra.mxu0 %v289
      %8290 = vmatpush.msra.mxu0 %v288
      %8291 = vmatpush.msra.mxu0 %v287
      %8292 = vmatpush.msra.mxu0 %v286
      %8293 = vmatpush.msra.mxu0 %v285
      %8294 = vmatpush.msra.mxu0 %v284
      %8295 = vmatpush.msra.mxu0 %v283
      %8296 = vmatpush.msra.mxu0 %v282
      %8297 = vmatpush.msra.mxu0 %v281
      %8298 = vmatpush.msra.mxu0 %v280
      %8299 = vmatpush.msra.mxu0 %v279
      %8300 = vmatpush.msra.mxu0 %v278
      %8301 = vmatpush.msra.mxu0 %v277
      %8302 = vmatpush.msra.mxu0 %v276
      %8303 = vmatpush.msra.mxu0 %v275
      %8304 = vmatmul.f32.gmra.mxu0 %v8186
      %v8305 = vpop.f32.mrf.mxu0
      %v8306 = vadd.f32 %v8286, %v8305
      %8307 = vdwg.mxu0
      %8308 = vmatpush.msra.mxu0 %v306
      %8309 = vmatpush.msra.mxu0 %v305
      %8310 = vmatpush.msra.mxu0 %v304
      %8311 = vmatpush.msra.mxu0 %v303
      %8312 = vmatpush.msra.mxu0 %v302
      %8313 = vmatpush.msra.mxu0 %v301
      %8314 = vmatpush.msra.mxu0 %v300
      %8315 = vmatpush.msra.mxu0 %v299
      %8316 = vmatpush.msra.mxu0 %v298
      %8317 = vmatpush.msra.mxu0 %v297
      %8318 = vmatpush.msra.mxu0 %v296
      %8319 = vmatpush.msra.mxu0 %v295
      %8320 = vmatpush.msra.mxu0 %v294
      %8321 = vmatpush.msra.mxu0 %v293
      %8322 = vmatpush.msra.mxu0 %v292
      %8323 = vmatpush.msra.mxu0 %v291
      %8324 = vmatmul.f32.gmra.mxu0 %v8226
      %v8325 = vpop.f32.mrf.mxu0
      %v8326 = vadd.f32 %v8306, %v8325
      %8327 = vdwg.mxu0
      %8328 = vmatpush.msra.mxu0 %v322
      %8329 = vmatpush.msra.mxu0 %v321
      %8330 = vmatpush.msra.mxu0 %v320
      %8331 = vmatpush.msra.mxu0 %v319
      %8332 = vmatpush.msra.mxu0 %v318
      %8333 = vmatpush.msra.mxu0 %v317
      %8334 = vmatpush.msra.mxu0 %v316
      %8335 = vmatpush.msra.mxu0 %v315
      %8336 = vmatpush.msra.mxu0 %v314
      %8337 = vmatpush.msra.mxu0 %v313
      %8338 = vmatpush.msra.mxu0 %v312
      %8339 = vmatpush.msra.mxu0 %v311
      %8340 = vmatpush.msra.mxu0 %v310
      %8341 = vmatpush.msra.mxu0 %v309
      %8342 = vmatpush.msra.mxu0 %v308
      %8343 = vmatpush.msra.mxu0 %v307
      %8344 = vmatmul.f32.gmra.mxu0 %v8266
      %v8345 = vpop.f32.mrf.mxu0
      %v8346 = vadd.f32 %v8326, %v8345
      %8347 = vdwg.mxu0
      %v8348 = vmul.f32 %v8146, %v8146
      %v8349 = vmul.f32 %v8186, %v8186
      %v8350 = vmul.f32 %v8226, %v8226
      %v8351 = vmul.f32 %v8266, %v8266
      %8352 = vmatpush.msra.mxu0 %v274
      %8353 = vmatpush.msra.mxu0 %v273
      %8354 = vmatpush.msra.mxu0 %v272
      %8355 = vmatpush.msra.mxu0 %v271
      %8356 = vmatpush.msra.mxu0 %v270
      %8357 = vmatpush.msra.mxu0 %v269
      %8358 = vmatpush.msra.mxu0 %v268
      %8359 = vmatpush.msra.mxu0 %v267
      %8360 = vmatpush.msra.mxu0 %v266
      %8361 = vmatpush.msra.mxu0 %v265
      %8362 = vmatpush.msra.mxu0 %v264
      %8363 = vmatpush.msra.mxu0 %v263
      %8364 = vmatpush.msra.mxu0 %v262
      %8365 = vmatpush.msra.mxu0 %v261
      %8366 = vmatpush.msra.mxu0 %v260
      %8367 = vmatpush.msra.mxu0 %v259
      %8368 = vmatmul.f32.gmra.mxu0 %v8348
      %v8369 = vpop.f32.mrf.mxu0
      %v8370 = vadd.f32 0.0, %v8369
      %8371 = vdwg.mxu0
      %8372 = vmatpush.msra.mxu0 %v290
      %8373 = vmatpush.msra.mxu0 %v289
      %8374 = vmatpush.msra.mxu0 %v288
      %8375 = vmatpush.msra.mxu0 %v287
      %8376 = vmatpush.msra.mxu0 %v286
      %8377 = vmatpush.msra.mxu0 %v285
      %8378 = vmatpush.msra.mxu0 %v284
      %8379 = vmatpush.msra.mxu0 %v283
      %8380 = vmatpush.msra.mxu0 %v282
      %8381 = vmatpush.msra.mxu0 %v281
      %8382 = vmatpush.msra.mxu0 %v280
      %8383 = vmatpush.msra.mxu0 %v279
      %8384 = vmatpush.msra.mxu0 %v278
      %8385 = vmatpush.msra.mxu0 %v277
      %8386 = vmatpush.msra.mxu0 %v276
      %8387 = vmatpush.msra.mxu0 %v275
      %8388 = vmatmul.f32.gmra.mxu0 %v8349
      %v8389 = vpop.f32.mrf.mxu0
      %v8390 = vadd.f32 %v8370, %v8389
      %8391 = vdwg.mxu0
      %8392 = vmatpush.msra.mxu0 %v306
      %8393 = vmatpush.msra.mxu0 %v305
      %8394 = vmatpush.msra.mxu0 %v304
      %8395 = vmatpush.msra.mxu0 %v303
      %8396 = vmatpush.msra.mxu0 %v302
      %8397 = vmatpush.msra.mxu0 %v301
      %8398 = vmatpush.msra.mxu0 %v300
      %8399 = vmatpush.msra.mxu0 %v299
      %8400 = vmatpush.msra.mxu0 %v298
      %8401 = vmatpush.msra.mxu0 %v297
      %8402 = vmatpush.msra.mxu0 %v296
      %8403 = vmatpush.msra.mxu0 %v295
      %8404 = vmatpush.msra.mxu0 %v294
      %8405 = vmatpush.msra.mxu0 %v293
      %8406 = vmatpush.msra.mxu0 %v292
      %8407 = vmatpush.msra.mxu0 %v291
      %8408 = vmatmul.f32.gmra.mxu0 %v8350
      %v8409 = vpop.f32.mrf.mxu0
      %v8410 = vadd.f32 %v8390, %v8409
      %8411 = vdwg.mxu0
      %8412 = vmatpush.msra.mxu0 %v322
      %8413 = vmatpush.msra.mxu0 %v321
      %8414 = vmatpush.msra.mxu0 %v320
      %8415 = vmatpush.msra.mxu0 %v319
      %8416 = vmatpush.msra.mxu0 %v318
      %8417 = vmatpush.msra.mxu0 %v317
      %8418 = vmatpush.msra.mxu0 %v316
      %8419 = vmatpush.msra.mxu0 %v315
      %8420 = vmatpush.msra.mxu0 %v314
      %8421 = vmatpush.msra.mxu0 %v313
      %8422 = vmatpush.msra.mxu0 %v312
      %8423 = vmatpush.msra.mxu0 %v311
      %8424 = vmatpush.msra.mxu0 %v310
      %8425 = vmatpush.msra.mxu0 %v309
      %8426 = vmatpush.msra.mxu0 %v308
      %8427 = vmatpush.msra.mxu0 %v307
      %8428 = vmatmul.f32.gmra.mxu0 %v8351
      %v8429 = vpop.f32.mrf.mxu0
      %v8430 = vadd.f32 %v8410, %v8429
      %8431 = vdwg.mxu0
      %v8432 = vmul.f32 %v8346, 0.001953125
      %v8433 = vmul.f32 %v8430, 0.001953125
      %v8434 = vmul.f32 %v8432, %v8432
      %v8435 = vsub.f32 %v8433, %v8434
      %8437 = vset.pattern.permute.xlu0 0
      %8438 = vperm.xlu0 %8437, %v8432
      %v8439 = vpop.permute.xlu0 %8438
      %v8441 = vsub.f32 %v8146, %v8439
      %v8442 = vsub.f32 %v8186, %v8439
      %v8443 = vsub.f32 %v8226, %v8439
      %v8444 = vsub.f32 %v8266, %v8439
      %v8445 = vadd.f32 %v8435, 1e-05
      %v8446 = vrsqrt.pop %v8445
      %v8447 = vmul.f32 %v8446, %v8445
      %v8448 = vmul.f32 %v8447, %v8446
      %v8449 = vmul.f32 0.5, %v8448
      %v8450 = vsub.f32 1.5, %v8449
      %v8451 = vmul.f32 %v8446, %v8450
      %vm8452 = vweird.f32 %v8445
      %vm8453 = vweird.f32 %v8446
      %vm8454 = vmor %vm8452, %vm8453
      %v8455 = vsel %vm8454, %v8446, %v8451
      %8457 = vset.pattern.permute.xlu0 0
      %8458 = vperm.xlu0 %8457, %v8455
      %v8459 = vpop.permute.xlu0 %8458
      %v8461 = vmul.f32 %v8441, %v8459
      %v8462 = vmul.f32 %v8442, %v8459
      %v8463 = vmul.f32 %v8443, %v8459
      %v8464 = vmul.f32 %v8444, %v8459
      %v8465 = vadd.f32 %v4407, %v8461
      %v8466 = vadd.f32 %v4408, %v8462
      %v8467 = vadd.f32 %v4409, %v8463
      %v8468 = vadd.f32 %v4410, %v8464
      %s8469 = scalar_lea.vmem %s231, 32
      %8470 = vst [vmem:[%s8469] sm:$0xff] %v8465
      %8471 = vst [vmem:[%s8469 + $0x8] sm:$0xff] %v8466
      %8472 = vst [vmem:[%s8469 + $0x10] sm:$0xff] %v8467
      %8473 = vst [vmem:[%s8469 + $0x18] sm:$0xff] %v8468
      %s8474 = smul.u32 2, %s16
      %p8475 = scmp.lt.s32.totalorder %s8474, 3
      %s8476 = scalar_select %p8475, %s8474, 3
      %s8477 = smul.addr %s8476, 4
      %s8478 = smul.addr %s8477, 8
      %s8479 = scalar_lea.vmem %s5, %s8478
      // Predicated region
      $region41: #{resnet_block_forward.1} parent=39 // pred_check
        %p8480 = pneg %p144
      $region42: #{resnet_block_forward.1} parent=39 // pred_check_branch
        %8482 = sbr.rel (%p8480) target = $region44
      $region43: #{resnet_block_forward.1} parent=39 // pred_region
        %s8483 = smul.u32 2, %s16
      $region44: #{resnet_block_forward.1} parent=39 // pred_fallthru
        _
    $region40: #{resnet_block_forward.1} parent=5 // pred_fallthru
      _
    %p8484 = scmp.le.s32.totalorder 2, %s11
    // Predicated region
    $region45: #{resnet_block_forward.1} parent=5 // pred_check
      %p8485 = pneg %p8484
    $region46: #{resnet_block_forward.1} parent=5 // pred_check_branch
      %8487 = sbr.rel (%p8485) target = $region48
    $region47: #{resnet_block_forward.1} parent=5 // pred_region
      %s8488 = ssub.s32 %s11, 2
      // Predicated region
      $region49: #{resnet_block_forward.1} parent=47 // pred_check
        %p8489 = pneg %p150
      $region50: #{resnet_block_forward.1} parent=47 // pred_check_branch
        %8491 = sbr.rel (%p8489) target = $region52
      $region51: #{resnet_block_forward.1} parent=47 // pred_region
        %s8492 = smul.u32 2, %s17
        %p8493 = scmp.lt.s32.totalorder %s8492, 3
        %s8494 = scalar_select %p8493, %s8492, 3
        %s8495 = smul.addr %s8494, 4
        %s8496 = smul.addr %s8495, 8
        %s8497 = scalar_lea.vmem %s5, %s8496
      $region52: #{resnet_block_forward.1} parent=47 // pred_fallthru
        _
    $region48: #{resnet_block_forward.1} parent=5 // pred_fallthru
      _
  $region6: #{resnet_block_forward.1} parent=0 // loop_footer
    %s15 = sadd.s32 1, %s11
  $region7: #{resnet_block_forward.1} parent=0 // loop_footer_branch
    %10 = sbr.rel target = $region3
  $region8: #{resnet_block_forward.1} parent=0 // loop_exit
    _

</llo_original>
